<compile_context>
chip_gen: v7x
topology: tpu7x:2x2x1
jax: 0.10.0
libtpu: 0.0.40
codegen_flags: <defaults>
</compile_context>

<pallas_src>
import numpy as np
import jax
import jax.numpy as jnp
from jax.experimental import pallas as pl
from jax.experimental.pallas import tpu as pltpu

# Exact f32 matmuls in the wrapper and the pure-JAX reference too, so the
# kernel/reference comparison is not polluted by silent bf16 demotion.
jax.config.update("jax_default_matmul_precision", "highest")

HIGHEST = jax.lax.Precision.HIGHEST


# ----------------------------- Pallas kernel ------------------------------ #
def bilstm_attn_kernel(gin_ref,      # (S*B, 8H) fused precomputed gate inputs (x@Wih + b)
                       whh_ref,      # (2H, 8H)  block-diagonal recurrent weights
                       rhs_ref,      # (2H+S, 128) fused epilogue RHS [wout_f; wout_b; attn_sel]
                       bout_ref,     # (1, 128)  zero-padded output bias
                       out_ref):     # (B, 128)  packed [logits | attn | 0...]
    SB = gin_ref.shape[0]
    H2 = whh_ref.shape[0]            # 2H (forward|backward concat)
    H = H2 // 2
    B = out_ref.shape[0]
    S = SB // B

    whh = whh_ref[...]               # load once, reused S times
    gin = gin_ref[...]               # (S*B, 8H): a handful of vregs, loaded once

    h = jnp.zeros((B, H2), jnp.float32)          # [h_f | h_b]
    c = jnp.zeros((B, H2), jnp.float32)          # [c_f | c_b]
    hs = []                                      # register staging of per-step h

    # Fused, fully unrolled recurrence: step s advances the forward chain at
    # time s AND the backward chain at time S-1-s with ONE block-diagonal
    # (B,2H)x(2H,8H) MXU matmul, one sigmoid push and one tanh push.
    # Fused gate layout (lanes): [ i(2H) | f(2H) | o(2H) | g(2H) ].
    for s in range(S):
        gates = gin[s * B:(s + 1) * B, :] + jnp.dot(
            h, whh, preferred_element_type=jnp.float32, precision=HIGHEST)
        sig = jax.nn.sigmoid(gates[:, :3 * H2])  # i, f, o (both directions) in one push
        g_t = jnp.tanh(gates[:, 3 * H2:])        # g (both directions) in one push
        i_g = sig[:, :H2]
        f_g = sig[:, H2:2 * H2]
        o_g = sig[:, 2 * H2:]
        c = f_g * c + i_g * g_t
        h = o_g * jnp.tanh(c)
        hs.append(h)                             # stays in vregs; no VMEM round trip

    # Final hidden state: [h_f(t=S-1) | h_b(t=0)] — exactly the attention query.
    h_fin = h

    # Time-align the backward half in registers: step t of the fused loop holds
    # h_b at time S-1-t, so aligned[t] = [h_f(t) | h_b(t)].
    aligned = [jnp.concatenate([hs[t][:, :H], hs[S - 1 - t][:, H:]], axis=-1)
               for t in range(S)]                # each (B, 2H)

    # Attention scores: lstm_output . final_hidden (lane reduce per step).
    scores = jnp.concatenate(
        [jnp.sum(a * h_fin, axis=-1, keepdims=True) for a in aligned], axis=-1)  # (B, S)

    # Exact, stabilized softmax (user-visible attention weights must sum to 1).
    scores = scores - jnp.max(scores, axis=-1, keepdims=True)
    p = jnp.exp(scores)
    attn = p / jnp.sum(p, axis=-1, keepdims=True)                   # (B, S)

    # Context = attention-weighted sum over time (tiny VPU accumulation,
    # off the serial critical path).
    ctx = aligned[0] * attn[:, 0:1]
    for t in range(1, S):
        ctx = ctx + aligned[t] * attn[:, t:t + 1]                   # (B, 2H) = [ctx_f | ctx_b]

    # TODO(synk): nn.Dropout(p=0.9) is treated as eval-mode identity
    # (deterministic inference); no RNG dropout mask is applied here.

    # Fused lane-dense epilogue: ONE (B, 2H+S)x(2H+S, 128) matmul puts the
    # logits in columns [0, C) and copies attn into columns [C, C+S) via 0/1
    # selector rows, then a single unmasked (B, 128) store.
    lhs = jnp.concatenate([ctx, attn], axis=-1)                     # (B, 2H+S)
    out_ref[...] = jnp.dot(lhs, rhs_ref[...],
                           preferred_element_type=jnp.float32,
                           precision=HIGHEST) + bout_ref[...]


# ------------------------------- wrapper ----------------------------------- #
def bilstm_attention_forward(X, params):
    """X: (batch, seq) int32 token ids. Returns (logits, attention)."""
    emb_table = params["embedding"]
    B, S = X.shape
    E = emb_table.shape[1]
    H = params["whh_f"].shape[0]
    C = params["wout_f"].shape[1]
    OUT_W = 128                                   # lane-dense packed output width
    assert C + S <= OUT_W

    def ifog(w):  # reorder gate blocks from PyTorch [i, f, g, o] to [i, f, o, g]
        i, f, g, o = jnp.split(w, 4, axis=-1)
        return jnp.concatenate([i, f, o, g], axis=-1)

    emb = jnp.take(emb_table, X, axis=0).astype(jnp.float32)        # (B, S, E)

    # --- input projection hoisted off the serial critical path -------------- #
    # one (B*S, E) x (E, 8H) matmul with the per-direction biases folded in
    w_in = jnp.concatenate([ifog(params["wih_f"]), ifog(params["wih_b"])], axis=1)  # (E, 8H)
    b_in = jnp.concatenate([ifog(params["b_f"]), ifog(params["b_b"])], axis=1)      # (1, 8H)
    gin = (emb.reshape(B * S, E) @ w_in + b_in).reshape(B, S, 8 * H)
    gin = jnp.transpose(gin, (1, 0, 2))                              # (S, B, 8H) time-major

    # Fuse forward time s with backward time S-1-s and interleave per gate so
    # the kernel's fused gate layout is [i_f i_b | f_f f_b | o_f o_b | g_f g_b],
    # flattened to a lane-dense (S*B, 8H) buffer.
    gf = gin[..., :4 * H].reshape(S, B, 4, H)
    gb = gin[..., 4 * H:][::-1].reshape(S, B, 4, H)                  # backward, time-reversed
    gin_fused = jnp.stack([gf, gb], axis=3).reshape(S * B, 8 * H)

    # Block-diagonal recurrent weights: [h_f | h_b] @ whh_bd -> all 8H gates in
    # one MXU pass, with the same fused gate column layout.
    wf = ifog(params["whh_f"]).reshape(H, 4, H)
    wb = ifog(params["whh_b"]).reshape(H, 4, H)
    zero = jnp.zeros_like(wf)
    whh_bd = jnp.concatenate(
        [jnp.stack([wf, zero], axis=2).reshape(H, 8 * H),            # h_f rows -> fwd columns
         jnp.stack([zero, wb], axis=2).reshape(H, 8 * H)], axis=0)   # h_b rows -> bwd columns

    # Fused lane-dense epilogue RHS: logits from [ctx_f|ctx_b]@[wout_f;wout_b],
    # attention copied into columns [C, C+S) by an exact 0/1 selector block.
    pad = jnp.zeros((2 * H, OUT_W - C), jnp.float32)
    wout = jnp.concatenate(
        [jnp.concatenate([params["wout_f"], params["wout_b"]], axis=0), pad], axis=1)  # (2H, OUT_W)
    attn_sel = jnp.zeros((S, OUT_W), jnp.float32)
    attn_sel = attn_sel.at[jnp.arange(S), C + jnp.arange(S)].set(1.0)
    rhs_out = jnp.concatenate([wout, attn_sel], axis=0)              # (2H+S, OUT_W)
    bout_pad = jnp.concatenate(
        [params["bout"], jnp.zeros((1, OUT_W - C), jnp.float32)], axis=1)

    vmem = lambda: pl.BlockSpec(memory_space=pltpu.MemorySpace.VMEM)
    slab = pl.pallas_call(
        bilstm_attn_kernel,
        out_shape=jax.ShapeDtypeStruct((B, OUT_W), jnp.float32),
        in_specs=[vmem() for _ in range(4)],
        out_specs=vmem(),
    )(gin_fused, whh_bd, rhs_out, bout_pad)

    logits = slab[:, :C]
    attn = slab[:, C:C + S]
    return logits, attn


# --------------------------- pure-JAX reference ----------------------------- #
def reference_forward(X, p):
    emb = p["embedding"][X]                      # (B, S, E)
    x_t = jnp.transpose(emb, (1, 0, 2))          # (S, B, E)
    S, B, E = x_t.shape
    H = p["whh_f"].shape[0]

    def run(x_seq, wih, whh, b):
        h = jnp.zeros((B, H), jnp.float32)
        c = jnp.zeros((B, H), jnp.float32)
        outs = []
        for t in range(S):
            g = x_seq[t] @ wih + h @ whh + b
            i = jax.nn.sigmoid(g[:, :H])
            f = jax.nn.sigmoid(g[:, H:2 * H])
            gg = jnp.tanh(g[:, 2 * H:3 * H])
            o = jax.nn.sigmoid(g[:, 3 * H:])
            c = f * c + i * gg
            h = o * jnp.tanh(c)
            outs.append(h)
        return jnp.stack(outs), h

    out_f, hf = run(x_t, p["wih_f"], p["whh_f"], p["b_f"])
    out_b_rev, hb = run(x_t[::-1], p["wih_b"], p["whh_b"], p["b_b"])
    out_b = out_b_rev[::-1]
    scores = (jnp.einsum("sbh,bh->bs", out_f, hf)
              + jnp.einsum("sbh,bh->bs", out_b, hb))
    w = jax.nn.softmax(scores, axis=-1)
    ctx_f = jnp.einsum("sbh,bs->bh", out_f, w)
    ctx_b = jnp.einsum("sbh,bs->bh", out_b, w)
    logits = ctx_f @ p["wout_f"] + ctx_b @ p["wout_b"] + p["bout"]
    return logits, w


# ---------------------------------- main ------------------------------------ #
if __name__ == "__main__":
    vocab_size, embedding_dim, n_hidden, num_classes = 50, 16, 32, 3
    batch, seq_len = 2, 8
    E, H, C = embedding_dim, n_hidden, num_classes

    key = jax.random.PRNGKey(0)
    ks = jax.random.split(key, 16)
    bound = 1.0 / np.sqrt(H)

    def u(k, shape, b=bound):
        return jax.random.uniform(k, shape, jnp.float32, minval=-b, maxval=b)

    params = {
        "embedding": jax.random.normal(ks[0], (vocab_size, E), jnp.float32),
        # forward direction (stored pre-transposed: x @ W), PyTorch gate order i,f,g,o
        "wih_f": u(ks[1], (E, 4 * H)),
        "whh_f": u(ks[2], (H, 4 * H)),
        "b_f": u(ks[3], (1, 4 * H)) + u(ks[4], (1, 4 * H)),   # b_ih + b_hh
        # reverse direction
        "wih_b": u(ks[5], (E, 4 * H)),
        "whh_b": u(ks[6], (H, 4 * H)),
        "b_b": u(ks[7], (1, 4 * H)) + u(ks[8], (1, 4 * H)),
        # output linear, weight.T split into forward/backward halves
        "wout_f": u(ks[9], (H, C), 1.0 / np.sqrt(2 * H)),
        "wout_b": u(ks[10], (H, C), 1.0 / np.sqrt(2 * H)),
        "bout": u(ks[11], (1, C), 1.0 / np.sqrt(2 * H)),
    }

    X = jax.random.randint(ks[12], (batch, seq_len), 0, vocab_size, jnp.int32)

    logits, attn = bilstm_attention_forward(X, params)
    jax.block_until_ready((logits, attn))

    ref_logits, ref_attn = reference_forward(X, params)
    # exact softmax divide + HIGHEST-precision f32 matmuls -> only Mosaic-vs-XLA
    # transcendental differences remain, so the tolerance is much tighter now
    np.testing.assert_allclose(np.asarray(logits), np.asarray(ref_logits),
                               rtol=1e-4, atol=5e-5)
    np.testing.assert_allclose(np.asarray(attn), np.asarray(ref_attn),
                               rtol=1e-4, atol=5e-5)

    print("KERNEL_OK")
</pallas_src>

<mosaic_0001>
module attributes {stable_mosaic.version = 11 : i64} {
  func.func @bilstm_attn_kernel(%arg0: memref<16x256xf32, #tpu.memory_space<vmem>>, %arg1: memref<64x256xf32, #tpu.memory_space<vmem>>, %arg2: memref<72x128xf32, #tpu.memory_space<vmem>>, %arg3: memref<1x128xf32, #tpu.memory_space<vmem>>, %arg4: memref<2x128xf32, #tpu.memory_space<vmem>>) attributes {dimension_semantics = [], scalar_prefetch = 0 : i64, scratch_operands = 0 : i64, tpu.core_type = #tpu.core_type<tc>} {
    %c0 = arith.constant 0 : index
    %c0_0 = arith.constant 0 : index
    %0 = vector.load %arg1[%c0, %c0_0] : memref<64x256xf32, #tpu.memory_space<vmem>>, vector<64x256xf32>
    %c0_1 = arith.constant 0 : index
    %c0_2 = arith.constant 0 : index
    %1 = vector.load %arg0[%c0_1, %c0_2] : memref<16x256xf32, #tpu.memory_space<vmem>>, vector<16x256xf32>
    %cst = arith.constant 0.000000e+00 : f32
    %2 = vector.broadcast %cst : f32 to vector<2x64xf32>
    %cst_3 = arith.constant 0.000000e+00 : f32
    %3 = vector.broadcast %cst_3 : f32 to vector<2x64xf32>
    %4 = vector.extract_strided_slice %1 {offsets = [0, 0], sizes = [2, 256], strides = [1, 1]} : vector<16x256xf32> to vector<2x256xf32>
    %cst_4 = arith.constant dense<0.000000e+00> : vector<2x256xf32>
    %5 = tpu.matmul %2, %0, %cst_4 {dimension_numbers = #tpu.dot_dimension_numbers<[1], [0], [0], [1], [0, 0, 1, 1], [], []>, precision = #tpu.contract_precision<fp32>} : vector<2x64xf32>, vector<64x256xf32>, vector<2x256xf32> -> vector<2x256xf32>
    %6 = arith.addf %4, %5 : vector<2x256xf32>
    %7 = vector.extract_strided_slice %6 {offsets = [0, 0], sizes = [2, 192], strides = [1, 1]} : vector<2x256xf32> to vector<2x192xf32>
    %8 = arith.negf %7 : vector<2x192xf32>
    %9 = math.exp %8 : vector<2x192xf32>
    %cst_5 = arith.constant 1.000000e+00 : f32
    %10 = vector.broadcast %cst_5 : f32 to vector<2x192xf32>
    %11 = arith.addf %10, %9 : vector<2x192xf32>
    %12 = arith.divf %10, %11 : vector<2x192xf32>
    %13 = vector.extract_strided_slice %6 {offsets = [0, 192], sizes = [2, 64], strides = [1, 1]} : vector<2x256xf32> to vector<2x64xf32>
    %14 = math.tanh %13 : vector<2x64xf32>
    %15 = vector.extract_strided_slice %12 {offsets = [0, 0], sizes = [2, 64], strides = [1, 1]} : vector<2x192xf32> to vector<2x64xf32>
    %16 = vector.extract_strided_slice %12 {offsets = [0, 64], sizes = [2, 64], strides = [1, 1]} : vector<2x192xf32> to vector<2x64xf32>
    %17 = vector.extract_strided_slice %12 {offsets = [0, 128], sizes = [2, 64], strides = [1, 1]} : vector<2x192xf32> to vector<2x64xf32>
    %18 = arith.mulf %16, %3 : vector<2x64xf32>
    %19 = arith.mulf %15, %14 : vector<2x64xf32>
    %20 = arith.addf %18, %19 : vector<2x64xf32>
    %21 = math.tanh %20 : vector<2x64xf32>
    %22 = arith.mulf %17, %21 : vector<2x64xf32>
    %23 = vector.extract_strided_slice %1 {offsets = [2, 0], sizes = [2, 256], strides = [1, 1]} : vector<16x256xf32> to vector<2x256xf32>
    %cst_6 = arith.constant dense<0.000000e+00> : vector<2x256xf32>
    %24 = tpu.matmul %22, %0, %cst_6 {dimension_numbers = #tpu.dot_dimension_numbers<[1], [0], [0], [1], [0, 0, 1, 1], [], []>, precision = #tpu.contract_precision<fp32>} : vector<2x64xf32>, vector<64x256xf32>, vector<2x256xf32> -> vector<2x256xf32>
    %25 = arith.addf %23, %24 : vector<2x256xf32>
    %26 = vector.extract_strided_slice %25 {offsets = [0, 0], sizes = [2, 192], strides = [1, 1]} : vector<2x256xf32> to vector<2x192xf32>
    %27 = arith.negf %26 : vector<2x192xf32>
    %28 = math.exp %27 : vector<2x192xf32>
    %cst_7 = arith.constant 1.000000e+00 : f32
    %29 = vector.broadcast %cst_7 : f32 to vector<2x192xf32>
    %30 = arith.addf %29, %28 : vector<2x192xf32>
    %31 = arith.divf %29, %30 : vector<2x192xf32>
    %32 = vector.extract_strided_slice %25 {offsets = [0, 192], sizes = [2, 64], strides = [1, 1]} : vector<2x256xf32> to vector<2x64xf32>
    %33 = math.tanh %32 : vector<2x64xf32>
    %34 = vector.extract_strided_slice %31 {offsets = [0, 0], sizes = [2, 64], strides = [1, 1]} : vector<2x192xf32> to vector<2x64xf32>
    %35 = vector.extract_strided_slice %31 {offsets = [0, 64], sizes = [2, 64], strides = [1, 1]} : vector<2x192xf32> to vector<2x64xf32>
    %36 = vector.extract_strided_slice %31 {offsets = [0, 128], sizes = [2, 64], strides = [1, 1]} : vector<2x192xf32> to vector<2x64xf32>
    %37 = arith.mulf %35, %20 : vector<2x64xf32>
    %38 = arith.mulf %34, %33 : vector<2x64xf32>
    %39 = arith.addf %37, %38 : vector<2x64xf32>
    %40 = math.tanh %39 : vector<2x64xf32>
    %41 = arith.mulf %36, %40 : vector<2x64xf32>
    %42 = vector.extract_strided_slice %1 {offsets = [4, 0], sizes = [2, 256], strides = [1, 1]} : vector<16x256xf32> to vector<2x256xf32>
    %cst_8 = arith.constant dense<0.000000e+00> : vector<2x256xf32>
    %43 = tpu.matmul %41, %0, %cst_8 {dimension_numbers = #tpu.dot_dimension_numbers<[1], [0], [0], [1], [0, 0, 1, 1], [], []>, precision = #tpu.contract_precision<fp32>} : vector<2x64xf32>, vector<64x256xf32>, vector<2x256xf32> -> vector<2x256xf32>
    %44 = arith.addf %42, %43 : vector<2x256xf32>
    %45 = vector.extract_strided_slice %44 {offsets = [0, 0], sizes = [2, 192], strides = [1, 1]} : vector<2x256xf32> to vector<2x192xf32>
    %46 = arith.negf %45 : vector<2x192xf32>
    %47 = math.exp %46 : vector<2x192xf32>
    %cst_9 = arith.constant 1.000000e+00 : f32
    %48 = vector.broadcast %cst_9 : f32 to vector<2x192xf32>
    %49 = arith.addf %48, %47 : vector<2x192xf32>
    %50 = arith.divf %48, %49 : vector<2x192xf32>
    %51 = vector.extract_strided_slice %44 {offsets = [0, 192], sizes = [2, 64], strides = [1, 1]} : vector<2x256xf32> to vector<2x64xf32>
    %52 = math.tanh %51 : vector<2x64xf32>
    %53 = vector.extract_strided_slice %50 {offsets = [0, 0], sizes = [2, 64], strides = [1, 1]} : vector<2x192xf32> to vector<2x64xf32>
    %54 = vector.extract_strided_slice %50 {offsets = [0, 64], sizes = [2, 64], strides = [1, 1]} : vector<2x192xf32> to vector<2x64xf32>
    %55 = vector.extract_strided_slice %50 {offsets = [0, 128], sizes = [2, 64], strides = [1, 1]} : vector<2x192xf32> to vector<2x64xf32>
    %56 = arith.mulf %54, %39 : vector<2x64xf32>
    %57 = arith.mulf %53, %52 : vector<2x64xf32>
    %58 = arith.addf %56, %57 : vector<2x64xf32>
    %59 = math.tanh %58 : vector<2x64xf32>
    %60 = arith.mulf %55, %59 : vector<2x64xf32>
    %61 = vector.extract_strided_slice %1 {offsets = [6, 0], sizes = [2, 256], strides = [1, 1]} : vector<16x256xf32> to vector<2x256xf32>
    %cst_10 = arith.constant dense<0.000000e+00> : vector<2x256xf32>
    %62 = tpu.matmul %60, %0, %cst_10 {dimension_numbers = #tpu.dot_dimension_numbers<[1], [0], [0], [1], [0, 0, 1, 1], [], []>, precision = #tpu.contract_precision<fp32>} : vector<2x64xf32>, vector<64x256xf32>, vector<2x256xf32> -> vector<2x256xf32>
    %63 = arith.addf %61, %62 : vector<2x256xf32>
    %64 = vector.extract_strided_slice %63 {offsets = [0, 0], sizes = [2, 192], strides = [1, 1]} : vector<2x256xf32> to vector<2x192xf32>
    %65 = arith.negf %64 : vector<2x192xf32>
    %66 = math.exp %65 : vector<2x192xf32>
    %cst_11 = arith.constant 1.000000e+00 : f32
    %67 = vector.broadcast %cst_11 : f32 to vector<2x192xf32>
    %68 = arith.addf %67, %66 : vector<2x192xf32>
    %69 = arith.divf %67, %68 : vector<2x192xf32>
    %70 = vector.extract_strided_slice %63 {offsets = [0, 192], sizes = [2, 64], strides = [1, 1]} : vector<2x256xf32> to vector<2x64xf32>
    %71 = math.tanh %70 : vector<2x64xf32>
    %72 = vector.extract_strided_slice %69 {offsets = [0, 0], sizes = [2, 64], strides = [1, 1]} : vector<2x192xf32> to vector<2x64xf32>
    %73 = vector.extract_strided_slice %69 {offsets = [0, 64], sizes = [2, 64], strides = [1, 1]} : vector<2x192xf32> to vector<2x64xf32>
    %74 = vector.extract_strided_slice %69 {offsets = [0, 128], sizes = [2, 64], strides = [1, 1]} : vector<2x192xf32> to vector<2x64xf32>
    %75 = arith.mulf %73, %58 : vector<2x64xf32>
    %76 = arith.mulf %72, %71 : vector<2x64xf32>
    %77 = arith.addf %75, %76 : vector<2x64xf32>
    %78 = math.tanh %77 : vector<2x64xf32>
    %79 = arith.mulf %74, %78 : vector<2x64xf32>
    %80 = vector.extract_strided_slice %1 {offsets = [8, 0], sizes = [2, 256], strides = [1, 1]} : vector<16x256xf32> to vector<2x256xf32>
    %cst_12 = arith.constant dense<0.000000e+00> : vector<2x256xf32>
    %81 = tpu.matmul %79, %0, %cst_12 {dimension_numbers = #tpu.dot_dimension_numbers<[1], [0], [0], [1], [0, 0, 1, 1], [], []>, precision = #tpu.contract_precision<fp32>} : vector<2x64xf32>, vector<64x256xf32>, vector<2x256xf32> -> vector<2x256xf32>
    %82 = arith.addf %80, %81 : vector<2x256xf32>
    %83 = vector.extract_strided_slice %82 {offsets = [0, 0], sizes = [2, 192], strides = [1, 1]} : vector<2x256xf32> to vector<2x192xf32>
    %84 = arith.negf %83 : vector<2x192xf32>
    %85 = math.exp %84 : vector<2x192xf32>
    %cst_13 = arith.constant 1.000000e+00 : f32
    %86 = vector.broadcast %cst_13 : f32 to vector<2x192xf32>
    %87 = arith.addf %86, %85 : vector<2x192xf32>
    %88 = arith.divf %86, %87 : vector<2x192xf32>
    %89 = vector.extract_strided_slice %82 {offsets = [0, 192], sizes = [2, 64], strides = [1, 1]} : vector<2x256xf32> to vector<2x64xf32>
    %90 = math.tanh %89 : vector<2x64xf32>
    %91 = vector.extract_strided_slice %88 {offsets = [0, 0], sizes = [2, 64], strides = [1, 1]} : vector<2x192xf32> to vector<2x64xf32>
    %92 = vector.extract_strided_slice %88 {offsets = [0, 64], sizes = [2, 64], strides = [1, 1]} : vector<2x192xf32> to vector<2x64xf32>
    %93 = vector.extract_strided_slice %88 {offsets = [0, 128], sizes = [2, 64], strides = [1, 1]} : vector<2x192xf32> to vector<2x64xf32>
    %94 = arith.mulf %92, %77 : vector<2x64xf32>
    %95 = arith.mulf %91, %90 : vector<2x64xf32>
    %96 = arith.addf %94, %95 : vector<2x64xf32>
    %97 = math.tanh %96 : vector<2x64xf32>
    %98 = arith.mulf %93, %97 : vector<2x64xf32>
    %99 = vector.extract_strided_slice %1 {offsets = [10, 0], sizes = [2, 256], strides = [1, 1]} : vector<16x256xf32> to vector<2x256xf32>
    %cst_14 = arith.constant dense<0.000000e+00> : vector<2x256xf32>
    %100 = tpu.matmul %98, %0, %cst_14 {dimension_numbers = #tpu.dot_dimension_numbers<[1], [0], [0], [1], [0, 0, 1, 1], [], []>, precision = #tpu.contract_precision<fp32>} : vector<2x64xf32>, vector<64x256xf32>, vector<2x256xf32> -> vector<2x256xf32>
    %101 = arith.addf %99, %100 : vector<2x256xf32>
    %102 = vector.extract_strided_slice %101 {offsets = [0, 0], sizes = [2, 192], strides = [1, 1]} : vector<2x256xf32> to vector<2x192xf32>
    %103 = arith.negf %102 : vector<2x192xf32>
    %104 = math.exp %103 : vector<2x192xf32>
    %cst_15 = arith.constant 1.000000e+00 : f32
    %105 = vector.broadcast %cst_15 : f32 to vector<2x192xf32>
    %106 = arith.addf %105, %104 : vector<2x192xf32>
    %107 = arith.divf %105, %106 : vector<2x192xf32>
    %108 = vector.extract_strided_slice %101 {offsets = [0, 192], sizes = [2, 64], strides = [1, 1]} : vector<2x256xf32> to vector<2x64xf32>
    %109 = math.tanh %108 : vector<2x64xf32>
    %110 = vector.extract_strided_slice %107 {offsets = [0, 0], sizes = [2, 64], strides = [1, 1]} : vector<2x192xf32> to vector<2x64xf32>
    %111 = vector.extract_strided_slice %107 {offsets = [0, 64], sizes = [2, 64], strides = [1, 1]} : vector<2x192xf32> to vector<2x64xf32>
    %112 = vector.extract_strided_slice %107 {offsets = [0, 128], sizes = [2, 64], strides = [1, 1]} : vector<2x192xf32> to vector<2x64xf32>
    %113 = arith.mulf %111, %96 : vector<2x64xf32>
    %114 = arith.mulf %110, %109 : vector<2x64xf32>
    %115 = arith.addf %113, %114 : vector<2x64xf32>
    %116 = math.tanh %115 : vector<2x64xf32>
    %117 = arith.mulf %112, %116 : vector<2x64xf32>
    %118 = vector.extract_strided_slice %1 {offsets = [12, 0], sizes = [2, 256], strides = [1, 1]} : vector<16x256xf32> to vector<2x256xf32>
    %cst_16 = arith.constant dense<0.000000e+00> : vector<2x256xf32>
    %119 = tpu.matmul %117, %0, %cst_16 {dimension_numbers = #tpu.dot_dimension_numbers<[1], [0], [0], [1], [0, 0, 1, 1], [], []>, precision = #tpu.contract_precision<fp32>} : vector<2x64xf32>, vector<64x256xf32>, vector<2x256xf32> -> vector<2x256xf32>
    %120 = arith.addf %118, %119 : vector<2x256xf32>
    %121 = vector.extract_strided_slice %120 {offsets = [0, 0], sizes = [2, 192], strides = [1, 1]} : vector<2x256xf32> to vector<2x192xf32>
    %122 = arith.negf %121 : vector<2x192xf32>
    %123 = math.exp %122 : vector<2x192xf32>
    %cst_17 = arith.constant 1.000000e+00 : f32
    %124 = vector.broadcast %cst_17 : f32 to vector<2x192xf32>
    %125 = arith.addf %124, %123 : vector<2x192xf32>
    %126 = arith.divf %124, %125 : vector<2x192xf32>
    %127 = vector.extract_strided_slice %120 {offsets = [0, 192], sizes = [2, 64], strides = [1, 1]} : vector<2x256xf32> to vector<2x64xf32>
    %128 = math.tanh %127 : vector<2x64xf32>
    %129 = vector.extract_strided_slice %126 {offsets = [0, 0], sizes = [2, 64], strides = [1, 1]} : vector<2x192xf32> to vector<2x64xf32>
    %130 = vector.extract_strided_slice %126 {offsets = [0, 64], sizes = [2, 64], strides = [1, 1]} : vector<2x192xf32> to vector<2x64xf32>
    %131 = vector.extract_strided_slice %126 {offsets = [0, 128], sizes = [2, 64], strides = [1, 1]} : vector<2x192xf32> to vector<2x64xf32>
    %132 = arith.mulf %130, %115 : vector<2x64xf32>
    %133 = arith.mulf %129, %128 : vector<2x64xf32>
    %134 = arith.addf %132, %133 : vector<2x64xf32>
    %135 = math.tanh %134 : vector<2x64xf32>
    %136 = arith.mulf %131, %135 : vector<2x64xf32>
    %137 = vector.extract_strided_slice %1 {offsets = [14, 0], sizes = [2, 256], strides = [1, 1]} : vector<16x256xf32> to vector<2x256xf32>
    %cst_18 = arith.constant dense<0.000000e+00> : vector<2x256xf32>
    %138 = tpu.matmul %136, %0, %cst_18 {dimension_numbers = #tpu.dot_dimension_numbers<[1], [0], [0], [1], [0, 0, 1, 1], [], []>, precision = #tpu.contract_precision<fp32>} : vector<2x64xf32>, vector<64x256xf32>, vector<2x256xf32> -> vector<2x256xf32>
    %139 = arith.addf %137, %138 : vector<2x256xf32>
    %140 = vector.extract_strided_slice %139 {offsets = [0, 0], sizes = [2, 192], strides = [1, 1]} : vector<2x256xf32> to vector<2x192xf32>
    %141 = arith.negf %140 : vector<2x192xf32>
    %142 = math.exp %141 : vector<2x192xf32>
    %cst_19 = arith.constant 1.000000e+00 : f32
    %143 = vector.broadcast %cst_19 : f32 to vector<2x192xf32>
    %144 = arith.addf %143, %142 : vector<2x192xf32>
    %145 = arith.divf %143, %144 : vector<2x192xf32>
    %146 = vector.extract_strided_slice %139 {offsets = [0, 192], sizes = [2, 64], strides = [1, 1]} : vector<2x256xf32> to vector<2x64xf32>
    %147 = math.tanh %146 : vector<2x64xf32>
    %148 = vector.extract_strided_slice %145 {offsets = [0, 0], sizes = [2, 64], strides = [1, 1]} : vector<2x192xf32> to vector<2x64xf32>
    %149 = vector.extract_strided_slice %145 {offsets = [0, 64], sizes = [2, 64], strides = [1, 1]} : vector<2x192xf32> to vector<2x64xf32>
    %150 = vector.extract_strided_slice %145 {offsets = [0, 128], sizes = [2, 64], strides = [1, 1]} : vector<2x192xf32> to vector<2x64xf32>
    %151 = arith.mulf %149, %134 : vector<2x64xf32>
    %152 = arith.mulf %148, %147 : vector<2x64xf32>
    %153 = arith.addf %151, %152 : vector<2x64xf32>
    %154 = math.tanh %153 : vector<2x64xf32>
    %155 = arith.mulf %150, %154 : vector<2x64xf32>
    %156 = vector.extract_strided_slice %22 {offsets = [0, 0], sizes = [2, 32], strides = [1, 1]} : vector<2x64xf32> to vector<2x32xf32>
    %157 = vector.extract_strided_slice %155 {offsets = [0, 32], sizes = [2, 32], strides = [1, 1]} : vector<2x64xf32> to vector<2x32xf32>
    %158 = tpu.concatenate %156, %157 in 1 : vector<2x32xf32>, vector<2x32xf32> -> vector<2x64xf32>
    %159 = vector.extract_strided_slice %41 {offsets = [0, 0], sizes = [2, 32], strides = [1, 1]} : vector<2x64xf32> to vector<2x32xf32>
    %160 = vector.extract_strided_slice %136 {offsets = [0, 32], sizes = [2, 32], strides = [1, 1]} : vector<2x64xf32> to vector<2x32xf32>
    %161 = tpu.concatenate %159, %160 in 1 : vector<2x32xf32>, vector<2x32xf32> -> vector<2x64xf32>
    %162 = vector.extract_strided_slice %60 {offsets = [0, 0], sizes = [2, 32], strides = [1, 1]} : vector<2x64xf32> to vector<2x32xf32>
    %163 = vector.extract_strided_slice %117 {offsets = [0, 32], sizes = [2, 32], strides = [1, 1]} : vector<2x64xf32> to vector<2x32xf32>
    %164 = tpu.concatenate %162, %163 in 1 : vector<2x32xf32>, vector<2x32xf32> -> vector<2x64xf32>
    %165 = vector.extract_strided_slice %79 {offsets = [0, 0], sizes = [2, 32], strides = [1, 1]} : vector<2x64xf32> to vector<2x32xf32>
    %166 = vector.extract_strided_slice %98 {offsets = [0, 32], sizes = [2, 32], strides = [1, 1]} : vector<2x64xf32> to vector<2x32xf32>
    %167 = tpu.concatenate %165, %166 in 1 : vector<2x32xf32>, vector<2x32xf32> -> vector<2x64xf32>
    %168 = vector.extract_strided_slice %98 {offsets = [0, 0], sizes = [2, 32], strides = [1, 1]} : vector<2x64xf32> to vector<2x32xf32>
    %169 = vector.extract_strided_slice %79 {offsets = [0, 32], sizes = [2, 32], strides = [1, 1]} : vector<2x64xf32> to vector<2x32xf32>
    %170 = tpu.concatenate %168, %169 in 1 : vector<2x32xf32>, vector<2x32xf32> -> vector<2x64xf32>
    %171 = vector.extract_strided_slice %117 {offsets = [0, 0], sizes = [2, 32], strides = [1, 1]} : vector<2x64xf32> to vector<2x32xf32>
    %172 = vector.extract_strided_slice %60 {offsets = [0, 32], sizes = [2, 32], strides = [1, 1]} : vector<2x64xf32> to vector<2x32xf32>
    %173 = tpu.concatenate %171, %172 in 1 : vector<2x32xf32>, vector<2x32xf32> -> vector<2x64xf32>
    %174 = vector.extract_strided_slice %136 {offsets = [0, 0], sizes = [2, 32], strides = [1, 1]} : vector<2x64xf32> to vector<2x32xf32>
    %175 = vector.extract_strided_slice %41 {offsets = [0, 32], sizes = [2, 32], strides = [1, 1]} : vector<2x64xf32> to vector<2x32xf32>
    %176 = tpu.concatenate %174, %175 in 1 : vector<2x32xf32>, vector<2x32xf32> -> vector<2x64xf32>
    %177 = vector.extract_strided_slice %155 {offsets = [0, 0], sizes = [2, 32], strides = [1, 1]} : vector<2x64xf32> to vector<2x32xf32>
    %178 = vector.extract_strided_slice %22 {offsets = [0, 32], sizes = [2, 32], strides = [1, 1]} : vector<2x64xf32> to vector<2x32xf32>
    %179 = tpu.concatenate %177, %178 in 1 : vector<2x32xf32>, vector<2x32xf32> -> vector<2x64xf32>
    %180 = arith.mulf %158, %155 : vector<2x64xf32>
    %cst_20 = arith.constant dense<0.000000e+00> : vector<2xf32>
    %181 = vector.multi_reduction <add>, %180, %cst_20 [1] : vector<2x64xf32> to vector<2xf32>
    %182 = vector.shape_cast %181 : vector<2xf32> to vector<2x1xf32>
    %183 = arith.mulf %161, %155 : vector<2x64xf32>
    %cst_21 = arith.constant dense<0.000000e+00> : vector<2xf32>
    %184 = vector.multi_reduction <add>, %183, %cst_21 [1] : vector<2x64xf32> to vector<2xf32>
    %185 = vector.shape_cast %184 : vector<2xf32> to vector<2x1xf32>
    %186 = arith.mulf %164, %155 : vector<2x64xf32>
    %cst_22 = arith.constant dense<0.000000e+00> : vector<2xf32>
    %187 = vector.multi_reduction <add>, %186, %cst_22 [1] : vector<2x64xf32> to vector<2xf32>
    %188 = vector.shape_cast %187 : vector<2xf32> to vector<2x1xf32>
    %189 = arith.mulf %167, %155 : vector<2x64xf32>
    %cst_23 = arith.constant dense<0.000000e+00> : vector<2xf32>
    %190 = vector.multi_reduction <add>, %189, %cst_23 [1] : vector<2x64xf32> to vector<2xf32>
    %191 = vector.shape_cast %190 : vector<2xf32> to vector<2x1xf32>
    %192 = arith.mulf %170, %155 : vector<2x64xf32>
    %cst_24 = arith.constant dense<0.000000e+00> : vector<2xf32>
    %193 = vector.multi_reduction <add>, %192, %cst_24 [1] : vector<2x64xf32> to vector<2xf32>
    %194 = vector.shape_cast %193 : vector<2xf32> to vector<2x1xf32>
    %195 = arith.mulf %173, %155 : vector<2x64xf32>
    %cst_25 = arith.constant dense<0.000000e+00> : vector<2xf32>
    %196 = vector.multi_reduction <add>, %195, %cst_25 [1] : vector<2x64xf32> to vector<2xf32>
    %197 = vector.shape_cast %196 : vector<2xf32> to vector<2x1xf32>
    %198 = arith.mulf %176, %155 : vector<2x64xf32>
    %cst_26 = arith.constant dense<0.000000e+00> : vector<2xf32>
    %199 = vector.multi_reduction <add>, %198, %cst_26 [1] : vector<2x64xf32> to vector<2xf32>
    %200 = vector.shape_cast %199 : vector<2xf32> to vector<2x1xf32>
    %201 = arith.mulf %179, %155 : vector<2x64xf32>
    %cst_27 = arith.constant dense<0.000000e+00> : vector<2xf32>
    %202 = vector.multi_reduction <add>, %201, %cst_27 [1] : vector<2x64xf32> to vector<2xf32>
    %203 = vector.shape_cast %202 : vector<2xf32> to vector<2x1xf32>
    %204 = tpu.concatenate %182, %185, %188, %191, %194, %197, %200, %203 in 1 : vector<2x1xf32>, vector<2x1xf32>, vector<2x1xf32>, vector<2x1xf32>, vector<2x1xf32>, vector<2x1xf32>, vector<2x1xf32>, vector<2x1xf32> -> vector<2x8xf32>
    %cst_28 = arith.constant dense<0xFF800000> : vector<2xf32>
    %205 = vector.multi_reduction <maximumf>, %204, %cst_28 [1] : vector<2x8xf32> to vector<2xf32>
    %206 = vector.shape_cast %205 : vector<2xf32> to vector<2x1xf32>
    %207 = vector.broadcast %206 : vector<2x1xf32> to vector<2x8xf32>
    %208 = arith.subf %204, %207 : vector<2x8xf32>
    %209 = math.exp %208 : vector<2x8xf32>
    %cst_29 = arith.constant dense<0.000000e+00> : vector<2xf32>
    %210 = vector.multi_reduction <add>, %209, %cst_29 [1] : vector<2x8xf32> to vector<2xf32>
    %211 = vector.shape_cast %210 : vector<2xf32> to vector<2x1xf32>
    %212 = vector.broadcast %211 : vector<2x1xf32> to vector<2x8xf32>
    %213 = arith.divf %209, %212 : vector<2x8xf32>
    %214 = vector.extract_strided_slice %213 {offsets = [0, 0], sizes = [2, 1], strides = [1, 1]} : vector<2x8xf32> to vector<2x1xf32>
    %215 = vector.broadcast %214 : vector<2x1xf32> to vector<2x64xf32>
    %216 = arith.mulf %158, %215 : vector<2x64xf32>
    %217 = vector.extract_strided_slice %213 {offsets = [0, 1], sizes = [2, 1], strides = [1, 1]} : vector<2x8xf32> to vector<2x1xf32>
    %218 = vector.broadcast %217 : vector<2x1xf32> to vector<2x64xf32>
    %219 = arith.mulf %161, %218 : vector<2x64xf32>
    %220 = arith.addf %216, %219 : vector<2x64xf32>
    %221 = vector.extract_strided_slice %213 {offsets = [0, 2], sizes = [2, 1], strides = [1, 1]} : vector<2x8xf32> to vector<2x1xf32>
    %222 = vector.broadcast %221 : vector<2x1xf32> to vector<2x64xf32>
    %223 = arith.mulf %164, %222 : vector<2x64xf32>
    %224 = arith.addf %220, %223 : vector<2x64xf32>
    %225 = vector.extract_strided_slice %213 {offsets = [0, 3], sizes = [2, 1], strides = [1, 1]} : vector<2x8xf32> to vector<2x1xf32>
    %226 = vector.broadcast %225 : vector<2x1xf32> to vector<2x64xf32>
    %227 = arith.mulf %167, %226 : vector<2x64xf32>
    %228 = arith.addf %224, %227 : vector<2x64xf32>
    %229 = vector.extract_strided_slice %213 {offsets = [0, 4], sizes = [2, 1], strides = [1, 1]} : vector<2x8xf32> to vector<2x1xf32>
    %230 = vector.broadcast %229 : vector<2x1xf32> to vector<2x64xf32>
    %231 = arith.mulf %170, %230 : vector<2x64xf32>
    %232 = arith.addf %228, %231 : vector<2x64xf32>
    %233 = vector.extract_strided_slice %213 {offsets = [0, 5], sizes = [2, 1], strides = [1, 1]} : vector<2x8xf32> to vector<2x1xf32>
    %234 = vector.broadcast %233 : vector<2x1xf32> to vector<2x64xf32>
    %235 = arith.mulf %173, %234 : vector<2x64xf32>
    %236 = arith.addf %232, %235 : vector<2x64xf32>
    %237 = vector.extract_strided_slice %213 {offsets = [0, 6], sizes = [2, 1], strides = [1, 1]} : vector<2x8xf32> to vector<2x1xf32>
    %238 = vector.broadcast %237 : vector<2x1xf32> to vector<2x64xf32>
    %239 = arith.mulf %176, %238 : vector<2x64xf32>
    %240 = arith.addf %236, %239 : vector<2x64xf32>
    %241 = vector.extract_strided_slice %213 {offsets = [0, 7], sizes = [2, 1], strides = [1, 1]} : vector<2x8xf32> to vector<2x1xf32>
    %242 = vector.broadcast %241 : vector<2x1xf32> to vector<2x64xf32>
    %243 = arith.mulf %179, %242 : vector<2x64xf32>
    %244 = arith.addf %240, %243 : vector<2x64xf32>
    %245 = tpu.concatenate %244, %213 in 1 : vector<2x64xf32>, vector<2x8xf32> -> vector<2x72xf32>
    %c0_30 = arith.constant 0 : index
    %c0_31 = arith.constant 0 : index
    %246 = vector.load %arg2[%c0_30, %c0_31] : memref<72x128xf32, #tpu.memory_space<vmem>>, vector<72x128xf32>
    %cst_32 = arith.constant dense<0.000000e+00> : vector<2x128xf32>
    %247 = tpu.matmul %245, %246, %cst_32 {dimension_numbers = #tpu.dot_dimension_numbers<[1], [0], [0], [1], [0, 0, 1, 1], [], []>, precision = #tpu.contract_precision<fp32>} : vector<2x72xf32>, vector<72x128xf32>, vector<2x128xf32> -> vector<2x128xf32>
    %c0_33 = arith.constant 0 : index
    %c0_34 = arith.constant 0 : index
    %248 = vector.load %arg3[%c0_33, %c0_34] : memref<1x128xf32, #tpu.memory_space<vmem>>, vector<1x128xf32>
    %249 = vector.broadcast %248 : vector<1x128xf32> to vector<2x128xf32>
    %250 = arith.addf %247, %249 : vector<2x128xf32>
    %c0_35 = arith.constant 0 : index
    %c0_36 = arith.constant 0 : index
    %251 = vector.load %arg4[%c0_35, %c0_36] : memref<2x128xf32, #tpu.memory_space<vmem>>, vector<2x128xf32>
    tpu.vector_store %arg4[%c0_35, %c0_36], %250 {strides = array<i32>} : memref<2x128xf32, #tpu.memory_space<vmem>>, vector<2x128xf32>,
    return
  }
}

</mosaic_0001>

<llo_original>
// kernel: tpu_custom_call.1
$region0: #{tpu_custom_call.1}
  #allocation0 [shape = 'u32[]', space=smem, size = 0x4, offset = 0x4, fixed_abs, tag = 'smem constant byte address 0x4 - core index']
  #allocation1 [shape = 'u32[144,128]{1,0:T(1,128)}', space=vmem, size = 0x12000, scoped, tag = 'internal scratch']
  %s0 = inlined_call_operand.hbm [shape: f32[16,256], index: 0, kind: input, shape index: {}]
  %s1 = inlined_call_operand.hbm [shape: f32[64,256], index: 1, kind: input, shape index: {}]
  %s2 = inlined_call_operand.hbm [shape: f32[72,128], index: 2, kind: input, shape index: {}]
  %s3 = inlined_call_operand.vmem [shape: f32[1,128], index: 3, kind: input, shape index: {}]
  %s4 = inlined_call_operand.hbm [shape: f32[2,128], index: 4, kind: output, shape index: {}]
  %s5 = sld [smem:[#allocation0]]
  $region38: #{tpu_custom_call.1} parent=0
    _
  %s7 = ssub.s32 1, %s5
  %s8 = scalar_select 0, %s7, %s5
  $region1: #{tpu_custom_call.1} parent=0
    #allocation2 [shape = 'u8[16384]{0}', space=vmem, size = 0x4000, scoped, tag = 'input window, operand 0, single buffered']
    #allocation3 [shape = 's32[1]{0}', space=sflag, size = 0x4, scoped, tag = 'scoped memory for tpu_custom_call.1']
    #allocation4 [shape = 's32[1]{0}', space=sflag, size = 0x4, scoped, tag = 'scoped memory for tpu_custom_call.1']
    #allocation5 [shape = 'u8[65536]{0}', space=vmem, size = 0x10000, scoped, tag = 'input window, operand 1, single buffered']
    #allocation6 [shape = 's32[1]{0}', space=sflag, size = 0x4, scoped, tag = 'scoped memory for tpu_custom_call.1']
    #allocation7 [shape = 'u8[36864]{0}', space=vmem, size = 0x9000, scoped, tag = 'input window, operand 2, single buffered']
    #allocation8 [shape = 'u8[1024]{0}', space=vmem, size = 0x400, scoped, tag = 'output window, operand 0, single buffered']
    %9 = vsyncpa [#allocation3], 0
    %10 = vsyncpa [#allocation6], 0
    %11 = vsyncpa [#allocation4], 0
    // Predicated region
    $region2: #{tpu_custom_call.1} parent=1 // pred_check
      _
    $region3: #{tpu_custom_call.1} parent=1 // pred_check_branch
      %13 = sbr.rel (0) target = $region5
    $region4: #{tpu_custom_call.1} parent=1 // pred_region
      %s15 = ssub.s32 512, 512
      %16 = vsyncadd [#allocation3], %s15
      %s17 = sshll.u32 [#allocation2], 4
      %s18 = int_to_ptr.vmem [resolvable:$true] %s17
      %23 = dma.hbm_to_vmem [thread:$0]  %s0, 512, %s18, [#allocation3], 256, 256, 16
    $region5: #{tpu_custom_call.1} parent=1 // pred_fallthru
      _
    // Predicated region
    $region6: #{tpu_custom_call.1} parent=1 // pred_check
      _
    $region7: #{tpu_custom_call.1} parent=1 // pred_check_branch
      %25 = sbr.rel (0) target = $region9
    $region8: #{tpu_custom_call.1} parent=1 // pred_region
      %s27 = ssub.s32 2048, 2048
      %28 = vsyncadd [#allocation6], %s27
      %s29 = sshll.u32 [#allocation5], 4
      %s30 = int_to_ptr.vmem [resolvable:$true] %s29
      %35 = dma.hbm_to_vmem [thread:$0]  %s1, 2048, %s30, [#allocation6], 256, 256, 16
    $region9: #{tpu_custom_call.1} parent=1 // pred_fallthru
      _
    // Predicated region
    $region10: #{tpu_custom_call.1} parent=1 // pred_check
      _
    $region11: #{tpu_custom_call.1} parent=1 // pred_check_branch
      %37 = sbr.rel (0) target = $region13
    $region12: #{tpu_custom_call.1} parent=1 // pred_region
      %s39 = ssub.s32 1152, 1152
      %40 = vsyncadd [#allocation6], %s39
      %s41 = sshll.u32 [#allocation7], 4
      %s42 = int_to_ptr.vmem [resolvable:$true] %s41
      %47 = dma.hbm_to_vmem [thread:$0]  %s2, 1152, %s42, [#allocation6], 128, 128, 8
    $region13: #{tpu_custom_call.1} parent=1 // pred_fallthru
      _
    // Predicated region
    $region14: #{tpu_custom_call.1} parent=1 // pred_check
      _
    $region15: #{tpu_custom_call.1} parent=1 // pred_check_branch
      %49 = sbr.rel (0) target = $region17
    $region16: #{tpu_custom_call.1} parent=1 // pred_region
      _
    $region17: #{tpu_custom_call.1} parent=1 // pred_fallthru
      _
    // Predicated region
    $region18: #{tpu_custom_call.1} parent=1 // pred_check
      _
    $region19: #{tpu_custom_call.1} parent=1 // pred_check_branch
      %51 = sbr.rel (0) target = $region21
    $region20: #{tpu_custom_call.1} parent=1 // pred_region
      %52 = dma.done [#allocation3], 512
    $region21: #{tpu_custom_call.1} parent=1 // pred_fallthru
      _
    // Predicated region
    $region22: #{tpu_custom_call.1} parent=1 // pred_check
      _
    $region23: #{tpu_custom_call.1} parent=1 // pred_check_branch
      %54 = sbr.rel (0) target = $region25
    $region24: #{tpu_custom_call.1} parent=1 // pred_region
      %55 = dma.done [#allocation6], 2048
    $region25: #{tpu_custom_call.1} parent=1 // pred_fallthru
      _
    // Predicated region
    $region26: #{tpu_custom_call.1} parent=1 // pred_check
      _
    $region27: #{tpu_custom_call.1} parent=1 // pred_check_branch
      %57 = sbr.rel (0) target = $region29
    $region28: #{tpu_custom_call.1} parent=1 // pred_region
      %58 = dma.done [#allocation6], 1152
    $region29: #{tpu_custom_call.1} parent=1 // pred_fallthru
      _
    %v59 = vld [vmem:[#allocation5] sm:$0xff]
    %v60 = vld [vmem:[#allocation5 + $0x8] sm:$0xff]
    %v61 = vld [vmem:[#allocation5 + $0x10] sm:$0xff]
    %v62 = vld [vmem:[#allocation5 + $0x18] sm:$0xff]
    %v63 = vld [vmem:[#allocation5 + $0x20] sm:$0xff]
    %v64 = vld [vmem:[#allocation5 + $0x28] sm:$0xff]
    %v65 = vld [vmem:[#allocation5 + $0x30] sm:$0xff]
    %v66 = vld [vmem:[#allocation5 + $0x38] sm:$0xff]
    %v67 = vld [vmem:[#allocation5 + $0x40] sm:$0xff]
    %v68 = vld [vmem:[#allocation5 + $0x48] sm:$0xff]
    %v69 = vld [vmem:[#allocation5 + $0x50] sm:$0xff]
    %v70 = vld [vmem:[#allocation5 + $0x58] sm:$0xff]
    %v71 = vld [vmem:[#allocation5 + $0x60] sm:$0xff]
    %v72 = vld [vmem:[#allocation5 + $0x68] sm:$0xff]
    %v73 = vld [vmem:[#allocation5 + $0x70] sm:$0xff]
    %v74 = vld [vmem:[#allocation5 + $0x78] sm:$0xff]
    %v75 = vld [vmem:[#allocation2] sm:$0xff]
    %v76 = vld [vmem:[#allocation2 + $0x8] sm:$0xff]
    %v77 = vld [vmem:[#allocation2 + $0x10] sm:$0xff]
    %v78 = vld [vmem:[#allocation2 + $0x18] sm:$0xff]
    %vm79 = vcmask 523264
    %v81 = vsel %vm79, 0.0, 0
    %v83 = vand.u32 %v60, 4294901760
    %84 = vmatprep.subr.mxu0 %v83
    %v85 = vand.u32 %v59, 4294901760
    %86 = vmatpush1.msra.mxu0 %v85
    %v87 = vand.u32 %v62, 4294901760
    %88 = vmatprep.subr.mxu0 %v87
    %v89 = vand.u32 %v61, 4294901760
    %90 = vmatpush1.msra.mxu0 %v89
    %v91 = vand.u32 %v64, 4294901760
    %92 = vmatprep.subr.mxu0 %v91
    %v93 = vand.u32 %v63, 4294901760
    %94 = vmatpush1.msra.mxu0 %v93
    %v95 = vand.u32 %v66, 4294901760
    %96 = vmatprep.subr.mxu0 %v95
    %v97 = vand.u32 %v65, 4294901760
    %98 = vmatpush1.msra.mxu0 %v97
    %v99 = vand.u32 %v68, 4294901760
    %100 = vmatprep.subr.mxu0 %v99
    %v101 = vand.u32 %v67, 4294901760
    %102 = vmatpush1.msra.mxu0 %v101
    %v103 = vand.u32 %v70, 4294901760
    %104 = vmatprep.subr.mxu0 %v103
    %v105 = vand.u32 %v69, 4294901760
    %106 = vmatpush1.msra.mxu0 %v105
    %v107 = vand.u32 %v72, 4294901760
    %108 = vmatprep.subr.mxu0 %v107
    %v109 = vand.u32 %v71, 4294901760
    %110 = vmatpush1.msra.mxu0 %v109
    %v111 = vand.u32 %v74, 4294901760
    %112 = vmatprep.subr.mxu0 %v111
    %v113 = vand.u32 %v73, 4294901760
    %114 = vmatpush1.msra.mxu0 %v113
    %115 = vmatprep.subr.mxu0 0.0
    %116 = vmatpush1.msra.mxu0 0.0
    %117 = vmatprep.subr.mxu0 0.0
    %118 = vmatpush1.msra.mxu0 0.0
    %119 = vmatprep.subr.mxu0 0.0
    %120 = vmatpush1.msra.mxu0 0.0
    %121 = vmatprep.subr.mxu0 0.0
    %122 = vmatpush1.msra.mxu0 0.0
    %123 = vmatprep.subr.mxu0 0.0
    %124 = vmatpush1.msra.mxu0 0.0
    %125 = vmatprep.subr.mxu0 0.0
    %126 = vmatpush1.msra.mxu0 0.0
    %127 = vmatprep.subr.mxu0 0.0
    %128 = vmatpush1.msra.mxu0 0.0
    %129 = vmatprep.subr.mxu0 0.0
    %130 = vmatpush1.msra.mxu0 0.0
    %131 = vmatprep.subr.mxu0 0.0
    %132 = vmatpush1.msra.mxu0 0.0
    %133 = vmatprep.subr.mxu0 0.0
    %134 = vmatpush1.msra.mxu0 0.0
    %135 = vmatprep.subr.mxu0 0.0
    %136 = vmatpush1.msra.mxu0 0.0
    %137 = vmatprep.subr.mxu0 0.0
    %138 = vmatpush1.msra.mxu0 0.0
    %139 = vmatprep.subr.mxu0 0.0
    %140 = vmatpush1.msra.mxu0 0.0
    %141 = vmatprep.subr.mxu0 0.0
    %142 = vmatpush1.msra.mxu0 0.0
    %143 = vmatprep.subr.mxu0 0.0
    %144 = vmatpush1.msra.mxu0 0.0
    %145 = vmatprep.subr.mxu0 0.0
    %146 = vmatpush1.msra.mxu0 0.0
    %147 = vmatprep.subr.mxu0 0.0
    %148 = vmatpush1.msra.mxu0 0.0
    %149 = vmatprep.subr.mxu0 0.0
    %150 = vmatpush1.msra.mxu0 0.0
    %151 = vmatprep.subr.mxu0 0.0
    %152 = vmatpush1.msra.mxu0 0.0
    %153 = vmatprep.subr.mxu0 0.0
    %154 = vmatpush1.msra.mxu0 0.0
    %155 = vmatprep.subr.mxu0 0.0
    %156 = vmatpush1.msra.mxu0 0.0
    %157 = vmatprep.subr.mxu0 0.0
    %158 = vmatpush1.msra.mxu0 0.0
    %159 = vmatprep.subr.mxu0 0.0
    %160 = vmatpush1.msra.mxu0 0.0
    %161 = vmatprep.subr.mxu0 0.0
    %162 = vmatpush1.msra.mxu0 0.0
    %163 = vmatprep.mubr.f32.mxu0 0.0
    %v164 = vand.u32 %v81, 4294901760
    %v165 = vsub.f32 %v81, %v164
    %v166 = vand.u32 %v165, 4294901760
    %v167 = vsub.f32 %v165, %v166
    %v168 = vand.u32 %v167, 4294901760
    %169 = vmatmul.mubr.f32.gmra.mrb[0].mxu0 %v168
    %v170 = vpop.f32.mrb[0].mxu0
    %v171 = vadd.f32 0.0, %v170
    %v172 = vpop.f32.mrb[0].mxu0
    %v173 = vadd.f32 0.0, %v172
    %174 = vdwg.mxu0
    %v175 = vand.u32 %v60, 4294901760
    %v176 = vsub.f32 %v60, %v175
    %v177 = vand.u32 %v176, 4294901760
    %v178 = vsub.f32 %v176, %v177
    %v179 = vand.u32 %v178, 4294901760
    %180 = vmatprep.subr.mxu0 %v179
    %v181 = vand.u32 %v59, 4294901760
    %v182 = vsub.f32 %v59, %v181
    %v183 = vand.u32 %v182, 4294901760
    %v184 = vsub.f32 %v182, %v183
    %v185 = vand.u32 %v184, 4294901760
    %186 = vmatpush1.msra.mxu0 %v185
    %v187 = vand.u32 %v62, 4294901760
    %v188 = vsub.f32 %v62, %v187
    %v189 = vand.u32 %v188, 4294901760
    %v190 = vsub.f32 %v188, %v189
    %v191 = vand.u32 %v190, 4294901760
    %192 = vmatprep.subr.mxu0 %v191
    %v193 = vand.u32 %v61, 4294901760
    %v194 = vsub.f32 %v61, %v193
    %v195 = vand.u32 %v194, 4294901760
    %v196 = vsub.f32 %v194, %v195
    %v197 = vand.u32 %v196, 4294901760
    %198 = vmatpush1.msra.mxu0 %v197
    %v199 = vand.u32 %v64, 4294901760
    %v200 = vsub.f32 %v64, %v199
    %v201 = vand.u32 %v200, 4294901760
    %v202 = vsub.f32 %v200, %v201
    %v203 = vand.u32 %v202, 4294901760
    %204 = vmatprep.subr.mxu0 %v203
    %v205 = vand.u32 %v63, 4294901760
    %v206 = vsub.f32 %v63, %v205
    %v207 = vand.u32 %v206, 4294901760
    %v208 = vsub.f32 %v206, %v207
    %v209 = vand.u32 %v208, 4294901760
    %210 = vmatpush1.msra.mxu0 %v209
    %v211 = vand.u32 %v66, 4294901760
    %v212 = vsub.f32 %v66, %v211
    %v213 = vand.u32 %v212, 4294901760
    %v214 = vsub.f32 %v212, %v213
    %v215 = vand.u32 %v214, 4294901760
    %216 = vmatprep.subr.mxu0 %v215
    %v217 = vand.u32 %v65, 4294901760
    %v218 = vsub.f32 %v65, %v217
    %v219 = vand.u32 %v218, 4294901760
    %v220 = vsub.f32 %v218, %v219
    %v221 = vand.u32 %v220, 4294901760
    %222 = vmatpush1.msra.mxu0 %v221
    %v223 = vand.u32 %v68, 4294901760
    %v224 = vsub.f32 %v68, %v223
    %v225 = vand.u32 %v224, 4294901760
    %v226 = vsub.f32 %v224, %v225
    %v227 = vand.u32 %v226, 4294901760
    %228 = vmatprep.subr.mxu0 %v227
    %v229 = vand.u32 %v67, 4294901760
    %v230 = vsub.f32 %v67, %v229
    %v231 = vand.u32 %v230, 4294901760
    %v232 = vsub.f32 %v230, %v231
    %v233 = vand.u32 %v232, 4294901760
    %234 = vmatpush1.msra.mxu0 %v233
    %v235 = vand.u32 %v70, 4294901760
    %v236 = vsub.f32 %v70, %v235
    %v237 = vand.u32 %v236, 4294901760
    %v238 = vsub.f32 %v236, %v237
    %v239 = vand.u32 %v238, 4294901760
    %240 = vmatprep.subr.mxu0 %v239
    %v241 = vand.u32 %v69, 4294901760
    %v242 = vsub.f32 %v69, %v241
    %v243 = vand.u32 %v242, 4294901760
    %v244 = vsub.f32 %v242, %v243
    %v245 = vand.u32 %v244, 4294901760
    %246 = vmatpush1.msra.mxu0 %v245
    %v247 = vand.u32 %v72, 4294901760
    %v248 = vsub.f32 %v72, %v247
    %v249 = vand.u32 %v248, 4294901760
    %v250 = vsub.f32 %v248, %v249
    %v251 = vand.u32 %v250, 4294901760
    %252 = vmatprep.subr.mxu0 %v251
    %v253 = vand.u32 %v71, 4294901760
    %v254 = vsub.f32 %v71, %v253
    %v255 = vand.u32 %v254, 4294901760
    %v256 = vsub.f32 %v254, %v255
    %v257 = vand.u32 %v256, 4294901760
    %258 = vmatpush1.msra.mxu0 %v257
    %v259 = vand.u32 %v74, 4294901760
    %v260 = vsub.f32 %v74, %v259
    %v261 = vand.u32 %v260, 4294901760
    %v262 = vsub.f32 %v260, %v261
    %v263 = vand.u32 %v262, 4294901760
    %264 = vmatprep.subr.mxu0 %v263
    %v265 = vand.u32 %v73, 4294901760
    %v266 = vsub.f32 %v73, %v265
    %v267 = vand.u32 %v266, 4294901760
    %v268 = vsub.f32 %v266, %v267
    %v269 = vand.u32 %v268, 4294901760
    %270 = vmatpush1.msra.mxu0 %v269
    %271 = vmatprep.subr.mxu0 0.0
    %272 = vmatpush1.msra.mxu0 0.0
    %273 = vmatprep.subr.mxu0 0.0
    %274 = vmatpush1.msra.mxu0 0.0
    %275 = vmatprep.subr.mxu0 0.0
    %276 = vmatpush1.msra.mxu0 0.0
    %277 = vmatprep.subr.mxu0 0.0
    %278 = vmatpush1.msra.mxu0 0.0
    %279 = vmatprep.subr.mxu0 0.0
    %280 = vmatpush1.msra.mxu0 0.0
    %281 = vmatprep.subr.mxu0 0.0
    %282 = vmatpush1.msra.mxu0 0.0
    %283 = vmatprep.subr.mxu0 0.0
    %284 = vmatpush1.msra.mxu0 0.0
    %285 = vmatprep.subr.mxu0 0.0
    %286 = vmatpush1.msra.mxu0 0.0
    %287 = vmatprep.subr.mxu0 0.0
    %288 = vmatpush1.msra.mxu0 0.0
    %289 = vmatprep.subr.mxu0 0.0
    %290 = vmatpush1.msra.mxu0 0.0
    %291 = vmatprep.subr.mxu0 0.0
    %292 = vmatpush1.msra.mxu0 0.0
    %293 = vmatprep.subr.mxu0 0.0
    %294 = vmatpush1.msra.mxu0 0.0
    %295 = vmatprep.subr.mxu0 0.0
    %296 = vmatpush1.msra.mxu0 0.0
    %297 = vmatprep.subr.mxu0 0.0
    %298 = vmatpush1.msra.mxu0 0.0
    %299 = vmatprep.subr.mxu0 0.0
    %300 = vmatpush1.msra.mxu0 0.0
    %301 = vmatprep.subr.mxu0 0.0
    %302 = vmatpush1.msra.mxu0 0.0
    %303 = vmatprep.subr.mxu0 0.0
    %304 = vmatpush1.msra.mxu0 0.0
    %305 = vmatprep.subr.mxu0 0.0
    %306 = vmatpush1.msra.mxu0 0.0
    %307 = vmatprep.subr.mxu0 0.0
    %308 = vmatpush1.msra.mxu0 0.0
    %309 = vmatprep.subr.mxu0 0.0
    %310 = vmatpush1.msra.mxu0 0.0
    %311 = vmatprep.subr.mxu0 0.0
    %312 = vmatpush1.msra.mxu0 0.0
    %313 = vmatprep.subr.mxu0 0.0
    %314 = vmatpush1.msra.mxu0 0.0
    %315 = vmatprep.subr.mxu0 0.0
    %316 = vmatpush1.msra.mxu0 0.0
    %317 = vmatprep.subr.mxu0 0.0
    %318 = vmatpush1.msra.mxu0 0.0
    %319 = vmatprep.mubr.f32.mxu0 0.0
    %v320 = vand.u32 %v81, 4294901760
    %321 = vmatmul.mubr.f32.gmra.mrb[0].mxu0 %v320
    %v322 = vpop.f32.mrb[0].mxu0
    %v323 = vadd.f32 %v171, %v322
    %v324 = vpop.f32.mrb[0].mxu0
    %v325 = vadd.f32 %v173, %v324
    %326 = vdwg.mxu0
    %v327 = vand.u32 %v60, 4294901760
    %v328 = vsub.f32 %v60, %v327
    %329 = vmatprep.subr.mxu0 %v328
    %v330 = vand.u32 %v59, 4294901760
    %v331 = vsub.f32 %v59, %v330
    %332 = vmatpush1.msra.mxu0 %v331
    %v333 = vand.u32 %v62, 4294901760
    %v334 = vsub.f32 %v62, %v333
    %335 = vmatprep.subr.mxu0 %v334
    %v336 = vand.u32 %v61, 4294901760
    %v337 = vsub.f32 %v61, %v336
    %338 = vmatpush1.msra.mxu0 %v337
    %v339 = vand.u32 %v64, 4294901760
    %v340 = vsub.f32 %v64, %v339
    %341 = vmatprep.subr.mxu0 %v340
    %v342 = vand.u32 %v63, 4294901760
    %v343 = vsub.f32 %v63, %v342
    %344 = vmatpush1.msra.mxu0 %v343
    %v345 = vand.u32 %v66, 4294901760
    %v346 = vsub.f32 %v66, %v345
    %347 = vmatprep.subr.mxu0 %v346
    %v348 = vand.u32 %v65, 4294901760
    %v349 = vsub.f32 %v65, %v348
    %350 = vmatpush1.msra.mxu0 %v349
    %v351 = vand.u32 %v68, 4294901760
    %v352 = vsub.f32 %v68, %v351
    %353 = vmatprep.subr.mxu0 %v352
    %v354 = vand.u32 %v67, 4294901760
    %v355 = vsub.f32 %v67, %v354
    %356 = vmatpush1.msra.mxu0 %v355
    %v357 = vand.u32 %v70, 4294901760
    %v358 = vsub.f32 %v70, %v357
    %359 = vmatprep.subr.mxu0 %v358
    %v360 = vand.u32 %v69, 4294901760
    %v361 = vsub.f32 %v69, %v360
    %362 = vmatpush1.msra.mxu0 %v361
    %v363 = vand.u32 %v72, 4294901760
    %v364 = vsub.f32 %v72, %v363
    %365 = vmatprep.subr.mxu0 %v364
    %v366 = vand.u32 %v71, 4294901760
    %v367 = vsub.f32 %v71, %v366
    %368 = vmatpush1.msra.mxu0 %v367
    %v369 = vand.u32 %v74, 4294901760
    %v370 = vsub.f32 %v74, %v369
    %371 = vmatprep.subr.mxu0 %v370
    %v372 = vand.u32 %v73, 4294901760
    %v373 = vsub.f32 %v73, %v372
    %374 = vmatpush1.msra.mxu0 %v373
    %375 = vmatprep.subr.mxu0 0.0
    %376 = vmatpush1.msra.mxu0 0.0
    %377 = vmatprep.subr.mxu0 0.0
    %378 = vmatpush1.msra.mxu0 0.0
    %379 = vmatprep.subr.mxu0 0.0
    %380 = vmatpush1.msra.mxu0 0.0
    %381 = vmatprep.subr.mxu0 0.0
    %382 = vmatpush1.msra.mxu0 0.0
    %383 = vmatprep.subr.mxu0 0.0
    %384 = vmatpush1.msra.mxu0 0.0
    %385 = vmatprep.subr.mxu0 0.0
    %386 = vmatpush1.msra.mxu0 0.0
    %387 = vmatprep.subr.mxu0 0.0
    %388 = vmatpush1.msra.mxu0 0.0
    %389 = vmatprep.subr.mxu0 0.0
    %390 = vmatpush1.msra.mxu0 0.0
    %391 = vmatprep.subr.mxu0 0.0
    %392 = vmatpush1.msra.mxu0 0.0
    %393 = vmatprep.subr.mxu0 0.0
    %394 = vmatpush1.msra.mxu0 0.0
    %395 = vmatprep.subr.mxu0 0.0
    %396 = vmatpush1.msra.mxu0 0.0
    %397 = vmatprep.subr.mxu0 0.0
    %398 = vmatpush1.msra.mxu0 0.0
    %399 = vmatprep.subr.mxu0 0.0
    %400 = vmatpush1.msra.mxu0 0.0
    %401 = vmatprep.subr.mxu0 0.0
    %402 = vmatpush1.msra.mxu0 0.0
    %403 = vmatprep.subr.mxu0 0.0
    %404 = vmatpush1.msra.mxu0 0.0
    %405 = vmatprep.subr.mxu0 0.0
    %406 = vmatpush1.msra.mxu0 0.0
    %407 = vmatprep.subr.mxu0 0.0
    %408 = vmatpush1.msra.mxu0 0.0
    %409 = vmatprep.subr.mxu0 0.0
    %410 = vmatpush1.msra.mxu0 0.0
    %411 = vmatprep.subr.mxu0 0.0
    %412 = vmatpush1.msra.mxu0 0.0
    %413 = vmatprep.subr.mxu0 0.0
    %414 = vmatpush1.msra.mxu0 0.0
    %415 = vmatprep.subr.mxu0 0.0
    %416 = vmatpush1.msra.mxu0 0.0
    %417 = vmatprep.subr.mxu0 0.0
    %418 = vmatpush1.msra.mxu0 0.0
    %419 = vmatprep.subr.mxu0 0.0
    %420 = vmatpush1.msra.mxu0 0.0
    %421 = vmatprep.subr.mxu0 0.0
    %422 = vmatpush1.msra.mxu0 0.0
    %423 = vmatprep.mubr.f32.mxu0 0.0
    %v424 = vand.u32 %v81, 4294901760
    %v425 = vsub.f32 %v81, %v424
    %426 = vmatmul.mubr.f32.gmra.mrb[0].mxu0 %v425
    %v427 = vpop.f32.mrb[0].mxu0
    %v428 = vadd.f32 %v323, %v427
    %v429 = vpop.f32.mrb[0].mxu0
    %v430 = vadd.f32 %v325, %v429
    %431 = vdwg.mxu0
    %v432 = vand.u32 %v60, 4294901760
    %433 = vmatprep.subr.mxu0 %v432
    %v434 = vand.u32 %v59, 4294901760
    %435 = vmatpush1.msra.mxu0 %v434
    %v436 = vand.u32 %v62, 4294901760
    %437 = vmatprep.subr.mxu0 %v436
    %v438 = vand.u32 %v61, 4294901760
    %439 = vmatpush1.msra.mxu0 %v438
    %v440 = vand.u32 %v64, 4294901760
    %441 = vmatprep.subr.mxu0 %v440
    %v442 = vand.u32 %v63, 4294901760
    %443 = vmatpush1.msra.mxu0 %v442
    %v444 = vand.u32 %v66, 4294901760
    %445 = vmatprep.subr.mxu0 %v444
    %v446 = vand.u32 %v65, 4294901760
    %447 = vmatpush1.msra.mxu0 %v446
    %v448 = vand.u32 %v68, 4294901760
    %449 = vmatprep.subr.mxu0 %v448
    %v450 = vand.u32 %v67, 4294901760
    %451 = vmatpush1.msra.mxu0 %v450
    %v452 = vand.u32 %v70, 4294901760
    %453 = vmatprep.subr.mxu0 %v452
    %v454 = vand.u32 %v69, 4294901760
    %455 = vmatpush1.msra.mxu0 %v454
    %v456 = vand.u32 %v72, 4294901760
    %457 = vmatprep.subr.mxu0 %v456
    %v458 = vand.u32 %v71, 4294901760
    %459 = vmatpush1.msra.mxu0 %v458
    %v460 = vand.u32 %v74, 4294901760
    %461 = vmatprep.subr.mxu0 %v460
    %v462 = vand.u32 %v73, 4294901760
    %463 = vmatpush1.msra.mxu0 %v462
    %464 = vmatprep.subr.mxu0 0.0
    %465 = vmatpush1.msra.mxu0 0.0
    %466 = vmatprep.subr.mxu0 0.0
    %467 = vmatpush1.msra.mxu0 0.0
    %468 = vmatprep.subr.mxu0 0.0
    %469 = vmatpush1.msra.mxu0 0.0
    %470 = vmatprep.subr.mxu0 0.0
    %471 = vmatpush1.msra.mxu0 0.0
    %472 = vmatprep.subr.mxu0 0.0
    %473 = vmatpush1.msra.mxu0 0.0
    %474 = vmatprep.subr.mxu0 0.0
    %475 = vmatpush1.msra.mxu0 0.0
    %476 = vmatprep.subr.mxu0 0.0
    %477 = vmatpush1.msra.mxu0 0.0
    %478 = vmatprep.subr.mxu0 0.0
    %479 = vmatpush1.msra.mxu0 0.0
    %480 = vmatprep.subr.mxu0 0.0
    %481 = vmatpush1.msra.mxu0 0.0
    %482 = vmatprep.subr.mxu0 0.0
    %483 = vmatpush1.msra.mxu0 0.0
    %484 = vmatprep.subr.mxu0 0.0
    %485 = vmatpush1.msra.mxu0 0.0
    %486 = vmatprep.subr.mxu0 0.0
    %487 = vmatpush1.msra.mxu0 0.0
    %488 = vmatprep.subr.mxu0 0.0
    %489 = vmatpush1.msra.mxu0 0.0
    %490 = vmatprep.subr.mxu0 0.0
    %491 = vmatpush1.msra.mxu0 0.0
    %492 = vmatprep.subr.mxu0 0.0
    %493 = vmatpush1.msra.mxu0 0.0
    %494 = vmatprep.subr.mxu0 0.0
    %495 = vmatpush1.msra.mxu0 0.0
    %496 = vmatprep.subr.mxu0 0.0
    %497 = vmatpush1.msra.mxu0 0.0
    %498 = vmatprep.subr.mxu0 0.0
    %499 = vmatpush1.msra.mxu0 0.0
    %500 = vmatprep.subr.mxu0 0.0
    %501 = vmatpush1.msra.mxu0 0.0
    %502 = vmatprep.subr.mxu0 0.0
    %503 = vmatpush1.msra.mxu0 0.0
    %504 = vmatprep.subr.mxu0 0.0
    %505 = vmatpush1.msra.mxu0 0.0
    %506 = vmatprep.subr.mxu0 0.0
    %507 = vmatpush1.msra.mxu0 0.0
    %508 = vmatprep.subr.mxu0 0.0
    %509 = vmatpush1.msra.mxu0 0.0
    %510 = vmatprep.subr.mxu0 0.0
    %511 = vmatpush1.msra.mxu0 0.0
    %512 = vmatprep.mubr.f32.mxu0 0.0
    %v513 = vand.u32 %v81, 4294901760
    %v514 = vsub.f32 %v81, %v513
    %v515 = vand.u32 %v514, 4294901760
    %516 = vmatmul.mubr.f32.gmra.mrb[0].mxu0 %v515
    %v517 = vpop.f32.mrb[0].mxu0
    %v518 = vadd.f32 %v428, %v517
    %v519 = vpop.f32.mrb[0].mxu0
    %v520 = vadd.f32 %v430, %v519
    %521 = vdwg.mxu0
    %v522 = vand.u32 %v60, 4294901760
    %v523 = vsub.f32 %v60, %v522
    %v524 = vand.u32 %v523, 4294901760
    %525 = vmatprep.subr.mxu0 %v524
    %v526 = vand.u32 %v59, 4294901760
    %v527 = vsub.f32 %v59, %v526
    %v528 = vand.u32 %v527, 4294901760
    %529 = vmatpush1.msra.mxu0 %v528
    %v530 = vand.u32 %v62, 4294901760
    %v531 = vsub.f32 %v62, %v530
    %v532 = vand.u32 %v531, 4294901760
    %533 = vmatprep.subr.mxu0 %v532
    %v534 = vand.u32 %v61, 4294901760
    %v535 = vsub.f32 %v61, %v534
    %v536 = vand.u32 %v535, 4294901760
    %537 = vmatpush1.msra.mxu0 %v536
    %v538 = vand.u32 %v64, 4294901760
    %v539 = vsub.f32 %v64, %v538
    %v540 = vand.u32 %v539, 4294901760
    %541 = vmatprep.subr.mxu0 %v540
    %v542 = vand.u32 %v63, 4294901760
    %v543 = vsub.f32 %v63, %v542
    %v544 = vand.u32 %v543, 4294901760
    %545 = vmatpush1.msra.mxu0 %v544
    %v546 = vand.u32 %v66, 4294901760
    %v547 = vsub.f32 %v66, %v546
    %v548 = vand.u32 %v547, 4294901760
    %549 = vmatprep.subr.mxu0 %v548
    %v550 = vand.u32 %v65, 4294901760
    %v551 = vsub.f32 %v65, %v550
    %v552 = vand.u32 %v551, 4294901760
    %553 = vmatpush1.msra.mxu0 %v552
    %v554 = vand.u32 %v68, 4294901760
    %v555 = vsub.f32 %v68, %v554
    %v556 = vand.u32 %v555, 4294901760
    %557 = vmatprep.subr.mxu0 %v556
    %v558 = vand.u32 %v67, 4294901760
    %v559 = vsub.f32 %v67, %v558
    %v560 = vand.u32 %v559, 4294901760
    %561 = vmatpush1.msra.mxu0 %v560
    %v562 = vand.u32 %v70, 4294901760
    %v563 = vsub.f32 %v70, %v562
    %v564 = vand.u32 %v563, 4294901760
    %565 = vmatprep.subr.mxu0 %v564
    %v566 = vand.u32 %v69, 4294901760
    %v567 = vsub.f32 %v69, %v566
    %v568 = vand.u32 %v567, 4294901760
    %569 = vmatpush1.msra.mxu0 %v568
    %v570 = vand.u32 %v72, 4294901760
    %v571 = vsub.f32 %v72, %v570
    %v572 = vand.u32 %v571, 4294901760
    %573 = vmatprep.subr.mxu0 %v572
    %v574 = vand.u32 %v71, 4294901760
    %v575 = vsub.f32 %v71, %v574
    %v576 = vand.u32 %v575, 4294901760
    %577 = vmatpush1.msra.mxu0 %v576
    %v578 = vand.u32 %v74, 4294901760
    %v579 = vsub.f32 %v74, %v578
    %v580 = vand.u32 %v579, 4294901760
    %581 = vmatprep.subr.mxu0 %v580
    %v582 = vand.u32 %v73, 4294901760
    %v583 = vsub.f32 %v73, %v582
    %v584 = vand.u32 %v583, 4294901760
    %585 = vmatpush1.msra.mxu0 %v584
    %586 = vmatprep.subr.mxu0 0.0
    %587 = vmatpush1.msra.mxu0 0.0
    %588 = vmatprep.subr.mxu0 0.0
    %589 = vmatpush1.msra.mxu0 0.0
    %590 = vmatprep.subr.mxu0 0.0
    %591 = vmatpush1.msra.mxu0 0.0
    %592 = vmatprep.subr.mxu0 0.0
    %593 = vmatpush1.msra.mxu0 0.0
    %594 = vmatprep.subr.mxu0 0.0
    %595 = vmatpush1.msra.mxu0 0.0
    %596 = vmatprep.subr.mxu0 0.0
    %597 = vmatpush1.msra.mxu0 0.0
    %598 = vmatprep.subr.mxu0 0.0
    %599 = vmatpush1.msra.mxu0 0.0
    %600 = vmatprep.subr.mxu0 0.0
    %601 = vmatpush1.msra.mxu0 0.0
    %602 = vmatprep.subr.mxu0 0.0
    %603 = vmatpush1.msra.mxu0 0.0
    %604 = vmatprep.subr.mxu0 0.0
    %605 = vmatpush1.msra.mxu0 0.0
    %606 = vmatprep.subr.mxu0 0.0
    %607 = vmatpush1.msra.mxu0 0.0
    %608 = vmatprep.subr.mxu0 0.0
    %609 = vmatpush1.msra.mxu0 0.0
    %610 = vmatprep.subr.mxu0 0.0
    %611 = vmatpush1.msra.mxu0 0.0
    %612 = vmatprep.subr.mxu0 0.0
    %613 = vmatpush1.msra.mxu0 0.0
    %614 = vmatprep.subr.mxu0 0.0
    %615 = vmatpush1.msra.mxu0 0.0
    %616 = vmatprep.subr.mxu0 0.0
    %617 = vmatpush1.msra.mxu0 0.0
    %618 = vmatprep.subr.mxu0 0.0
    %619 = vmatpush1.msra.mxu0 0.0
    %620 = vmatprep.subr.mxu0 0.0
    %621 = vmatpush1.msra.mxu0 0.0
    %622 = vmatprep.subr.mxu0 0.0
    %623 = vmatpush1.msra.mxu0 0.0
    %624 = vmatprep.subr.mxu0 0.0
    %625 = vmatpush1.msra.mxu0 0.0
    %626 = vmatprep.subr.mxu0 0.0
    %627 = vmatpush1.msra.mxu0 0.0
    %628 = vmatprep.subr.mxu0 0.0
    %629 = vmatpush1.msra.mxu0 0.0
    %630 = vmatprep.subr.mxu0 0.0
    %631 = vmatpush1.msra.mxu0 0.0
    %632 = vmatprep.subr.mxu0 0.0
    %633 = vmatpush1.msra.mxu0 0.0
    %634 = vmatprep.mubr.f32.mxu0 0.0
    %v635 = vand.u32 %v81, 4294901760
    %636 = vmatmul.mubr.f32.gmra.mrb[0].mxu0 %v635
    %v637 = vpop.f32.mrb[0].mxu0
    %v638 = vadd.f32 %v518, %v637
    %v639 = vpop.f32.mrb[0].mxu0
    %v640 = vadd.f32 %v520, %v639
    %641 = vdwg.mxu0
    %v642 = vand.u32 %v60, 4294901760
    %643 = vmatprep.subr.mxu0 %v642
    %v644 = vand.u32 %v59, 4294901760
    %645 = vmatpush1.msra.mxu0 %v644
    %v646 = vand.u32 %v62, 4294901760
    %647 = vmatprep.subr.mxu0 %v646
    %v648 = vand.u32 %v61, 4294901760
    %649 = vmatpush1.msra.mxu0 %v648
    %v650 = vand.u32 %v64, 4294901760
    %651 = vmatprep.subr.mxu0 %v650
    %v652 = vand.u32 %v63, 4294901760
    %653 = vmatpush1.msra.mxu0 %v652
    %v654 = vand.u32 %v66, 4294901760
    %655 = vmatprep.subr.mxu0 %v654
    %v656 = vand.u32 %v65, 4294901760
    %657 = vmatpush1.msra.mxu0 %v656
    %v658 = vand.u32 %v68, 4294901760
    %659 = vmatprep.subr.mxu0 %v658
    %v660 = vand.u32 %v67, 4294901760
    %661 = vmatpush1.msra.mxu0 %v660
    %v662 = vand.u32 %v70, 4294901760
    %663 = vmatprep.subr.mxu0 %v662
    %v664 = vand.u32 %v69, 4294901760
    %665 = vmatpush1.msra.mxu0 %v664
    %v666 = vand.u32 %v72, 4294901760
    %667 = vmatprep.subr.mxu0 %v666
    %v668 = vand.u32 %v71, 4294901760
    %669 = vmatpush1.msra.mxu0 %v668
    %v670 = vand.u32 %v74, 4294901760
    %671 = vmatprep.subr.mxu0 %v670
    %v672 = vand.u32 %v73, 4294901760
    %673 = vmatpush1.msra.mxu0 %v672
    %674 = vmatprep.subr.mxu0 0.0
    %675 = vmatpush1.msra.mxu0 0.0
    %676 = vmatprep.subr.mxu0 0.0
    %677 = vmatpush1.msra.mxu0 0.0
    %678 = vmatprep.subr.mxu0 0.0
    %679 = vmatpush1.msra.mxu0 0.0
    %680 = vmatprep.subr.mxu0 0.0
    %681 = vmatpush1.msra.mxu0 0.0
    %682 = vmatprep.subr.mxu0 0.0
    %683 = vmatpush1.msra.mxu0 0.0
    %684 = vmatprep.subr.mxu0 0.0
    %685 = vmatpush1.msra.mxu0 0.0
    %686 = vmatprep.subr.mxu0 0.0
    %687 = vmatpush1.msra.mxu0 0.0
    %688 = vmatprep.subr.mxu0 0.0
    %689 = vmatpush1.msra.mxu0 0.0
    %690 = vmatprep.subr.mxu0 0.0
    %691 = vmatpush1.msra.mxu0 0.0
    %692 = vmatprep.subr.mxu0 0.0
    %693 = vmatpush1.msra.mxu0 0.0
    %694 = vmatprep.subr.mxu0 0.0
    %695 = vmatpush1.msra.mxu0 0.0
    %696 = vmatprep.subr.mxu0 0.0
    %697 = vmatpush1.msra.mxu0 0.0
    %698 = vmatprep.subr.mxu0 0.0
    %699 = vmatpush1.msra.mxu0 0.0
    %700 = vmatprep.subr.mxu0 0.0
    %701 = vmatpush1.msra.mxu0 0.0
    %702 = vmatprep.subr.mxu0 0.0
    %703 = vmatpush1.msra.mxu0 0.0
    %704 = vmatprep.subr.mxu0 0.0
    %705 = vmatpush1.msra.mxu0 0.0
    %706 = vmatprep.subr.mxu0 0.0
    %707 = vmatpush1.msra.mxu0 0.0
    %708 = vmatprep.subr.mxu0 0.0
    %709 = vmatpush1.msra.mxu0 0.0
    %710 = vmatprep.subr.mxu0 0.0
    %711 = vmatpush1.msra.mxu0 0.0
    %712 = vmatprep.subr.mxu0 0.0
    %713 = vmatpush1.msra.mxu0 0.0
    %714 = vmatprep.subr.mxu0 0.0
    %715 = vmatpush1.msra.mxu0 0.0
    %716 = vmatprep.subr.mxu0 0.0
    %717 = vmatpush1.msra.mxu0 0.0
    %718 = vmatprep.subr.mxu0 0.0
    %719 = vmatpush1.msra.mxu0 0.0
    %720 = vmatprep.subr.mxu0 0.0
    %721 = vmatpush1.msra.mxu0 0.0
    %722 = vmatprep.mubr.f32.mxu0 0.0
    %v723 = vand.u32 %v81, 4294901760
    %724 = vmatmul.mubr.f32.gmra.mrb[0].mxu0 %v723
    %v725 = vpop.f32.mrb[0].mxu0
    %v726 = vadd.f32 %v638, %v725
    %v727 = vpop.f32.mrb[0].mxu0
    %v728 = vadd.f32 %v640, %v727
    %729 = vdwg.mxu0
    %v730 = vadd.f32 %v75, %v726
    %v731 = vadd.f32 %v76, %v728
    %v732 = vxor.u32 %v730, 2147483648
    %v733 = vxor.u32 %v731, 2147483648
    %v734 = vmul.f32 %v732, 1.442695
    %v735 = vpow.pop %v734
    %v736 = vmul.f32 %v733, 1.442695
    %v737 = vpow.pop %v736
    %v738 = vadd.f32 %v735, 1.0
    %v739 = vadd.f32 %v737, 1.0
    %v740 = vrcp.pop %v738
    %v741 = vmul.f32 1.0, %v740
    %v742 = vrcp.pop %v739
    %v743 = vmul.f32 1.0, %v742
    %v744 = vtanh.pop %v731
    %v745 = vmul.f32 %v741, 0.0
    %747 = vrot.lane.b32.xlu0 %v744, 64
    %v748 = vpop.permute.xlu0 %747
    %v750 = vmul.f32 %v741, %v748
    %752 = vrot.lane.b32.xlu0 %v750, 64
    %v753 = vpop.permute.xlu0 %752
    %v755 = vadd.f32 %v745, %v753
    %v756 = vtanh.pop %v755
    %758 = vrot.lane.b32.xlu0 %v756, 64
    %v759 = vpop.permute.xlu0 %758
    %v761 = vmul.f32 %v743, %v759
    %v763 = vsel %vm79, %v761, 0
    %v765 = vand.u32 %v60, 4294901760
    %766 = vmatprep.subr.mxu0 %v765
    %v767 = vand.u32 %v59, 4294901760
    %768 = vmatpush1.msra.mxu0 %v767
    %v769 = vand.u32 %v62, 4294901760
    %770 = vmatprep.subr.mxu0 %v769
    %v771 = vand.u32 %v61, 4294901760
    %772 = vmatpush1.msra.mxu0 %v771
    %v773 = vand.u32 %v64, 4294901760
    %774 = vmatprep.subr.mxu0 %v773
    %v775 = vand.u32 %v63, 4294901760
    %776 = vmatpush1.msra.mxu0 %v775
    %v777 = vand.u32 %v66, 4294901760
    %778 = vmatprep.subr.mxu0 %v777
    %v779 = vand.u32 %v65, 4294901760
    %780 = vmatpush1.msra.mxu0 %v779
    %v781 = vand.u32 %v68, 4294901760
    %782 = vmatprep.subr.mxu0 %v781
    %v783 = vand.u32 %v67, 4294901760
    %784 = vmatpush1.msra.mxu0 %v783
    %v785 = vand.u32 %v70, 4294901760
    %786 = vmatprep.subr.mxu0 %v785
    %v787 = vand.u32 %v69, 4294901760
    %788 = vmatpush1.msra.mxu0 %v787
    %v789 = vand.u32 %v72, 4294901760
    %790 = vmatprep.subr.mxu0 %v789
    %v791 = vand.u32 %v71, 4294901760
    %792 = vmatpush1.msra.mxu0 %v791
    %v793 = vand.u32 %v74, 4294901760
    %794 = vmatprep.subr.mxu0 %v793
    %v795 = vand.u32 %v73, 4294901760
    %796 = vmatpush1.msra.mxu0 %v795
    %797 = vmatprep.subr.mxu0 0.0
    %798 = vmatpush1.msra.mxu0 0.0
    %799 = vmatprep.subr.mxu0 0.0
    %800 = vmatpush1.msra.mxu0 0.0
    %801 = vmatprep.subr.mxu0 0.0
    %802 = vmatpush1.msra.mxu0 0.0
    %803 = vmatprep.subr.mxu0 0.0
    %804 = vmatpush1.msra.mxu0 0.0
    %805 = vmatprep.subr.mxu0 0.0
    %806 = vmatpush1.msra.mxu0 0.0
    %807 = vmatprep.subr.mxu0 0.0
    %808 = vmatpush1.msra.mxu0 0.0
    %809 = vmatprep.subr.mxu0 0.0
    %810 = vmatpush1.msra.mxu0 0.0
    %811 = vmatprep.subr.mxu0 0.0
    %812 = vmatpush1.msra.mxu0 0.0
    %813 = vmatprep.subr.mxu0 0.0
    %814 = vmatpush1.msra.mxu0 0.0
    %815 = vmatprep.subr.mxu0 0.0
    %816 = vmatpush1.msra.mxu0 0.0
    %817 = vmatprep.subr.mxu0 0.0
    %818 = vmatpush1.msra.mxu0 0.0
    %819 = vmatprep.subr.mxu0 0.0
    %820 = vmatpush1.msra.mxu0 0.0
    %821 = vmatprep.subr.mxu0 0.0
    %822 = vmatpush1.msra.mxu0 0.0
    %823 = vmatprep.subr.mxu0 0.0
    %824 = vmatpush1.msra.mxu0 0.0
    %825 = vmatprep.subr.mxu0 0.0
    %826 = vmatpush1.msra.mxu0 0.0
    %827 = vmatprep.subr.mxu0 0.0
    %828 = vmatpush1.msra.mxu0 0.0
    %829 = vmatprep.subr.mxu0 0.0
    %830 = vmatpush1.msra.mxu0 0.0
    %831 = vmatprep.subr.mxu0 0.0
    %832 = vmatpush1.msra.mxu0 0.0
    %833 = vmatprep.subr.mxu0 0.0
    %834 = vmatpush1.msra.mxu0 0.0
    %835 = vmatprep.subr.mxu0 0.0
    %836 = vmatpush1.msra.mxu0 0.0
    %837 = vmatprep.subr.mxu0 0.0
    %838 = vmatpush1.msra.mxu0 0.0
    %839 = vmatprep.subr.mxu0 0.0
    %840 = vmatpush1.msra.mxu0 0.0
    %841 = vmatprep.subr.mxu0 0.0
    %842 = vmatpush1.msra.mxu0 0.0
    %843 = vmatprep.subr.mxu0 0.0
    %844 = vmatpush1.msra.mxu0 0.0
    %845 = vmatprep.mubr.f32.mxu0 0.0
    %v846 = vand.u32 %v763, 4294901760
    %v847 = vsub.f32 %v763, %v846
    %v848 = vand.u32 %v847, 4294901760
    %v849 = vsub.f32 %v847, %v848
    %v850 = vand.u32 %v849, 4294901760
    %851 = vmatmul.mubr.f32.gmra.mrb[0].mxu0 %v850
    %v852 = vpop.f32.mrb[0].mxu0
    %v853 = vadd.f32 0.0, %v852
    %v854 = vpop.f32.mrb[0].mxu0
    %v855 = vadd.f32 0.0, %v854
    %856 = vdwg.mxu0
    %v857 = vand.u32 %v60, 4294901760
    %v858 = vsub.f32 %v60, %v857
    %v859 = vand.u32 %v858, 4294901760
    %v860 = vsub.f32 %v858, %v859
    %v861 = vand.u32 %v860, 4294901760
    %862 = vmatprep.subr.mxu0 %v861
    %v863 = vand.u32 %v59, 4294901760
    %v864 = vsub.f32 %v59, %v863
    %v865 = vand.u32 %v864, 4294901760
    %v866 = vsub.f32 %v864, %v865
    %v867 = vand.u32 %v866, 4294901760
    %868 = vmatpush1.msra.mxu0 %v867
    %v869 = vand.u32 %v62, 4294901760
    %v870 = vsub.f32 %v62, %v869
    %v871 = vand.u32 %v870, 4294901760
    %v872 = vsub.f32 %v870, %v871
    %v873 = vand.u32 %v872, 4294901760
    %874 = vmatprep.subr.mxu0 %v873
    %v875 = vand.u32 %v61, 4294901760
    %v876 = vsub.f32 %v61, %v875
    %v877 = vand.u32 %v876, 4294901760
    %v878 = vsub.f32 %v876, %v877
    %v879 = vand.u32 %v878, 4294901760
    %880 = vmatpush1.msra.mxu0 %v879
    %v881 = vand.u32 %v64, 4294901760
    %v882 = vsub.f32 %v64, %v881
    %v883 = vand.u32 %v882, 4294901760
    %v884 = vsub.f32 %v882, %v883
    %v885 = vand.u32 %v884, 4294901760
    %886 = vmatprep.subr.mxu0 %v885
    %v887 = vand.u32 %v63, 4294901760
    %v888 = vsub.f32 %v63, %v887
    %v889 = vand.u32 %v888, 4294901760
    %v890 = vsub.f32 %v888, %v889
    %v891 = vand.u32 %v890, 4294901760
    %892 = vmatpush1.msra.mxu0 %v891
    %v893 = vand.u32 %v66, 4294901760
    %v894 = vsub.f32 %v66, %v893
    %v895 = vand.u32 %v894, 4294901760
    %v896 = vsub.f32 %v894, %v895
    %v897 = vand.u32 %v896, 4294901760
    %898 = vmatprep.subr.mxu0 %v897
    %v899 = vand.u32 %v65, 4294901760
    %v900 = vsub.f32 %v65, %v899
    %v901 = vand.u32 %v900, 4294901760
    %v902 = vsub.f32 %v900, %v901
    %v903 = vand.u32 %v902, 4294901760
    %904 = vmatpush1.msra.mxu0 %v903
    %v905 = vand.u32 %v68, 4294901760
    %v906 = vsub.f32 %v68, %v905
    %v907 = vand.u32 %v906, 4294901760
    %v908 = vsub.f32 %v906, %v907
    %v909 = vand.u32 %v908, 4294901760
    %910 = vmatprep.subr.mxu0 %v909
    %v911 = vand.u32 %v67, 4294901760
    %v912 = vsub.f32 %v67, %v911
    %v913 = vand.u32 %v912, 4294901760
    %v914 = vsub.f32 %v912, %v913
    %v915 = vand.u32 %v914, 4294901760
    %916 = vmatpush1.msra.mxu0 %v915
    %v917 = vand.u32 %v70, 4294901760
    %v918 = vsub.f32 %v70, %v917
    %v919 = vand.u32 %v918, 4294901760
    %v920 = vsub.f32 %v918, %v919
    %v921 = vand.u32 %v920, 4294901760
    %922 = vmatprep.subr.mxu0 %v921
    %v923 = vand.u32 %v69, 4294901760
    %v924 = vsub.f32 %v69, %v923
    %v925 = vand.u32 %v924, 4294901760
    %v926 = vsub.f32 %v924, %v925
    %v927 = vand.u32 %v926, 4294901760
    %928 = vmatpush1.msra.mxu0 %v927
    %v929 = vand.u32 %v72, 4294901760
    %v930 = vsub.f32 %v72, %v929
    %v931 = vand.u32 %v930, 4294901760
    %v932 = vsub.f32 %v930, %v931
    %v933 = vand.u32 %v932, 4294901760
    %934 = vmatprep.subr.mxu0 %v933
    %v935 = vand.u32 %v71, 4294901760
    %v936 = vsub.f32 %v71, %v935
    %v937 = vand.u32 %v936, 4294901760
    %v938 = vsub.f32 %v936, %v937
    %v939 = vand.u32 %v938, 4294901760
    %940 = vmatpush1.msra.mxu0 %v939
    %v941 = vand.u32 %v74, 4294901760
    %v942 = vsub.f32 %v74, %v941
    %v943 = vand.u32 %v942, 4294901760
    %v944 = vsub.f32 %v942, %v943
    %v945 = vand.u32 %v944, 4294901760
    %946 = vmatprep.subr.mxu0 %v945
    %v947 = vand.u32 %v73, 4294901760
    %v948 = vsub.f32 %v73, %v947
    %v949 = vand.u32 %v948, 4294901760
    %v950 = vsub.f32 %v948, %v949
    %v951 = vand.u32 %v950, 4294901760
    %952 = vmatpush1.msra.mxu0 %v951
    %953 = vmatprep.subr.mxu0 0.0
    %954 = vmatpush1.msra.mxu0 0.0
    %955 = vmatprep.subr.mxu0 0.0
    %956 = vmatpush1.msra.mxu0 0.0
    %957 = vmatprep.subr.mxu0 0.0
    %958 = vmatpush1.msra.mxu0 0.0
    %959 = vmatprep.subr.mxu0 0.0
    %960 = vmatpush1.msra.mxu0 0.0
    %961 = vmatprep.subr.mxu0 0.0
    %962 = vmatpush1.msra.mxu0 0.0
    %963 = vmatprep.subr.mxu0 0.0
    %964 = vmatpush1.msra.mxu0 0.0
    %965 = vmatprep.subr.mxu0 0.0
    %966 = vmatpush1.msra.mxu0 0.0
    %967 = vmatprep.subr.mxu0 0.0
    %968 = vmatpush1.msra.mxu0 0.0
    %969 = vmatprep.subr.mxu0 0.0
    %970 = vmatpush1.msra.mxu0 0.0
    %971 = vmatprep.subr.mxu0 0.0
    %972 = vmatpush1.msra.mxu0 0.0
    %973 = vmatprep.subr.mxu0 0.0
    %974 = vmatpush1.msra.mxu0 0.0
    %975 = vmatprep.subr.mxu0 0.0
    %976 = vmatpush1.msra.mxu0 0.0
    %977 = vmatprep.subr.mxu0 0.0
    %978 = vmatpush1.msra.mxu0 0.0
    %979 = vmatprep.subr.mxu0 0.0
    %980 = vmatpush1.msra.mxu0 0.0
    %981 = vmatprep.subr.mxu0 0.0
    %982 = vmatpush1.msra.mxu0 0.0
    %983 = vmatprep.subr.mxu0 0.0
    %984 = vmatpush1.msra.mxu0 0.0
    %985 = vmatprep.subr.mxu0 0.0
    %986 = vmatpush1.msra.mxu0 0.0
    %987 = vmatprep.subr.mxu0 0.0
    %988 = vmatpush1.msra.mxu0 0.0
    %989 = vmatprep.subr.mxu0 0.0
    %990 = vmatpush1.msra.mxu0 0.0
    %991 = vmatprep.subr.mxu0 0.0
    %992 = vmatpush1.msra.mxu0 0.0
    %993 = vmatprep.subr.mxu0 0.0
    %994 = vmatpush1.msra.mxu0 0.0
    %995 = vmatprep.subr.mxu0 0.0
    %996 = vmatpush1.msra.mxu0 0.0
    %997 = vmatprep.subr.mxu0 0.0
    %998 = vmatpush1.msra.mxu0 0.0
    %999 = vmatprep.subr.mxu0 0.0
    %1000 = vmatpush1.msra.mxu0 0.0
    %1001 = vmatprep.mubr.f32.mxu0 0.0
    %v1002 = vand.u32 %v763, 4294901760
    %1003 = vmatmul.mubr.f32.gmra.mrb[0].mxu0 %v1002
    %v1004 = vpop.f32.mrb[0].mxu0
    %v1005 = vadd.f32 %v853, %v1004
    %v1006 = vpop.f32.mrb[0].mxu0
    %v1007 = vadd.f32 %v855, %v1006
    %1008 = vdwg.mxu0
    %v1009 = vand.u32 %v60, 4294901760
    %v1010 = vsub.f32 %v60, %v1009
    %1011 = vmatprep.subr.mxu0 %v1010
    %v1012 = vand.u32 %v59, 4294901760
    %v1013 = vsub.f32 %v59, %v1012
    %1014 = vmatpush1.msra.mxu0 %v1013
    %v1015 = vand.u32 %v62, 4294901760
    %v1016 = vsub.f32 %v62, %v1015
    %1017 = vmatprep.subr.mxu0 %v1016
    %v1018 = vand.u32 %v61, 4294901760
    %v1019 = vsub.f32 %v61, %v1018
    %1020 = vmatpush1.msra.mxu0 %v1019
    %v1021 = vand.u32 %v64, 4294901760
    %v1022 = vsub.f32 %v64, %v1021
    %1023 = vmatprep.subr.mxu0 %v1022
    %v1024 = vand.u32 %v63, 4294901760
    %v1025 = vsub.f32 %v63, %v1024
    %1026 = vmatpush1.msra.mxu0 %v1025
    %v1027 = vand.u32 %v66, 4294901760
    %v1028 = vsub.f32 %v66, %v1027
    %1029 = vmatprep.subr.mxu0 %v1028
    %v1030 = vand.u32 %v65, 4294901760
    %v1031 = vsub.f32 %v65, %v1030
    %1032 = vmatpush1.msra.mxu0 %v1031
    %v1033 = vand.u32 %v68, 4294901760
    %v1034 = vsub.f32 %v68, %v1033
    %1035 = vmatprep.subr.mxu0 %v1034
    %v1036 = vand.u32 %v67, 4294901760
    %v1037 = vsub.f32 %v67, %v1036
    %1038 = vmatpush1.msra.mxu0 %v1037
    %v1039 = vand.u32 %v70, 4294901760
    %v1040 = vsub.f32 %v70, %v1039
    %1041 = vmatprep.subr.mxu0 %v1040
    %v1042 = vand.u32 %v69, 4294901760
    %v1043 = vsub.f32 %v69, %v1042
    %1044 = vmatpush1.msra.mxu0 %v1043
    %v1045 = vand.u32 %v72, 4294901760
    %v1046 = vsub.f32 %v72, %v1045
    %1047 = vmatprep.subr.mxu0 %v1046
    %v1048 = vand.u32 %v71, 4294901760
    %v1049 = vsub.f32 %v71, %v1048
    %1050 = vmatpush1.msra.mxu0 %v1049
    %v1051 = vand.u32 %v74, 4294901760
    %v1052 = vsub.f32 %v74, %v1051
    %1053 = vmatprep.subr.mxu0 %v1052
    %v1054 = vand.u32 %v73, 4294901760
    %v1055 = vsub.f32 %v73, %v1054
    %1056 = vmatpush1.msra.mxu0 %v1055
    %1057 = vmatprep.subr.mxu0 0.0
    %1058 = vmatpush1.msra.mxu0 0.0
    %1059 = vmatprep.subr.mxu0 0.0
    %1060 = vmatpush1.msra.mxu0 0.0
    %1061 = vmatprep.subr.mxu0 0.0
    %1062 = vmatpush1.msra.mxu0 0.0
    %1063 = vmatprep.subr.mxu0 0.0
    %1064 = vmatpush1.msra.mxu0 0.0
    %1065 = vmatprep.subr.mxu0 0.0
    %1066 = vmatpush1.msra.mxu0 0.0
    %1067 = vmatprep.subr.mxu0 0.0
    %1068 = vmatpush1.msra.mxu0 0.0
    %1069 = vmatprep.subr.mxu0 0.0
    %1070 = vmatpush1.msra.mxu0 0.0
    %1071 = vmatprep.subr.mxu0 0.0
    %1072 = vmatpush1.msra.mxu0 0.0
    %1073 = vmatprep.subr.mxu0 0.0
    %1074 = vmatpush1.msra.mxu0 0.0
    %1075 = vmatprep.subr.mxu0 0.0
    %1076 = vmatpush1.msra.mxu0 0.0
    %1077 = vmatprep.subr.mxu0 0.0
    %1078 = vmatpush1.msra.mxu0 0.0
    %1079 = vmatprep.subr.mxu0 0.0
    %1080 = vmatpush1.msra.mxu0 0.0
    %1081 = vmatprep.subr.mxu0 0.0
    %1082 = vmatpush1.msra.mxu0 0.0
    %1083 = vmatprep.subr.mxu0 0.0
    %1084 = vmatpush1.msra.mxu0 0.0
    %1085 = vmatprep.subr.mxu0 0.0
    %1086 = vmatpush1.msra.mxu0 0.0
    %1087 = vmatprep.subr.mxu0 0.0
    %1088 = vmatpush1.msra.mxu0 0.0
    %1089 = vmatprep.subr.mxu0 0.0
    %1090 = vmatpush1.msra.mxu0 0.0
    %1091 = vmatprep.subr.mxu0 0.0
    %1092 = vmatpush1.msra.mxu0 0.0
    %1093 = vmatprep.subr.mxu0 0.0
    %1094 = vmatpush1.msra.mxu0 0.0
    %1095 = vmatprep.subr.mxu0 0.0
    %1096 = vmatpush1.msra.mxu0 0.0
    %1097 = vmatprep.subr.mxu0 0.0
    %1098 = vmatpush1.msra.mxu0 0.0
    %1099 = vmatprep.subr.mxu0 0.0
    %1100 = vmatpush1.msra.mxu0 0.0
    %1101 = vmatprep.subr.mxu0 0.0
    %1102 = vmatpush1.msra.mxu0 0.0
    %1103 = vmatprep.subr.mxu0 0.0
    %1104 = vmatpush1.msra.mxu0 0.0
    %1105 = vmatprep.mubr.f32.mxu0 0.0
    %v1106 = vand.u32 %v763, 4294901760
    %v1107 = vsub.f32 %v763, %v1106
    %1108 = vmatmul.mubr.f32.gmra.mrb[0].mxu0 %v1107
    %v1109 = vpop.f32.mrb[0].mxu0
    %v1110 = vadd.f32 %v1005, %v1109
    %v1111 = vpop.f32.mrb[0].mxu0
    %v1112 = vadd.f32 %v1007, %v1111
    %1113 = vdwg.mxu0
    %v1114 = vand.u32 %v60, 4294901760
    %1115 = vmatprep.subr.mxu0 %v1114
    %v1116 = vand.u32 %v59, 4294901760
    %1117 = vmatpush1.msra.mxu0 %v1116
    %v1118 = vand.u32 %v62, 4294901760
    %1119 = vmatprep.subr.mxu0 %v1118
    %v1120 = vand.u32 %v61, 4294901760
    %1121 = vmatpush1.msra.mxu0 %v1120
    %v1122 = vand.u32 %v64, 4294901760
    %1123 = vmatprep.subr.mxu0 %v1122
    %v1124 = vand.u32 %v63, 4294901760
    %1125 = vmatpush1.msra.mxu0 %v1124
    %v1126 = vand.u32 %v66, 4294901760
    %1127 = vmatprep.subr.mxu0 %v1126
    %v1128 = vand.u32 %v65, 4294901760
    %1129 = vmatpush1.msra.mxu0 %v1128
    %v1130 = vand.u32 %v68, 4294901760
    %1131 = vmatprep.subr.mxu0 %v1130
    %v1132 = vand.u32 %v67, 4294901760
    %1133 = vmatpush1.msra.mxu0 %v1132
    %v1134 = vand.u32 %v70, 4294901760
    %1135 = vmatprep.subr.mxu0 %v1134
    %v1136 = vand.u32 %v69, 4294901760
    %1137 = vmatpush1.msra.mxu0 %v1136
    %v1138 = vand.u32 %v72, 4294901760
    %1139 = vmatprep.subr.mxu0 %v1138
    %v1140 = vand.u32 %v71, 4294901760
    %1141 = vmatpush1.msra.mxu0 %v1140
    %v1142 = vand.u32 %v74, 4294901760
    %1143 = vmatprep.subr.mxu0 %v1142
    %v1144 = vand.u32 %v73, 4294901760
    %1145 = vmatpush1.msra.mxu0 %v1144
    %1146 = vmatprep.subr.mxu0 0.0
    %1147 = vmatpush1.msra.mxu0 0.0
    %1148 = vmatprep.subr.mxu0 0.0
    %1149 = vmatpush1.msra.mxu0 0.0
    %1150 = vmatprep.subr.mxu0 0.0
    %1151 = vmatpush1.msra.mxu0 0.0
    %1152 = vmatprep.subr.mxu0 0.0
    %1153 = vmatpush1.msra.mxu0 0.0
    %1154 = vmatprep.subr.mxu0 0.0
    %1155 = vmatpush1.msra.mxu0 0.0
    %1156 = vmatprep.subr.mxu0 0.0
    %1157 = vmatpush1.msra.mxu0 0.0
    %1158 = vmatprep.subr.mxu0 0.0
    %1159 = vmatpush1.msra.mxu0 0.0
    %1160 = vmatprep.subr.mxu0 0.0
    %1161 = vmatpush1.msra.mxu0 0.0
    %1162 = vmatprep.subr.mxu0 0.0
    %1163 = vmatpush1.msra.mxu0 0.0
    %1164 = vmatprep.subr.mxu0 0.0
    %1165 = vmatpush1.msra.mxu0 0.0
    %1166 = vmatprep.subr.mxu0 0.0
    %1167 = vmatpush1.msra.mxu0 0.0
    %1168 = vmatprep.subr.mxu0 0.0
    %1169 = vmatpush1.msra.mxu0 0.0
    %1170 = vmatprep.subr.mxu0 0.0
    %1171 = vmatpush1.msra.mxu0 0.0
    %1172 = vmatprep.subr.mxu0 0.0
    %1173 = vmatpush1.msra.mxu0 0.0
    %1174 = vmatprep.subr.mxu0 0.0
    %1175 = vmatpush1.msra.mxu0 0.0
    %1176 = vmatprep.subr.mxu0 0.0
    %1177 = vmatpush1.msra.mxu0 0.0
    %1178 = vmatprep.subr.mxu0 0.0
    %1179 = vmatpush1.msra.mxu0 0.0
    %1180 = vmatprep.subr.mxu0 0.0
    %1181 = vmatpush1.msra.mxu0 0.0
    %1182 = vmatprep.subr.mxu0 0.0
    %1183 = vmatpush1.msra.mxu0 0.0
    %1184 = vmatprep.subr.mxu0 0.0
    %1185 = vmatpush1.msra.mxu0 0.0
    %1186 = vmatprep.subr.mxu0 0.0
    %1187 = vmatpush1.msra.mxu0 0.0
    %1188 = vmatprep.subr.mxu0 0.0
    %1189 = vmatpush1.msra.mxu0 0.0
    %1190 = vmatprep.subr.mxu0 0.0
    %1191 = vmatpush1.msra.mxu0 0.0
    %1192 = vmatprep.subr.mxu0 0.0
    %1193 = vmatpush1.msra.mxu0 0.0
    %1194 = vmatprep.mubr.f32.mxu0 0.0
    %v1195 = vand.u32 %v763, 4294901760
    %v1196 = vsub.f32 %v763, %v1195
    %v1197 = vand.u32 %v1196, 4294901760
    %1198 = vmatmul.mubr.f32.gmra.mrb[0].mxu0 %v1197
    %v1199 = vpop.f32.mrb[0].mxu0
    %v1200 = vadd.f32 %v1110, %v1199
    %v1201 = vpop.f32.mrb[0].mxu0
    %v1202 = vadd.f32 %v1112, %v1201
    %1203 = vdwg.mxu0
    %v1204 = vand.u32 %v60, 4294901760
    %v1205 = vsub.f32 %v60, %v1204
    %v1206 = vand.u32 %v1205, 4294901760
    %1207 = vmatprep.subr.mxu0 %v1206
    %v1208 = vand.u32 %v59, 4294901760
    %v1209 = vsub.f32 %v59, %v1208
    %v1210 = vand.u32 %v1209, 4294901760
    %1211 = vmatpush1.msra.mxu0 %v1210
    %v1212 = vand.u32 %v62, 4294901760
    %v1213 = vsub.f32 %v62, %v1212
    %v1214 = vand.u32 %v1213, 4294901760
    %1215 = vmatprep.subr.mxu0 %v1214
    %v1216 = vand.u32 %v61, 4294901760
    %v1217 = vsub.f32 %v61, %v1216
    %v1218 = vand.u32 %v1217, 4294901760
    %1219 = vmatpush1.msra.mxu0 %v1218
    %v1220 = vand.u32 %v64, 4294901760
    %v1221 = vsub.f32 %v64, %v1220
    %v1222 = vand.u32 %v1221, 4294901760
    %1223 = vmatprep.subr.mxu0 %v1222
    %v1224 = vand.u32 %v63, 4294901760
    %v1225 = vsub.f32 %v63, %v1224
    %v1226 = vand.u32 %v1225, 4294901760
    %1227 = vmatpush1.msra.mxu0 %v1226
    %v1228 = vand.u32 %v66, 4294901760
    %v1229 = vsub.f32 %v66, %v1228
    %v1230 = vand.u32 %v1229, 4294901760
    %1231 = vmatprep.subr.mxu0 %v1230
    %v1232 = vand.u32 %v65, 4294901760
    %v1233 = vsub.f32 %v65, %v1232
    %v1234 = vand.u32 %v1233, 4294901760
    %1235 = vmatpush1.msra.mxu0 %v1234
    %v1236 = vand.u32 %v68, 4294901760
    %v1237 = vsub.f32 %v68, %v1236
    %v1238 = vand.u32 %v1237, 4294901760
    %1239 = vmatprep.subr.mxu0 %v1238
    %v1240 = vand.u32 %v67, 4294901760
    %v1241 = vsub.f32 %v67, %v1240
    %v1242 = vand.u32 %v1241, 4294901760
    %1243 = vmatpush1.msra.mxu0 %v1242
    %v1244 = vand.u32 %v70, 4294901760
    %v1245 = vsub.f32 %v70, %v1244
    %v1246 = vand.u32 %v1245, 4294901760
    %1247 = vmatprep.subr.mxu0 %v1246
    %v1248 = vand.u32 %v69, 4294901760
    %v1249 = vsub.f32 %v69, %v1248
    %v1250 = vand.u32 %v1249, 4294901760
    %1251 = vmatpush1.msra.mxu0 %v1250
    %v1252 = vand.u32 %v72, 4294901760
    %v1253 = vsub.f32 %v72, %v1252
    %v1254 = vand.u32 %v1253, 4294901760
    %1255 = vmatprep.subr.mxu0 %v1254
    %v1256 = vand.u32 %v71, 4294901760
    %v1257 = vsub.f32 %v71, %v1256
    %v1258 = vand.u32 %v1257, 4294901760
    %1259 = vmatpush1.msra.mxu0 %v1258
    %v1260 = vand.u32 %v74, 4294901760
    %v1261 = vsub.f32 %v74, %v1260
    %v1262 = vand.u32 %v1261, 4294901760
    %1263 = vmatprep.subr.mxu0 %v1262
    %v1264 = vand.u32 %v73, 4294901760
    %v1265 = vsub.f32 %v73, %v1264
    %v1266 = vand.u32 %v1265, 4294901760
    %1267 = vmatpush1.msra.mxu0 %v1266
    %1268 = vmatprep.subr.mxu0 0.0
    %1269 = vmatpush1.msra.mxu0 0.0
    %1270 = vmatprep.subr.mxu0 0.0
    %1271 = vmatpush1.msra.mxu0 0.0
    %1272 = vmatprep.subr.mxu0 0.0
    %1273 = vmatpush1.msra.mxu0 0.0
    %1274 = vmatprep.subr.mxu0 0.0
    %1275 = vmatpush1.msra.mxu0 0.0
    %1276 = vmatprep.subr.mxu0 0.0
    %1277 = vmatpush1.msra.mxu0 0.0
    %1278 = vmatprep.subr.mxu0 0.0
    %1279 = vmatpush1.msra.mxu0 0.0
    %1280 = vmatprep.subr.mxu0 0.0
    %1281 = vmatpush1.msra.mxu0 0.0
    %1282 = vmatprep.subr.mxu0 0.0
    %1283 = vmatpush1.msra.mxu0 0.0
    %1284 = vmatprep.subr.mxu0 0.0
    %1285 = vmatpush1.msra.mxu0 0.0
    %1286 = vmatprep.subr.mxu0 0.0
    %1287 = vmatpush1.msra.mxu0 0.0
    %1288 = vmatprep.subr.mxu0 0.0
    %1289 = vmatpush1.msra.mxu0 0.0
    %1290 = vmatprep.subr.mxu0 0.0
    %1291 = vmatpush1.msra.mxu0 0.0
    %1292 = vmatprep.subr.mxu0 0.0
    %1293 = vmatpush1.msra.mxu0 0.0
    %1294 = vmatprep.subr.mxu0 0.0
    %1295 = vmatpush1.msra.mxu0 0.0
    %1296 = vmatprep.subr.mxu0 0.0
    %1297 = vmatpush1.msra.mxu0 0.0
    %1298 = vmatprep.subr.mxu0 0.0
    %1299 = vmatpush1.msra.mxu0 0.0
    %1300 = vmatprep.subr.mxu0 0.0
    %1301 = vmatpush1.msra.mxu0 0.0
    %1302 = vmatprep.subr.mxu0 0.0
    %1303 = vmatpush1.msra.mxu0 0.0
    %1304 = vmatprep.subr.mxu0 0.0
    %1305 = vmatpush1.msra.mxu0 0.0
    %1306 = vmatprep.subr.mxu0 0.0
    %1307 = vmatpush1.msra.mxu0 0.0
    %1308 = vmatprep.subr.mxu0 0.0
    %1309 = vmatpush1.msra.mxu0 0.0
    %1310 = vmatprep.subr.mxu0 0.0
    %1311 = vmatpush1.msra.mxu0 0.0
    %1312 = vmatprep.subr.mxu0 0.0
    %1313 = vmatpush1.msra.mxu0 0.0
    %1314 = vmatprep.subr.mxu0 0.0
    %1315 = vmatpush1.msra.mxu0 0.0
    %1316 = vmatprep.mubr.f32.mxu0 0.0
    %v1317 = vand.u32 %v763, 4294901760
    %1318 = vmatmul.mubr.f32.gmra.mrb[0].mxu0 %v1317
    %v1319 = vpop.f32.mrb[0].mxu0
    %v1320 = vadd.f32 %v1200, %v1319
    %v1321 = vpop.f32.mrb[0].mxu0
    %v1322 = vadd.f32 %v1202, %v1321
    %1323 = vdwg.mxu0
    %v1324 = vand.u32 %v60, 4294901760
    %1325 = vmatprep.subr.mxu0 %v1324
    %v1326 = vand.u32 %v59, 4294901760
    %1327 = vmatpush1.msra.mxu0 %v1326
    %v1328 = vand.u32 %v62, 4294901760
    %1329 = vmatprep.subr.mxu0 %v1328
    %v1330 = vand.u32 %v61, 4294901760
    %1331 = vmatpush1.msra.mxu0 %v1330
    %v1332 = vand.u32 %v64, 4294901760
    %1333 = vmatprep.subr.mxu0 %v1332
    %v1334 = vand.u32 %v63, 4294901760
    %1335 = vmatpush1.msra.mxu0 %v1334
    %v1336 = vand.u32 %v66, 4294901760
    %1337 = vmatprep.subr.mxu0 %v1336
    %v1338 = vand.u32 %v65, 4294901760
    %1339 = vmatpush1.msra.mxu0 %v1338
    %v1340 = vand.u32 %v68, 4294901760
    %1341 = vmatprep.subr.mxu0 %v1340
    %v1342 = vand.u32 %v67, 4294901760
    %1343 = vmatpush1.msra.mxu0 %v1342
    %v1344 = vand.u32 %v70, 4294901760
    %1345 = vmatprep.subr.mxu0 %v1344
    %v1346 = vand.u32 %v69, 4294901760
    %1347 = vmatpush1.msra.mxu0 %v1346
    %v1348 = vand.u32 %v72, 4294901760
    %1349 = vmatprep.subr.mxu0 %v1348
    %v1350 = vand.u32 %v71, 4294901760
    %1351 = vmatpush1.msra.mxu0 %v1350
    %v1352 = vand.u32 %v74, 4294901760
    %1353 = vmatprep.subr.mxu0 %v1352
    %v1354 = vand.u32 %v73, 4294901760
    %1355 = vmatpush1.msra.mxu0 %v1354
    %1356 = vmatprep.subr.mxu0 0.0
    %1357 = vmatpush1.msra.mxu0 0.0
    %1358 = vmatprep.subr.mxu0 0.0
    %1359 = vmatpush1.msra.mxu0 0.0
    %1360 = vmatprep.subr.mxu0 0.0
    %1361 = vmatpush1.msra.mxu0 0.0
    %1362 = vmatprep.subr.mxu0 0.0
    %1363 = vmatpush1.msra.mxu0 0.0
    %1364 = vmatprep.subr.mxu0 0.0
    %1365 = vmatpush1.msra.mxu0 0.0
    %1366 = vmatprep.subr.mxu0 0.0
    %1367 = vmatpush1.msra.mxu0 0.0
    %1368 = vmatprep.subr.mxu0 0.0
    %1369 = vmatpush1.msra.mxu0 0.0
    %1370 = vmatprep.subr.mxu0 0.0
    %1371 = vmatpush1.msra.mxu0 0.0
    %1372 = vmatprep.subr.mxu0 0.0
    %1373 = vmatpush1.msra.mxu0 0.0
    %1374 = vmatprep.subr.mxu0 0.0
    %1375 = vmatpush1.msra.mxu0 0.0
    %1376 = vmatprep.subr.mxu0 0.0
    %1377 = vmatpush1.msra.mxu0 0.0
    %1378 = vmatprep.subr.mxu0 0.0
    %1379 = vmatpush1.msra.mxu0 0.0
    %1380 = vmatprep.subr.mxu0 0.0
    %1381 = vmatpush1.msra.mxu0 0.0
    %1382 = vmatprep.subr.mxu0 0.0
    %1383 = vmatpush1.msra.mxu0 0.0
    %1384 = vmatprep.subr.mxu0 0.0
    %1385 = vmatpush1.msra.mxu0 0.0
    %1386 = vmatprep.subr.mxu0 0.0
    %1387 = vmatpush1.msra.mxu0 0.0
    %1388 = vmatprep.subr.mxu0 0.0
    %1389 = vmatpush1.msra.mxu0 0.0
    %1390 = vmatprep.subr.mxu0 0.0
    %1391 = vmatpush1.msra.mxu0 0.0
    %1392 = vmatprep.subr.mxu0 0.0
    %1393 = vmatpush1.msra.mxu0 0.0
    %1394 = vmatprep.subr.mxu0 0.0
    %1395 = vmatpush1.msra.mxu0 0.0
    %1396 = vmatprep.subr.mxu0 0.0
    %1397 = vmatpush1.msra.mxu0 0.0
    %1398 = vmatprep.subr.mxu0 0.0
    %1399 = vmatpush1.msra.mxu0 0.0
    %1400 = vmatprep.subr.mxu0 0.0
    %1401 = vmatpush1.msra.mxu0 0.0
    %1402 = vmatprep.subr.mxu0 0.0
    %1403 = vmatpush1.msra.mxu0 0.0
    %1404 = vmatprep.mubr.f32.mxu0 0.0
    %v1405 = vand.u32 %v763, 4294901760
    %1406 = vmatmul.mubr.f32.gmra.mrb[0].mxu0 %v1405
    %v1407 = vpop.f32.mrb[0].mxu0
    %v1408 = vadd.f32 %v1320, %v1407
    %v1409 = vpop.f32.mrb[0].mxu0
    %v1410 = vadd.f32 %v1322, %v1409
    %1411 = vdwg.mxu0
    %v1414 = vrot.slane %v1408, 6
    %v1415 = vrot.slane %v1410, 6
    %v1418 = vadd.f32 %v75, %v1414
    %v1419 = vadd.f32 %v76, %v1415
    %v1420 = vxor.u32 %v1418, 2147483648
    %v1421 = vxor.u32 %v1419, 2147483648
    %v1422 = vmul.f32 %v1420, 1.442695
    %v1423 = vpow.pop %v1422
    %v1424 = vmul.f32 %v1421, 1.442695
    %v1425 = vpow.pop %v1424
    %v1426 = vadd.f32 %v1423, 1.0
    %v1427 = vadd.f32 %v1425, 1.0
    %v1428 = vrcp.pop %v1426
    %v1429 = vmul.f32 1.0, %v1428
    %v1430 = vrcp.pop %v1427
    %v1431 = vmul.f32 1.0, %v1430
    %v1432 = vtanh.pop %v1419
    %v1434 = vrot.slane %v755, 6
    %v1436 = vmul.f32 %v1429, %v1434
    %1438 = vrot.lane.b32.xlu0 %v1432, 64
    %v1439 = vpop.permute.xlu0 %1438
    %v1441 = vmul.f32 %v1429, %v1439
    %1443 = vrot.lane.b32.xlu0 %v1441, 64
    %v1444 = vpop.permute.xlu0 %1443
    %v1446 = vadd.f32 %v1436, %v1444
    %v1447 = vtanh.pop %v1446
    %1449 = vrot.lane.b32.xlu0 %v1447, 64
    %v1450 = vpop.permute.xlu0 %1449
    %v1452 = vmul.f32 %v1431, %v1450
    %v1454 = vrot.slane %v1452, 2
    %v1455 = vsel %vm79, %v1454, 0
    %v1457 = vand.u32 %v60, 4294901760
    %1458 = vmatprep.subr.mxu0 %v1457
    %v1459 = vand.u32 %v59, 4294901760
    %1460 = vmatpush1.msra.mxu0 %v1459
    %v1461 = vand.u32 %v62, 4294901760
    %1462 = vmatprep.subr.mxu0 %v1461
    %v1463 = vand.u32 %v61, 4294901760
    %1464 = vmatpush1.msra.mxu0 %v1463
    %v1465 = vand.u32 %v64, 4294901760
    %1466 = vmatprep.subr.mxu0 %v1465
    %v1467 = vand.u32 %v63, 4294901760
    %1468 = vmatpush1.msra.mxu0 %v1467
    %v1469 = vand.u32 %v66, 4294901760
    %1470 = vmatprep.subr.mxu0 %v1469
    %v1471 = vand.u32 %v65, 4294901760
    %1472 = vmatpush1.msra.mxu0 %v1471
    %v1473 = vand.u32 %v68, 4294901760
    %1474 = vmatprep.subr.mxu0 %v1473
    %v1475 = vand.u32 %v67, 4294901760
    %1476 = vmatpush1.msra.mxu0 %v1475
    %v1477 = vand.u32 %v70, 4294901760
    %1478 = vmatprep.subr.mxu0 %v1477
    %v1479 = vand.u32 %v69, 4294901760
    %1480 = vmatpush1.msra.mxu0 %v1479
    %v1481 = vand.u32 %v72, 4294901760
    %1482 = vmatprep.subr.mxu0 %v1481
    %v1483 = vand.u32 %v71, 4294901760
    %1484 = vmatpush1.msra.mxu0 %v1483
    %v1485 = vand.u32 %v74, 4294901760
    %1486 = vmatprep.subr.mxu0 %v1485
    %v1487 = vand.u32 %v73, 4294901760
    %1488 = vmatpush1.msra.mxu0 %v1487
    %1489 = vmatprep.subr.mxu0 0.0
    %1490 = vmatpush1.msra.mxu0 0.0
    %1491 = vmatprep.subr.mxu0 0.0
    %1492 = vmatpush1.msra.mxu0 0.0
    %1493 = vmatprep.subr.mxu0 0.0
    %1494 = vmatpush1.msra.mxu0 0.0
    %1495 = vmatprep.subr.mxu0 0.0
    %1496 = vmatpush1.msra.mxu0 0.0
    %1497 = vmatprep.subr.mxu0 0.0
    %1498 = vmatpush1.msra.mxu0 0.0
    %1499 = vmatprep.subr.mxu0 0.0
    %1500 = vmatpush1.msra.mxu0 0.0
    %1501 = vmatprep.subr.mxu0 0.0
    %1502 = vmatpush1.msra.mxu0 0.0
    %1503 = vmatprep.subr.mxu0 0.0
    %1504 = vmatpush1.msra.mxu0 0.0
    %1505 = vmatprep.subr.mxu0 0.0
    %1506 = vmatpush1.msra.mxu0 0.0
    %1507 = vmatprep.subr.mxu0 0.0
    %1508 = vmatpush1.msra.mxu0 0.0
    %1509 = vmatprep.subr.mxu0 0.0
    %1510 = vmatpush1.msra.mxu0 0.0
    %1511 = vmatprep.subr.mxu0 0.0
    %1512 = vmatpush1.msra.mxu0 0.0
    %1513 = vmatprep.subr.mxu0 0.0
    %1514 = vmatpush1.msra.mxu0 0.0
    %1515 = vmatprep.subr.mxu0 0.0
    %1516 = vmatpush1.msra.mxu0 0.0
    %1517 = vmatprep.subr.mxu0 0.0
    %1518 = vmatpush1.msra.mxu0 0.0
    %1519 = vmatprep.subr.mxu0 0.0
    %1520 = vmatpush1.msra.mxu0 0.0
    %1521 = vmatprep.subr.mxu0 0.0
    %1522 = vmatpush1.msra.mxu0 0.0
    %1523 = vmatprep.subr.mxu0 0.0
    %1524 = vmatpush1.msra.mxu0 0.0
    %1525 = vmatprep.subr.mxu0 0.0
    %1526 = vmatpush1.msra.mxu0 0.0
    %1527 = vmatprep.subr.mxu0 0.0
    %1528 = vmatpush1.msra.mxu0 0.0
    %1529 = vmatprep.subr.mxu0 0.0
    %1530 = vmatpush1.msra.mxu0 0.0
    %1531 = vmatprep.subr.mxu0 0.0
    %1532 = vmatpush1.msra.mxu0 0.0
    %1533 = vmatprep.subr.mxu0 0.0
    %1534 = vmatpush1.msra.mxu0 0.0
    %1535 = vmatprep.subr.mxu0 0.0
    %1536 = vmatpush1.msra.mxu0 0.0
    %1537 = vmatprep.mubr.f32.mxu0 0.0
    %v1538 = vand.u32 %v1455, 4294901760
    %v1539 = vsub.f32 %v1455, %v1538
    %v1540 = vand.u32 %v1539, 4294901760
    %v1541 = vsub.f32 %v1539, %v1540
    %v1542 = vand.u32 %v1541, 4294901760
    %1543 = vmatmul.mubr.f32.gmra.mrb[0].mxu0 %v1542
    %v1544 = vpop.f32.mrb[0].mxu0
    %v1545 = vadd.f32 0.0, %v1544
    %v1546 = vpop.f32.mrb[0].mxu0
    %v1547 = vadd.f32 0.0, %v1546
    %1548 = vdwg.mxu0
    %v1549 = vand.u32 %v60, 4294901760
    %v1550 = vsub.f32 %v60, %v1549
    %v1551 = vand.u32 %v1550, 4294901760
    %v1552 = vsub.f32 %v1550, %v1551
    %v1553 = vand.u32 %v1552, 4294901760
    %1554 = vmatprep.subr.mxu0 %v1553
    %v1555 = vand.u32 %v59, 4294901760
    %v1556 = vsub.f32 %v59, %v1555
    %v1557 = vand.u32 %v1556, 4294901760
    %v1558 = vsub.f32 %v1556, %v1557
    %v1559 = vand.u32 %v1558, 4294901760
    %1560 = vmatpush1.msra.mxu0 %v1559
    %v1561 = vand.u32 %v62, 4294901760
    %v1562 = vsub.f32 %v62, %v1561
    %v1563 = vand.u32 %v1562, 4294901760
    %v1564 = vsub.f32 %v1562, %v1563
    %v1565 = vand.u32 %v1564, 4294901760
    %1566 = vmatprep.subr.mxu0 %v1565
    %v1567 = vand.u32 %v61, 4294901760
    %v1568 = vsub.f32 %v61, %v1567
    %v1569 = vand.u32 %v1568, 4294901760
    %v1570 = vsub.f32 %v1568, %v1569
    %v1571 = vand.u32 %v1570, 4294901760
    %1572 = vmatpush1.msra.mxu0 %v1571
    %v1573 = vand.u32 %v64, 4294901760
    %v1574 = vsub.f32 %v64, %v1573
    %v1575 = vand.u32 %v1574, 4294901760
    %v1576 = vsub.f32 %v1574, %v1575
    %v1577 = vand.u32 %v1576, 4294901760
    %1578 = vmatprep.subr.mxu0 %v1577
    %v1579 = vand.u32 %v63, 4294901760
    %v1580 = vsub.f32 %v63, %v1579
    %v1581 = vand.u32 %v1580, 4294901760
    %v1582 = vsub.f32 %v1580, %v1581
    %v1583 = vand.u32 %v1582, 4294901760
    %1584 = vmatpush1.msra.mxu0 %v1583
    %v1585 = vand.u32 %v66, 4294901760
    %v1586 = vsub.f32 %v66, %v1585
    %v1587 = vand.u32 %v1586, 4294901760
    %v1588 = vsub.f32 %v1586, %v1587
    %v1589 = vand.u32 %v1588, 4294901760
    %1590 = vmatprep.subr.mxu0 %v1589
    %v1591 = vand.u32 %v65, 4294901760
    %v1592 = vsub.f32 %v65, %v1591
    %v1593 = vand.u32 %v1592, 4294901760
    %v1594 = vsub.f32 %v1592, %v1593
    %v1595 = vand.u32 %v1594, 4294901760
    %1596 = vmatpush1.msra.mxu0 %v1595
    %v1597 = vand.u32 %v68, 4294901760
    %v1598 = vsub.f32 %v68, %v1597
    %v1599 = vand.u32 %v1598, 4294901760
    %v1600 = vsub.f32 %v1598, %v1599
    %v1601 = vand.u32 %v1600, 4294901760
    %1602 = vmatprep.subr.mxu0 %v1601
    %v1603 = vand.u32 %v67, 4294901760
    %v1604 = vsub.f32 %v67, %v1603
    %v1605 = vand.u32 %v1604, 4294901760
    %v1606 = vsub.f32 %v1604, %v1605
    %v1607 = vand.u32 %v1606, 4294901760
    %1608 = vmatpush1.msra.mxu0 %v1607
    %v1609 = vand.u32 %v70, 4294901760
    %v1610 = vsub.f32 %v70, %v1609
    %v1611 = vand.u32 %v1610, 4294901760
    %v1612 = vsub.f32 %v1610, %v1611
    %v1613 = vand.u32 %v1612, 4294901760
    %1614 = vmatprep.subr.mxu0 %v1613
    %v1615 = vand.u32 %v69, 4294901760
    %v1616 = vsub.f32 %v69, %v1615
    %v1617 = vand.u32 %v1616, 4294901760
    %v1618 = vsub.f32 %v1616, %v1617
    %v1619 = vand.u32 %v1618, 4294901760
    %1620 = vmatpush1.msra.mxu0 %v1619
    %v1621 = vand.u32 %v72, 4294901760
    %v1622 = vsub.f32 %v72, %v1621
    %v1623 = vand.u32 %v1622, 4294901760
    %v1624 = vsub.f32 %v1622, %v1623
    %v1625 = vand.u32 %v1624, 4294901760
    %1626 = vmatprep.subr.mxu0 %v1625
    %v1627 = vand.u32 %v71, 4294901760
    %v1628 = vsub.f32 %v71, %v1627
    %v1629 = vand.u32 %v1628, 4294901760
    %v1630 = vsub.f32 %v1628, %v1629
    %v1631 = vand.u32 %v1630, 4294901760
    %1632 = vmatpush1.msra.mxu0 %v1631
    %v1633 = vand.u32 %v74, 4294901760
    %v1634 = vsub.f32 %v74, %v1633
    %v1635 = vand.u32 %v1634, 4294901760
    %v1636 = vsub.f32 %v1634, %v1635
    %v1637 = vand.u32 %v1636, 4294901760
    %1638 = vmatprep.subr.mxu0 %v1637
    %v1639 = vand.u32 %v73, 4294901760
    %v1640 = vsub.f32 %v73, %v1639
    %v1641 = vand.u32 %v1640, 4294901760
    %v1642 = vsub.f32 %v1640, %v1641
    %v1643 = vand.u32 %v1642, 4294901760
    %1644 = vmatpush1.msra.mxu0 %v1643
    %1645 = vmatprep.subr.mxu0 0.0
    %1646 = vmatpush1.msra.mxu0 0.0
    %1647 = vmatprep.subr.mxu0 0.0
    %1648 = vmatpush1.msra.mxu0 0.0
    %1649 = vmatprep.subr.mxu0 0.0
    %1650 = vmatpush1.msra.mxu0 0.0
    %1651 = vmatprep.subr.mxu0 0.0
    %1652 = vmatpush1.msra.mxu0 0.0
    %1653 = vmatprep.subr.mxu0 0.0
    %1654 = vmatpush1.msra.mxu0 0.0
    %1655 = vmatprep.subr.mxu0 0.0
    %1656 = vmatpush1.msra.mxu0 0.0
    %1657 = vmatprep.subr.mxu0 0.0
    %1658 = vmatpush1.msra.mxu0 0.0
    %1659 = vmatprep.subr.mxu0 0.0
    %1660 = vmatpush1.msra.mxu0 0.0
    %1661 = vmatprep.subr.mxu0 0.0
    %1662 = vmatpush1.msra.mxu0 0.0
    %1663 = vmatprep.subr.mxu0 0.0
    %1664 = vmatpush1.msra.mxu0 0.0
    %1665 = vmatprep.subr.mxu0 0.0
    %1666 = vmatpush1.msra.mxu0 0.0
    %1667 = vmatprep.subr.mxu0 0.0
    %1668 = vmatpush1.msra.mxu0 0.0
    %1669 = vmatprep.subr.mxu0 0.0
    %1670 = vmatpush1.msra.mxu0 0.0
    %1671 = vmatprep.subr.mxu0 0.0
    %1672 = vmatpush1.msra.mxu0 0.0
    %1673 = vmatprep.subr.mxu0 0.0
    %1674 = vmatpush1.msra.mxu0 0.0
    %1675 = vmatprep.subr.mxu0 0.0
    %1676 = vmatpush1.msra.mxu0 0.0
    %1677 = vmatprep.subr.mxu0 0.0
    %1678 = vmatpush1.msra.mxu0 0.0
    %1679 = vmatprep.subr.mxu0 0.0
    %1680 = vmatpush1.msra.mxu0 0.0
    %1681 = vmatprep.subr.mxu0 0.0
    %1682 = vmatpush1.msra.mxu0 0.0
    %1683 = vmatprep.subr.mxu0 0.0
    %1684 = vmatpush1.msra.mxu0 0.0
    %1685 = vmatprep.subr.mxu0 0.0
    %1686 = vmatpush1.msra.mxu0 0.0
    %1687 = vmatprep.subr.mxu0 0.0
    %1688 = vmatpush1.msra.mxu0 0.0
    %1689 = vmatprep.subr.mxu0 0.0
    %1690 = vmatpush1.msra.mxu0 0.0
    %1691 = vmatprep.subr.mxu0 0.0
    %1692 = vmatpush1.msra.mxu0 0.0
    %1693 = vmatprep.mubr.f32.mxu0 0.0
    %v1694 = vand.u32 %v1455, 4294901760
    %1695 = vmatmul.mubr.f32.gmra.mrb[0].mxu0 %v1694
    %v1696 = vpop.f32.mrb[0].mxu0
    %v1697 = vadd.f32 %v1545, %v1696
    %v1698 = vpop.f32.mrb[0].mxu0
    %v1699 = vadd.f32 %v1547, %v1698
    %1700 = vdwg.mxu0
    %v1701 = vand.u32 %v60, 4294901760
    %v1702 = vsub.f32 %v60, %v1701
    %1703 = vmatprep.subr.mxu0 %v1702
    %v1704 = vand.u32 %v59, 4294901760
    %v1705 = vsub.f32 %v59, %v1704
    %1706 = vmatpush1.msra.mxu0 %v1705
    %v1707 = vand.u32 %v62, 4294901760
    %v1708 = vsub.f32 %v62, %v1707
    %1709 = vmatprep.subr.mxu0 %v1708
    %v1710 = vand.u32 %v61, 4294901760
    %v1711 = vsub.f32 %v61, %v1710
    %1712 = vmatpush1.msra.mxu0 %v1711
    %v1713 = vand.u32 %v64, 4294901760
    %v1714 = vsub.f32 %v64, %v1713
    %1715 = vmatprep.subr.mxu0 %v1714
    %v1716 = vand.u32 %v63, 4294901760
    %v1717 = vsub.f32 %v63, %v1716
    %1718 = vmatpush1.msra.mxu0 %v1717
    %v1719 = vand.u32 %v66, 4294901760
    %v1720 = vsub.f32 %v66, %v1719
    %1721 = vmatprep.subr.mxu0 %v1720
    %v1722 = vand.u32 %v65, 4294901760
    %v1723 = vsub.f32 %v65, %v1722
    %1724 = vmatpush1.msra.mxu0 %v1723
    %v1725 = vand.u32 %v68, 4294901760
    %v1726 = vsub.f32 %v68, %v1725
    %1727 = vmatprep.subr.mxu0 %v1726
    %v1728 = vand.u32 %v67, 4294901760
    %v1729 = vsub.f32 %v67, %v1728
    %1730 = vmatpush1.msra.mxu0 %v1729
    %v1731 = vand.u32 %v70, 4294901760
    %v1732 = vsub.f32 %v70, %v1731
    %1733 = vmatprep.subr.mxu0 %v1732
    %v1734 = vand.u32 %v69, 4294901760
    %v1735 = vsub.f32 %v69, %v1734
    %1736 = vmatpush1.msra.mxu0 %v1735
    %v1737 = vand.u32 %v72, 4294901760
    %v1738 = vsub.f32 %v72, %v1737
    %1739 = vmatprep.subr.mxu0 %v1738
    %v1740 = vand.u32 %v71, 4294901760
    %v1741 = vsub.f32 %v71, %v1740
    %1742 = vmatpush1.msra.mxu0 %v1741
    %v1743 = vand.u32 %v74, 4294901760
    %v1744 = vsub.f32 %v74, %v1743
    %1745 = vmatprep.subr.mxu0 %v1744
    %v1746 = vand.u32 %v73, 4294901760
    %v1747 = vsub.f32 %v73, %v1746
    %1748 = vmatpush1.msra.mxu0 %v1747
    %1749 = vmatprep.subr.mxu0 0.0
    %1750 = vmatpush1.msra.mxu0 0.0
    %1751 = vmatprep.subr.mxu0 0.0
    %1752 = vmatpush1.msra.mxu0 0.0
    %1753 = vmatprep.subr.mxu0 0.0
    %1754 = vmatpush1.msra.mxu0 0.0
    %1755 = vmatprep.subr.mxu0 0.0
    %1756 = vmatpush1.msra.mxu0 0.0
    %1757 = vmatprep.subr.mxu0 0.0
    %1758 = vmatpush1.msra.mxu0 0.0
    %1759 = vmatprep.subr.mxu0 0.0
    %1760 = vmatpush1.msra.mxu0 0.0
    %1761 = vmatprep.subr.mxu0 0.0
    %1762 = vmatpush1.msra.mxu0 0.0
    %1763 = vmatprep.subr.mxu0 0.0
    %1764 = vmatpush1.msra.mxu0 0.0
    %1765 = vmatprep.subr.mxu0 0.0
    %1766 = vmatpush1.msra.mxu0 0.0
    %1767 = vmatprep.subr.mxu0 0.0
    %1768 = vmatpush1.msra.mxu0 0.0
    %1769 = vmatprep.subr.mxu0 0.0
    %1770 = vmatpush1.msra.mxu0 0.0
    %1771 = vmatprep.subr.mxu0 0.0
    %1772 = vmatpush1.msra.mxu0 0.0
    %1773 = vmatprep.subr.mxu0 0.0
    %1774 = vmatpush1.msra.mxu0 0.0
    %1775 = vmatprep.subr.mxu0 0.0
    %1776 = vmatpush1.msra.mxu0 0.0
    %1777 = vmatprep.subr.mxu0 0.0
    %1778 = vmatpush1.msra.mxu0 0.0
    %1779 = vmatprep.subr.mxu0 0.0
    %1780 = vmatpush1.msra.mxu0 0.0
    %1781 = vmatprep.subr.mxu0 0.0
    %1782 = vmatpush1.msra.mxu0 0.0
    %1783 = vmatprep.subr.mxu0 0.0
    %1784 = vmatpush1.msra.mxu0 0.0
    %1785 = vmatprep.subr.mxu0 0.0
    %1786 = vmatpush1.msra.mxu0 0.0
    %1787 = vmatprep.subr.mxu0 0.0
    %1788 = vmatpush1.msra.mxu0 0.0
    %1789 = vmatprep.subr.mxu0 0.0
    %1790 = vmatpush1.msra.mxu0 0.0
    %1791 = vmatprep.subr.mxu0 0.0
    %1792 = vmatpush1.msra.mxu0 0.0
    %1793 = vmatprep.subr.mxu0 0.0
    %1794 = vmatpush1.msra.mxu0 0.0
    %1795 = vmatprep.subr.mxu0 0.0
    %1796 = vmatpush1.msra.mxu0 0.0
    %1797 = vmatprep.mubr.f32.mxu0 0.0
    %v1798 = vand.u32 %v1455, 4294901760
    %v1799 = vsub.f32 %v1455, %v1798
    %1800 = vmatmul.mubr.f32.gmra.mrb[0].mxu0 %v1799
    %v1801 = vpop.f32.mrb[0].mxu0
    %v1802 = vadd.f32 %v1697, %v1801
    %v1803 = vpop.f32.mrb[0].mxu0
    %v1804 = vadd.f32 %v1699, %v1803
    %1805 = vdwg.mxu0
    %v1806 = vand.u32 %v60, 4294901760
    %1807 = vmatprep.subr.mxu0 %v1806
    %v1808 = vand.u32 %v59, 4294901760
    %1809 = vmatpush1.msra.mxu0 %v1808
    %v1810 = vand.u32 %v62, 4294901760
    %1811 = vmatprep.subr.mxu0 %v1810
    %v1812 = vand.u32 %v61, 4294901760
    %1813 = vmatpush1.msra.mxu0 %v1812
    %v1814 = vand.u32 %v64, 4294901760
    %1815 = vmatprep.subr.mxu0 %v1814
    %v1816 = vand.u32 %v63, 4294901760
    %1817 = vmatpush1.msra.mxu0 %v1816
    %v1818 = vand.u32 %v66, 4294901760
    %1819 = vmatprep.subr.mxu0 %v1818
    %v1820 = vand.u32 %v65, 4294901760
    %1821 = vmatpush1.msra.mxu0 %v1820
    %v1822 = vand.u32 %v68, 4294901760
    %1823 = vmatprep.subr.mxu0 %v1822
    %v1824 = vand.u32 %v67, 4294901760
    %1825 = vmatpush1.msra.mxu0 %v1824
    %v1826 = vand.u32 %v70, 4294901760
    %1827 = vmatprep.subr.mxu0 %v1826
    %v1828 = vand.u32 %v69, 4294901760
    %1829 = vmatpush1.msra.mxu0 %v1828
    %v1830 = vand.u32 %v72, 4294901760
    %1831 = vmatprep.subr.mxu0 %v1830
    %v1832 = vand.u32 %v71, 4294901760
    %1833 = vmatpush1.msra.mxu0 %v1832
    %v1834 = vand.u32 %v74, 4294901760
    %1835 = vmatprep.subr.mxu0 %v1834
    %v1836 = vand.u32 %v73, 4294901760
    %1837 = vmatpush1.msra.mxu0 %v1836
    %1838 = vmatprep.subr.mxu0 0.0
    %1839 = vmatpush1.msra.mxu0 0.0
    %1840 = vmatprep.subr.mxu0 0.0
    %1841 = vmatpush1.msra.mxu0 0.0
    %1842 = vmatprep.subr.mxu0 0.0
    %1843 = vmatpush1.msra.mxu0 0.0
    %1844 = vmatprep.subr.mxu0 0.0
    %1845 = vmatpush1.msra.mxu0 0.0
    %1846 = vmatprep.subr.mxu0 0.0
    %1847 = vmatpush1.msra.mxu0 0.0
    %1848 = vmatprep.subr.mxu0 0.0
    %1849 = vmatpush1.msra.mxu0 0.0
    %1850 = vmatprep.subr.mxu0 0.0
    %1851 = vmatpush1.msra.mxu0 0.0
    %1852 = vmatprep.subr.mxu0 0.0
    %1853 = vmatpush1.msra.mxu0 0.0
    %1854 = vmatprep.subr.mxu0 0.0
    %1855 = vmatpush1.msra.mxu0 0.0
    %1856 = vmatprep.subr.mxu0 0.0
    %1857 = vmatpush1.msra.mxu0 0.0
    %1858 = vmatprep.subr.mxu0 0.0
    %1859 = vmatpush1.msra.mxu0 0.0
    %1860 = vmatprep.subr.mxu0 0.0
    %1861 = vmatpush1.msra.mxu0 0.0
    %1862 = vmatprep.subr.mxu0 0.0
    %1863 = vmatpush1.msra.mxu0 0.0
    %1864 = vmatprep.subr.mxu0 0.0
    %1865 = vmatpush1.msra.mxu0 0.0
    %1866 = vmatprep.subr.mxu0 0.0
    %1867 = vmatpush1.msra.mxu0 0.0
    %1868 = vmatprep.subr.mxu0 0.0
    %1869 = vmatpush1.msra.mxu0 0.0
    %1870 = vmatprep.subr.mxu0 0.0
    %1871 = vmatpush1.msra.mxu0 0.0
    %1872 = vmatprep.subr.mxu0 0.0
    %1873 = vmatpush1.msra.mxu0 0.0
    %1874 = vmatprep.subr.mxu0 0.0
    %1875 = vmatpush1.msra.mxu0 0.0
    %1876 = vmatprep.subr.mxu0 0.0
    %1877 = vmatpush1.msra.mxu0 0.0
    %1878 = vmatprep.subr.mxu0 0.0
    %1879 = vmatpush1.msra.mxu0 0.0
    %1880 = vmatprep.subr.mxu0 0.0
    %1881 = vmatpush1.msra.mxu0 0.0
    %1882 = vmatprep.subr.mxu0 0.0
    %1883 = vmatpush1.msra.mxu0 0.0
    %1884 = vmatprep.subr.mxu0 0.0
    %1885 = vmatpush1.msra.mxu0 0.0
    %1886 = vmatprep.mubr.f32.mxu0 0.0
    %v1887 = vand.u32 %v1455, 4294901760
    %v1888 = vsub.f32 %v1455, %v1887
    %v1889 = vand.u32 %v1888, 4294901760
    %1890 = vmatmul.mubr.f32.gmra.mrb[0].mxu0 %v1889
    %v1891 = vpop.f32.mrb[0].mxu0
    %v1892 = vadd.f32 %v1802, %v1891
    %v1893 = vpop.f32.mrb[0].mxu0
    %v1894 = vadd.f32 %v1804, %v1893
    %1895 = vdwg.mxu0
    %v1896 = vand.u32 %v60, 4294901760
    %v1897 = vsub.f32 %v60, %v1896
    %v1898 = vand.u32 %v1897, 4294901760
    %1899 = vmatprep.subr.mxu0 %v1898
    %v1900 = vand.u32 %v59, 4294901760
    %v1901 = vsub.f32 %v59, %v1900
    %v1902 = vand.u32 %v1901, 4294901760
    %1903 = vmatpush1.msra.mxu0 %v1902
    %v1904 = vand.u32 %v62, 4294901760
    %v1905 = vsub.f32 %v62, %v1904
    %v1906 = vand.u32 %v1905, 4294901760
    %1907 = vmatprep.subr.mxu0 %v1906
    %v1908 = vand.u32 %v61, 4294901760
    %v1909 = vsub.f32 %v61, %v1908
    %v1910 = vand.u32 %v1909, 4294901760
    %1911 = vmatpush1.msra.mxu0 %v1910
    %v1912 = vand.u32 %v64, 4294901760
    %v1913 = vsub.f32 %v64, %v1912
    %v1914 = vand.u32 %v1913, 4294901760
    %1915 = vmatprep.subr.mxu0 %v1914
    %v1916 = vand.u32 %v63, 4294901760
    %v1917 = vsub.f32 %v63, %v1916
    %v1918 = vand.u32 %v1917, 4294901760
    %1919 = vmatpush1.msra.mxu0 %v1918
    %v1920 = vand.u32 %v66, 4294901760
    %v1921 = vsub.f32 %v66, %v1920
    %v1922 = vand.u32 %v1921, 4294901760
    %1923 = vmatprep.subr.mxu0 %v1922
    %v1924 = vand.u32 %v65, 4294901760
    %v1925 = vsub.f32 %v65, %v1924
    %v1926 = vand.u32 %v1925, 4294901760
    %1927 = vmatpush1.msra.mxu0 %v1926
    %v1928 = vand.u32 %v68, 4294901760
    %v1929 = vsub.f32 %v68, %v1928
    %v1930 = vand.u32 %v1929, 4294901760
    %1931 = vmatprep.subr.mxu0 %v1930
    %v1932 = vand.u32 %v67, 4294901760
    %v1933 = vsub.f32 %v67, %v1932
    %v1934 = vand.u32 %v1933, 4294901760
    %1935 = vmatpush1.msra.mxu0 %v1934
    %v1936 = vand.u32 %v70, 4294901760
    %v1937 = vsub.f32 %v70, %v1936
    %v1938 = vand.u32 %v1937, 4294901760
    %1939 = vmatprep.subr.mxu0 %v1938
    %v1940 = vand.u32 %v69, 4294901760
    %v1941 = vsub.f32 %v69, %v1940
    %v1942 = vand.u32 %v1941, 4294901760
    %1943 = vmatpush1.msra.mxu0 %v1942
    %v1944 = vand.u32 %v72, 4294901760
    %v1945 = vsub.f32 %v72, %v1944
    %v1946 = vand.u32 %v1945, 4294901760
    %1947 = vmatprep.subr.mxu0 %v1946
    %v1948 = vand.u32 %v71, 4294901760
    %v1949 = vsub.f32 %v71, %v1948
    %v1950 = vand.u32 %v1949, 4294901760
    %1951 = vmatpush1.msra.mxu0 %v1950
    %v1952 = vand.u32 %v74, 4294901760
    %v1953 = vsub.f32 %v74, %v1952
    %v1954 = vand.u32 %v1953, 4294901760
    %1955 = vmatprep.subr.mxu0 %v1954
    %v1956 = vand.u32 %v73, 4294901760
    %v1957 = vsub.f32 %v73, %v1956
    %v1958 = vand.u32 %v1957, 4294901760
    %1959 = vmatpush1.msra.mxu0 %v1958
    %1960 = vmatprep.subr.mxu0 0.0
    %1961 = vmatpush1.msra.mxu0 0.0
    %1962 = vmatprep.subr.mxu0 0.0
    %1963 = vmatpush1.msra.mxu0 0.0
    %1964 = vmatprep.subr.mxu0 0.0
    %1965 = vmatpush1.msra.mxu0 0.0
    %1966 = vmatprep.subr.mxu0 0.0
    %1967 = vmatpush1.msra.mxu0 0.0
    %1968 = vmatprep.subr.mxu0 0.0
    %1969 = vmatpush1.msra.mxu0 0.0
    %1970 = vmatprep.subr.mxu0 0.0
    %1971 = vmatpush1.msra.mxu0 0.0
    %1972 = vmatprep.subr.mxu0 0.0
    %1973 = vmatpush1.msra.mxu0 0.0
    %1974 = vmatprep.subr.mxu0 0.0
    %1975 = vmatpush1.msra.mxu0 0.0
    %1976 = vmatprep.subr.mxu0 0.0
    %1977 = vmatpush1.msra.mxu0 0.0
    %1978 = vmatprep.subr.mxu0 0.0
    %1979 = vmatpush1.msra.mxu0 0.0
    %1980 = vmatprep.subr.mxu0 0.0
    %1981 = vmatpush1.msra.mxu0 0.0
    %1982 = vmatprep.subr.mxu0 0.0
    %1983 = vmatpush1.msra.mxu0 0.0
    %1984 = vmatprep.subr.mxu0 0.0
    %1985 = vmatpush1.msra.mxu0 0.0
    %1986 = vmatprep.subr.mxu0 0.0
    %1987 = vmatpush1.msra.mxu0 0.0
    %1988 = vmatprep.subr.mxu0 0.0
    %1989 = vmatpush1.msra.mxu0 0.0
    %1990 = vmatprep.subr.mxu0 0.0
    %1991 = vmatpush1.msra.mxu0 0.0
    %1992 = vmatprep.subr.mxu0 0.0
    %1993 = vmatpush1.msra.mxu0 0.0
    %1994 = vmatprep.subr.mxu0 0.0
    %1995 = vmatpush1.msra.mxu0 0.0
    %1996 = vmatprep.subr.mxu0 0.0
    %1997 = vmatpush1.msra.mxu0 0.0
    %1998 = vmatprep.subr.mxu0 0.0
    %1999 = vmatpush1.msra.mxu0 0.0
    %2000 = vmatprep.subr.mxu0 0.0
    %2001 = vmatpush1.msra.mxu0 0.0
    %2002 = vmatprep.subr.mxu0 0.0
    %2003 = vmatpush1.msra.mxu0 0.0
    %2004 = vmatprep.subr.mxu0 0.0
    %2005 = vmatpush1.msra.mxu0 0.0
    %2006 = vmatprep.subr.mxu0 0.0
    %2007 = vmatpush1.msra.mxu0 0.0
    %2008 = vmatprep.mubr.f32.mxu0 0.0
    %v2009 = vand.u32 %v1455, 4294901760
    %2010 = vmatmul.mubr.f32.gmra.mrb[0].mxu0 %v2009
    %v2011 = vpop.f32.mrb[0].mxu0
    %v2012 = vadd.f32 %v1892, %v2011
    %v2013 = vpop.f32.mrb[0].mxu0
    %v2014 = vadd.f32 %v1894, %v2013
    %2015 = vdwg.mxu0
    %v2016 = vand.u32 %v60, 4294901760
    %2017 = vmatprep.subr.mxu0 %v2016
    %v2018 = vand.u32 %v59, 4294901760
    %2019 = vmatpush1.msra.mxu0 %v2018
    %v2020 = vand.u32 %v62, 4294901760
    %2021 = vmatprep.subr.mxu0 %v2020
    %v2022 = vand.u32 %v61, 4294901760
    %2023 = vmatpush1.msra.mxu0 %v2022
    %v2024 = vand.u32 %v64, 4294901760
    %2025 = vmatprep.subr.mxu0 %v2024
    %v2026 = vand.u32 %v63, 4294901760
    %2027 = vmatpush1.msra.mxu0 %v2026
    %v2028 = vand.u32 %v66, 4294901760
    %2029 = vmatprep.subr.mxu0 %v2028
    %v2030 = vand.u32 %v65, 4294901760
    %2031 = vmatpush1.msra.mxu0 %v2030
    %v2032 = vand.u32 %v68, 4294901760
    %2033 = vmatprep.subr.mxu0 %v2032
    %v2034 = vand.u32 %v67, 4294901760
    %2035 = vmatpush1.msra.mxu0 %v2034
    %v2036 = vand.u32 %v70, 4294901760
    %2037 = vmatprep.subr.mxu0 %v2036
    %v2038 = vand.u32 %v69, 4294901760
    %2039 = vmatpush1.msra.mxu0 %v2038
    %v2040 = vand.u32 %v72, 4294901760
    %2041 = vmatprep.subr.mxu0 %v2040
    %v2042 = vand.u32 %v71, 4294901760
    %2043 = vmatpush1.msra.mxu0 %v2042
    %v2044 = vand.u32 %v74, 4294901760
    %2045 = vmatprep.subr.mxu0 %v2044
    %v2046 = vand.u32 %v73, 4294901760
    %2047 = vmatpush1.msra.mxu0 %v2046
    %2048 = vmatprep.subr.mxu0 0.0
    %2049 = vmatpush1.msra.mxu0 0.0
    %2050 = vmatprep.subr.mxu0 0.0
    %2051 = vmatpush1.msra.mxu0 0.0
    %2052 = vmatprep.subr.mxu0 0.0
    %2053 = vmatpush1.msra.mxu0 0.0
    %2054 = vmatprep.subr.mxu0 0.0
    %2055 = vmatpush1.msra.mxu0 0.0
    %2056 = vmatprep.subr.mxu0 0.0
    %2057 = vmatpush1.msra.mxu0 0.0
    %2058 = vmatprep.subr.mxu0 0.0
    %2059 = vmatpush1.msra.mxu0 0.0
    %2060 = vmatprep.subr.mxu0 0.0
    %2061 = vmatpush1.msra.mxu0 0.0
    %2062 = vmatprep.subr.mxu0 0.0
    %2063 = vmatpush1.msra.mxu0 0.0
    %2064 = vmatprep.subr.mxu0 0.0
    %2065 = vmatpush1.msra.mxu0 0.0
    %2066 = vmatprep.subr.mxu0 0.0
    %2067 = vmatpush1.msra.mxu0 0.0
    %2068 = vmatprep.subr.mxu0 0.0
    %2069 = vmatpush1.msra.mxu0 0.0
    %2070 = vmatprep.subr.mxu0 0.0
    %2071 = vmatpush1.msra.mxu0 0.0
    %2072 = vmatprep.subr.mxu0 0.0
    %2073 = vmatpush1.msra.mxu0 0.0
    %2074 = vmatprep.subr.mxu0 0.0
    %2075 = vmatpush1.msra.mxu0 0.0
    %2076 = vmatprep.subr.mxu0 0.0
    %2077 = vmatpush1.msra.mxu0 0.0
    %2078 = vmatprep.subr.mxu0 0.0
    %2079 = vmatpush1.msra.mxu0 0.0
    %2080 = vmatprep.subr.mxu0 0.0
    %2081 = vmatpush1.msra.mxu0 0.0
    %2082 = vmatprep.subr.mxu0 0.0
    %2083 = vmatpush1.msra.mxu0 0.0
    %2084 = vmatprep.subr.mxu0 0.0
    %2085 = vmatpush1.msra.mxu0 0.0
    %2086 = vmatprep.subr.mxu0 0.0
    %2087 = vmatpush1.msra.mxu0 0.0
    %2088 = vmatprep.subr.mxu0 0.0
    %2089 = vmatpush1.msra.mxu0 0.0
    %2090 = vmatprep.subr.mxu0 0.0
    %2091 = vmatpush1.msra.mxu0 0.0
    %2092 = vmatprep.subr.mxu0 0.0
    %2093 = vmatpush1.msra.mxu0 0.0
    %2094 = vmatprep.subr.mxu0 0.0
    %2095 = vmatpush1.msra.mxu0 0.0
    %2096 = vmatprep.mubr.f32.mxu0 0.0
    %v2097 = vand.u32 %v1455, 4294901760
    %2098 = vmatmul.mubr.f32.gmra.mrb[0].mxu0 %v2097
    %v2099 = vpop.f32.mrb[0].mxu0
    %v2100 = vadd.f32 %v2012, %v2099
    %v2101 = vpop.f32.mrb[0].mxu0
    %v2102 = vadd.f32 %v2014, %v2101
    %2103 = vdwg.mxu0
    %v2106 = vrot.slane %v2100, 4
    %v2107 = vrot.slane %v2102, 4
    %v2110 = vadd.f32 %v75, %v2106
    %v2111 = vadd.f32 %v76, %v2107
    %v2112 = vxor.u32 %v2110, 2147483648
    %v2113 = vxor.u32 %v2111, 2147483648
    %v2114 = vmul.f32 %v2112, 1.442695
    %v2115 = vpow.pop %v2114
    %v2116 = vmul.f32 %v2113, 1.442695
    %v2117 = vpow.pop %v2116
    %v2118 = vadd.f32 %v2115, 1.0
    %v2119 = vadd.f32 %v2117, 1.0
    %v2120 = vrcp.pop %v2118
    %v2121 = vmul.f32 1.0, %v2120
    %v2122 = vrcp.pop %v2119
    %v2123 = vmul.f32 1.0, %v2122
    %v2124 = vtanh.pop %v2111
    %v2126 = vrot.slane %v1446, 6
    %v2128 = vmul.f32 %v2121, %v2126
    %2130 = vrot.lane.b32.xlu0 %v2124, 64
    %v2131 = vpop.permute.xlu0 %2130
    %v2133 = vmul.f32 %v2121, %v2131
    %2135 = vrot.lane.b32.xlu0 %v2133, 64
    %v2136 = vpop.permute.xlu0 %2135
    %v2138 = vadd.f32 %v2128, %v2136
    %v2139 = vtanh.pop %v2138
    %2141 = vrot.lane.b32.xlu0 %v2139, 64
    %v2142 = vpop.permute.xlu0 %2141
    %v2144 = vmul.f32 %v2123, %v2142
    %v2146 = vrot.slane %v2144, 4
    %v2147 = vsel %vm79, %v2146, 0
    %v2149 = vand.u32 %v60, 4294901760
    %2150 = vmatprep.subr.mxu0 %v2149
    %v2151 = vand.u32 %v59, 4294901760
    %2152 = vmatpush1.msra.mxu0 %v2151
    %v2153 = vand.u32 %v62, 4294901760
    %2154 = vmatprep.subr.mxu0 %v2153
    %v2155 = vand.u32 %v61, 4294901760
    %2156 = vmatpush1.msra.mxu0 %v2155
    %v2157 = vand.u32 %v64, 4294901760
    %2158 = vmatprep.subr.mxu0 %v2157
    %v2159 = vand.u32 %v63, 4294901760
    %2160 = vmatpush1.msra.mxu0 %v2159
    %v2161 = vand.u32 %v66, 4294901760
    %2162 = vmatprep.subr.mxu0 %v2161
    %v2163 = vand.u32 %v65, 4294901760
    %2164 = vmatpush1.msra.mxu0 %v2163
    %v2165 = vand.u32 %v68, 4294901760
    %2166 = vmatprep.subr.mxu0 %v2165
    %v2167 = vand.u32 %v67, 4294901760
    %2168 = vmatpush1.msra.mxu0 %v2167
    %v2169 = vand.u32 %v70, 4294901760
    %2170 = vmatprep.subr.mxu0 %v2169
    %v2171 = vand.u32 %v69, 4294901760
    %2172 = vmatpush1.msra.mxu0 %v2171
    %v2173 = vand.u32 %v72, 4294901760
    %2174 = vmatprep.subr.mxu0 %v2173
    %v2175 = vand.u32 %v71, 4294901760
    %2176 = vmatpush1.msra.mxu0 %v2175
    %v2177 = vand.u32 %v74, 4294901760
    %2178 = vmatprep.subr.mxu0 %v2177
    %v2179 = vand.u32 %v73, 4294901760
    %2180 = vmatpush1.msra.mxu0 %v2179
    %2181 = vmatprep.subr.mxu0 0.0
    %2182 = vmatpush1.msra.mxu0 0.0
    %2183 = vmatprep.subr.mxu0 0.0
    %2184 = vmatpush1.msra.mxu0 0.0
    %2185 = vmatprep.subr.mxu0 0.0
    %2186 = vmatpush1.msra.mxu0 0.0
    %2187 = vmatprep.subr.mxu0 0.0
    %2188 = vmatpush1.msra.mxu0 0.0
    %2189 = vmatprep.subr.mxu0 0.0
    %2190 = vmatpush1.msra.mxu0 0.0
    %2191 = vmatprep.subr.mxu0 0.0
    %2192 = vmatpush1.msra.mxu0 0.0
    %2193 = vmatprep.subr.mxu0 0.0
    %2194 = vmatpush1.msra.mxu0 0.0
    %2195 = vmatprep.subr.mxu0 0.0
    %2196 = vmatpush1.msra.mxu0 0.0
    %2197 = vmatprep.subr.mxu0 0.0
    %2198 = vmatpush1.msra.mxu0 0.0
    %2199 = vmatprep.subr.mxu0 0.0
    %2200 = vmatpush1.msra.mxu0 0.0
    %2201 = vmatprep.subr.mxu0 0.0
    %2202 = vmatpush1.msra.mxu0 0.0
    %2203 = vmatprep.subr.mxu0 0.0
    %2204 = vmatpush1.msra.mxu0 0.0
    %2205 = vmatprep.subr.mxu0 0.0
    %2206 = vmatpush1.msra.mxu0 0.0
    %2207 = vmatprep.subr.mxu0 0.0
    %2208 = vmatpush1.msra.mxu0 0.0
    %2209 = vmatprep.subr.mxu0 0.0
    %2210 = vmatpush1.msra.mxu0 0.0
    %2211 = vmatprep.subr.mxu0 0.0
    %2212 = vmatpush1.msra.mxu0 0.0
    %2213 = vmatprep.subr.mxu0 0.0
    %2214 = vmatpush1.msra.mxu0 0.0
    %2215 = vmatprep.subr.mxu0 0.0
    %2216 = vmatpush1.msra.mxu0 0.0
    %2217 = vmatprep.subr.mxu0 0.0
    %2218 = vmatpush1.msra.mxu0 0.0
    %2219 = vmatprep.subr.mxu0 0.0
    %2220 = vmatpush1.msra.mxu0 0.0
    %2221 = vmatprep.subr.mxu0 0.0
    %2222 = vmatpush1.msra.mxu0 0.0
    %2223 = vmatprep.subr.mxu0 0.0
    %2224 = vmatpush1.msra.mxu0 0.0
    %2225 = vmatprep.subr.mxu0 0.0
    %2226 = vmatpush1.msra.mxu0 0.0
    %2227 = vmatprep.subr.mxu0 0.0
    %2228 = vmatpush1.msra.mxu0 0.0
    %2229 = vmatprep.mubr.f32.mxu0 0.0
    %v2230 = vand.u32 %v2147, 4294901760
    %v2231 = vsub.f32 %v2147, %v2230
    %v2232 = vand.u32 %v2231, 4294901760
    %v2233 = vsub.f32 %v2231, %v2232
    %v2234 = vand.u32 %v2233, 4294901760
    %2235 = vmatmul.mubr.f32.gmra.mrb[0].mxu0 %v2234
    %v2236 = vpop.f32.mrb[0].mxu0
    %v2237 = vadd.f32 0.0, %v2236
    %v2238 = vpop.f32.mrb[0].mxu0
    %v2239 = vadd.f32 0.0, %v2238
    %2240 = vdwg.mxu0
    %v2241 = vand.u32 %v60, 4294901760
    %v2242 = vsub.f32 %v60, %v2241
    %v2243 = vand.u32 %v2242, 4294901760
    %v2244 = vsub.f32 %v2242, %v2243
    %v2245 = vand.u32 %v2244, 4294901760
    %2246 = vmatprep.subr.mxu0 %v2245
    %v2247 = vand.u32 %v59, 4294901760
    %v2248 = vsub.f32 %v59, %v2247
    %v2249 = vand.u32 %v2248, 4294901760
    %v2250 = vsub.f32 %v2248, %v2249
    %v2251 = vand.u32 %v2250, 4294901760
    %2252 = vmatpush1.msra.mxu0 %v2251
    %v2253 = vand.u32 %v62, 4294901760
    %v2254 = vsub.f32 %v62, %v2253
    %v2255 = vand.u32 %v2254, 4294901760
    %v2256 = vsub.f32 %v2254, %v2255
    %v2257 = vand.u32 %v2256, 4294901760
    %2258 = vmatprep.subr.mxu0 %v2257
    %v2259 = vand.u32 %v61, 4294901760
    %v2260 = vsub.f32 %v61, %v2259
    %v2261 = vand.u32 %v2260, 4294901760
    %v2262 = vsub.f32 %v2260, %v2261
    %v2263 = vand.u32 %v2262, 4294901760
    %2264 = vmatpush1.msra.mxu0 %v2263
    %v2265 = vand.u32 %v64, 4294901760
    %v2266 = vsub.f32 %v64, %v2265
    %v2267 = vand.u32 %v2266, 4294901760
    %v2268 = vsub.f32 %v2266, %v2267
    %v2269 = vand.u32 %v2268, 4294901760
    %2270 = vmatprep.subr.mxu0 %v2269
    %v2271 = vand.u32 %v63, 4294901760
    %v2272 = vsub.f32 %v63, %v2271
    %v2273 = vand.u32 %v2272, 4294901760
    %v2274 = vsub.f32 %v2272, %v2273
    %v2275 = vand.u32 %v2274, 4294901760
    %2276 = vmatpush1.msra.mxu0 %v2275
    %v2277 = vand.u32 %v66, 4294901760
    %v2278 = vsub.f32 %v66, %v2277
    %v2279 = vand.u32 %v2278, 4294901760
    %v2280 = vsub.f32 %v2278, %v2279
    %v2281 = vand.u32 %v2280, 4294901760
    %2282 = vmatprep.subr.mxu0 %v2281
    %v2283 = vand.u32 %v65, 4294901760
    %v2284 = vsub.f32 %v65, %v2283
    %v2285 = vand.u32 %v2284, 4294901760
    %v2286 = vsub.f32 %v2284, %v2285
    %v2287 = vand.u32 %v2286, 4294901760
    %2288 = vmatpush1.msra.mxu0 %v2287
    %v2289 = vand.u32 %v68, 4294901760
    %v2290 = vsub.f32 %v68, %v2289
    %v2291 = vand.u32 %v2290, 4294901760
    %v2292 = vsub.f32 %v2290, %v2291
    %v2293 = vand.u32 %v2292, 4294901760
    %2294 = vmatprep.subr.mxu0 %v2293
    %v2295 = vand.u32 %v67, 4294901760
    %v2296 = vsub.f32 %v67, %v2295
    %v2297 = vand.u32 %v2296, 4294901760
    %v2298 = vsub.f32 %v2296, %v2297
    %v2299 = vand.u32 %v2298, 4294901760
    %2300 = vmatpush1.msra.mxu0 %v2299
    %v2301 = vand.u32 %v70, 4294901760
    %v2302 = vsub.f32 %v70, %v2301
    %v2303 = vand.u32 %v2302, 4294901760
    %v2304 = vsub.f32 %v2302, %v2303
    %v2305 = vand.u32 %v2304, 4294901760
    %2306 = vmatprep.subr.mxu0 %v2305
    %v2307 = vand.u32 %v69, 4294901760
    %v2308 = vsub.f32 %v69, %v2307
    %v2309 = vand.u32 %v2308, 4294901760
    %v2310 = vsub.f32 %v2308, %v2309
    %v2311 = vand.u32 %v2310, 4294901760
    %2312 = vmatpush1.msra.mxu0 %v2311
    %v2313 = vand.u32 %v72, 4294901760
    %v2314 = vsub.f32 %v72, %v2313
    %v2315 = vand.u32 %v2314, 4294901760
    %v2316 = vsub.f32 %v2314, %v2315
    %v2317 = vand.u32 %v2316, 4294901760
    %2318 = vmatprep.subr.mxu0 %v2317
    %v2319 = vand.u32 %v71, 4294901760
    %v2320 = vsub.f32 %v71, %v2319
    %v2321 = vand.u32 %v2320, 4294901760
    %v2322 = vsub.f32 %v2320, %v2321
    %v2323 = vand.u32 %v2322, 4294901760
    %2324 = vmatpush1.msra.mxu0 %v2323
    %v2325 = vand.u32 %v74, 4294901760
    %v2326 = vsub.f32 %v74, %v2325
    %v2327 = vand.u32 %v2326, 4294901760
    %v2328 = vsub.f32 %v2326, %v2327
    %v2329 = vand.u32 %v2328, 4294901760
    %2330 = vmatprep.subr.mxu0 %v2329
    %v2331 = vand.u32 %v73, 4294901760
    %v2332 = vsub.f32 %v73, %v2331
    %v2333 = vand.u32 %v2332, 4294901760
    %v2334 = vsub.f32 %v2332, %v2333
    %v2335 = vand.u32 %v2334, 4294901760
    %2336 = vmatpush1.msra.mxu0 %v2335
    %2337 = vmatprep.subr.mxu0 0.0
    %2338 = vmatpush1.msra.mxu0 0.0
    %2339 = vmatprep.subr.mxu0 0.0
    %2340 = vmatpush1.msra.mxu0 0.0
    %2341 = vmatprep.subr.mxu0 0.0
    %2342 = vmatpush1.msra.mxu0 0.0
    %2343 = vmatprep.subr.mxu0 0.0
    %2344 = vmatpush1.msra.mxu0 0.0
    %2345 = vmatprep.subr.mxu0 0.0
    %2346 = vmatpush1.msra.mxu0 0.0
    %2347 = vmatprep.subr.mxu0 0.0
    %2348 = vmatpush1.msra.mxu0 0.0
    %2349 = vmatprep.subr.mxu0 0.0
    %2350 = vmatpush1.msra.mxu0 0.0
    %2351 = vmatprep.subr.mxu0 0.0
    %2352 = vmatpush1.msra.mxu0 0.0
    %2353 = vmatprep.subr.mxu0 0.0
    %2354 = vmatpush1.msra.mxu0 0.0
    %2355 = vmatprep.subr.mxu0 0.0
    %2356 = vmatpush1.msra.mxu0 0.0
    %2357 = vmatprep.subr.mxu0 0.0
    %2358 = vmatpush1.msra.mxu0 0.0
    %2359 = vmatprep.subr.mxu0 0.0
    %2360 = vmatpush1.msra.mxu0 0.0
    %2361 = vmatprep.subr.mxu0 0.0
    %2362 = vmatpush1.msra.mxu0 0.0
    %2363 = vmatprep.subr.mxu0 0.0
    %2364 = vmatpush1.msra.mxu0 0.0
    %2365 = vmatprep.subr.mxu0 0.0
    %2366 = vmatpush1.msra.mxu0 0.0
    %2367 = vmatprep.subr.mxu0 0.0
    %2368 = vmatpush1.msra.mxu0 0.0
    %2369 = vmatprep.subr.mxu0 0.0
    %2370 = vmatpush1.msra.mxu0 0.0
    %2371 = vmatprep.subr.mxu0 0.0
    %2372 = vmatpush1.msra.mxu0 0.0
    %2373 = vmatprep.subr.mxu0 0.0
    %2374 = vmatpush1.msra.mxu0 0.0
    %2375 = vmatprep.subr.mxu0 0.0
    %2376 = vmatpush1.msra.mxu0 0.0
    %2377 = vmatprep.subr.mxu0 0.0
    %2378 = vmatpush1.msra.mxu0 0.0
    %2379 = vmatprep.subr.mxu0 0.0
    %2380 = vmatpush1.msra.mxu0 0.0
    %2381 = vmatprep.subr.mxu0 0.0
    %2382 = vmatpush1.msra.mxu0 0.0
    %2383 = vmatprep.subr.mxu0 0.0
    %2384 = vmatpush1.msra.mxu0 0.0
    %2385 = vmatprep.mubr.f32.mxu0 0.0
    %v2386 = vand.u32 %v2147, 4294901760
    %2387 = vmatmul.mubr.f32.gmra.mrb[0].mxu0 %v2386
    %v2388 = vpop.f32.mrb[0].mxu0
    %v2389 = vadd.f32 %v2237, %v2388
    %v2390 = vpop.f32.mrb[0].mxu0
    %v2391 = vadd.f32 %v2239, %v2390
    %2392 = vdwg.mxu0
    %v2393 = vand.u32 %v60, 4294901760
    %v2394 = vsub.f32 %v60, %v2393
    %2395 = vmatprep.subr.mxu0 %v2394
    %v2396 = vand.u32 %v59, 4294901760
    %v2397 = vsub.f32 %v59, %v2396
    %2398 = vmatpush1.msra.mxu0 %v2397
    %v2399 = vand.u32 %v62, 4294901760
    %v2400 = vsub.f32 %v62, %v2399
    %2401 = vmatprep.subr.mxu0 %v2400
    %v2402 = vand.u32 %v61, 4294901760
    %v2403 = vsub.f32 %v61, %v2402
    %2404 = vmatpush1.msra.mxu0 %v2403
    %v2405 = vand.u32 %v64, 4294901760
    %v2406 = vsub.f32 %v64, %v2405
    %2407 = vmatprep.subr.mxu0 %v2406
    %v2408 = vand.u32 %v63, 4294901760
    %v2409 = vsub.f32 %v63, %v2408
    %2410 = vmatpush1.msra.mxu0 %v2409
    %v2411 = vand.u32 %v66, 4294901760
    %v2412 = vsub.f32 %v66, %v2411
    %2413 = vmatprep.subr.mxu0 %v2412
    %v2414 = vand.u32 %v65, 4294901760
    %v2415 = vsub.f32 %v65, %v2414
    %2416 = vmatpush1.msra.mxu0 %v2415
    %v2417 = vand.u32 %v68, 4294901760
    %v2418 = vsub.f32 %v68, %v2417
    %2419 = vmatprep.subr.mxu0 %v2418
    %v2420 = vand.u32 %v67, 4294901760
    %v2421 = vsub.f32 %v67, %v2420
    %2422 = vmatpush1.msra.mxu0 %v2421
    %v2423 = vand.u32 %v70, 4294901760
    %v2424 = vsub.f32 %v70, %v2423
    %2425 = vmatprep.subr.mxu0 %v2424
    %v2426 = vand.u32 %v69, 4294901760
    %v2427 = vsub.f32 %v69, %v2426
    %2428 = vmatpush1.msra.mxu0 %v2427
    %v2429 = vand.u32 %v72, 4294901760
    %v2430 = vsub.f32 %v72, %v2429
    %2431 = vmatprep.subr.mxu0 %v2430
    %v2432 = vand.u32 %v71, 4294901760
    %v2433 = vsub.f32 %v71, %v2432
    %2434 = vmatpush1.msra.mxu0 %v2433
    %v2435 = vand.u32 %v74, 4294901760
    %v2436 = vsub.f32 %v74, %v2435
    %2437 = vmatprep.subr.mxu0 %v2436
    %v2438 = vand.u32 %v73, 4294901760
    %v2439 = vsub.f32 %v73, %v2438
    %2440 = vmatpush1.msra.mxu0 %v2439
    %2441 = vmatprep.subr.mxu0 0.0
    %2442 = vmatpush1.msra.mxu0 0.0
    %2443 = vmatprep.subr.mxu0 0.0
    %2444 = vmatpush1.msra.mxu0 0.0
    %2445 = vmatprep.subr.mxu0 0.0
    %2446 = vmatpush1.msra.mxu0 0.0
    %2447 = vmatprep.subr.mxu0 0.0
    %2448 = vmatpush1.msra.mxu0 0.0
    %2449 = vmatprep.subr.mxu0 0.0
    %2450 = vmatpush1.msra.mxu0 0.0
    %2451 = vmatprep.subr.mxu0 0.0
    %2452 = vmatpush1.msra.mxu0 0.0
    %2453 = vmatprep.subr.mxu0 0.0
    %2454 = vmatpush1.msra.mxu0 0.0
    %2455 = vmatprep.subr.mxu0 0.0
    %2456 = vmatpush1.msra.mxu0 0.0
    %2457 = vmatprep.subr.mxu0 0.0
    %2458 = vmatpush1.msra.mxu0 0.0
    %2459 = vmatprep.subr.mxu0 0.0
    %2460 = vmatpush1.msra.mxu0 0.0
    %2461 = vmatprep.subr.mxu0 0.0
    %2462 = vmatpush1.msra.mxu0 0.0
    %2463 = vmatprep.subr.mxu0 0.0
    %2464 = vmatpush1.msra.mxu0 0.0
    %2465 = vmatprep.subr.mxu0 0.0
    %2466 = vmatpush1.msra.mxu0 0.0
    %2467 = vmatprep.subr.mxu0 0.0
    %2468 = vmatpush1.msra.mxu0 0.0
    %2469 = vmatprep.subr.mxu0 0.0
    %2470 = vmatpush1.msra.mxu0 0.0
    %2471 = vmatprep.subr.mxu0 0.0
    %2472 = vmatpush1.msra.mxu0 0.0
    %2473 = vmatprep.subr.mxu0 0.0
    %2474 = vmatpush1.msra.mxu0 0.0
    %2475 = vmatprep.subr.mxu0 0.0
    %2476 = vmatpush1.msra.mxu0 0.0
    %2477 = vmatprep.subr.mxu0 0.0
    %2478 = vmatpush1.msra.mxu0 0.0
    %2479 = vmatprep.subr.mxu0 0.0
    %2480 = vmatpush1.msra.mxu0 0.0
    %2481 = vmatprep.subr.mxu0 0.0
    %2482 = vmatpush1.msra.mxu0 0.0
    %2483 = vmatprep.subr.mxu0 0.0
    %2484 = vmatpush1.msra.mxu0 0.0
    %2485 = vmatprep.subr.mxu0 0.0
    %2486 = vmatpush1.msra.mxu0 0.0
    %2487 = vmatprep.subr.mxu0 0.0
    %2488 = vmatpush1.msra.mxu0 0.0
    %2489 = vmatprep.mubr.f32.mxu0 0.0
    %v2490 = vand.u32 %v2147, 4294901760
    %v2491 = vsub.f32 %v2147, %v2490
    %2492 = vmatmul.mubr.f32.gmra.mrb[0].mxu0 %v2491
    %v2493 = vpop.f32.mrb[0].mxu0
    %v2494 = vadd.f32 %v2389, %v2493
    %v2495 = vpop.f32.mrb[0].mxu0
    %v2496 = vadd.f32 %v2391, %v2495
    %2497 = vdwg.mxu0
    %v2498 = vand.u32 %v60, 4294901760
    %2499 = vmatprep.subr.mxu0 %v2498
    %v2500 = vand.u32 %v59, 4294901760
    %2501 = vmatpush1.msra.mxu0 %v2500
    %v2502 = vand.u32 %v62, 4294901760
    %2503 = vmatprep.subr.mxu0 %v2502
    %v2504 = vand.u32 %v61, 4294901760
    %2505 = vmatpush1.msra.mxu0 %v2504
    %v2506 = vand.u32 %v64, 4294901760
    %2507 = vmatprep.subr.mxu0 %v2506
    %v2508 = vand.u32 %v63, 4294901760
    %2509 = vmatpush1.msra.mxu0 %v2508
    %v2510 = vand.u32 %v66, 4294901760
    %2511 = vmatprep.subr.mxu0 %v2510
    %v2512 = vand.u32 %v65, 4294901760
    %2513 = vmatpush1.msra.mxu0 %v2512
    %v2514 = vand.u32 %v68, 4294901760
    %2515 = vmatprep.subr.mxu0 %v2514
    %v2516 = vand.u32 %v67, 4294901760
    %2517 = vmatpush1.msra.mxu0 %v2516
    %v2518 = vand.u32 %v70, 4294901760
    %2519 = vmatprep.subr.mxu0 %v2518
    %v2520 = vand.u32 %v69, 4294901760
    %2521 = vmatpush1.msra.mxu0 %v2520
    %v2522 = vand.u32 %v72, 4294901760
    %2523 = vmatprep.subr.mxu0 %v2522
    %v2524 = vand.u32 %v71, 4294901760
    %2525 = vmatpush1.msra.mxu0 %v2524
    %v2526 = vand.u32 %v74, 4294901760
    %2527 = vmatprep.subr.mxu0 %v2526
    %v2528 = vand.u32 %v73, 4294901760
    %2529 = vmatpush1.msra.mxu0 %v2528
    %2530 = vmatprep.subr.mxu0 0.0
    %2531 = vmatpush1.msra.mxu0 0.0
    %2532 = vmatprep.subr.mxu0 0.0
    %2533 = vmatpush1.msra.mxu0 0.0
    %2534 = vmatprep.subr.mxu0 0.0
    %2535 = vmatpush1.msra.mxu0 0.0
    %2536 = vmatprep.subr.mxu0 0.0
    %2537 = vmatpush1.msra.mxu0 0.0
    %2538 = vmatprep.subr.mxu0 0.0
    %2539 = vmatpush1.msra.mxu0 0.0
    %2540 = vmatprep.subr.mxu0 0.0
    %2541 = vmatpush1.msra.mxu0 0.0
    %2542 = vmatprep.subr.mxu0 0.0
    %2543 = vmatpush1.msra.mxu0 0.0
    %2544 = vmatprep.subr.mxu0 0.0
    %2545 = vmatpush1.msra.mxu0 0.0
    %2546 = vmatprep.subr.mxu0 0.0
    %2547 = vmatpush1.msra.mxu0 0.0
    %2548 = vmatprep.subr.mxu0 0.0
    %2549 = vmatpush1.msra.mxu0 0.0
    %2550 = vmatprep.subr.mxu0 0.0
    %2551 = vmatpush1.msra.mxu0 0.0
    %2552 = vmatprep.subr.mxu0 0.0
    %2553 = vmatpush1.msra.mxu0 0.0
    %2554 = vmatprep.subr.mxu0 0.0
    %2555 = vmatpush1.msra.mxu0 0.0
    %2556 = vmatprep.subr.mxu0 0.0
    %2557 = vmatpush1.msra.mxu0 0.0
    %2558 = vmatprep.subr.mxu0 0.0
    %2559 = vmatpush1.msra.mxu0 0.0
    %2560 = vmatprep.subr.mxu0 0.0
    %2561 = vmatpush1.msra.mxu0 0.0
    %2562 = vmatprep.subr.mxu0 0.0
    %2563 = vmatpush1.msra.mxu0 0.0
    %2564 = vmatprep.subr.mxu0 0.0
    %2565 = vmatpush1.msra.mxu0 0.0
    %2566 = vmatprep.subr.mxu0 0.0
    %2567 = vmatpush1.msra.mxu0 0.0
    %2568 = vmatprep.subr.mxu0 0.0
    %2569 = vmatpush1.msra.mxu0 0.0
    %2570 = vmatprep.subr.mxu0 0.0
    %2571 = vmatpush1.msra.mxu0 0.0
    %2572 = vmatprep.subr.mxu0 0.0
    %2573 = vmatpush1.msra.mxu0 0.0
    %2574 = vmatprep.subr.mxu0 0.0
    %2575 = vmatpush1.msra.mxu0 0.0
    %2576 = vmatprep.subr.mxu0 0.0
    %2577 = vmatpush1.msra.mxu0 0.0
    %2578 = vmatprep.mubr.f32.mxu0 0.0
    %v2579 = vand.u32 %v2147, 4294901760
    %v2580 = vsub.f32 %v2147, %v2579
    %v2581 = vand.u32 %v2580, 4294901760
    %2582 = vmatmul.mubr.f32.gmra.mrb[0].mxu0 %v2581
    %v2583 = vpop.f32.mrb[0].mxu0
    %v2584 = vadd.f32 %v2494, %v2583
    %v2585 = vpop.f32.mrb[0].mxu0
    %v2586 = vadd.f32 %v2496, %v2585
    %2587 = vdwg.mxu0
    %v2588 = vand.u32 %v60, 4294901760
    %v2589 = vsub.f32 %v60, %v2588
    %v2590 = vand.u32 %v2589, 4294901760
    %2591 = vmatprep.subr.mxu0 %v2590
    %v2592 = vand.u32 %v59, 4294901760
    %v2593 = vsub.f32 %v59, %v2592
    %v2594 = vand.u32 %v2593, 4294901760
    %2595 = vmatpush1.msra.mxu0 %v2594
    %v2596 = vand.u32 %v62, 4294901760
    %v2597 = vsub.f32 %v62, %v2596
    %v2598 = vand.u32 %v2597, 4294901760
    %2599 = vmatprep.subr.mxu0 %v2598
    %v2600 = vand.u32 %v61, 4294901760
    %v2601 = vsub.f32 %v61, %v2600
    %v2602 = vand.u32 %v2601, 4294901760
    %2603 = vmatpush1.msra.mxu0 %v2602
    %v2604 = vand.u32 %v64, 4294901760
    %v2605 = vsub.f32 %v64, %v2604
    %v2606 = vand.u32 %v2605, 4294901760
    %2607 = vmatprep.subr.mxu0 %v2606
    %v2608 = vand.u32 %v63, 4294901760
    %v2609 = vsub.f32 %v63, %v2608
    %v2610 = vand.u32 %v2609, 4294901760
    %2611 = vmatpush1.msra.mxu0 %v2610
    %v2612 = vand.u32 %v66, 4294901760
    %v2613 = vsub.f32 %v66, %v2612
    %v2614 = vand.u32 %v2613, 4294901760
    %2615 = vmatprep.subr.mxu0 %v2614
    %v2616 = vand.u32 %v65, 4294901760
    %v2617 = vsub.f32 %v65, %v2616
    %v2618 = vand.u32 %v2617, 4294901760
    %2619 = vmatpush1.msra.mxu0 %v2618
    %v2620 = vand.u32 %v68, 4294901760
    %v2621 = vsub.f32 %v68, %v2620
    %v2622 = vand.u32 %v2621, 4294901760
    %2623 = vmatprep.subr.mxu0 %v2622
    %v2624 = vand.u32 %v67, 4294901760
    %v2625 = vsub.f32 %v67, %v2624
    %v2626 = vand.u32 %v2625, 4294901760
    %2627 = vmatpush1.msra.mxu0 %v2626
    %v2628 = vand.u32 %v70, 4294901760
    %v2629 = vsub.f32 %v70, %v2628
    %v2630 = vand.u32 %v2629, 4294901760
    %2631 = vmatprep.subr.mxu0 %v2630
    %v2632 = vand.u32 %v69, 4294901760
    %v2633 = vsub.f32 %v69, %v2632
    %v2634 = vand.u32 %v2633, 4294901760
    %2635 = vmatpush1.msra.mxu0 %v2634
    %v2636 = vand.u32 %v72, 4294901760
    %v2637 = vsub.f32 %v72, %v2636
    %v2638 = vand.u32 %v2637, 4294901760
    %2639 = vmatprep.subr.mxu0 %v2638
    %v2640 = vand.u32 %v71, 4294901760
    %v2641 = vsub.f32 %v71, %v2640
    %v2642 = vand.u32 %v2641, 4294901760
    %2643 = vmatpush1.msra.mxu0 %v2642
    %v2644 = vand.u32 %v74, 4294901760
    %v2645 = vsub.f32 %v74, %v2644
    %v2646 = vand.u32 %v2645, 4294901760
    %2647 = vmatprep.subr.mxu0 %v2646
    %v2648 = vand.u32 %v73, 4294901760
    %v2649 = vsub.f32 %v73, %v2648
    %v2650 = vand.u32 %v2649, 4294901760
    %2651 = vmatpush1.msra.mxu0 %v2650
    %2652 = vmatprep.subr.mxu0 0.0
    %2653 = vmatpush1.msra.mxu0 0.0
    %2654 = vmatprep.subr.mxu0 0.0
    %2655 = vmatpush1.msra.mxu0 0.0
    %2656 = vmatprep.subr.mxu0 0.0
    %2657 = vmatpush1.msra.mxu0 0.0
    %2658 = vmatprep.subr.mxu0 0.0
    %2659 = vmatpush1.msra.mxu0 0.0
    %2660 = vmatprep.subr.mxu0 0.0
    %2661 = vmatpush1.msra.mxu0 0.0
    %2662 = vmatprep.subr.mxu0 0.0
    %2663 = vmatpush1.msra.mxu0 0.0
    %2664 = vmatprep.subr.mxu0 0.0
    %2665 = vmatpush1.msra.mxu0 0.0
    %2666 = vmatprep.subr.mxu0 0.0
    %2667 = vmatpush1.msra.mxu0 0.0
    %2668 = vmatprep.subr.mxu0 0.0
    %2669 = vmatpush1.msra.mxu0 0.0
    %2670 = vmatprep.subr.mxu0 0.0
    %2671 = vmatpush1.msra.mxu0 0.0
    %2672 = vmatprep.subr.mxu0 0.0
    %2673 = vmatpush1.msra.mxu0 0.0
    %2674 = vmatprep.subr.mxu0 0.0
    %2675 = vmatpush1.msra.mxu0 0.0
    %2676 = vmatprep.subr.mxu0 0.0
    %2677 = vmatpush1.msra.mxu0 0.0
    %2678 = vmatprep.subr.mxu0 0.0
    %2679 = vmatpush1.msra.mxu0 0.0
    %2680 = vmatprep.subr.mxu0 0.0
    %2681 = vmatpush1.msra.mxu0 0.0
    %2682 = vmatprep.subr.mxu0 0.0
    %2683 = vmatpush1.msra.mxu0 0.0
    %2684 = vmatprep.subr.mxu0 0.0
    %2685 = vmatpush1.msra.mxu0 0.0
    %2686 = vmatprep.subr.mxu0 0.0
    %2687 = vmatpush1.msra.mxu0 0.0
    %2688 = vmatprep.subr.mxu0 0.0
    %2689 = vmatpush1.msra.mxu0 0.0
    %2690 = vmatprep.subr.mxu0 0.0
    %2691 = vmatpush1.msra.mxu0 0.0
    %2692 = vmatprep.subr.mxu0 0.0
    %2693 = vmatpush1.msra.mxu0 0.0
    %2694 = vmatprep.subr.mxu0 0.0
    %2695 = vmatpush1.msra.mxu0 0.0
    %2696 = vmatprep.subr.mxu0 0.0
    %2697 = vmatpush1.msra.mxu0 0.0
    %2698 = vmatprep.subr.mxu0 0.0
    %2699 = vmatpush1.msra.mxu0 0.0
    %2700 = vmatprep.mubr.f32.mxu0 0.0
    %v2701 = vand.u32 %v2147, 4294901760
    %2702 = vmatmul.mubr.f32.gmra.mrb[0].mxu0 %v2701
    %v2703 = vpop.f32.mrb[0].mxu0
    %v2704 = vadd.f32 %v2584, %v2703
    %v2705 = vpop.f32.mrb[0].mxu0
    %v2706 = vadd.f32 %v2586, %v2705
    %2707 = vdwg.mxu0
    %v2708 = vand.u32 %v60, 4294901760
    %2709 = vmatprep.subr.mxu0 %v2708
    %v2710 = vand.u32 %v59, 4294901760
    %2711 = vmatpush1.msra.mxu0 %v2710
    %v2712 = vand.u32 %v62, 4294901760
    %2713 = vmatprep.subr.mxu0 %v2712
    %v2714 = vand.u32 %v61, 4294901760
    %2715 = vmatpush1.msra.mxu0 %v2714
    %v2716 = vand.u32 %v64, 4294901760
    %2717 = vmatprep.subr.mxu0 %v2716
    %v2718 = vand.u32 %v63, 4294901760
    %2719 = vmatpush1.msra.mxu0 %v2718
    %v2720 = vand.u32 %v66, 4294901760
    %2721 = vmatprep.subr.mxu0 %v2720
    %v2722 = vand.u32 %v65, 4294901760
    %2723 = vmatpush1.msra.mxu0 %v2722
    %v2724 = vand.u32 %v68, 4294901760
    %2725 = vmatprep.subr.mxu0 %v2724
    %v2726 = vand.u32 %v67, 4294901760
    %2727 = vmatpush1.msra.mxu0 %v2726
    %v2728 = vand.u32 %v70, 4294901760
    %2729 = vmatprep.subr.mxu0 %v2728
    %v2730 = vand.u32 %v69, 4294901760
    %2731 = vmatpush1.msra.mxu0 %v2730
    %v2732 = vand.u32 %v72, 4294901760
    %2733 = vmatprep.subr.mxu0 %v2732
    %v2734 = vand.u32 %v71, 4294901760
    %2735 = vmatpush1.msra.mxu0 %v2734
    %v2736 = vand.u32 %v74, 4294901760
    %2737 = vmatprep.subr.mxu0 %v2736
    %v2738 = vand.u32 %v73, 4294901760
    %2739 = vmatpush1.msra.mxu0 %v2738
    %2740 = vmatprep.subr.mxu0 0.0
    %2741 = vmatpush1.msra.mxu0 0.0
    %2742 = vmatprep.subr.mxu0 0.0
    %2743 = vmatpush1.msra.mxu0 0.0
    %2744 = vmatprep.subr.mxu0 0.0
    %2745 = vmatpush1.msra.mxu0 0.0
    %2746 = vmatprep.subr.mxu0 0.0
    %2747 = vmatpush1.msra.mxu0 0.0
    %2748 = vmatprep.subr.mxu0 0.0
    %2749 = vmatpush1.msra.mxu0 0.0
    %2750 = vmatprep.subr.mxu0 0.0
    %2751 = vmatpush1.msra.mxu0 0.0
    %2752 = vmatprep.subr.mxu0 0.0
    %2753 = vmatpush1.msra.mxu0 0.0
    %2754 = vmatprep.subr.mxu0 0.0
    %2755 = vmatpush1.msra.mxu0 0.0
    %2756 = vmatprep.subr.mxu0 0.0
    %2757 = vmatpush1.msra.mxu0 0.0
    %2758 = vmatprep.subr.mxu0 0.0
    %2759 = vmatpush1.msra.mxu0 0.0
    %2760 = vmatprep.subr.mxu0 0.0
    %2761 = vmatpush1.msra.mxu0 0.0
    %2762 = vmatprep.subr.mxu0 0.0
    %2763 = vmatpush1.msra.mxu0 0.0
    %2764 = vmatprep.subr.mxu0 0.0
    %2765 = vmatpush1.msra.mxu0 0.0
    %2766 = vmatprep.subr.mxu0 0.0
    %2767 = vmatpush1.msra.mxu0 0.0
    %2768 = vmatprep.subr.mxu0 0.0
    %2769 = vmatpush1.msra.mxu0 0.0
    %2770 = vmatprep.subr.mxu0 0.0
    %2771 = vmatpush1.msra.mxu0 0.0
    %2772 = vmatprep.subr.mxu0 0.0
    %2773 = vmatpush1.msra.mxu0 0.0
    %2774 = vmatprep.subr.mxu0 0.0
    %2775 = vmatpush1.msra.mxu0 0.0
    %2776 = vmatprep.subr.mxu0 0.0
    %2777 = vmatpush1.msra.mxu0 0.0
    %2778 = vmatprep.subr.mxu0 0.0
    %2779 = vmatpush1.msra.mxu0 0.0
    %2780 = vmatprep.subr.mxu0 0.0
    %2781 = vmatpush1.msra.mxu0 0.0
    %2782 = vmatprep.subr.mxu0 0.0
    %2783 = vmatpush1.msra.mxu0 0.0
    %2784 = vmatprep.subr.mxu0 0.0
    %2785 = vmatpush1.msra.mxu0 0.0
    %2786 = vmatprep.subr.mxu0 0.0
    %2787 = vmatpush1.msra.mxu0 0.0
    %2788 = vmatprep.mubr.f32.mxu0 0.0
    %v2789 = vand.u32 %v2147, 4294901760
    %2790 = vmatmul.mubr.f32.gmra.mrb[0].mxu0 %v2789
    %v2791 = vpop.f32.mrb[0].mxu0
    %v2792 = vadd.f32 %v2704, %v2791
    %v2793 = vpop.f32.mrb[0].mxu0
    %v2794 = vadd.f32 %v2706, %v2793
    %2795 = vdwg.mxu0
    %v2798 = vrot.slane %v2792, 2
    %v2799 = vrot.slane %v2794, 2
    %v2802 = vadd.f32 %v75, %v2798
    %v2803 = vadd.f32 %v76, %v2799
    %v2804 = vxor.u32 %v2802, 2147483648
    %v2805 = vxor.u32 %v2803, 2147483648
    %v2806 = vmul.f32 %v2804, 1.442695
    %v2807 = vpow.pop %v2806
    %v2808 = vmul.f32 %v2805, 1.442695
    %v2809 = vpow.pop %v2808
    %v2810 = vadd.f32 %v2807, 1.0
    %v2811 = vadd.f32 %v2809, 1.0
    %v2812 = vrcp.pop %v2810
    %v2813 = vmul.f32 1.0, %v2812
    %v2814 = vrcp.pop %v2811
    %v2815 = vmul.f32 1.0, %v2814
    %v2816 = vtanh.pop %v2803
    %v2818 = vrot.slane %v2138, 6
    %v2820 = vmul.f32 %v2813, %v2818
    %2822 = vrot.lane.b32.xlu0 %v2816, 64
    %v2823 = vpop.permute.xlu0 %2822
    %v2825 = vmul.f32 %v2813, %v2823
    %2827 = vrot.lane.b32.xlu0 %v2825, 64
    %v2828 = vpop.permute.xlu0 %2827
    %v2830 = vadd.f32 %v2820, %v2828
    %v2831 = vtanh.pop %v2830
    %2833 = vrot.lane.b32.xlu0 %v2831, 64
    %v2834 = vpop.permute.xlu0 %2833
    %v2836 = vmul.f32 %v2815, %v2834
    %v2838 = vrot.slane %v2836, 6
    %v2839 = vsel %vm79, %v2838, 0
    %v2841 = vand.u32 %v60, 4294901760
    %2842 = vmatprep.subr.mxu0 %v2841
    %v2843 = vand.u32 %v59, 4294901760
    %2844 = vmatpush1.msra.mxu0 %v2843
    %v2845 = vand.u32 %v62, 4294901760
    %2846 = vmatprep.subr.mxu0 %v2845
    %v2847 = vand.u32 %v61, 4294901760
    %2848 = vmatpush1.msra.mxu0 %v2847
    %v2849 = vand.u32 %v64, 4294901760
    %2850 = vmatprep.subr.mxu0 %v2849
    %v2851 = vand.u32 %v63, 4294901760
    %2852 = vmatpush1.msra.mxu0 %v2851
    %v2853 = vand.u32 %v66, 4294901760
    %2854 = vmatprep.subr.mxu0 %v2853
    %v2855 = vand.u32 %v65, 4294901760
    %2856 = vmatpush1.msra.mxu0 %v2855
    %v2857 = vand.u32 %v68, 4294901760
    %2858 = vmatprep.subr.mxu0 %v2857
    %v2859 = vand.u32 %v67, 4294901760
    %2860 = vmatpush1.msra.mxu0 %v2859
    %v2861 = vand.u32 %v70, 4294901760
    %2862 = vmatprep.subr.mxu0 %v2861
    %v2863 = vand.u32 %v69, 4294901760
    %2864 = vmatpush1.msra.mxu0 %v2863
    %v2865 = vand.u32 %v72, 4294901760
    %2866 = vmatprep.subr.mxu0 %v2865
    %v2867 = vand.u32 %v71, 4294901760
    %2868 = vmatpush1.msra.mxu0 %v2867
    %v2869 = vand.u32 %v74, 4294901760
    %2870 = vmatprep.subr.mxu0 %v2869
    %v2871 = vand.u32 %v73, 4294901760
    %2872 = vmatpush1.msra.mxu0 %v2871
    %2873 = vmatprep.subr.mxu0 0.0
    %2874 = vmatpush1.msra.mxu0 0.0
    %2875 = vmatprep.subr.mxu0 0.0
    %2876 = vmatpush1.msra.mxu0 0.0
    %2877 = vmatprep.subr.mxu0 0.0
    %2878 = vmatpush1.msra.mxu0 0.0
    %2879 = vmatprep.subr.mxu0 0.0
    %2880 = vmatpush1.msra.mxu0 0.0
    %2881 = vmatprep.subr.mxu0 0.0
    %2882 = vmatpush1.msra.mxu0 0.0
    %2883 = vmatprep.subr.mxu0 0.0
    %2884 = vmatpush1.msra.mxu0 0.0
    %2885 = vmatprep.subr.mxu0 0.0
    %2886 = vmatpush1.msra.mxu0 0.0
    %2887 = vmatprep.subr.mxu0 0.0
    %2888 = vmatpush1.msra.mxu0 0.0
    %2889 = vmatprep.subr.mxu0 0.0
    %2890 = vmatpush1.msra.mxu0 0.0
    %2891 = vmatprep.subr.mxu0 0.0
    %2892 = vmatpush1.msra.mxu0 0.0
    %2893 = vmatprep.subr.mxu0 0.0
    %2894 = vmatpush1.msra.mxu0 0.0
    %2895 = vmatprep.subr.mxu0 0.0
    %2896 = vmatpush1.msra.mxu0 0.0
    %2897 = vmatprep.subr.mxu0 0.0
    %2898 = vmatpush1.msra.mxu0 0.0
    %2899 = vmatprep.subr.mxu0 0.0
    %2900 = vmatpush1.msra.mxu0 0.0
    %2901 = vmatprep.subr.mxu0 0.0
    %2902 = vmatpush1.msra.mxu0 0.0
    %2903 = vmatprep.subr.mxu0 0.0
    %2904 = vmatpush1.msra.mxu0 0.0
    %2905 = vmatprep.subr.mxu0 0.0
    %2906 = vmatpush1.msra.mxu0 0.0
    %2907 = vmatprep.subr.mxu0 0.0
    %2908 = vmatpush1.msra.mxu0 0.0
    %2909 = vmatprep.subr.mxu0 0.0
    %2910 = vmatpush1.msra.mxu0 0.0
    %2911 = vmatprep.subr.mxu0 0.0
    %2912 = vmatpush1.msra.mxu0 0.0
    %2913 = vmatprep.subr.mxu0 0.0
    %2914 = vmatpush1.msra.mxu0 0.0
    %2915 = vmatprep.subr.mxu0 0.0
    %2916 = vmatpush1.msra.mxu0 0.0
    %2917 = vmatprep.subr.mxu0 0.0
    %2918 = vmatpush1.msra.mxu0 0.0
    %2919 = vmatprep.subr.mxu0 0.0
    %2920 = vmatpush1.msra.mxu0 0.0
    %2921 = vmatprep.mubr.f32.mxu0 0.0
    %v2922 = vand.u32 %v2839, 4294901760
    %v2923 = vsub.f32 %v2839, %v2922
    %v2924 = vand.u32 %v2923, 4294901760
    %v2925 = vsub.f32 %v2923, %v2924
    %v2926 = vand.u32 %v2925, 4294901760
    %2927 = vmatmul.mubr.f32.gmra.mrb[0].mxu0 %v2926
    %v2928 = vpop.f32.mrb[0].mxu0
    %v2929 = vadd.f32 0.0, %v2928
    %v2930 = vpop.f32.mrb[0].mxu0
    %v2931 = vadd.f32 0.0, %v2930
    %2932 = vdwg.mxu0
    %v2933 = vand.u32 %v60, 4294901760
    %v2934 = vsub.f32 %v60, %v2933
    %v2935 = vand.u32 %v2934, 4294901760
    %v2936 = vsub.f32 %v2934, %v2935
    %v2937 = vand.u32 %v2936, 4294901760
    %2938 = vmatprep.subr.mxu0 %v2937
    %v2939 = vand.u32 %v59, 4294901760
    %v2940 = vsub.f32 %v59, %v2939
    %v2941 = vand.u32 %v2940, 4294901760
    %v2942 = vsub.f32 %v2940, %v2941
    %v2943 = vand.u32 %v2942, 4294901760
    %2944 = vmatpush1.msra.mxu0 %v2943
    %v2945 = vand.u32 %v62, 4294901760
    %v2946 = vsub.f32 %v62, %v2945
    %v2947 = vand.u32 %v2946, 4294901760
    %v2948 = vsub.f32 %v2946, %v2947
    %v2949 = vand.u32 %v2948, 4294901760
    %2950 = vmatprep.subr.mxu0 %v2949
    %v2951 = vand.u32 %v61, 4294901760
    %v2952 = vsub.f32 %v61, %v2951
    %v2953 = vand.u32 %v2952, 4294901760
    %v2954 = vsub.f32 %v2952, %v2953
    %v2955 = vand.u32 %v2954, 4294901760
    %2956 = vmatpush1.msra.mxu0 %v2955
    %v2957 = vand.u32 %v64, 4294901760
    %v2958 = vsub.f32 %v64, %v2957
    %v2959 = vand.u32 %v2958, 4294901760
    %v2960 = vsub.f32 %v2958, %v2959
    %v2961 = vand.u32 %v2960, 4294901760
    %2962 = vmatprep.subr.mxu0 %v2961
    %v2963 = vand.u32 %v63, 4294901760
    %v2964 = vsub.f32 %v63, %v2963
    %v2965 = vand.u32 %v2964, 4294901760
    %v2966 = vsub.f32 %v2964, %v2965
    %v2967 = vand.u32 %v2966, 4294901760
    %2968 = vmatpush1.msra.mxu0 %v2967
    %v2969 = vand.u32 %v66, 4294901760
    %v2970 = vsub.f32 %v66, %v2969
    %v2971 = vand.u32 %v2970, 4294901760
    %v2972 = vsub.f32 %v2970, %v2971
    %v2973 = vand.u32 %v2972, 4294901760
    %2974 = vmatprep.subr.mxu0 %v2973
    %v2975 = vand.u32 %v65, 4294901760
    %v2976 = vsub.f32 %v65, %v2975
    %v2977 = vand.u32 %v2976, 4294901760
    %v2978 = vsub.f32 %v2976, %v2977
    %v2979 = vand.u32 %v2978, 4294901760
    %2980 = vmatpush1.msra.mxu0 %v2979
    %v2981 = vand.u32 %v68, 4294901760
    %v2982 = vsub.f32 %v68, %v2981
    %v2983 = vand.u32 %v2982, 4294901760
    %v2984 = vsub.f32 %v2982, %v2983
    %v2985 = vand.u32 %v2984, 4294901760
    %2986 = vmatprep.subr.mxu0 %v2985
    %v2987 = vand.u32 %v67, 4294901760
    %v2988 = vsub.f32 %v67, %v2987
    %v2989 = vand.u32 %v2988, 4294901760
    %v2990 = vsub.f32 %v2988, %v2989
    %v2991 = vand.u32 %v2990, 4294901760
    %2992 = vmatpush1.msra.mxu0 %v2991
    %v2993 = vand.u32 %v70, 4294901760
    %v2994 = vsub.f32 %v70, %v2993
    %v2995 = vand.u32 %v2994, 4294901760
    %v2996 = vsub.f32 %v2994, %v2995
    %v2997 = vand.u32 %v2996, 4294901760
    %2998 = vmatprep.subr.mxu0 %v2997
    %v2999 = vand.u32 %v69, 4294901760
    %v3000 = vsub.f32 %v69, %v2999
    %v3001 = vand.u32 %v3000, 4294901760
    %v3002 = vsub.f32 %v3000, %v3001
    %v3003 = vand.u32 %v3002, 4294901760
    %3004 = vmatpush1.msra.mxu0 %v3003
    %v3005 = vand.u32 %v72, 4294901760
    %v3006 = vsub.f32 %v72, %v3005
    %v3007 = vand.u32 %v3006, 4294901760
    %v3008 = vsub.f32 %v3006, %v3007
    %v3009 = vand.u32 %v3008, 4294901760
    %3010 = vmatprep.subr.mxu0 %v3009
    %v3011 = vand.u32 %v71, 4294901760
    %v3012 = vsub.f32 %v71, %v3011
    %v3013 = vand.u32 %v3012, 4294901760
    %v3014 = vsub.f32 %v3012, %v3013
    %v3015 = vand.u32 %v3014, 4294901760
    %3016 = vmatpush1.msra.mxu0 %v3015
    %v3017 = vand.u32 %v74, 4294901760
    %v3018 = vsub.f32 %v74, %v3017
    %v3019 = vand.u32 %v3018, 4294901760
    %v3020 = vsub.f32 %v3018, %v3019
    %v3021 = vand.u32 %v3020, 4294901760
    %3022 = vmatprep.subr.mxu0 %v3021
    %v3023 = vand.u32 %v73, 4294901760
    %v3024 = vsub.f32 %v73, %v3023
    %v3025 = vand.u32 %v3024, 4294901760
    %v3026 = vsub.f32 %v3024, %v3025
    %v3027 = vand.u32 %v3026, 4294901760
    %3028 = vmatpush1.msra.mxu0 %v3027
    %3029 = vmatprep.subr.mxu0 0.0
    %3030 = vmatpush1.msra.mxu0 0.0
    %3031 = vmatprep.subr.mxu0 0.0
    %3032 = vmatpush1.msra.mxu0 0.0
    %3033 = vmatprep.subr.mxu0 0.0
    %3034 = vmatpush1.msra.mxu0 0.0
    %3035 = vmatprep.subr.mxu0 0.0
    %3036 = vmatpush1.msra.mxu0 0.0
    %3037 = vmatprep.subr.mxu0 0.0
    %3038 = vmatpush1.msra.mxu0 0.0
    %3039 = vmatprep.subr.mxu0 0.0
    %3040 = vmatpush1.msra.mxu0 0.0
    %3041 = vmatprep.subr.mxu0 0.0
    %3042 = vmatpush1.msra.mxu0 0.0
    %3043 = vmatprep.subr.mxu0 0.0
    %3044 = vmatpush1.msra.mxu0 0.0
    %3045 = vmatprep.subr.mxu0 0.0
    %3046 = vmatpush1.msra.mxu0 0.0
    %3047 = vmatprep.subr.mxu0 0.0
    %3048 = vmatpush1.msra.mxu0 0.0
    %3049 = vmatprep.subr.mxu0 0.0
    %3050 = vmatpush1.msra.mxu0 0.0
    %3051 = vmatprep.subr.mxu0 0.0
    %3052 = vmatpush1.msra.mxu0 0.0
    %3053 = vmatprep.subr.mxu0 0.0
    %3054 = vmatpush1.msra.mxu0 0.0
    %3055 = vmatprep.subr.mxu0 0.0
    %3056 = vmatpush1.msra.mxu0 0.0
    %3057 = vmatprep.subr.mxu0 0.0
    %3058 = vmatpush1.msra.mxu0 0.0
    %3059 = vmatprep.subr.mxu0 0.0
    %3060 = vmatpush1.msra.mxu0 0.0
    %3061 = vmatprep.subr.mxu0 0.0
    %3062 = vmatpush1.msra.mxu0 0.0
    %3063 = vmatprep.subr.mxu0 0.0
    %3064 = vmatpush1.msra.mxu0 0.0
    %3065 = vmatprep.subr.mxu0 0.0
    %3066 = vmatpush1.msra.mxu0 0.0
    %3067 = vmatprep.subr.mxu0 0.0
    %3068 = vmatpush1.msra.mxu0 0.0
    %3069 = vmatprep.subr.mxu0 0.0
    %3070 = vmatpush1.msra.mxu0 0.0
    %3071 = vmatprep.subr.mxu0 0.0
    %3072 = vmatpush1.msra.mxu0 0.0
    %3073 = vmatprep.subr.mxu0 0.0
    %3074 = vmatpush1.msra.mxu0 0.0
    %3075 = vmatprep.subr.mxu0 0.0
    %3076 = vmatpush1.msra.mxu0 0.0
    %3077 = vmatprep.mubr.f32.mxu0 0.0
    %v3078 = vand.u32 %v2839, 4294901760
    %3079 = vmatmul.mubr.f32.gmra.mrb[0].mxu0 %v3078
    %v3080 = vpop.f32.mrb[0].mxu0
    %v3081 = vadd.f32 %v2929, %v3080
    %v3082 = vpop.f32.mrb[0].mxu0
    %v3083 = vadd.f32 %v2931, %v3082
    %3084 = vdwg.mxu0
    %v3085 = vand.u32 %v60, 4294901760
    %v3086 = vsub.f32 %v60, %v3085
    %3087 = vmatprep.subr.mxu0 %v3086
    %v3088 = vand.u32 %v59, 4294901760
    %v3089 = vsub.f32 %v59, %v3088
    %3090 = vmatpush1.msra.mxu0 %v3089
    %v3091 = vand.u32 %v62, 4294901760
    %v3092 = vsub.f32 %v62, %v3091
    %3093 = vmatprep.subr.mxu0 %v3092
    %v3094 = vand.u32 %v61, 4294901760
    %v3095 = vsub.f32 %v61, %v3094
    %3096 = vmatpush1.msra.mxu0 %v3095
    %v3097 = vand.u32 %v64, 4294901760
    %v3098 = vsub.f32 %v64, %v3097
    %3099 = vmatprep.subr.mxu0 %v3098
    %v3100 = vand.u32 %v63, 4294901760
    %v3101 = vsub.f32 %v63, %v3100
    %3102 = vmatpush1.msra.mxu0 %v3101
    %v3103 = vand.u32 %v66, 4294901760
    %v3104 = vsub.f32 %v66, %v3103
    %3105 = vmatprep.subr.mxu0 %v3104
    %v3106 = vand.u32 %v65, 4294901760
    %v3107 = vsub.f32 %v65, %v3106
    %3108 = vmatpush1.msra.mxu0 %v3107
    %v3109 = vand.u32 %v68, 4294901760
    %v3110 = vsub.f32 %v68, %v3109
    %3111 = vmatprep.subr.mxu0 %v3110
    %v3112 = vand.u32 %v67, 4294901760
    %v3113 = vsub.f32 %v67, %v3112
    %3114 = vmatpush1.msra.mxu0 %v3113
    %v3115 = vand.u32 %v70, 4294901760
    %v3116 = vsub.f32 %v70, %v3115
    %3117 = vmatprep.subr.mxu0 %v3116
    %v3118 = vand.u32 %v69, 4294901760
    %v3119 = vsub.f32 %v69, %v3118
    %3120 = vmatpush1.msra.mxu0 %v3119
    %v3121 = vand.u32 %v72, 4294901760
    %v3122 = vsub.f32 %v72, %v3121
    %3123 = vmatprep.subr.mxu0 %v3122
    %v3124 = vand.u32 %v71, 4294901760
    %v3125 = vsub.f32 %v71, %v3124
    %3126 = vmatpush1.msra.mxu0 %v3125
    %v3127 = vand.u32 %v74, 4294901760
    %v3128 = vsub.f32 %v74, %v3127
    %3129 = vmatprep.subr.mxu0 %v3128
    %v3130 = vand.u32 %v73, 4294901760
    %v3131 = vsub.f32 %v73, %v3130
    %3132 = vmatpush1.msra.mxu0 %v3131
    %3133 = vmatprep.subr.mxu0 0.0
    %3134 = vmatpush1.msra.mxu0 0.0
    %3135 = vmatprep.subr.mxu0 0.0
    %3136 = vmatpush1.msra.mxu0 0.0
    %3137 = vmatprep.subr.mxu0 0.0
    %3138 = vmatpush1.msra.mxu0 0.0
    %3139 = vmatprep.subr.mxu0 0.0
    %3140 = vmatpush1.msra.mxu0 0.0
    %3141 = vmatprep.subr.mxu0 0.0
    %3142 = vmatpush1.msra.mxu0 0.0
    %3143 = vmatprep.subr.mxu0 0.0
    %3144 = vmatpush1.msra.mxu0 0.0
    %3145 = vmatprep.subr.mxu0 0.0
    %3146 = vmatpush1.msra.mxu0 0.0
    %3147 = vmatprep.subr.mxu0 0.0
    %3148 = vmatpush1.msra.mxu0 0.0
    %3149 = vmatprep.subr.mxu0 0.0
    %3150 = vmatpush1.msra.mxu0 0.0
    %3151 = vmatprep.subr.mxu0 0.0
    %3152 = vmatpush1.msra.mxu0 0.0
    %3153 = vmatprep.subr.mxu0 0.0
    %3154 = vmatpush1.msra.mxu0 0.0
    %3155 = vmatprep.subr.mxu0 0.0
    %3156 = vmatpush1.msra.mxu0 0.0
    %3157 = vmatprep.subr.mxu0 0.0
    %3158 = vmatpush1.msra.mxu0 0.0
    %3159 = vmatprep.subr.mxu0 0.0
    %3160 = vmatpush1.msra.mxu0 0.0
    %3161 = vmatprep.subr.mxu0 0.0
    %3162 = vmatpush1.msra.mxu0 0.0
    %3163 = vmatprep.subr.mxu0 0.0
    %3164 = vmatpush1.msra.mxu0 0.0
    %3165 = vmatprep.subr.mxu0 0.0
    %3166 = vmatpush1.msra.mxu0 0.0
    %3167 = vmatprep.subr.mxu0 0.0
    %3168 = vmatpush1.msra.mxu0 0.0
    %3169 = vmatprep.subr.mxu0 0.0
    %3170 = vmatpush1.msra.mxu0 0.0
    %3171 = vmatprep.subr.mxu0 0.0
    %3172 = vmatpush1.msra.mxu0 0.0
    %3173 = vmatprep.subr.mxu0 0.0
    %3174 = vmatpush1.msra.mxu0 0.0
    %3175 = vmatprep.subr.mxu0 0.0
    %3176 = vmatpush1.msra.mxu0 0.0
    %3177 = vmatprep.subr.mxu0 0.0
    %3178 = vmatpush1.msra.mxu0 0.0
    %3179 = vmatprep.subr.mxu0 0.0
    %3180 = vmatpush1.msra.mxu0 0.0
    %3181 = vmatprep.mubr.f32.mxu0 0.0
    %v3182 = vand.u32 %v2839, 4294901760
    %v3183 = vsub.f32 %v2839, %v3182
    %3184 = vmatmul.mubr.f32.gmra.mrb[0].mxu0 %v3183
    %v3185 = vpop.f32.mrb[0].mxu0
    %v3186 = vadd.f32 %v3081, %v3185
    %v3187 = vpop.f32.mrb[0].mxu0
    %v3188 = vadd.f32 %v3083, %v3187
    %3189 = vdwg.mxu0
    %v3190 = vand.u32 %v60, 4294901760
    %3191 = vmatprep.subr.mxu0 %v3190
    %v3192 = vand.u32 %v59, 4294901760
    %3193 = vmatpush1.msra.mxu0 %v3192
    %v3194 = vand.u32 %v62, 4294901760
    %3195 = vmatprep.subr.mxu0 %v3194
    %v3196 = vand.u32 %v61, 4294901760
    %3197 = vmatpush1.msra.mxu0 %v3196
    %v3198 = vand.u32 %v64, 4294901760
    %3199 = vmatprep.subr.mxu0 %v3198
    %v3200 = vand.u32 %v63, 4294901760
    %3201 = vmatpush1.msra.mxu0 %v3200
    %v3202 = vand.u32 %v66, 4294901760
    %3203 = vmatprep.subr.mxu0 %v3202
    %v3204 = vand.u32 %v65, 4294901760
    %3205 = vmatpush1.msra.mxu0 %v3204
    %v3206 = vand.u32 %v68, 4294901760
    %3207 = vmatprep.subr.mxu0 %v3206
    %v3208 = vand.u32 %v67, 4294901760
    %3209 = vmatpush1.msra.mxu0 %v3208
    %v3210 = vand.u32 %v70, 4294901760
    %3211 = vmatprep.subr.mxu0 %v3210
    %v3212 = vand.u32 %v69, 4294901760
    %3213 = vmatpush1.msra.mxu0 %v3212
    %v3214 = vand.u32 %v72, 4294901760
    %3215 = vmatprep.subr.mxu0 %v3214
    %v3216 = vand.u32 %v71, 4294901760
    %3217 = vmatpush1.msra.mxu0 %v3216
    %v3218 = vand.u32 %v74, 4294901760
    %3219 = vmatprep.subr.mxu0 %v3218
    %v3220 = vand.u32 %v73, 4294901760
    %3221 = vmatpush1.msra.mxu0 %v3220
    %3222 = vmatprep.subr.mxu0 0.0
    %3223 = vmatpush1.msra.mxu0 0.0
    %3224 = vmatprep.subr.mxu0 0.0
    %3225 = vmatpush1.msra.mxu0 0.0
    %3226 = vmatprep.subr.mxu0 0.0
    %3227 = vmatpush1.msra.mxu0 0.0
    %3228 = vmatprep.subr.mxu0 0.0
    %3229 = vmatpush1.msra.mxu0 0.0
    %3230 = vmatprep.subr.mxu0 0.0
    %3231 = vmatpush1.msra.mxu0 0.0
    %3232 = vmatprep.subr.mxu0 0.0
    %3233 = vmatpush1.msra.mxu0 0.0
    %3234 = vmatprep.subr.mxu0 0.0
    %3235 = vmatpush1.msra.mxu0 0.0
    %3236 = vmatprep.subr.mxu0 0.0
    %3237 = vmatpush1.msra.mxu0 0.0
    %3238 = vmatprep.subr.mxu0 0.0
    %3239 = vmatpush1.msra.mxu0 0.0
    %3240 = vmatprep.subr.mxu0 0.0
    %3241 = vmatpush1.msra.mxu0 0.0
    %3242 = vmatprep.subr.mxu0 0.0
    %3243 = vmatpush1.msra.mxu0 0.0
    %3244 = vmatprep.subr.mxu0 0.0
    %3245 = vmatpush1.msra.mxu0 0.0
    %3246 = vmatprep.subr.mxu0 0.0
    %3247 = vmatpush1.msra.mxu0 0.0
    %3248 = vmatprep.subr.mxu0 0.0
    %3249 = vmatpush1.msra.mxu0 0.0
    %3250 = vmatprep.subr.mxu0 0.0
    %3251 = vmatpush1.msra.mxu0 0.0
    %3252 = vmatprep.subr.mxu0 0.0
    %3253 = vmatpush1.msra.mxu0 0.0
    %3254 = vmatprep.subr.mxu0 0.0
    %3255 = vmatpush1.msra.mxu0 0.0
    %3256 = vmatprep.subr.mxu0 0.0
    %3257 = vmatpush1.msra.mxu0 0.0
    %3258 = vmatprep.subr.mxu0 0.0
    %3259 = vmatpush1.msra.mxu0 0.0
    %3260 = vmatprep.subr.mxu0 0.0
    %3261 = vmatpush1.msra.mxu0 0.0
    %3262 = vmatprep.subr.mxu0 0.0
    %3263 = vmatpush1.msra.mxu0 0.0
    %3264 = vmatprep.subr.mxu0 0.0
    %3265 = vmatpush1.msra.mxu0 0.0
    %3266 = vmatprep.subr.mxu0 0.0
    %3267 = vmatpush1.msra.mxu0 0.0
    %3268 = vmatprep.subr.mxu0 0.0
    %3269 = vmatpush1.msra.mxu0 0.0
    %3270 = vmatprep.mubr.f32.mxu0 0.0
    %v3271 = vand.u32 %v2839, 4294901760
    %v3272 = vsub.f32 %v2839, %v3271
    %v3273 = vand.u32 %v3272, 4294901760
    %3274 = vmatmul.mubr.f32.gmra.mrb[0].mxu0 %v3273
    %v3275 = vpop.f32.mrb[0].mxu0
    %v3276 = vadd.f32 %v3186, %v3275
    %v3277 = vpop.f32.mrb[0].mxu0
    %v3278 = vadd.f32 %v3188, %v3277
    %3279 = vdwg.mxu0
    %v3280 = vand.u32 %v60, 4294901760
    %v3281 = vsub.f32 %v60, %v3280
    %v3282 = vand.u32 %v3281, 4294901760
    %3283 = vmatprep.subr.mxu0 %v3282
    %v3284 = vand.u32 %v59, 4294901760
    %v3285 = vsub.f32 %v59, %v3284
    %v3286 = vand.u32 %v3285, 4294901760
    %3287 = vmatpush1.msra.mxu0 %v3286
    %v3288 = vand.u32 %v62, 4294901760
    %v3289 = vsub.f32 %v62, %v3288
    %v3290 = vand.u32 %v3289, 4294901760
    %3291 = vmatprep.subr.mxu0 %v3290
    %v3292 = vand.u32 %v61, 4294901760
    %v3293 = vsub.f32 %v61, %v3292
    %v3294 = vand.u32 %v3293, 4294901760
    %3295 = vmatpush1.msra.mxu0 %v3294
    %v3296 = vand.u32 %v64, 4294901760
    %v3297 = vsub.f32 %v64, %v3296
    %v3298 = vand.u32 %v3297, 4294901760
    %3299 = vmatprep.subr.mxu0 %v3298
    %v3300 = vand.u32 %v63, 4294901760
    %v3301 = vsub.f32 %v63, %v3300
    %v3302 = vand.u32 %v3301, 4294901760
    %3303 = vmatpush1.msra.mxu0 %v3302
    %v3304 = vand.u32 %v66, 4294901760
    %v3305 = vsub.f32 %v66, %v3304
    %v3306 = vand.u32 %v3305, 4294901760
    %3307 = vmatprep.subr.mxu0 %v3306
    %v3308 = vand.u32 %v65, 4294901760
    %v3309 = vsub.f32 %v65, %v3308
    %v3310 = vand.u32 %v3309, 4294901760
    %3311 = vmatpush1.msra.mxu0 %v3310
    %v3312 = vand.u32 %v68, 4294901760
    %v3313 = vsub.f32 %v68, %v3312
    %v3314 = vand.u32 %v3313, 4294901760
    %3315 = vmatprep.subr.mxu0 %v3314
    %v3316 = vand.u32 %v67, 4294901760
    %v3317 = vsub.f32 %v67, %v3316
    %v3318 = vand.u32 %v3317, 4294901760
    %3319 = vmatpush1.msra.mxu0 %v3318
    %v3320 = vand.u32 %v70, 4294901760
    %v3321 = vsub.f32 %v70, %v3320
    %v3322 = vand.u32 %v3321, 4294901760
    %3323 = vmatprep.subr.mxu0 %v3322
    %v3324 = vand.u32 %v69, 4294901760
    %v3325 = vsub.f32 %v69, %v3324
    %v3326 = vand.u32 %v3325, 4294901760
    %3327 = vmatpush1.msra.mxu0 %v3326
    %v3328 = vand.u32 %v72, 4294901760
    %v3329 = vsub.f32 %v72, %v3328
    %v3330 = vand.u32 %v3329, 4294901760
    %3331 = vmatprep.subr.mxu0 %v3330
    %v3332 = vand.u32 %v71, 4294901760
    %v3333 = vsub.f32 %v71, %v3332
    %v3334 = vand.u32 %v3333, 4294901760
    %3335 = vmatpush1.msra.mxu0 %v3334
    %v3336 = vand.u32 %v74, 4294901760
    %v3337 = vsub.f32 %v74, %v3336
    %v3338 = vand.u32 %v3337, 4294901760
    %3339 = vmatprep.subr.mxu0 %v3338
    %v3340 = vand.u32 %v73, 4294901760
    %v3341 = vsub.f32 %v73, %v3340
    %v3342 = vand.u32 %v3341, 4294901760
    %3343 = vmatpush1.msra.mxu0 %v3342
    %3344 = vmatprep.subr.mxu0 0.0
    %3345 = vmatpush1.msra.mxu0 0.0
    %3346 = vmatprep.subr.mxu0 0.0
    %3347 = vmatpush1.msra.mxu0 0.0
    %3348 = vmatprep.subr.mxu0 0.0
    %3349 = vmatpush1.msra.mxu0 0.0
    %3350 = vmatprep.subr.mxu0 0.0
    %3351 = vmatpush1.msra.mxu0 0.0
    %3352 = vmatprep.subr.mxu0 0.0
    %3353 = vmatpush1.msra.mxu0 0.0
    %3354 = vmatprep.subr.mxu0 0.0
    %3355 = vmatpush1.msra.mxu0 0.0
    %3356 = vmatprep.subr.mxu0 0.0
    %3357 = vmatpush1.msra.mxu0 0.0
    %3358 = vmatprep.subr.mxu0 0.0
    %3359 = vmatpush1.msra.mxu0 0.0
    %3360 = vmatprep.subr.mxu0 0.0
    %3361 = vmatpush1.msra.mxu0 0.0
    %3362 = vmatprep.subr.mxu0 0.0
    %3363 = vmatpush1.msra.mxu0 0.0
    %3364 = vmatprep.subr.mxu0 0.0
    %3365 = vmatpush1.msra.mxu0 0.0
    %3366 = vmatprep.subr.mxu0 0.0
    %3367 = vmatpush1.msra.mxu0 0.0
    %3368 = vmatprep.subr.mxu0 0.0
    %3369 = vmatpush1.msra.mxu0 0.0
    %3370 = vmatprep.subr.mxu0 0.0
    %3371 = vmatpush1.msra.mxu0 0.0
    %3372 = vmatprep.subr.mxu0 0.0
    %3373 = vmatpush1.msra.mxu0 0.0
    %3374 = vmatprep.subr.mxu0 0.0
    %3375 = vmatpush1.msra.mxu0 0.0
    %3376 = vmatprep.subr.mxu0 0.0
    %3377 = vmatpush1.msra.mxu0 0.0
    %3378 = vmatprep.subr.mxu0 0.0
    %3379 = vmatpush1.msra.mxu0 0.0
    %3380 = vmatprep.subr.mxu0 0.0
    %3381 = vmatpush1.msra.mxu0 0.0
    %3382 = vmatprep.subr.mxu0 0.0
    %3383 = vmatpush1.msra.mxu0 0.0
    %3384 = vmatprep.subr.mxu0 0.0
    %3385 = vmatpush1.msra.mxu0 0.0
    %3386 = vmatprep.subr.mxu0 0.0
    %3387 = vmatpush1.msra.mxu0 0.0
    %3388 = vmatprep.subr.mxu0 0.0
    %3389 = vmatpush1.msra.mxu0 0.0
    %3390 = vmatprep.subr.mxu0 0.0
    %3391 = vmatpush1.msra.mxu0 0.0
    %3392 = vmatprep.mubr.f32.mxu0 0.0
    %v3393 = vand.u32 %v2839, 4294901760
    %3394 = vmatmul.mubr.f32.gmra.mrb[0].mxu0 %v3393
    %v3395 = vpop.f32.mrb[0].mxu0
    %v3396 = vadd.f32 %v3276, %v3395
    %v3397 = vpop.f32.mrb[0].mxu0
    %v3398 = vadd.f32 %v3278, %v3397
    %3399 = vdwg.mxu0
    %v3400 = vand.u32 %v60, 4294901760
    %3401 = vmatprep.subr.mxu0 %v3400
    %v3402 = vand.u32 %v59, 4294901760
    %3403 = vmatpush1.msra.mxu0 %v3402
    %v3404 = vand.u32 %v62, 4294901760
    %3405 = vmatprep.subr.mxu0 %v3404
    %v3406 = vand.u32 %v61, 4294901760
    %3407 = vmatpush1.msra.mxu0 %v3406
    %v3408 = vand.u32 %v64, 4294901760
    %3409 = vmatprep.subr.mxu0 %v3408
    %v3410 = vand.u32 %v63, 4294901760
    %3411 = vmatpush1.msra.mxu0 %v3410
    %v3412 = vand.u32 %v66, 4294901760
    %3413 = vmatprep.subr.mxu0 %v3412
    %v3414 = vand.u32 %v65, 4294901760
    %3415 = vmatpush1.msra.mxu0 %v3414
    %v3416 = vand.u32 %v68, 4294901760
    %3417 = vmatprep.subr.mxu0 %v3416
    %v3418 = vand.u32 %v67, 4294901760
    %3419 = vmatpush1.msra.mxu0 %v3418
    %v3420 = vand.u32 %v70, 4294901760
    %3421 = vmatprep.subr.mxu0 %v3420
    %v3422 = vand.u32 %v69, 4294901760
    %3423 = vmatpush1.msra.mxu0 %v3422
    %v3424 = vand.u32 %v72, 4294901760
    %3425 = vmatprep.subr.mxu0 %v3424
    %v3426 = vand.u32 %v71, 4294901760
    %3427 = vmatpush1.msra.mxu0 %v3426
    %v3428 = vand.u32 %v74, 4294901760
    %3429 = vmatprep.subr.mxu0 %v3428
    %v3430 = vand.u32 %v73, 4294901760
    %3431 = vmatpush1.msra.mxu0 %v3430
    %3432 = vmatprep.subr.mxu0 0.0
    %3433 = vmatpush1.msra.mxu0 0.0
    %3434 = vmatprep.subr.mxu0 0.0
    %3435 = vmatpush1.msra.mxu0 0.0
    %3436 = vmatprep.subr.mxu0 0.0
    %3437 = vmatpush1.msra.mxu0 0.0
    %3438 = vmatprep.subr.mxu0 0.0
    %3439 = vmatpush1.msra.mxu0 0.0
    %3440 = vmatprep.subr.mxu0 0.0
    %3441 = vmatpush1.msra.mxu0 0.0
    %3442 = vmatprep.subr.mxu0 0.0
    %3443 = vmatpush1.msra.mxu0 0.0
    %3444 = vmatprep.subr.mxu0 0.0
    %3445 = vmatpush1.msra.mxu0 0.0
    %3446 = vmatprep.subr.mxu0 0.0
    %3447 = vmatpush1.msra.mxu0 0.0
    %3448 = vmatprep.subr.mxu0 0.0
    %3449 = vmatpush1.msra.mxu0 0.0
    %3450 = vmatprep.subr.mxu0 0.0
    %3451 = vmatpush1.msra.mxu0 0.0
    %3452 = vmatprep.subr.mxu0 0.0
    %3453 = vmatpush1.msra.mxu0 0.0
    %3454 = vmatprep.subr.mxu0 0.0
    %3455 = vmatpush1.msra.mxu0 0.0
    %3456 = vmatprep.subr.mxu0 0.0
    %3457 = vmatpush1.msra.mxu0 0.0
    %3458 = vmatprep.subr.mxu0 0.0
    %3459 = vmatpush1.msra.mxu0 0.0
    %3460 = vmatprep.subr.mxu0 0.0
    %3461 = vmatpush1.msra.mxu0 0.0
    %3462 = vmatprep.subr.mxu0 0.0
    %3463 = vmatpush1.msra.mxu0 0.0
    %3464 = vmatprep.subr.mxu0 0.0
    %3465 = vmatpush1.msra.mxu0 0.0
    %3466 = vmatprep.subr.mxu0 0.0
    %3467 = vmatpush1.msra.mxu0 0.0
    %3468 = vmatprep.subr.mxu0 0.0
    %3469 = vmatpush1.msra.mxu0 0.0
    %3470 = vmatprep.subr.mxu0 0.0
    %3471 = vmatpush1.msra.mxu0 0.0
    %3472 = vmatprep.subr.mxu0 0.0
    %3473 = vmatpush1.msra.mxu0 0.0
    %3474 = vmatprep.subr.mxu0 0.0
    %3475 = vmatpush1.msra.mxu0 0.0
    %3476 = vmatprep.subr.mxu0 0.0
    %3477 = vmatpush1.msra.mxu0 0.0
    %3478 = vmatprep.subr.mxu0 0.0
    %3479 = vmatpush1.msra.mxu0 0.0
    %3480 = vmatprep.mubr.f32.mxu0 0.0
    %v3481 = vand.u32 %v2839, 4294901760
    %3482 = vmatmul.mubr.f32.gmra.mrb[0].mxu0 %v3481
    %v3483 = vpop.f32.mrb[0].mxu0
    %v3484 = vadd.f32 %v3396, %v3483
    %v3485 = vpop.f32.mrb[0].mxu0
    %v3486 = vadd.f32 %v3398, %v3485
    %3487 = vdwg.mxu0
    %v3488 = vadd.f32 %v77, %v3484
    %v3489 = vadd.f32 %v78, %v3486
    %v3490 = vxor.u32 %v3488, 2147483648
    %v3491 = vxor.u32 %v3489, 2147483648
    %v3492 = vmul.f32 %v3490, 1.442695
    %v3493 = vpow.pop %v3492
    %v3494 = vmul.f32 %v3491, 1.442695
    %v3495 = vpow.pop %v3494
    %v3496 = vadd.f32 %v3493, 1.0
    %v3497 = vadd.f32 %v3495, 1.0
    %v3498 = vrcp.pop %v3496
    %v3499 = vmul.f32 1.0, %v3498
    %v3500 = vrcp.pop %v3497
    %v3501 = vmul.f32 1.0, %v3500
    %v3502 = vtanh.pop %v3489
    %v3504 = vrot.slane %v2830, 6
    %v3506 = vmul.f32 %v3499, %v3504
    %3508 = vrot.lane.b32.xlu0 %v3502, 64
    %v3509 = vpop.permute.xlu0 %3508
    %v3511 = vmul.f32 %v3499, %v3509
    %3513 = vrot.lane.b32.xlu0 %v3511, 64
    %v3514 = vpop.permute.xlu0 %3513
    %v3516 = vadd.f32 %v3506, %v3514
    %v3517 = vtanh.pop %v3516
    %3519 = vrot.lane.b32.xlu0 %v3517, 64
    %v3520 = vpop.permute.xlu0 %3519
    %v3522 = vmul.f32 %v3501, %v3520
    %v3524 = vsel %vm79, %v3522, 0
    %v3526 = vand.u32 %v60, 4294901760
    %3527 = vmatprep.subr.mxu0 %v3526
    %v3528 = vand.u32 %v59, 4294901760
    %3529 = vmatpush1.msra.mxu0 %v3528
    %v3530 = vand.u32 %v62, 4294901760
    %3531 = vmatprep.subr.mxu0 %v3530
    %v3532 = vand.u32 %v61, 4294901760
    %3533 = vmatpush1.msra.mxu0 %v3532
    %v3534 = vand.u32 %v64, 4294901760
    %3535 = vmatprep.subr.mxu0 %v3534
    %v3536 = vand.u32 %v63, 4294901760
    %3537 = vmatpush1.msra.mxu0 %v3536
    %v3538 = vand.u32 %v66, 4294901760
    %3539 = vmatprep.subr.mxu0 %v3538
    %v3540 = vand.u32 %v65, 4294901760
    %3541 = vmatpush1.msra.mxu0 %v3540
    %v3542 = vand.u32 %v68, 4294901760
    %3543 = vmatprep.subr.mxu0 %v3542
    %v3544 = vand.u32 %v67, 4294901760
    %3545 = vmatpush1.msra.mxu0 %v3544
    %v3546 = vand.u32 %v70, 4294901760
    %3547 = vmatprep.subr.mxu0 %v3546
    %v3548 = vand.u32 %v69, 4294901760
    %3549 = vmatpush1.msra.mxu0 %v3548
    %v3550 = vand.u32 %v72, 4294901760
    %3551 = vmatprep.subr.mxu0 %v3550
    %v3552 = vand.u32 %v71, 4294901760
    %3553 = vmatpush1.msra.mxu0 %v3552
    %v3554 = vand.u32 %v74, 4294901760
    %3555 = vmatprep.subr.mxu0 %v3554
    %v3556 = vand.u32 %v73, 4294901760
    %3557 = vmatpush1.msra.mxu0 %v3556
    %3558 = vmatprep.subr.mxu0 0.0
    %3559 = vmatpush1.msra.mxu0 0.0
    %3560 = vmatprep.subr.mxu0 0.0
    %3561 = vmatpush1.msra.mxu0 0.0
    %3562 = vmatprep.subr.mxu0 0.0
    %3563 = vmatpush1.msra.mxu0 0.0
    %3564 = vmatprep.subr.mxu0 0.0
    %3565 = vmatpush1.msra.mxu0 0.0
    %3566 = vmatprep.subr.mxu0 0.0
    %3567 = vmatpush1.msra.mxu0 0.0
    %3568 = vmatprep.subr.mxu0 0.0
    %3569 = vmatpush1.msra.mxu0 0.0
    %3570 = vmatprep.subr.mxu0 0.0
    %3571 = vmatpush1.msra.mxu0 0.0
    %3572 = vmatprep.subr.mxu0 0.0
    %3573 = vmatpush1.msra.mxu0 0.0
    %3574 = vmatprep.subr.mxu0 0.0
    %3575 = vmatpush1.msra.mxu0 0.0
    %3576 = vmatprep.subr.mxu0 0.0
    %3577 = vmatpush1.msra.mxu0 0.0
    %3578 = vmatprep.subr.mxu0 0.0
    %3579 = vmatpush1.msra.mxu0 0.0
    %3580 = vmatprep.subr.mxu0 0.0
    %3581 = vmatpush1.msra.mxu0 0.0
    %3582 = vmatprep.subr.mxu0 0.0
    %3583 = vmatpush1.msra.mxu0 0.0
    %3584 = vmatprep.subr.mxu0 0.0
    %3585 = vmatpush1.msra.mxu0 0.0
    %3586 = vmatprep.subr.mxu0 0.0
    %3587 = vmatpush1.msra.mxu0 0.0
    %3588 = vmatprep.subr.mxu0 0.0
    %3589 = vmatpush1.msra.mxu0 0.0
    %3590 = vmatprep.subr.mxu0 0.0
    %3591 = vmatpush1.msra.mxu0 0.0
    %3592 = vmatprep.subr.mxu0 0.0
    %3593 = vmatpush1.msra.mxu0 0.0
    %3594 = vmatprep.subr.mxu0 0.0
    %3595 = vmatpush1.msra.mxu0 0.0
    %3596 = vmatprep.subr.mxu0 0.0
    %3597 = vmatpush1.msra.mxu0 0.0
    %3598 = vmatprep.subr.mxu0 0.0
    %3599 = vmatpush1.msra.mxu0 0.0
    %3600 = vmatprep.subr.mxu0 0.0
    %3601 = vmatpush1.msra.mxu0 0.0
    %3602 = vmatprep.subr.mxu0 0.0
    %3603 = vmatpush1.msra.mxu0 0.0
    %3604 = vmatprep.subr.mxu0 0.0
    %3605 = vmatpush1.msra.mxu0 0.0
    %3606 = vmatprep.mubr.f32.mxu0 0.0
    %v3607 = vand.u32 %v3524, 4294901760
    %v3608 = vsub.f32 %v3524, %v3607
    %v3609 = vand.u32 %v3608, 4294901760
    %v3610 = vsub.f32 %v3608, %v3609
    %v3611 = vand.u32 %v3610, 4294901760
    %3612 = vmatmul.mubr.f32.gmra.mrb[0].mxu0 %v3611
    %v3613 = vpop.f32.mrb[0].mxu0
    %v3614 = vadd.f32 0.0, %v3613
    %v3615 = vpop.f32.mrb[0].mxu0
    %v3616 = vadd.f32 0.0, %v3615
    %3617 = vdwg.mxu0
    %v3618 = vand.u32 %v60, 4294901760
    %v3619 = vsub.f32 %v60, %v3618
    %v3620 = vand.u32 %v3619, 4294901760
    %v3621 = vsub.f32 %v3619, %v3620
    %v3622 = vand.u32 %v3621, 4294901760
    %3623 = vmatprep.subr.mxu0 %v3622
    %v3624 = vand.u32 %v59, 4294901760
    %v3625 = vsub.f32 %v59, %v3624
    %v3626 = vand.u32 %v3625, 4294901760
    %v3627 = vsub.f32 %v3625, %v3626
    %v3628 = vand.u32 %v3627, 4294901760
    %3629 = vmatpush1.msra.mxu0 %v3628
    %v3630 = vand.u32 %v62, 4294901760
    %v3631 = vsub.f32 %v62, %v3630
    %v3632 = vand.u32 %v3631, 4294901760
    %v3633 = vsub.f32 %v3631, %v3632
    %v3634 = vand.u32 %v3633, 4294901760
    %3635 = vmatprep.subr.mxu0 %v3634
    %v3636 = vand.u32 %v61, 4294901760
    %v3637 = vsub.f32 %v61, %v3636
    %v3638 = vand.u32 %v3637, 4294901760
    %v3639 = vsub.f32 %v3637, %v3638
    %v3640 = vand.u32 %v3639, 4294901760
    %3641 = vmatpush1.msra.mxu0 %v3640
    %v3642 = vand.u32 %v64, 4294901760
    %v3643 = vsub.f32 %v64, %v3642
    %v3644 = vand.u32 %v3643, 4294901760
    %v3645 = vsub.f32 %v3643, %v3644
    %v3646 = vand.u32 %v3645, 4294901760
    %3647 = vmatprep.subr.mxu0 %v3646
    %v3648 = vand.u32 %v63, 4294901760
    %v3649 = vsub.f32 %v63, %v3648
    %v3650 = vand.u32 %v3649, 4294901760
    %v3651 = vsub.f32 %v3649, %v3650
    %v3652 = vand.u32 %v3651, 4294901760
    %3653 = vmatpush1.msra.mxu0 %v3652
    %v3654 = vand.u32 %v66, 4294901760
    %v3655 = vsub.f32 %v66, %v3654
    %v3656 = vand.u32 %v3655, 4294901760
    %v3657 = vsub.f32 %v3655, %v3656
    %v3658 = vand.u32 %v3657, 4294901760
    %3659 = vmatprep.subr.mxu0 %v3658
    %v3660 = vand.u32 %v65, 4294901760
    %v3661 = vsub.f32 %v65, %v3660
    %v3662 = vand.u32 %v3661, 4294901760
    %v3663 = vsub.f32 %v3661, %v3662
    %v3664 = vand.u32 %v3663, 4294901760
    %3665 = vmatpush1.msra.mxu0 %v3664
    %v3666 = vand.u32 %v68, 4294901760
    %v3667 = vsub.f32 %v68, %v3666
    %v3668 = vand.u32 %v3667, 4294901760
    %v3669 = vsub.f32 %v3667, %v3668
    %v3670 = vand.u32 %v3669, 4294901760
    %3671 = vmatprep.subr.mxu0 %v3670
    %v3672 = vand.u32 %v67, 4294901760
    %v3673 = vsub.f32 %v67, %v3672
    %v3674 = vand.u32 %v3673, 4294901760
    %v3675 = vsub.f32 %v3673, %v3674
    %v3676 = vand.u32 %v3675, 4294901760
    %3677 = vmatpush1.msra.mxu0 %v3676
    %v3678 = vand.u32 %v70, 4294901760
    %v3679 = vsub.f32 %v70, %v3678
    %v3680 = vand.u32 %v3679, 4294901760
    %v3681 = vsub.f32 %v3679, %v3680
    %v3682 = vand.u32 %v3681, 4294901760
    %3683 = vmatprep.subr.mxu0 %v3682
    %v3684 = vand.u32 %v69, 4294901760
    %v3685 = vsub.f32 %v69, %v3684
    %v3686 = vand.u32 %v3685, 4294901760
    %v3687 = vsub.f32 %v3685, %v3686
    %v3688 = vand.u32 %v3687, 4294901760
    %3689 = vmatpush1.msra.mxu0 %v3688
    %v3690 = vand.u32 %v72, 4294901760
    %v3691 = vsub.f32 %v72, %v3690
    %v3692 = vand.u32 %v3691, 4294901760
    %v3693 = vsub.f32 %v3691, %v3692
    %v3694 = vand.u32 %v3693, 4294901760
    %3695 = vmatprep.subr.mxu0 %v3694
    %v3696 = vand.u32 %v71, 4294901760
    %v3697 = vsub.f32 %v71, %v3696
    %v3698 = vand.u32 %v3697, 4294901760
    %v3699 = vsub.f32 %v3697, %v3698
    %v3700 = vand.u32 %v3699, 4294901760
    %3701 = vmatpush1.msra.mxu0 %v3700
    %v3702 = vand.u32 %v74, 4294901760
    %v3703 = vsub.f32 %v74, %v3702
    %v3704 = vand.u32 %v3703, 4294901760
    %v3705 = vsub.f32 %v3703, %v3704
    %v3706 = vand.u32 %v3705, 4294901760
    %3707 = vmatprep.subr.mxu0 %v3706
    %v3708 = vand.u32 %v73, 4294901760
    %v3709 = vsub.f32 %v73, %v3708
    %v3710 = vand.u32 %v3709, 4294901760
    %v3711 = vsub.f32 %v3709, %v3710
    %v3712 = vand.u32 %v3711, 4294901760
    %3713 = vmatpush1.msra.mxu0 %v3712
    %3714 = vmatprep.subr.mxu0 0.0
    %3715 = vmatpush1.msra.mxu0 0.0
    %3716 = vmatprep.subr.mxu0 0.0
    %3717 = vmatpush1.msra.mxu0 0.0
    %3718 = vmatprep.subr.mxu0 0.0
    %3719 = vmatpush1.msra.mxu0 0.0
    %3720 = vmatprep.subr.mxu0 0.0
    %3721 = vmatpush1.msra.mxu0 0.0
    %3722 = vmatprep.subr.mxu0 0.0
    %3723 = vmatpush1.msra.mxu0 0.0
    %3724 = vmatprep.subr.mxu0 0.0
    %3725 = vmatpush1.msra.mxu0 0.0
    %3726 = vmatprep.subr.mxu0 0.0
    %3727 = vmatpush1.msra.mxu0 0.0
    %3728 = vmatprep.subr.mxu0 0.0
    %3729 = vmatpush1.msra.mxu0 0.0
    %3730 = vmatprep.subr.mxu0 0.0
    %3731 = vmatpush1.msra.mxu0 0.0
    %3732 = vmatprep.subr.mxu0 0.0
    %3733 = vmatpush1.msra.mxu0 0.0
    %3734 = vmatprep.subr.mxu0 0.0
    %3735 = vmatpush1.msra.mxu0 0.0
    %3736 = vmatprep.subr.mxu0 0.0
    %3737 = vmatpush1.msra.mxu0 0.0
    %3738 = vmatprep.subr.mxu0 0.0
    %3739 = vmatpush1.msra.mxu0 0.0
    %3740 = vmatprep.subr.mxu0 0.0
    %3741 = vmatpush1.msra.mxu0 0.0
    %3742 = vmatprep.subr.mxu0 0.0
    %3743 = vmatpush1.msra.mxu0 0.0
    %3744 = vmatprep.subr.mxu0 0.0
    %3745 = vmatpush1.msra.mxu0 0.0
    %3746 = vmatprep.subr.mxu0 0.0
    %3747 = vmatpush1.msra.mxu0 0.0
    %3748 = vmatprep.subr.mxu0 0.0
    %3749 = vmatpush1.msra.mxu0 0.0
    %3750 = vmatprep.subr.mxu0 0.0
    %3751 = vmatpush1.msra.mxu0 0.0
    %3752 = vmatprep.subr.mxu0 0.0
    %3753 = vmatpush1.msra.mxu0 0.0
    %3754 = vmatprep.subr.mxu0 0.0
    %3755 = vmatpush1.msra.mxu0 0.0
    %3756 = vmatprep.subr.mxu0 0.0
    %3757 = vmatpush1.msra.mxu0 0.0
    %3758 = vmatprep.subr.mxu0 0.0
    %3759 = vmatpush1.msra.mxu0 0.0
    %3760 = vmatprep.subr.mxu0 0.0
    %3761 = vmatpush1.msra.mxu0 0.0
    %3762 = vmatprep.mubr.f32.mxu0 0.0
    %v3763 = vand.u32 %v3524, 4294901760
    %3764 = vmatmul.mubr.f32.gmra.mrb[0].mxu0 %v3763
    %v3765 = vpop.f32.mrb[0].mxu0
    %v3766 = vadd.f32 %v3614, %v3765
    %v3767 = vpop.f32.mrb[0].mxu0
    %v3768 = vadd.f32 %v3616, %v3767
    %3769 = vdwg.mxu0
    %v3770 = vand.u32 %v60, 4294901760
    %v3771 = vsub.f32 %v60, %v3770
    %3772 = vmatprep.subr.mxu0 %v3771
    %v3773 = vand.u32 %v59, 4294901760
    %v3774 = vsub.f32 %v59, %v3773
    %3775 = vmatpush1.msra.mxu0 %v3774
    %v3776 = vand.u32 %v62, 4294901760
    %v3777 = vsub.f32 %v62, %v3776
    %3778 = vmatprep.subr.mxu0 %v3777
    %v3779 = vand.u32 %v61, 4294901760
    %v3780 = vsub.f32 %v61, %v3779
    %3781 = vmatpush1.msra.mxu0 %v3780
    %v3782 = vand.u32 %v64, 4294901760
    %v3783 = vsub.f32 %v64, %v3782
    %3784 = vmatprep.subr.mxu0 %v3783
    %v3785 = vand.u32 %v63, 4294901760
    %v3786 = vsub.f32 %v63, %v3785
    %3787 = vmatpush1.msra.mxu0 %v3786
    %v3788 = vand.u32 %v66, 4294901760
    %v3789 = vsub.f32 %v66, %v3788
    %3790 = vmatprep.subr.mxu0 %v3789
    %v3791 = vand.u32 %v65, 4294901760
    %v3792 = vsub.f32 %v65, %v3791
    %3793 = vmatpush1.msra.mxu0 %v3792
    %v3794 = vand.u32 %v68, 4294901760
    %v3795 = vsub.f32 %v68, %v3794
    %3796 = vmatprep.subr.mxu0 %v3795
    %v3797 = vand.u32 %v67, 4294901760
    %v3798 = vsub.f32 %v67, %v3797
    %3799 = vmatpush1.msra.mxu0 %v3798
    %v3800 = vand.u32 %v70, 4294901760
    %v3801 = vsub.f32 %v70, %v3800
    %3802 = vmatprep.subr.mxu0 %v3801
    %v3803 = vand.u32 %v69, 4294901760
    %v3804 = vsub.f32 %v69, %v3803
    %3805 = vmatpush1.msra.mxu0 %v3804
    %v3806 = vand.u32 %v72, 4294901760
    %v3807 = vsub.f32 %v72, %v3806
    %3808 = vmatprep.subr.mxu0 %v3807
    %v3809 = vand.u32 %v71, 4294901760
    %v3810 = vsub.f32 %v71, %v3809
    %3811 = vmatpush1.msra.mxu0 %v3810
    %v3812 = vand.u32 %v74, 4294901760
    %v3813 = vsub.f32 %v74, %v3812
    %3814 = vmatprep.subr.mxu0 %v3813
    %v3815 = vand.u32 %v73, 4294901760
    %v3816 = vsub.f32 %v73, %v3815
    %3817 = vmatpush1.msra.mxu0 %v3816
    %3818 = vmatprep.subr.mxu0 0.0
    %3819 = vmatpush1.msra.mxu0 0.0
    %3820 = vmatprep.subr.mxu0 0.0
    %3821 = vmatpush1.msra.mxu0 0.0
    %3822 = vmatprep.subr.mxu0 0.0
    %3823 = vmatpush1.msra.mxu0 0.0
    %3824 = vmatprep.subr.mxu0 0.0
    %3825 = vmatpush1.msra.mxu0 0.0
    %3826 = vmatprep.subr.mxu0 0.0
    %3827 = vmatpush1.msra.mxu0 0.0
    %3828 = vmatprep.subr.mxu0 0.0
    %3829 = vmatpush1.msra.mxu0 0.0
    %3830 = vmatprep.subr.mxu0 0.0
    %3831 = vmatpush1.msra.mxu0 0.0
    %3832 = vmatprep.subr.mxu0 0.0
    %3833 = vmatpush1.msra.mxu0 0.0
    %3834 = vmatprep.subr.mxu0 0.0
    %3835 = vmatpush1.msra.mxu0 0.0
    %3836 = vmatprep.subr.mxu0 0.0
    %3837 = vmatpush1.msra.mxu0 0.0
    %3838 = vmatprep.subr.mxu0 0.0
    %3839 = vmatpush1.msra.mxu0 0.0
    %3840 = vmatprep.subr.mxu0 0.0
    %3841 = vmatpush1.msra.mxu0 0.0
    %3842 = vmatprep.subr.mxu0 0.0
    %3843 = vmatpush1.msra.mxu0 0.0
    %3844 = vmatprep.subr.mxu0 0.0
    %3845 = vmatpush1.msra.mxu0 0.0
    %3846 = vmatprep.subr.mxu0 0.0
    %3847 = vmatpush1.msra.mxu0 0.0
    %3848 = vmatprep.subr.mxu0 0.0
    %3849 = vmatpush1.msra.mxu0 0.0
    %3850 = vmatprep.subr.mxu0 0.0
    %3851 = vmatpush1.msra.mxu0 0.0
    %3852 = vmatprep.subr.mxu0 0.0
    %3853 = vmatpush1.msra.mxu0 0.0
    %3854 = vmatprep.subr.mxu0 0.0
    %3855 = vmatpush1.msra.mxu0 0.0
    %3856 = vmatprep.subr.mxu0 0.0
    %3857 = vmatpush1.msra.mxu0 0.0
    %3858 = vmatprep.subr.mxu0 0.0
    %3859 = vmatpush1.msra.mxu0 0.0
    %3860 = vmatprep.subr.mxu0 0.0
    %3861 = vmatpush1.msra.mxu0 0.0
    %3862 = vmatprep.subr.mxu0 0.0
    %3863 = vmatpush1.msra.mxu0 0.0
    %3864 = vmatprep.subr.mxu0 0.0
    %3865 = vmatpush1.msra.mxu0 0.0
    %3866 = vmatprep.mubr.f32.mxu0 0.0
    %v3867 = vand.u32 %v3524, 4294901760
    %v3868 = vsub.f32 %v3524, %v3867
    %3869 = vmatmul.mubr.f32.gmra.mrb[0].mxu0 %v3868
    %v3870 = vpop.f32.mrb[0].mxu0
    %v3871 = vadd.f32 %v3766, %v3870
    %v3872 = vpop.f32.mrb[0].mxu0
    %v3873 = vadd.f32 %v3768, %v3872
    %3874 = vdwg.mxu0
    %v3875 = vand.u32 %v60, 4294901760
    %3876 = vmatprep.subr.mxu0 %v3875
    %v3877 = vand.u32 %v59, 4294901760
    %3878 = vmatpush1.msra.mxu0 %v3877
    %v3879 = vand.u32 %v62, 4294901760
    %3880 = vmatprep.subr.mxu0 %v3879
    %v3881 = vand.u32 %v61, 4294901760
    %3882 = vmatpush1.msra.mxu0 %v3881
    %v3883 = vand.u32 %v64, 4294901760
    %3884 = vmatprep.subr.mxu0 %v3883
    %v3885 = vand.u32 %v63, 4294901760
    %3886 = vmatpush1.msra.mxu0 %v3885
    %v3887 = vand.u32 %v66, 4294901760
    %3888 = vmatprep.subr.mxu0 %v3887
    %v3889 = vand.u32 %v65, 4294901760
    %3890 = vmatpush1.msra.mxu0 %v3889
    %v3891 = vand.u32 %v68, 4294901760
    %3892 = vmatprep.subr.mxu0 %v3891
    %v3893 = vand.u32 %v67, 4294901760
    %3894 = vmatpush1.msra.mxu0 %v3893
    %v3895 = vand.u32 %v70, 4294901760
    %3896 = vmatprep.subr.mxu0 %v3895
    %v3897 = vand.u32 %v69, 4294901760
    %3898 = vmatpush1.msra.mxu0 %v3897
    %v3899 = vand.u32 %v72, 4294901760
    %3900 = vmatprep.subr.mxu0 %v3899
    %v3901 = vand.u32 %v71, 4294901760
    %3902 = vmatpush1.msra.mxu0 %v3901
    %v3903 = vand.u32 %v74, 4294901760
    %3904 = vmatprep.subr.mxu0 %v3903
    %v3905 = vand.u32 %v73, 4294901760
    %3906 = vmatpush1.msra.mxu0 %v3905
    %3907 = vmatprep.subr.mxu0 0.0
    %3908 = vmatpush1.msra.mxu0 0.0
    %3909 = vmatprep.subr.mxu0 0.0
    %3910 = vmatpush1.msra.mxu0 0.0
    %3911 = vmatprep.subr.mxu0 0.0
    %3912 = vmatpush1.msra.mxu0 0.0
    %3913 = vmatprep.subr.mxu0 0.0
    %3914 = vmatpush1.msra.mxu0 0.0
    %3915 = vmatprep.subr.mxu0 0.0
    %3916 = vmatpush1.msra.mxu0 0.0
    %3917 = vmatprep.subr.mxu0 0.0
    %3918 = vmatpush1.msra.mxu0 0.0
    %3919 = vmatprep.subr.mxu0 0.0
    %3920 = vmatpush1.msra.mxu0 0.0
    %3921 = vmatprep.subr.mxu0 0.0
    %3922 = vmatpush1.msra.mxu0 0.0
    %3923 = vmatprep.subr.mxu0 0.0
    %3924 = vmatpush1.msra.mxu0 0.0
    %3925 = vmatprep.subr.mxu0 0.0
    %3926 = vmatpush1.msra.mxu0 0.0
    %3927 = vmatprep.subr.mxu0 0.0
    %3928 = vmatpush1.msra.mxu0 0.0
    %3929 = vmatprep.subr.mxu0 0.0
    %3930 = vmatpush1.msra.mxu0 0.0
    %3931 = vmatprep.subr.mxu0 0.0
    %3932 = vmatpush1.msra.mxu0 0.0
    %3933 = vmatprep.subr.mxu0 0.0
    %3934 = vmatpush1.msra.mxu0 0.0
    %3935 = vmatprep.subr.mxu0 0.0
    %3936 = vmatpush1.msra.mxu0 0.0
    %3937 = vmatprep.subr.mxu0 0.0
    %3938 = vmatpush1.msra.mxu0 0.0
    %3939 = vmatprep.subr.mxu0 0.0
    %3940 = vmatpush1.msra.mxu0 0.0
    %3941 = vmatprep.subr.mxu0 0.0
    %3942 = vmatpush1.msra.mxu0 0.0
    %3943 = vmatprep.subr.mxu0 0.0
    %3944 = vmatpush1.msra.mxu0 0.0
    %3945 = vmatprep.subr.mxu0 0.0
    %3946 = vmatpush1.msra.mxu0 0.0
    %3947 = vmatprep.subr.mxu0 0.0
    %3948 = vmatpush1.msra.mxu0 0.0
    %3949 = vmatprep.subr.mxu0 0.0
    %3950 = vmatpush1.msra.mxu0 0.0
    %3951 = vmatprep.subr.mxu0 0.0
    %3952 = vmatpush1.msra.mxu0 0.0
    %3953 = vmatprep.subr.mxu0 0.0
    %3954 = vmatpush1.msra.mxu0 0.0
    %3955 = vmatprep.mubr.f32.mxu0 0.0
    %v3956 = vand.u32 %v3524, 4294901760
    %v3957 = vsub.f32 %v3524, %v3956
    %v3958 = vand.u32 %v3957, 4294901760
    %3959 = vmatmul.mubr.f32.gmra.mrb[0].mxu0 %v3958
    %v3960 = vpop.f32.mrb[0].mxu0
    %v3961 = vadd.f32 %v3871, %v3960
    %v3962 = vpop.f32.mrb[0].mxu0
    %v3963 = vadd.f32 %v3873, %v3962
    %3964 = vdwg.mxu0
    %v3965 = vand.u32 %v60, 4294901760
    %v3966 = vsub.f32 %v60, %v3965
    %v3967 = vand.u32 %v3966, 4294901760
    %3968 = vmatprep.subr.mxu0 %v3967
    %v3969 = vand.u32 %v59, 4294901760
    %v3970 = vsub.f32 %v59, %v3969
    %v3971 = vand.u32 %v3970, 4294901760
    %3972 = vmatpush1.msra.mxu0 %v3971
    %v3973 = vand.u32 %v62, 4294901760
    %v3974 = vsub.f32 %v62, %v3973
    %v3975 = vand.u32 %v3974, 4294901760
    %3976 = vmatprep.subr.mxu0 %v3975
    %v3977 = vand.u32 %v61, 4294901760
    %v3978 = vsub.f32 %v61, %v3977
    %v3979 = vand.u32 %v3978, 4294901760
    %3980 = vmatpush1.msra.mxu0 %v3979
    %v3981 = vand.u32 %v64, 4294901760
    %v3982 = vsub.f32 %v64, %v3981
    %v3983 = vand.u32 %v3982, 4294901760
    %3984 = vmatprep.subr.mxu0 %v3983
    %v3985 = vand.u32 %v63, 4294901760
    %v3986 = vsub.f32 %v63, %v3985
    %v3987 = vand.u32 %v3986, 4294901760
    %3988 = vmatpush1.msra.mxu0 %v3987
    %v3989 = vand.u32 %v66, 4294901760
    %v3990 = vsub.f32 %v66, %v3989
    %v3991 = vand.u32 %v3990, 4294901760
    %3992 = vmatprep.subr.mxu0 %v3991
    %v3993 = vand.u32 %v65, 4294901760
    %v3994 = vsub.f32 %v65, %v3993
    %v3995 = vand.u32 %v3994, 4294901760
    %3996 = vmatpush1.msra.mxu0 %v3995
    %v3997 = vand.u32 %v68, 4294901760
    %v3998 = vsub.f32 %v68, %v3997
    %v3999 = vand.u32 %v3998, 4294901760
    %4000 = vmatprep.subr.mxu0 %v3999
    %v4001 = vand.u32 %v67, 4294901760
    %v4002 = vsub.f32 %v67, %v4001
    %v4003 = vand.u32 %v4002, 4294901760
    %4004 = vmatpush1.msra.mxu0 %v4003
    %v4005 = vand.u32 %v70, 4294901760
    %v4006 = vsub.f32 %v70, %v4005
    %v4007 = vand.u32 %v4006, 4294901760
    %4008 = vmatprep.subr.mxu0 %v4007
    %v4009 = vand.u32 %v69, 4294901760
    %v4010 = vsub.f32 %v69, %v4009
    %v4011 = vand.u32 %v4010, 4294901760
    %4012 = vmatpush1.msra.mxu0 %v4011
    %v4013 = vand.u32 %v72, 4294901760
    %v4014 = vsub.f32 %v72, %v4013
    %v4015 = vand.u32 %v4014, 4294901760
    %4016 = vmatprep.subr.mxu0 %v4015
    %v4017 = vand.u32 %v71, 4294901760
    %v4018 = vsub.f32 %v71, %v4017
    %v4019 = vand.u32 %v4018, 4294901760
    %4020 = vmatpush1.msra.mxu0 %v4019
    %v4021 = vand.u32 %v74, 4294901760
    %v4022 = vsub.f32 %v74, %v4021
    %v4023 = vand.u32 %v4022, 4294901760
    %4024 = vmatprep.subr.mxu0 %v4023
    %v4025 = vand.u32 %v73, 4294901760
    %v4026 = vsub.f32 %v73, %v4025
    %v4027 = vand.u32 %v4026, 4294901760
    %4028 = vmatpush1.msra.mxu0 %v4027
    %4029 = vmatprep.subr.mxu0 0.0
    %4030 = vmatpush1.msra.mxu0 0.0
    %4031 = vmatprep.subr.mxu0 0.0
    %4032 = vmatpush1.msra.mxu0 0.0
    %4033 = vmatprep.subr.mxu0 0.0
    %4034 = vmatpush1.msra.mxu0 0.0
    %4035 = vmatprep.subr.mxu0 0.0
    %4036 = vmatpush1.msra.mxu0 0.0
    %4037 = vmatprep.subr.mxu0 0.0
    %4038 = vmatpush1.msra.mxu0 0.0
    %4039 = vmatprep.subr.mxu0 0.0
    %4040 = vmatpush1.msra.mxu0 0.0
    %4041 = vmatprep.subr.mxu0 0.0
    %4042 = vmatpush1.msra.mxu0 0.0
    %4043 = vmatprep.subr.mxu0 0.0
    %4044 = vmatpush1.msra.mxu0 0.0
    %4045 = vmatprep.subr.mxu0 0.0
    %4046 = vmatpush1.msra.mxu0 0.0
    %4047 = vmatprep.subr.mxu0 0.0
    %4048 = vmatpush1.msra.mxu0 0.0
    %4049 = vmatprep.subr.mxu0 0.0
    %4050 = vmatpush1.msra.mxu0 0.0
    %4051 = vmatprep.subr.mxu0 0.0
    %4052 = vmatpush1.msra.mxu0 0.0
    %4053 = vmatprep.subr.mxu0 0.0
    %4054 = vmatpush1.msra.mxu0 0.0
    %4055 = vmatprep.subr.mxu0 0.0
    %4056 = vmatpush1.msra.mxu0 0.0
    %4057 = vmatprep.subr.mxu0 0.0
    %4058 = vmatpush1.msra.mxu0 0.0
    %4059 = vmatprep.subr.mxu0 0.0
    %4060 = vmatpush1.msra.mxu0 0.0
    %4061 = vmatprep.subr.mxu0 0.0
    %4062 = vmatpush1.msra.mxu0 0.0
    %4063 = vmatprep.subr.mxu0 0.0
    %4064 = vmatpush1.msra.mxu0 0.0
    %4065 = vmatprep.subr.mxu0 0.0
    %4066 = vmatpush1.msra.mxu0 0.0
    %4067 = vmatprep.subr.mxu0 0.0
    %4068 = vmatpush1.msra.mxu0 0.0
    %4069 = vmatprep.subr.mxu0 0.0
    %4070 = vmatpush1.msra.mxu0 0.0
    %4071 = vmatprep.subr.mxu0 0.0
    %4072 = vmatpush1.msra.mxu0 0.0
    %4073 = vmatprep.subr.mxu0 0.0
    %4074 = vmatpush1.msra.mxu0 0.0
    %4075 = vmatprep.subr.mxu0 0.0
    %4076 = vmatpush1.msra.mxu0 0.0
    %4077 = vmatprep.mubr.f32.mxu0 0.0
    %v4078 = vand.u32 %v3524, 4294901760
    %4079 = vmatmul.mubr.f32.gmra.mrb[0].mxu0 %v4078
    %v4080 = vpop.f32.mrb[0].mxu0
    %v4081 = vadd.f32 %v3961, %v4080
    %v4082 = vpop.f32.mrb[0].mxu0
    %v4083 = vadd.f32 %v3963, %v4082
    %4084 = vdwg.mxu0
    %v4085 = vand.u32 %v60, 4294901760
    %4086 = vmatprep.subr.mxu0 %v4085
    %v4087 = vand.u32 %v59, 4294901760
    %4088 = vmatpush1.msra.mxu0 %v4087
    %v4089 = vand.u32 %v62, 4294901760
    %4090 = vmatprep.subr.mxu0 %v4089
    %v4091 = vand.u32 %v61, 4294901760
    %4092 = vmatpush1.msra.mxu0 %v4091
    %v4093 = vand.u32 %v64, 4294901760
    %4094 = vmatprep.subr.mxu0 %v4093
    %v4095 = vand.u32 %v63, 4294901760
    %4096 = vmatpush1.msra.mxu0 %v4095
    %v4097 = vand.u32 %v66, 4294901760
    %4098 = vmatprep.subr.mxu0 %v4097
    %v4099 = vand.u32 %v65, 4294901760
    %4100 = vmatpush1.msra.mxu0 %v4099
    %v4101 = vand.u32 %v68, 4294901760
    %4102 = vmatprep.subr.mxu0 %v4101
    %v4103 = vand.u32 %v67, 4294901760
    %4104 = vmatpush1.msra.mxu0 %v4103
    %v4105 = vand.u32 %v70, 4294901760
    %4106 = vmatprep.subr.mxu0 %v4105
    %v4107 = vand.u32 %v69, 4294901760
    %4108 = vmatpush1.msra.mxu0 %v4107
    %v4109 = vand.u32 %v72, 4294901760
    %4110 = vmatprep.subr.mxu0 %v4109
    %v4111 = vand.u32 %v71, 4294901760
    %4112 = vmatpush1.msra.mxu0 %v4111
    %v4113 = vand.u32 %v74, 4294901760
    %4114 = vmatprep.subr.mxu0 %v4113
    %v4115 = vand.u32 %v73, 4294901760
    %4116 = vmatpush1.msra.mxu0 %v4115
    %4117 = vmatprep.subr.mxu0 0.0
    %4118 = vmatpush1.msra.mxu0 0.0
    %4119 = vmatprep.subr.mxu0 0.0
    %4120 = vmatpush1.msra.mxu0 0.0
    %4121 = vmatprep.subr.mxu0 0.0
    %4122 = vmatpush1.msra.mxu0 0.0
    %4123 = vmatprep.subr.mxu0 0.0
    %4124 = vmatpush1.msra.mxu0 0.0
    %4125 = vmatprep.subr.mxu0 0.0
    %4126 = vmatpush1.msra.mxu0 0.0
    %4127 = vmatprep.subr.mxu0 0.0
    %4128 = vmatpush1.msra.mxu0 0.0
    %4129 = vmatprep.subr.mxu0 0.0
    %4130 = vmatpush1.msra.mxu0 0.0
    %4131 = vmatprep.subr.mxu0 0.0
    %4132 = vmatpush1.msra.mxu0 0.0
    %4133 = vmatprep.subr.mxu0 0.0
    %4134 = vmatpush1.msra.mxu0 0.0
    %4135 = vmatprep.subr.mxu0 0.0
    %4136 = vmatpush1.msra.mxu0 0.0
    %4137 = vmatprep.subr.mxu0 0.0
    %4138 = vmatpush1.msra.mxu0 0.0
    %4139 = vmatprep.subr.mxu0 0.0
    %4140 = vmatpush1.msra.mxu0 0.0
    %4141 = vmatprep.subr.mxu0 0.0
    %4142 = vmatpush1.msra.mxu0 0.0
    %4143 = vmatprep.subr.mxu0 0.0
    %4144 = vmatpush1.msra.mxu0 0.0
    %4145 = vmatprep.subr.mxu0 0.0
    %4146 = vmatpush1.msra.mxu0 0.0
    %4147 = vmatprep.subr.mxu0 0.0
    %4148 = vmatpush1.msra.mxu0 0.0
    %4149 = vmatprep.subr.mxu0 0.0
    %4150 = vmatpush1.msra.mxu0 0.0
    %4151 = vmatprep.subr.mxu0 0.0
    %4152 = vmatpush1.msra.mxu0 0.0
    %4153 = vmatprep.subr.mxu0 0.0
    %4154 = vmatpush1.msra.mxu0 0.0
    %4155 = vmatprep.subr.mxu0 0.0
    %4156 = vmatpush1.msra.mxu0 0.0
    %4157 = vmatprep.subr.mxu0 0.0
    %4158 = vmatpush1.msra.mxu0 0.0
    %4159 = vmatprep.subr.mxu0 0.0
    %4160 = vmatpush1.msra.mxu0 0.0
    %4161 = vmatprep.subr.mxu0 0.0
    %4162 = vmatpush1.msra.mxu0 0.0
    %4163 = vmatprep.subr.mxu0 0.0
    %4164 = vmatpush1.msra.mxu0 0.0
    %4165 = vmatprep.mubr.f32.mxu0 0.0
    %v4166 = vand.u32 %v3524, 4294901760
    %4167 = vmatmul.mubr.f32.gmra.mrb[0].mxu0 %v4166
    %v4168 = vpop.f32.mrb[0].mxu0
    %v4169 = vadd.f32 %v4081, %v4168
    %v4170 = vpop.f32.mrb[0].mxu0
    %v4171 = vadd.f32 %v4083, %v4170
    %4172 = vdwg.mxu0
    %v4175 = vrot.slane %v4169, 6
    %v4176 = vrot.slane %v4171, 6
    %v4179 = vadd.f32 %v77, %v4175
    %v4180 = vadd.f32 %v78, %v4176
    %v4181 = vxor.u32 %v4179, 2147483648
    %v4182 = vxor.u32 %v4180, 2147483648
    %v4183 = vmul.f32 %v4181, 1.442695
    %v4184 = vpow.pop %v4183
    %v4185 = vmul.f32 %v4182, 1.442695
    %v4186 = vpow.pop %v4185
    %v4187 = vadd.f32 %v4184, 1.0
    %v4188 = vadd.f32 %v4186, 1.0
    %v4189 = vrcp.pop %v4187
    %v4190 = vmul.f32 1.0, %v4189
    %v4191 = vrcp.pop %v4188
    %v4192 = vmul.f32 1.0, %v4191
    %v4193 = vtanh.pop %v4180
    %v4195 = vrot.slane %v3516, 6
    %v4197 = vmul.f32 %v4190, %v4195
    %4199 = vrot.lane.b32.xlu0 %v4193, 64
    %v4200 = vpop.permute.xlu0 %4199
    %v4202 = vmul.f32 %v4190, %v4200
    %4204 = vrot.lane.b32.xlu0 %v4202, 64
    %v4205 = vpop.permute.xlu0 %4204
    %v4207 = vadd.f32 %v4197, %v4205
    %v4208 = vtanh.pop %v4207
    %4210 = vrot.lane.b32.xlu0 %v4208, 64
    %v4211 = vpop.permute.xlu0 %4210
    %v4213 = vmul.f32 %v4192, %v4211
    %v4215 = vrot.slane %v4213, 2
    %v4216 = vsel %vm79, %v4215, 0
    %v4218 = vand.u32 %v60, 4294901760
    %4219 = vmatprep.subr.mxu0 %v4218
    %v4220 = vand.u32 %v59, 4294901760
    %4221 = vmatpush1.msra.mxu0 %v4220
    %v4222 = vand.u32 %v62, 4294901760
    %4223 = vmatprep.subr.mxu0 %v4222
    %v4224 = vand.u32 %v61, 4294901760
    %4225 = vmatpush1.msra.mxu0 %v4224
    %v4226 = vand.u32 %v64, 4294901760
    %4227 = vmatprep.subr.mxu0 %v4226
    %v4228 = vand.u32 %v63, 4294901760
    %4229 = vmatpush1.msra.mxu0 %v4228
    %v4230 = vand.u32 %v66, 4294901760
    %4231 = vmatprep.subr.mxu0 %v4230
    %v4232 = vand.u32 %v65, 4294901760
    %4233 = vmatpush1.msra.mxu0 %v4232
    %v4234 = vand.u32 %v68, 4294901760
    %4235 = vmatprep.subr.mxu0 %v4234
    %v4236 = vand.u32 %v67, 4294901760
    %4237 = vmatpush1.msra.mxu0 %v4236
    %v4238 = vand.u32 %v70, 4294901760
    %4239 = vmatprep.subr.mxu0 %v4238
    %v4240 = vand.u32 %v69, 4294901760
    %4241 = vmatpush1.msra.mxu0 %v4240
    %v4242 = vand.u32 %v72, 4294901760
    %4243 = vmatprep.subr.mxu0 %v4242
    %v4244 = vand.u32 %v71, 4294901760
    %4245 = vmatpush1.msra.mxu0 %v4244
    %v4246 = vand.u32 %v74, 4294901760
    %4247 = vmatprep.subr.mxu0 %v4246
    %v4248 = vand.u32 %v73, 4294901760
    %4249 = vmatpush1.msra.mxu0 %v4248
    %4250 = vmatprep.subr.mxu0 0.0
    %4251 = vmatpush1.msra.mxu0 0.0
    %4252 = vmatprep.subr.mxu0 0.0
    %4253 = vmatpush1.msra.mxu0 0.0
    %4254 = vmatprep.subr.mxu0 0.0
    %4255 = vmatpush1.msra.mxu0 0.0
    %4256 = vmatprep.subr.mxu0 0.0
    %4257 = vmatpush1.msra.mxu0 0.0
    %4258 = vmatprep.subr.mxu0 0.0
    %4259 = vmatpush1.msra.mxu0 0.0
    %4260 = vmatprep.subr.mxu0 0.0
    %4261 = vmatpush1.msra.mxu0 0.0
    %4262 = vmatprep.subr.mxu0 0.0
    %4263 = vmatpush1.msra.mxu0 0.0
    %4264 = vmatprep.subr.mxu0 0.0
    %4265 = vmatpush1.msra.mxu0 0.0
    %4266 = vmatprep.subr.mxu0 0.0
    %4267 = vmatpush1.msra.mxu0 0.0
    %4268 = vmatprep.subr.mxu0 0.0
    %4269 = vmatpush1.msra.mxu0 0.0
    %4270 = vmatprep.subr.mxu0 0.0
    %4271 = vmatpush1.msra.mxu0 0.0
    %4272 = vmatprep.subr.mxu0 0.0
    %4273 = vmatpush1.msra.mxu0 0.0
    %4274 = vmatprep.subr.mxu0 0.0
    %4275 = vmatpush1.msra.mxu0 0.0
    %4276 = vmatprep.subr.mxu0 0.0
    %4277 = vmatpush1.msra.mxu0 0.0
    %4278 = vmatprep.subr.mxu0 0.0
    %4279 = vmatpush1.msra.mxu0 0.0
    %4280 = vmatprep.subr.mxu0 0.0
    %4281 = vmatpush1.msra.mxu0 0.0
    %4282 = vmatprep.subr.mxu0 0.0
    %4283 = vmatpush1.msra.mxu0 0.0
    %4284 = vmatprep.subr.mxu0 0.0
    %4285 = vmatpush1.msra.mxu0 0.0
    %4286 = vmatprep.subr.mxu0 0.0
    %4287 = vmatpush1.msra.mxu0 0.0
    %4288 = vmatprep.subr.mxu0 0.0
    %4289 = vmatpush1.msra.mxu0 0.0
    %4290 = vmatprep.subr.mxu0 0.0
    %4291 = vmatpush1.msra.mxu0 0.0
    %4292 = vmatprep.subr.mxu0 0.0
    %4293 = vmatpush1.msra.mxu0 0.0
    %4294 = vmatprep.subr.mxu0 0.0
    %4295 = vmatpush1.msra.mxu0 0.0
    %4296 = vmatprep.subr.mxu0 0.0
    %4297 = vmatpush1.msra.mxu0 0.0
    %4298 = vmatprep.mubr.f32.mxu0 0.0
    %v4299 = vand.u32 %v4216, 4294901760
    %v4300 = vsub.f32 %v4216, %v4299
    %v4301 = vand.u32 %v4300, 4294901760
    %v4302 = vsub.f32 %v4300, %v4301
    %v4303 = vand.u32 %v4302, 4294901760
    %4304 = vmatmul.mubr.f32.gmra.mrb[0].mxu0 %v4303
    %v4305 = vpop.f32.mrb[0].mxu0
    %v4306 = vadd.f32 0.0, %v4305
    %v4307 = vpop.f32.mrb[0].mxu0
    %v4308 = vadd.f32 0.0, %v4307
    %4309 = vdwg.mxu0
    %v4310 = vand.u32 %v60, 4294901760
    %v4311 = vsub.f32 %v60, %v4310
    %v4312 = vand.u32 %v4311, 4294901760
    %v4313 = vsub.f32 %v4311, %v4312
    %v4314 = vand.u32 %v4313, 4294901760
    %4315 = vmatprep.subr.mxu0 %v4314
    %v4316 = vand.u32 %v59, 4294901760
    %v4317 = vsub.f32 %v59, %v4316
    %v4318 = vand.u32 %v4317, 4294901760
    %v4319 = vsub.f32 %v4317, %v4318
    %v4320 = vand.u32 %v4319, 4294901760
    %4321 = vmatpush1.msra.mxu0 %v4320
    %v4322 = vand.u32 %v62, 4294901760
    %v4323 = vsub.f32 %v62, %v4322
    %v4324 = vand.u32 %v4323, 4294901760
    %v4325 = vsub.f32 %v4323, %v4324
    %v4326 = vand.u32 %v4325, 4294901760
    %4327 = vmatprep.subr.mxu0 %v4326
    %v4328 = vand.u32 %v61, 4294901760
    %v4329 = vsub.f32 %v61, %v4328
    %v4330 = vand.u32 %v4329, 4294901760
    %v4331 = vsub.f32 %v4329, %v4330
    %v4332 = vand.u32 %v4331, 4294901760
    %4333 = vmatpush1.msra.mxu0 %v4332
    %v4334 = vand.u32 %v64, 4294901760
    %v4335 = vsub.f32 %v64, %v4334
    %v4336 = vand.u32 %v4335, 4294901760
    %v4337 = vsub.f32 %v4335, %v4336
    %v4338 = vand.u32 %v4337, 4294901760
    %4339 = vmatprep.subr.mxu0 %v4338
    %v4340 = vand.u32 %v63, 4294901760
    %v4341 = vsub.f32 %v63, %v4340
    %v4342 = vand.u32 %v4341, 4294901760
    %v4343 = vsub.f32 %v4341, %v4342
    %v4344 = vand.u32 %v4343, 4294901760
    %4345 = vmatpush1.msra.mxu0 %v4344
    %v4346 = vand.u32 %v66, 4294901760
    %v4347 = vsub.f32 %v66, %v4346
    %v4348 = vand.u32 %v4347, 4294901760
    %v4349 = vsub.f32 %v4347, %v4348
    %v4350 = vand.u32 %v4349, 4294901760
    %4351 = vmatprep.subr.mxu0 %v4350
    %v4352 = vand.u32 %v65, 4294901760
    %v4353 = vsub.f32 %v65, %v4352
    %v4354 = vand.u32 %v4353, 4294901760
    %v4355 = vsub.f32 %v4353, %v4354
    %v4356 = vand.u32 %v4355, 4294901760
    %4357 = vmatpush1.msra.mxu0 %v4356
    %v4358 = vand.u32 %v68, 4294901760
    %v4359 = vsub.f32 %v68, %v4358
    %v4360 = vand.u32 %v4359, 4294901760
    %v4361 = vsub.f32 %v4359, %v4360
    %v4362 = vand.u32 %v4361, 4294901760
    %4363 = vmatprep.subr.mxu0 %v4362
    %v4364 = vand.u32 %v67, 4294901760
    %v4365 = vsub.f32 %v67, %v4364
    %v4366 = vand.u32 %v4365, 4294901760
    %v4367 = vsub.f32 %v4365, %v4366
    %v4368 = vand.u32 %v4367, 4294901760
    %4369 = vmatpush1.msra.mxu0 %v4368
    %v4370 = vand.u32 %v70, 4294901760
    %v4371 = vsub.f32 %v70, %v4370
    %v4372 = vand.u32 %v4371, 4294901760
    %v4373 = vsub.f32 %v4371, %v4372
    %v4374 = vand.u32 %v4373, 4294901760
    %4375 = vmatprep.subr.mxu0 %v4374
    %v4376 = vand.u32 %v69, 4294901760
    %v4377 = vsub.f32 %v69, %v4376
    %v4378 = vand.u32 %v4377, 4294901760
    %v4379 = vsub.f32 %v4377, %v4378
    %v4380 = vand.u32 %v4379, 4294901760
    %4381 = vmatpush1.msra.mxu0 %v4380
    %v4382 = vand.u32 %v72, 4294901760
    %v4383 = vsub.f32 %v72, %v4382
    %v4384 = vand.u32 %v4383, 4294901760
    %v4385 = vsub.f32 %v4383, %v4384
    %v4386 = vand.u32 %v4385, 4294901760
    %4387 = vmatprep.subr.mxu0 %v4386
    %v4388 = vand.u32 %v71, 4294901760
    %v4389 = vsub.f32 %v71, %v4388
    %v4390 = vand.u32 %v4389, 4294901760
    %v4391 = vsub.f32 %v4389, %v4390
    %v4392 = vand.u32 %v4391, 4294901760
    %4393 = vmatpush1.msra.mxu0 %v4392
    %v4394 = vand.u32 %v74, 4294901760
    %v4395 = vsub.f32 %v74, %v4394
    %v4396 = vand.u32 %v4395, 4294901760
    %v4397 = vsub.f32 %v4395, %v4396
    %v4398 = vand.u32 %v4397, 4294901760
    %4399 = vmatprep.subr.mxu0 %v4398
    %v4400 = vand.u32 %v73, 4294901760
    %v4401 = vsub.f32 %v73, %v4400
    %v4402 = vand.u32 %v4401, 4294901760
    %v4403 = vsub.f32 %v4401, %v4402
    %v4404 = vand.u32 %v4403, 4294901760
    %4405 = vmatpush1.msra.mxu0 %v4404
    %4406 = vmatprep.subr.mxu0 0.0
    %4407 = vmatpush1.msra.mxu0 0.0
    %4408 = vmatprep.subr.mxu0 0.0
    %4409 = vmatpush1.msra.mxu0 0.0
    %4410 = vmatprep.subr.mxu0 0.0
    %4411 = vmatpush1.msra.mxu0 0.0
    %4412 = vmatprep.subr.mxu0 0.0
    %4413 = vmatpush1.msra.mxu0 0.0
    %4414 = vmatprep.subr.mxu0 0.0
    %4415 = vmatpush1.msra.mxu0 0.0
    %4416 = vmatprep.subr.mxu0 0.0
    %4417 = vmatpush1.msra.mxu0 0.0
    %4418 = vmatprep.subr.mxu0 0.0
    %4419 = vmatpush1.msra.mxu0 0.0
    %4420 = vmatprep.subr.mxu0 0.0
    %4421 = vmatpush1.msra.mxu0 0.0
    %4422 = vmatprep.subr.mxu0 0.0
    %4423 = vmatpush1.msra.mxu0 0.0
    %4424 = vmatprep.subr.mxu0 0.0
    %4425 = vmatpush1.msra.mxu0 0.0
    %4426 = vmatprep.subr.mxu0 0.0
    %4427 = vmatpush1.msra.mxu0 0.0
    %4428 = vmatprep.subr.mxu0 0.0
    %4429 = vmatpush1.msra.mxu0 0.0
    %4430 = vmatprep.subr.mxu0 0.0
    %4431 = vmatpush1.msra.mxu0 0.0
    %4432 = vmatprep.subr.mxu0 0.0
    %4433 = vmatpush1.msra.mxu0 0.0
    %4434 = vmatprep.subr.mxu0 0.0
    %4435 = vmatpush1.msra.mxu0 0.0
    %4436 = vmatprep.subr.mxu0 0.0
    %4437 = vmatpush1.msra.mxu0 0.0
    %4438 = vmatprep.subr.mxu0 0.0
    %4439 = vmatpush1.msra.mxu0 0.0
    %4440 = vmatprep.subr.mxu0 0.0
    %4441 = vmatpush1.msra.mxu0 0.0
    %4442 = vmatprep.subr.mxu0 0.0
    %4443 = vmatpush1.msra.mxu0 0.0
    %4444 = vmatprep.subr.mxu0 0.0
    %4445 = vmatpush1.msra.mxu0 0.0
    %4446 = vmatprep.subr.mxu0 0.0
    %4447 = vmatpush1.msra.mxu0 0.0
    %4448 = vmatprep.subr.mxu0 0.0
    %4449 = vmatpush1.msra.mxu0 0.0
    %4450 = vmatprep.subr.mxu0 0.0
    %4451 = vmatpush1.msra.mxu0 0.0
    %4452 = vmatprep.subr.mxu0 0.0
    %4453 = vmatpush1.msra.mxu0 0.0
    %4454 = vmatprep.mubr.f32.mxu0 0.0
    %v4455 = vand.u32 %v4216, 4294901760
    %4456 = vmatmul.mubr.f32.gmra.mrb[0].mxu0 %v4455
    %v4457 = vpop.f32.mrb[0].mxu0
    %v4458 = vadd.f32 %v4306, %v4457
    %v4459 = vpop.f32.mrb[0].mxu0
    %v4460 = vadd.f32 %v4308, %v4459
    %4461 = vdwg.mxu0
    %v4462 = vand.u32 %v60, 4294901760
    %v4463 = vsub.f32 %v60, %v4462
    %4464 = vmatprep.subr.mxu0 %v4463
    %v4465 = vand.u32 %v59, 4294901760
    %v4466 = vsub.f32 %v59, %v4465
    %4467 = vmatpush1.msra.mxu0 %v4466
    %v4468 = vand.u32 %v62, 4294901760
    %v4469 = vsub.f32 %v62, %v4468
    %4470 = vmatprep.subr.mxu0 %v4469
    %v4471 = vand.u32 %v61, 4294901760
    %v4472 = vsub.f32 %v61, %v4471
    %4473 = vmatpush1.msra.mxu0 %v4472
    %v4474 = vand.u32 %v64, 4294901760
    %v4475 = vsub.f32 %v64, %v4474
    %4476 = vmatprep.subr.mxu0 %v4475
    %v4477 = vand.u32 %v63, 4294901760
    %v4478 = vsub.f32 %v63, %v4477
    %4479 = vmatpush1.msra.mxu0 %v4478
    %v4480 = vand.u32 %v66, 4294901760
    %v4481 = vsub.f32 %v66, %v4480
    %4482 = vmatprep.subr.mxu0 %v4481
    %v4483 = vand.u32 %v65, 4294901760
    %v4484 = vsub.f32 %v65, %v4483
    %4485 = vmatpush1.msra.mxu0 %v4484
    %v4486 = vand.u32 %v68, 4294901760
    %v4487 = vsub.f32 %v68, %v4486
    %4488 = vmatprep.subr.mxu0 %v4487
    %v4489 = vand.u32 %v67, 4294901760
    %v4490 = vsub.f32 %v67, %v4489
    %4491 = vmatpush1.msra.mxu0 %v4490
    %v4492 = vand.u32 %v70, 4294901760
    %v4493 = vsub.f32 %v70, %v4492
    %4494 = vmatprep.subr.mxu0 %v4493
    %v4495 = vand.u32 %v69, 4294901760
    %v4496 = vsub.f32 %v69, %v4495
    %4497 = vmatpush1.msra.mxu0 %v4496
    %v4498 = vand.u32 %v72, 4294901760
    %v4499 = vsub.f32 %v72, %v4498
    %4500 = vmatprep.subr.mxu0 %v4499
    %v4501 = vand.u32 %v71, 4294901760
    %v4502 = vsub.f32 %v71, %v4501
    %4503 = vmatpush1.msra.mxu0 %v4502
    %v4504 = vand.u32 %v74, 4294901760
    %v4505 = vsub.f32 %v74, %v4504
    %4506 = vmatprep.subr.mxu0 %v4505
    %v4507 = vand.u32 %v73, 4294901760
    %v4508 = vsub.f32 %v73, %v4507
    %4509 = vmatpush1.msra.mxu0 %v4508
    %4510 = vmatprep.subr.mxu0 0.0
    %4511 = vmatpush1.msra.mxu0 0.0
    %4512 = vmatprep.subr.mxu0 0.0
    %4513 = vmatpush1.msra.mxu0 0.0
    %4514 = vmatprep.subr.mxu0 0.0
    %4515 = vmatpush1.msra.mxu0 0.0
    %4516 = vmatprep.subr.mxu0 0.0
    %4517 = vmatpush1.msra.mxu0 0.0
    %4518 = vmatprep.subr.mxu0 0.0
    %4519 = vmatpush1.msra.mxu0 0.0
    %4520 = vmatprep.subr.mxu0 0.0
    %4521 = vmatpush1.msra.mxu0 0.0
    %4522 = vmatprep.subr.mxu0 0.0
    %4523 = vmatpush1.msra.mxu0 0.0
    %4524 = vmatprep.subr.mxu0 0.0
    %4525 = vmatpush1.msra.mxu0 0.0
    %4526 = vmatprep.subr.mxu0 0.0
    %4527 = vmatpush1.msra.mxu0 0.0
    %4528 = vmatprep.subr.mxu0 0.0
    %4529 = vmatpush1.msra.mxu0 0.0
    %4530 = vmatprep.subr.mxu0 0.0
    %4531 = vmatpush1.msra.mxu0 0.0
    %4532 = vmatprep.subr.mxu0 0.0
    %4533 = vmatpush1.msra.mxu0 0.0
    %4534 = vmatprep.subr.mxu0 0.0
    %4535 = vmatpush1.msra.mxu0 0.0
    %4536 = vmatprep.subr.mxu0 0.0
    %4537 = vmatpush1.msra.mxu0 0.0
    %4538 = vmatprep.subr.mxu0 0.0
    %4539 = vmatpush1.msra.mxu0 0.0
    %4540 = vmatprep.subr.mxu0 0.0
    %4541 = vmatpush1.msra.mxu0 0.0
    %4542 = vmatprep.subr.mxu0 0.0
    %4543 = vmatpush1.msra.mxu0 0.0
    %4544 = vmatprep.subr.mxu0 0.0
    %4545 = vmatpush1.msra.mxu0 0.0
    %4546 = vmatprep.subr.mxu0 0.0
    %4547 = vmatpush1.msra.mxu0 0.0
    %4548 = vmatprep.subr.mxu0 0.0
    %4549 = vmatpush1.msra.mxu0 0.0
    %4550 = vmatprep.subr.mxu0 0.0
    %4551 = vmatpush1.msra.mxu0 0.0
    %4552 = vmatprep.subr.mxu0 0.0
    %4553 = vmatpush1.msra.mxu0 0.0
    %4554 = vmatprep.subr.mxu0 0.0
    %4555 = vmatpush1.msra.mxu0 0.0
    %4556 = vmatprep.subr.mxu0 0.0
    %4557 = vmatpush1.msra.mxu0 0.0
    %4558 = vmatprep.mubr.f32.mxu0 0.0
    %v4559 = vand.u32 %v4216, 4294901760
    %v4560 = vsub.f32 %v4216, %v4559
    %4561 = vmatmul.mubr.f32.gmra.mrb[0].mxu0 %v4560
    %v4562 = vpop.f32.mrb[0].mxu0
    %v4563 = vadd.f32 %v4458, %v4562
    %v4564 = vpop.f32.mrb[0].mxu0
    %v4565 = vadd.f32 %v4460, %v4564
    %4566 = vdwg.mxu0
    %v4567 = vand.u32 %v60, 4294901760
    %4568 = vmatprep.subr.mxu0 %v4567
    %v4569 = vand.u32 %v59, 4294901760
    %4570 = vmatpush1.msra.mxu0 %v4569
    %v4571 = vand.u32 %v62, 4294901760
    %4572 = vmatprep.subr.mxu0 %v4571
    %v4573 = vand.u32 %v61, 4294901760
    %4574 = vmatpush1.msra.mxu0 %v4573
    %v4575 = vand.u32 %v64, 4294901760
    %4576 = vmatprep.subr.mxu0 %v4575
    %v4577 = vand.u32 %v63, 4294901760
    %4578 = vmatpush1.msra.mxu0 %v4577
    %v4579 = vand.u32 %v66, 4294901760
    %4580 = vmatprep.subr.mxu0 %v4579
    %v4581 = vand.u32 %v65, 4294901760
    %4582 = vmatpush1.msra.mxu0 %v4581
    %v4583 = vand.u32 %v68, 4294901760
    %4584 = vmatprep.subr.mxu0 %v4583
    %v4585 = vand.u32 %v67, 4294901760
    %4586 = vmatpush1.msra.mxu0 %v4585
    %v4587 = vand.u32 %v70, 4294901760
    %4588 = vmatprep.subr.mxu0 %v4587
    %v4589 = vand.u32 %v69, 4294901760
    %4590 = vmatpush1.msra.mxu0 %v4589
    %v4591 = vand.u32 %v72, 4294901760
    %4592 = vmatprep.subr.mxu0 %v4591
    %v4593 = vand.u32 %v71, 4294901760
    %4594 = vmatpush1.msra.mxu0 %v4593
    %v4595 = vand.u32 %v74, 4294901760
    %4596 = vmatprep.subr.mxu0 %v4595
    %v4597 = vand.u32 %v73, 4294901760
    %4598 = vmatpush1.msra.mxu0 %v4597
    %4599 = vmatprep.subr.mxu0 0.0
    %4600 = vmatpush1.msra.mxu0 0.0
    %4601 = vmatprep.subr.mxu0 0.0
    %4602 = vmatpush1.msra.mxu0 0.0
    %4603 = vmatprep.subr.mxu0 0.0
    %4604 = vmatpush1.msra.mxu0 0.0
    %4605 = vmatprep.subr.mxu0 0.0
    %4606 = vmatpush1.msra.mxu0 0.0
    %4607 = vmatprep.subr.mxu0 0.0
    %4608 = vmatpush1.msra.mxu0 0.0
    %4609 = vmatprep.subr.mxu0 0.0
    %4610 = vmatpush1.msra.mxu0 0.0
    %4611 = vmatprep.subr.mxu0 0.0
    %4612 = vmatpush1.msra.mxu0 0.0
    %4613 = vmatprep.subr.mxu0 0.0
    %4614 = vmatpush1.msra.mxu0 0.0
    %4615 = vmatprep.subr.mxu0 0.0
    %4616 = vmatpush1.msra.mxu0 0.0
    %4617 = vmatprep.subr.mxu0 0.0
    %4618 = vmatpush1.msra.mxu0 0.0
    %4619 = vmatprep.subr.mxu0 0.0
    %4620 = vmatpush1.msra.mxu0 0.0
    %4621 = vmatprep.subr.mxu0 0.0
    %4622 = vmatpush1.msra.mxu0 0.0
    %4623 = vmatprep.subr.mxu0 0.0
    %4624 = vmatpush1.msra.mxu0 0.0
    %4625 = vmatprep.subr.mxu0 0.0
    %4626 = vmatpush1.msra.mxu0 0.0
    %4627 = vmatprep.subr.mxu0 0.0
    %4628 = vmatpush1.msra.mxu0 0.0
    %4629 = vmatprep.subr.mxu0 0.0
    %4630 = vmatpush1.msra.mxu0 0.0
    %4631 = vmatprep.subr.mxu0 0.0
    %4632 = vmatpush1.msra.mxu0 0.0
    %4633 = vmatprep.subr.mxu0 0.0
    %4634 = vmatpush1.msra.mxu0 0.0
    %4635 = vmatprep.subr.mxu0 0.0
    %4636 = vmatpush1.msra.mxu0 0.0
    %4637 = vmatprep.subr.mxu0 0.0
    %4638 = vmatpush1.msra.mxu0 0.0
    %4639 = vmatprep.subr.mxu0 0.0
    %4640 = vmatpush1.msra.mxu0 0.0
    %4641 = vmatprep.subr.mxu0 0.0
    %4642 = vmatpush1.msra.mxu0 0.0
    %4643 = vmatprep.subr.mxu0 0.0
    %4644 = vmatpush1.msra.mxu0 0.0
    %4645 = vmatprep.subr.mxu0 0.0
    %4646 = vmatpush1.msra.mxu0 0.0
    %4647 = vmatprep.mubr.f32.mxu0 0.0
    %v4648 = vand.u32 %v4216, 4294901760
    %v4649 = vsub.f32 %v4216, %v4648
    %v4650 = vand.u32 %v4649, 4294901760
    %4651 = vmatmul.mubr.f32.gmra.mrb[0].mxu0 %v4650
    %v4652 = vpop.f32.mrb[0].mxu0
    %v4653 = vadd.f32 %v4563, %v4652
    %v4654 = vpop.f32.mrb[0].mxu0
    %v4655 = vadd.f32 %v4565, %v4654
    %4656 = vdwg.mxu0
    %v4657 = vand.u32 %v60, 4294901760
    %v4658 = vsub.f32 %v60, %v4657
    %v4659 = vand.u32 %v4658, 4294901760
    %4660 = vmatprep.subr.mxu0 %v4659
    %v4661 = vand.u32 %v59, 4294901760
    %v4662 = vsub.f32 %v59, %v4661
    %v4663 = vand.u32 %v4662, 4294901760
    %4664 = vmatpush1.msra.mxu0 %v4663
    %v4665 = vand.u32 %v62, 4294901760
    %v4666 = vsub.f32 %v62, %v4665
    %v4667 = vand.u32 %v4666, 4294901760
    %4668 = vmatprep.subr.mxu0 %v4667
    %v4669 = vand.u32 %v61, 4294901760
    %v4670 = vsub.f32 %v61, %v4669
    %v4671 = vand.u32 %v4670, 4294901760
    %4672 = vmatpush1.msra.mxu0 %v4671
    %v4673 = vand.u32 %v64, 4294901760
    %v4674 = vsub.f32 %v64, %v4673
    %v4675 = vand.u32 %v4674, 4294901760
    %4676 = vmatprep.subr.mxu0 %v4675
    %v4677 = vand.u32 %v63, 4294901760
    %v4678 = vsub.f32 %v63, %v4677
    %v4679 = vand.u32 %v4678, 4294901760
    %4680 = vmatpush1.msra.mxu0 %v4679
    %v4681 = vand.u32 %v66, 4294901760
    %v4682 = vsub.f32 %v66, %v4681
    %v4683 = vand.u32 %v4682, 4294901760
    %4684 = vmatprep.subr.mxu0 %v4683
    %v4685 = vand.u32 %v65, 4294901760
    %v4686 = vsub.f32 %v65, %v4685
    %v4687 = vand.u32 %v4686, 4294901760
    %4688 = vmatpush1.msra.mxu0 %v4687
    %v4689 = vand.u32 %v68, 4294901760
    %v4690 = vsub.f32 %v68, %v4689
    %v4691 = vand.u32 %v4690, 4294901760
    %4692 = vmatprep.subr.mxu0 %v4691
    %v4693 = vand.u32 %v67, 4294901760
    %v4694 = vsub.f32 %v67, %v4693
    %v4695 = vand.u32 %v4694, 4294901760
    %4696 = vmatpush1.msra.mxu0 %v4695
    %v4697 = vand.u32 %v70, 4294901760
    %v4698 = vsub.f32 %v70, %v4697
    %v4699 = vand.u32 %v4698, 4294901760
    %4700 = vmatprep.subr.mxu0 %v4699
    %v4701 = vand.u32 %v69, 4294901760
    %v4702 = vsub.f32 %v69, %v4701
    %v4703 = vand.u32 %v4702, 4294901760
    %4704 = vmatpush1.msra.mxu0 %v4703
    %v4705 = vand.u32 %v72, 4294901760
    %v4706 = vsub.f32 %v72, %v4705
    %v4707 = vand.u32 %v4706, 4294901760
    %4708 = vmatprep.subr.mxu0 %v4707
    %v4709 = vand.u32 %v71, 4294901760
    %v4710 = vsub.f32 %v71, %v4709
    %v4711 = vand.u32 %v4710, 4294901760
    %4712 = vmatpush1.msra.mxu0 %v4711
    %v4713 = vand.u32 %v74, 4294901760
    %v4714 = vsub.f32 %v74, %v4713
    %v4715 = vand.u32 %v4714, 4294901760
    %4716 = vmatprep.subr.mxu0 %v4715
    %v4717 = vand.u32 %v73, 4294901760
    %v4718 = vsub.f32 %v73, %v4717
    %v4719 = vand.u32 %v4718, 4294901760
    %4720 = vmatpush1.msra.mxu0 %v4719
    %4721 = vmatprep.subr.mxu0 0.0
    %4722 = vmatpush1.msra.mxu0 0.0
    %4723 = vmatprep.subr.mxu0 0.0
    %4724 = vmatpush1.msra.mxu0 0.0
    %4725 = vmatprep.subr.mxu0 0.0
    %4726 = vmatpush1.msra.mxu0 0.0
    %4727 = vmatprep.subr.mxu0 0.0
    %4728 = vmatpush1.msra.mxu0 0.0
    %4729 = vmatprep.subr.mxu0 0.0
    %4730 = vmatpush1.msra.mxu0 0.0
    %4731 = vmatprep.subr.mxu0 0.0
    %4732 = vmatpush1.msra.mxu0 0.0
    %4733 = vmatprep.subr.mxu0 0.0
    %4734 = vmatpush1.msra.mxu0 0.0
    %4735 = vmatprep.subr.mxu0 0.0
    %4736 = vmatpush1.msra.mxu0 0.0
    %4737 = vmatprep.subr.mxu0 0.0
    %4738 = vmatpush1.msra.mxu0 0.0
    %4739 = vmatprep.subr.mxu0 0.0
    %4740 = vmatpush1.msra.mxu0 0.0
    %4741 = vmatprep.subr.mxu0 0.0
    %4742 = vmatpush1.msra.mxu0 0.0
    %4743 = vmatprep.subr.mxu0 0.0
    %4744 = vmatpush1.msra.mxu0 0.0
    %4745 = vmatprep.subr.mxu0 0.0
    %4746 = vmatpush1.msra.mxu0 0.0
    %4747 = vmatprep.subr.mxu0 0.0
    %4748 = vmatpush1.msra.mxu0 0.0
    %4749 = vmatprep.subr.mxu0 0.0
    %4750 = vmatpush1.msra.mxu0 0.0
    %4751 = vmatprep.subr.mxu0 0.0
    %4752 = vmatpush1.msra.mxu0 0.0
    %4753 = vmatprep.subr.mxu0 0.0
    %4754 = vmatpush1.msra.mxu0 0.0
    %4755 = vmatprep.subr.mxu0 0.0
    %4756 = vmatpush1.msra.mxu0 0.0
    %4757 = vmatprep.subr.mxu0 0.0
    %4758 = vmatpush1.msra.mxu0 0.0
    %4759 = vmatprep.subr.mxu0 0.0
    %4760 = vmatpush1.msra.mxu0 0.0
    %4761 = vmatprep.subr.mxu0 0.0
    %4762 = vmatpush1.msra.mxu0 0.0
    %4763 = vmatprep.subr.mxu0 0.0
    %4764 = vmatpush1.msra.mxu0 0.0
    %4765 = vmatprep.subr.mxu0 0.0
    %4766 = vmatpush1.msra.mxu0 0.0
    %4767 = vmatprep.subr.mxu0 0.0
    %4768 = vmatpush1.msra.mxu0 0.0
    %4769 = vmatprep.mubr.f32.mxu0 0.0
    %v4770 = vand.u32 %v4216, 4294901760
    %4771 = vmatmul.mubr.f32.gmra.mrb[0].mxu0 %v4770
    %v4772 = vpop.f32.mrb[0].mxu0
    %v4773 = vadd.f32 %v4653, %v4772
    %v4774 = vpop.f32.mrb[0].mxu0
    %v4775 = vadd.f32 %v4655, %v4774
    %4776 = vdwg.mxu0
    %v4777 = vand.u32 %v60, 4294901760
    %4778 = vmatprep.subr.mxu0 %v4777
    %v4779 = vand.u32 %v59, 4294901760
    %4780 = vmatpush1.msra.mxu0 %v4779
    %v4781 = vand.u32 %v62, 4294901760
    %4782 = vmatprep.subr.mxu0 %v4781
    %v4783 = vand.u32 %v61, 4294901760
    %4784 = vmatpush1.msra.mxu0 %v4783
    %v4785 = vand.u32 %v64, 4294901760
    %4786 = vmatprep.subr.mxu0 %v4785
    %v4787 = vand.u32 %v63, 4294901760
    %4788 = vmatpush1.msra.mxu0 %v4787
    %v4789 = vand.u32 %v66, 4294901760
    %4790 = vmatprep.subr.mxu0 %v4789
    %v4791 = vand.u32 %v65, 4294901760
    %4792 = vmatpush1.msra.mxu0 %v4791
    %v4793 = vand.u32 %v68, 4294901760
    %4794 = vmatprep.subr.mxu0 %v4793
    %v4795 = vand.u32 %v67, 4294901760
    %4796 = vmatpush1.msra.mxu0 %v4795
    %v4797 = vand.u32 %v70, 4294901760
    %4798 = vmatprep.subr.mxu0 %v4797
    %v4799 = vand.u32 %v69, 4294901760
    %4800 = vmatpush1.msra.mxu0 %v4799
    %v4801 = vand.u32 %v72, 4294901760
    %4802 = vmatprep.subr.mxu0 %v4801
    %v4803 = vand.u32 %v71, 4294901760
    %4804 = vmatpush1.msra.mxu0 %v4803
    %v4805 = vand.u32 %v74, 4294901760
    %4806 = vmatprep.subr.mxu0 %v4805
    %v4807 = vand.u32 %v73, 4294901760
    %4808 = vmatpush1.msra.mxu0 %v4807
    %4809 = vmatprep.subr.mxu0 0.0
    %4810 = vmatpush1.msra.mxu0 0.0
    %4811 = vmatprep.subr.mxu0 0.0
    %4812 = vmatpush1.msra.mxu0 0.0
    %4813 = vmatprep.subr.mxu0 0.0
    %4814 = vmatpush1.msra.mxu0 0.0
    %4815 = vmatprep.subr.mxu0 0.0
    %4816 = vmatpush1.msra.mxu0 0.0
    %4817 = vmatprep.subr.mxu0 0.0
    %4818 = vmatpush1.msra.mxu0 0.0
    %4819 = vmatprep.subr.mxu0 0.0
    %4820 = vmatpush1.msra.mxu0 0.0
    %4821 = vmatprep.subr.mxu0 0.0
    %4822 = vmatpush1.msra.mxu0 0.0
    %4823 = vmatprep.subr.mxu0 0.0
    %4824 = vmatpush1.msra.mxu0 0.0
    %4825 = vmatprep.subr.mxu0 0.0
    %4826 = vmatpush1.msra.mxu0 0.0
    %4827 = vmatprep.subr.mxu0 0.0
    %4828 = vmatpush1.msra.mxu0 0.0
    %4829 = vmatprep.subr.mxu0 0.0
    %4830 = vmatpush1.msra.mxu0 0.0
    %4831 = vmatprep.subr.mxu0 0.0
    %4832 = vmatpush1.msra.mxu0 0.0
    %4833 = vmatprep.subr.mxu0 0.0
    %4834 = vmatpush1.msra.mxu0 0.0
    %4835 = vmatprep.subr.mxu0 0.0
    %4836 = vmatpush1.msra.mxu0 0.0
    %4837 = vmatprep.subr.mxu0 0.0
    %4838 = vmatpush1.msra.mxu0 0.0
    %4839 = vmatprep.subr.mxu0 0.0
    %4840 = vmatpush1.msra.mxu0 0.0
    %4841 = vmatprep.subr.mxu0 0.0
    %4842 = vmatpush1.msra.mxu0 0.0
    %4843 = vmatprep.subr.mxu0 0.0
    %4844 = vmatpush1.msra.mxu0 0.0
    %4845 = vmatprep.subr.mxu0 0.0
    %4846 = vmatpush1.msra.mxu0 0.0
    %4847 = vmatprep.subr.mxu0 0.0
    %4848 = vmatpush1.msra.mxu0 0.0
    %4849 = vmatprep.subr.mxu0 0.0
    %4850 = vmatpush1.msra.mxu0 0.0
    %4851 = vmatprep.subr.mxu0 0.0
    %4852 = vmatpush1.msra.mxu0 0.0
    %4853 = vmatprep.subr.mxu0 0.0
    %4854 = vmatpush1.msra.mxu0 0.0
    %4855 = vmatprep.subr.mxu0 0.0
    %4856 = vmatpush1.msra.mxu0 0.0
    %4857 = vmatprep.mubr.f32.mxu0 0.0
    %v4858 = vand.u32 %v4216, 4294901760
    %4859 = vmatmul.mubr.f32.gmra.mrb[0].mxu0 %v4858
    %v4860 = vpop.f32.mrb[0].mxu0
    %v4861 = vadd.f32 %v4773, %v4860
    %v4862 = vpop.f32.mrb[0].mxu0
    %v4863 = vadd.f32 %v4775, %v4862
    %4864 = vdwg.mxu0
    %v4867 = vrot.slane %v4861, 4
    %v4868 = vrot.slane %v4863, 4
    %v4871 = vadd.f32 %v77, %v4867
    %v4872 = vadd.f32 %v78, %v4868
    %v4873 = vxor.u32 %v4871, 2147483648
    %v4874 = vxor.u32 %v4872, 2147483648
    %v4875 = vmul.f32 %v4873, 1.442695
    %v4876 = vpow.pop %v4875
    %v4877 = vmul.f32 %v4874, 1.442695
    %v4878 = vpow.pop %v4877
    %v4879 = vadd.f32 %v4876, 1.0
    %v4880 = vadd.f32 %v4878, 1.0
    %v4881 = vrcp.pop %v4879
    %v4882 = vmul.f32 1.0, %v4881
    %v4883 = vrcp.pop %v4880
    %v4884 = vmul.f32 1.0, %v4883
    %v4885 = vtanh.pop %v4872
    %v4887 = vrot.slane %v4207, 6
    %v4889 = vmul.f32 %v4882, %v4887
    %4891 = vrot.lane.b32.xlu0 %v4885, 64
    %v4892 = vpop.permute.xlu0 %4891
    %v4894 = vmul.f32 %v4882, %v4892
    %4896 = vrot.lane.b32.xlu0 %v4894, 64
    %v4897 = vpop.permute.xlu0 %4896
    %v4899 = vadd.f32 %v4889, %v4897
    %v4900 = vtanh.pop %v4899
    %4902 = vrot.lane.b32.xlu0 %v4900, 64
    %v4903 = vpop.permute.xlu0 %4902
    %v4905 = vmul.f32 %v4884, %v4903
    %v4907 = vrot.slane %v4905, 4
    %v4908 = vsel %vm79, %v4907, 0
    %v4910 = vand.u32 %v60, 4294901760
    %4911 = vmatprep.subr.mxu0 %v4910
    %v4912 = vand.u32 %v59, 4294901760
    %4913 = vmatpush1.msra.mxu0 %v4912
    %v4914 = vand.u32 %v62, 4294901760
    %4915 = vmatprep.subr.mxu0 %v4914
    %v4916 = vand.u32 %v61, 4294901760
    %4917 = vmatpush1.msra.mxu0 %v4916
    %v4918 = vand.u32 %v64, 4294901760
    %4919 = vmatprep.subr.mxu0 %v4918
    %v4920 = vand.u32 %v63, 4294901760
    %4921 = vmatpush1.msra.mxu0 %v4920
    %v4922 = vand.u32 %v66, 4294901760
    %4923 = vmatprep.subr.mxu0 %v4922
    %v4924 = vand.u32 %v65, 4294901760
    %4925 = vmatpush1.msra.mxu0 %v4924
    %v4926 = vand.u32 %v68, 4294901760
    %4927 = vmatprep.subr.mxu0 %v4926
    %v4928 = vand.u32 %v67, 4294901760
    %4929 = vmatpush1.msra.mxu0 %v4928
    %v4930 = vand.u32 %v70, 4294901760
    %4931 = vmatprep.subr.mxu0 %v4930
    %v4932 = vand.u32 %v69, 4294901760
    %4933 = vmatpush1.msra.mxu0 %v4932
    %v4934 = vand.u32 %v72, 4294901760
    %4935 = vmatprep.subr.mxu0 %v4934
    %v4936 = vand.u32 %v71, 4294901760
    %4937 = vmatpush1.msra.mxu0 %v4936
    %v4938 = vand.u32 %v74, 4294901760
    %4939 = vmatprep.subr.mxu0 %v4938
    %v4940 = vand.u32 %v73, 4294901760
    %4941 = vmatpush1.msra.mxu0 %v4940
    %4942 = vmatprep.subr.mxu0 0.0
    %4943 = vmatpush1.msra.mxu0 0.0
    %4944 = vmatprep.subr.mxu0 0.0
    %4945 = vmatpush1.msra.mxu0 0.0
    %4946 = vmatprep.subr.mxu0 0.0
    %4947 = vmatpush1.msra.mxu0 0.0
    %4948 = vmatprep.subr.mxu0 0.0
    %4949 = vmatpush1.msra.mxu0 0.0
    %4950 = vmatprep.subr.mxu0 0.0
    %4951 = vmatpush1.msra.mxu0 0.0
    %4952 = vmatprep.subr.mxu0 0.0
    %4953 = vmatpush1.msra.mxu0 0.0
    %4954 = vmatprep.subr.mxu0 0.0
    %4955 = vmatpush1.msra.mxu0 0.0
    %4956 = vmatprep.subr.mxu0 0.0
    %4957 = vmatpush1.msra.mxu0 0.0
    %4958 = vmatprep.subr.mxu0 0.0
    %4959 = vmatpush1.msra.mxu0 0.0
    %4960 = vmatprep.subr.mxu0 0.0
    %4961 = vmatpush1.msra.mxu0 0.0
    %4962 = vmatprep.subr.mxu0 0.0
    %4963 = vmatpush1.msra.mxu0 0.0
    %4964 = vmatprep.subr.mxu0 0.0
    %4965 = vmatpush1.msra.mxu0 0.0
    %4966 = vmatprep.subr.mxu0 0.0
    %4967 = vmatpush1.msra.mxu0 0.0
    %4968 = vmatprep.subr.mxu0 0.0
    %4969 = vmatpush1.msra.mxu0 0.0
    %4970 = vmatprep.subr.mxu0 0.0
    %4971 = vmatpush1.msra.mxu0 0.0
    %4972 = vmatprep.subr.mxu0 0.0
    %4973 = vmatpush1.msra.mxu0 0.0
    %4974 = vmatprep.subr.mxu0 0.0
    %4975 = vmatpush1.msra.mxu0 0.0
    %4976 = vmatprep.subr.mxu0 0.0
    %4977 = vmatpush1.msra.mxu0 0.0
    %4978 = vmatprep.subr.mxu0 0.0
    %4979 = vmatpush1.msra.mxu0 0.0
    %4980 = vmatprep.subr.mxu0 0.0
    %4981 = vmatpush1.msra.mxu0 0.0
    %4982 = vmatprep.subr.mxu0 0.0
    %4983 = vmatpush1.msra.mxu0 0.0
    %4984 = vmatprep.subr.mxu0 0.0
    %4985 = vmatpush1.msra.mxu0 0.0
    %4986 = vmatprep.subr.mxu0 0.0
    %4987 = vmatpush1.msra.mxu0 0.0
    %4988 = vmatprep.subr.mxu0 0.0
    %4989 = vmatpush1.msra.mxu0 0.0
    %4990 = vmatprep.mubr.f32.mxu0 0.0
    %v4991 = vand.u32 %v4908, 4294901760
    %v4992 = vsub.f32 %v4908, %v4991
    %v4993 = vand.u32 %v4992, 4294901760
    %v4994 = vsub.f32 %v4992, %v4993
    %v4995 = vand.u32 %v4994, 4294901760
    %4996 = vmatmul.mubr.f32.gmra.mrb[0].mxu0 %v4995
    %v4997 = vpop.f32.mrb[0].mxu0
    %v4998 = vadd.f32 0.0, %v4997
    %v4999 = vpop.f32.mrb[0].mxu0
    %v5000 = vadd.f32 0.0, %v4999
    %5001 = vdwg.mxu0
    %v5002 = vand.u32 %v60, 4294901760
    %v5003 = vsub.f32 %v60, %v5002
    %v5004 = vand.u32 %v5003, 4294901760
    %v5005 = vsub.f32 %v5003, %v5004
    %v5006 = vand.u32 %v5005, 4294901760
    %5007 = vmatprep.subr.mxu0 %v5006
    %v5008 = vand.u32 %v59, 4294901760
    %v5009 = vsub.f32 %v59, %v5008
    %v5010 = vand.u32 %v5009, 4294901760
    %v5011 = vsub.f32 %v5009, %v5010
    %v5012 = vand.u32 %v5011, 4294901760
    %5013 = vmatpush1.msra.mxu0 %v5012
    %v5014 = vand.u32 %v62, 4294901760
    %v5015 = vsub.f32 %v62, %v5014
    %v5016 = vand.u32 %v5015, 4294901760
    %v5017 = vsub.f32 %v5015, %v5016
    %v5018 = vand.u32 %v5017, 4294901760
    %5019 = vmatprep.subr.mxu0 %v5018
    %v5020 = vand.u32 %v61, 4294901760
    %v5021 = vsub.f32 %v61, %v5020
    %v5022 = vand.u32 %v5021, 4294901760
    %v5023 = vsub.f32 %v5021, %v5022
    %v5024 = vand.u32 %v5023, 4294901760
    %5025 = vmatpush1.msra.mxu0 %v5024
    %v5026 = vand.u32 %v64, 4294901760
    %v5027 = vsub.f32 %v64, %v5026
    %v5028 = vand.u32 %v5027, 4294901760
    %v5029 = vsub.f32 %v5027, %v5028
    %v5030 = vand.u32 %v5029, 4294901760
    %5031 = vmatprep.subr.mxu0 %v5030
    %v5032 = vand.u32 %v63, 4294901760
    %v5033 = vsub.f32 %v63, %v5032
    %v5034 = vand.u32 %v5033, 4294901760
    %v5035 = vsub.f32 %v5033, %v5034
    %v5036 = vand.u32 %v5035, 4294901760
    %5037 = vmatpush1.msra.mxu0 %v5036
    %v5038 = vand.u32 %v66, 4294901760
    %v5039 = vsub.f32 %v66, %v5038
    %v5040 = vand.u32 %v5039, 4294901760
    %v5041 = vsub.f32 %v5039, %v5040
    %v5042 = vand.u32 %v5041, 4294901760
    %5043 = vmatprep.subr.mxu0 %v5042
    %v5044 = vand.u32 %v65, 4294901760
    %v5045 = vsub.f32 %v65, %v5044
    %v5046 = vand.u32 %v5045, 4294901760
    %v5047 = vsub.f32 %v5045, %v5046
    %v5048 = vand.u32 %v5047, 4294901760
    %5049 = vmatpush1.msra.mxu0 %v5048
    %v5050 = vand.u32 %v68, 4294901760
    %v5051 = vsub.f32 %v68, %v5050
    %v5052 = vand.u32 %v5051, 4294901760
    %v5053 = vsub.f32 %v5051, %v5052
    %v5054 = vand.u32 %v5053, 4294901760
    %5055 = vmatprep.subr.mxu0 %v5054
    %v5056 = vand.u32 %v67, 4294901760
    %v5057 = vsub.f32 %v67, %v5056
    %v5058 = vand.u32 %v5057, 4294901760
    %v5059 = vsub.f32 %v5057, %v5058
    %v5060 = vand.u32 %v5059, 4294901760
    %5061 = vmatpush1.msra.mxu0 %v5060
    %v5062 = vand.u32 %v70, 4294901760
    %v5063 = vsub.f32 %v70, %v5062
    %v5064 = vand.u32 %v5063, 4294901760
    %v5065 = vsub.f32 %v5063, %v5064
    %v5066 = vand.u32 %v5065, 4294901760
    %5067 = vmatprep.subr.mxu0 %v5066
    %v5068 = vand.u32 %v69, 4294901760
    %v5069 = vsub.f32 %v69, %v5068
    %v5070 = vand.u32 %v5069, 4294901760
    %v5071 = vsub.f32 %v5069, %v5070
    %v5072 = vand.u32 %v5071, 4294901760
    %5073 = vmatpush1.msra.mxu0 %v5072
    %v5074 = vand.u32 %v72, 4294901760
    %v5075 = vsub.f32 %v72, %v5074
    %v5076 = vand.u32 %v5075, 4294901760
    %v5077 = vsub.f32 %v5075, %v5076
    %v5078 = vand.u32 %v5077, 4294901760
    %5079 = vmatprep.subr.mxu0 %v5078
    %v5080 = vand.u32 %v71, 4294901760
    %v5081 = vsub.f32 %v71, %v5080
    %v5082 = vand.u32 %v5081, 4294901760
    %v5083 = vsub.f32 %v5081, %v5082
    %v5084 = vand.u32 %v5083, 4294901760
    %5085 = vmatpush1.msra.mxu0 %v5084
    %v5086 = vand.u32 %v74, 4294901760
    %v5087 = vsub.f32 %v74, %v5086
    %v5088 = vand.u32 %v5087, 4294901760
    %v5089 = vsub.f32 %v5087, %v5088
    %v5090 = vand.u32 %v5089, 4294901760
    %5091 = vmatprep.subr.mxu0 %v5090
    %v5092 = vand.u32 %v73, 4294901760
    %v5093 = vsub.f32 %v73, %v5092
    %v5094 = vand.u32 %v5093, 4294901760
    %v5095 = vsub.f32 %v5093, %v5094
    %v5096 = vand.u32 %v5095, 4294901760
    %5097 = vmatpush1.msra.mxu0 %v5096
    %5098 = vmatprep.subr.mxu0 0.0
    %5099 = vmatpush1.msra.mxu0 0.0
    %5100 = vmatprep.subr.mxu0 0.0
    %5101 = vmatpush1.msra.mxu0 0.0
    %5102 = vmatprep.subr.mxu0 0.0
    %5103 = vmatpush1.msra.mxu0 0.0
    %5104 = vmatprep.subr.mxu0 0.0
    %5105 = vmatpush1.msra.mxu0 0.0
    %5106 = vmatprep.subr.mxu0 0.0
    %5107 = vmatpush1.msra.mxu0 0.0
    %5108 = vmatprep.subr.mxu0 0.0
    %5109 = vmatpush1.msra.mxu0 0.0
    %5110 = vmatprep.subr.mxu0 0.0
    %5111 = vmatpush1.msra.mxu0 0.0
    %5112 = vmatprep.subr.mxu0 0.0
    %5113 = vmatpush1.msra.mxu0 0.0
    %5114 = vmatprep.subr.mxu0 0.0
    %5115 = vmatpush1.msra.mxu0 0.0
    %5116 = vmatprep.subr.mxu0 0.0
    %5117 = vmatpush1.msra.mxu0 0.0
    %5118 = vmatprep.subr.mxu0 0.0
    %5119 = vmatpush1.msra.mxu0 0.0
    %5120 = vmatprep.subr.mxu0 0.0
    %5121 = vmatpush1.msra.mxu0 0.0
    %5122 = vmatprep.subr.mxu0 0.0
    %5123 = vmatpush1.msra.mxu0 0.0
    %5124 = vmatprep.subr.mxu0 0.0
    %5125 = vmatpush1.msra.mxu0 0.0
    %5126 = vmatprep.subr.mxu0 0.0
    %5127 = vmatpush1.msra.mxu0 0.0
    %5128 = vmatprep.subr.mxu0 0.0
    %5129 = vmatpush1.msra.mxu0 0.0
    %5130 = vmatprep.subr.mxu0 0.0
    %5131 = vmatpush1.msra.mxu0 0.0
    %5132 = vmatprep.subr.mxu0 0.0
    %5133 = vmatpush1.msra.mxu0 0.0
    %5134 = vmatprep.subr.mxu0 0.0
    %5135 = vmatpush1.msra.mxu0 0.0
    %5136 = vmatprep.subr.mxu0 0.0
    %5137 = vmatpush1.msra.mxu0 0.0
    %5138 = vmatprep.subr.mxu0 0.0
    %5139 = vmatpush1.msra.mxu0 0.0
    %5140 = vmatprep.subr.mxu0 0.0
    %5141 = vmatpush1.msra.mxu0 0.0
    %5142 = vmatprep.subr.mxu0 0.0
    %5143 = vmatpush1.msra.mxu0 0.0
    %5144 = vmatprep.subr.mxu0 0.0
    %5145 = vmatpush1.msra.mxu0 0.0
    %5146 = vmatprep.mubr.f32.mxu0 0.0
    %v5147 = vand.u32 %v4908, 4294901760
    %5148 = vmatmul.mubr.f32.gmra.mrb[0].mxu0 %v5147
    %v5149 = vpop.f32.mrb[0].mxu0
    %v5150 = vadd.f32 %v4998, %v5149
    %v5151 = vpop.f32.mrb[0].mxu0
    %v5152 = vadd.f32 %v5000, %v5151
    %5153 = vdwg.mxu0
    %v5154 = vand.u32 %v60, 4294901760
    %v5155 = vsub.f32 %v60, %v5154
    %5156 = vmatprep.subr.mxu0 %v5155
    %v5157 = vand.u32 %v59, 4294901760
    %v5158 = vsub.f32 %v59, %v5157
    %5159 = vmatpush1.msra.mxu0 %v5158
    %v5160 = vand.u32 %v62, 4294901760
    %v5161 = vsub.f32 %v62, %v5160
    %5162 = vmatprep.subr.mxu0 %v5161
    %v5163 = vand.u32 %v61, 4294901760
    %v5164 = vsub.f32 %v61, %v5163
    %5165 = vmatpush1.msra.mxu0 %v5164
    %v5166 = vand.u32 %v64, 4294901760
    %v5167 = vsub.f32 %v64, %v5166
    %5168 = vmatprep.subr.mxu0 %v5167
    %v5169 = vand.u32 %v63, 4294901760
    %v5170 = vsub.f32 %v63, %v5169
    %5171 = vmatpush1.msra.mxu0 %v5170
    %v5172 = vand.u32 %v66, 4294901760
    %v5173 = vsub.f32 %v66, %v5172
    %5174 = vmatprep.subr.mxu0 %v5173
    %v5175 = vand.u32 %v65, 4294901760
    %v5176 = vsub.f32 %v65, %v5175
    %5177 = vmatpush1.msra.mxu0 %v5176
    %v5178 = vand.u32 %v68, 4294901760
    %v5179 = vsub.f32 %v68, %v5178
    %5180 = vmatprep.subr.mxu0 %v5179
    %v5181 = vand.u32 %v67, 4294901760
    %v5182 = vsub.f32 %v67, %v5181
    %5183 = vmatpush1.msra.mxu0 %v5182
    %v5184 = vand.u32 %v70, 4294901760
    %v5185 = vsub.f32 %v70, %v5184
    %5186 = vmatprep.subr.mxu0 %v5185
    %v5187 = vand.u32 %v69, 4294901760
    %v5188 = vsub.f32 %v69, %v5187
    %5189 = vmatpush1.msra.mxu0 %v5188
    %v5190 = vand.u32 %v72, 4294901760
    %v5191 = vsub.f32 %v72, %v5190
    %5192 = vmatprep.subr.mxu0 %v5191
    %v5193 = vand.u32 %v71, 4294901760
    %v5194 = vsub.f32 %v71, %v5193
    %5195 = vmatpush1.msra.mxu0 %v5194
    %v5196 = vand.u32 %v74, 4294901760
    %v5197 = vsub.f32 %v74, %v5196
    %5198 = vmatprep.subr.mxu0 %v5197
    %v5199 = vand.u32 %v73, 4294901760
    %v5200 = vsub.f32 %v73, %v5199
    %5201 = vmatpush1.msra.mxu0 %v5200
    %5202 = vmatprep.subr.mxu0 0.0
    %5203 = vmatpush1.msra.mxu0 0.0
    %5204 = vmatprep.subr.mxu0 0.0
    %5205 = vmatpush1.msra.mxu0 0.0
    %5206 = vmatprep.subr.mxu0 0.0
    %5207 = vmatpush1.msra.mxu0 0.0
    %5208 = vmatprep.subr.mxu0 0.0
    %5209 = vmatpush1.msra.mxu0 0.0
    %5210 = vmatprep.subr.mxu0 0.0
    %5211 = vmatpush1.msra.mxu0 0.0
    %5212 = vmatprep.subr.mxu0 0.0
    %5213 = vmatpush1.msra.mxu0 0.0
    %5214 = vmatprep.subr.mxu0 0.0
    %5215 = vmatpush1.msra.mxu0 0.0
    %5216 = vmatprep.subr.mxu0 0.0
    %5217 = vmatpush1.msra.mxu0 0.0
    %5218 = vmatprep.subr.mxu0 0.0
    %5219 = vmatpush1.msra.mxu0 0.0
    %5220 = vmatprep.subr.mxu0 0.0
    %5221 = vmatpush1.msra.mxu0 0.0
    %5222 = vmatprep.subr.mxu0 0.0
    %5223 = vmatpush1.msra.mxu0 0.0
    %5224 = vmatprep.subr.mxu0 0.0
    %5225 = vmatpush1.msra.mxu0 0.0
    %5226 = vmatprep.subr.mxu0 0.0
    %5227 = vmatpush1.msra.mxu0 0.0
    %5228 = vmatprep.subr.mxu0 0.0
    %5229 = vmatpush1.msra.mxu0 0.0
    %5230 = vmatprep.subr.mxu0 0.0
    %5231 = vmatpush1.msra.mxu0 0.0
    %5232 = vmatprep.subr.mxu0 0.0
    %5233 = vmatpush1.msra.mxu0 0.0
    %5234 = vmatprep.subr.mxu0 0.0
    %5235 = vmatpush1.msra.mxu0 0.0
    %5236 = vmatprep.subr.mxu0 0.0
    %5237 = vmatpush1.msra.mxu0 0.0
    %5238 = vmatprep.subr.mxu0 0.0
    %5239 = vmatpush1.msra.mxu0 0.0
    %5240 = vmatprep.subr.mxu0 0.0
    %5241 = vmatpush1.msra.mxu0 0.0
    %5242 = vmatprep.subr.mxu0 0.0
    %5243 = vmatpush1.msra.mxu0 0.0
    %5244 = vmatprep.subr.mxu0 0.0
    %5245 = vmatpush1.msra.mxu0 0.0
    %5246 = vmatprep.subr.mxu0 0.0
    %5247 = vmatpush1.msra.mxu0 0.0
    %5248 = vmatprep.subr.mxu0 0.0
    %5249 = vmatpush1.msra.mxu0 0.0
    %5250 = vmatprep.mubr.f32.mxu0 0.0
    %v5251 = vand.u32 %v4908, 4294901760
    %v5252 = vsub.f32 %v4908, %v5251
    %5253 = vmatmul.mubr.f32.gmra.mrb[0].mxu0 %v5252
    %v5254 = vpop.f32.mrb[0].mxu0
    %v5255 = vadd.f32 %v5150, %v5254
    %v5256 = vpop.f32.mrb[0].mxu0
    %v5257 = vadd.f32 %v5152, %v5256
    %5258 = vdwg.mxu0
    %v5259 = vand.u32 %v60, 4294901760
    %5260 = vmatprep.subr.mxu0 %v5259
    %v5261 = vand.u32 %v59, 4294901760
    %5262 = vmatpush1.msra.mxu0 %v5261
    %v5263 = vand.u32 %v62, 4294901760
    %5264 = vmatprep.subr.mxu0 %v5263
    %v5265 = vand.u32 %v61, 4294901760
    %5266 = vmatpush1.msra.mxu0 %v5265
    %v5267 = vand.u32 %v64, 4294901760
    %5268 = vmatprep.subr.mxu0 %v5267
    %v5269 = vand.u32 %v63, 4294901760
    %5270 = vmatpush1.msra.mxu0 %v5269
    %v5271 = vand.u32 %v66, 4294901760
    %5272 = vmatprep.subr.mxu0 %v5271
    %v5273 = vand.u32 %v65, 4294901760
    %5274 = vmatpush1.msra.mxu0 %v5273
    %v5275 = vand.u32 %v68, 4294901760
    %5276 = vmatprep.subr.mxu0 %v5275
    %v5277 = vand.u32 %v67, 4294901760
    %5278 = vmatpush1.msra.mxu0 %v5277
    %v5279 = vand.u32 %v70, 4294901760
    %5280 = vmatprep.subr.mxu0 %v5279
    %v5281 = vand.u32 %v69, 4294901760
    %5282 = vmatpush1.msra.mxu0 %v5281
    %v5283 = vand.u32 %v72, 4294901760
    %5284 = vmatprep.subr.mxu0 %v5283
    %v5285 = vand.u32 %v71, 4294901760
    %5286 = vmatpush1.msra.mxu0 %v5285
    %v5287 = vand.u32 %v74, 4294901760
    %5288 = vmatprep.subr.mxu0 %v5287
    %v5289 = vand.u32 %v73, 4294901760
    %5290 = vmatpush1.msra.mxu0 %v5289
    %5291 = vmatprep.subr.mxu0 0.0
    %5292 = vmatpush1.msra.mxu0 0.0
    %5293 = vmatprep.subr.mxu0 0.0
    %5294 = vmatpush1.msra.mxu0 0.0
    %5295 = vmatprep.subr.mxu0 0.0
    %5296 = vmatpush1.msra.mxu0 0.0
    %5297 = vmatprep.subr.mxu0 0.0
    %5298 = vmatpush1.msra.mxu0 0.0
    %5299 = vmatprep.subr.mxu0 0.0
    %5300 = vmatpush1.msra.mxu0 0.0
    %5301 = vmatprep.subr.mxu0 0.0
    %5302 = vmatpush1.msra.mxu0 0.0
    %5303 = vmatprep.subr.mxu0 0.0
    %5304 = vmatpush1.msra.mxu0 0.0
    %5305 = vmatprep.subr.mxu0 0.0
    %5306 = vmatpush1.msra.mxu0 0.0
    %5307 = vmatprep.subr.mxu0 0.0
    %5308 = vmatpush1.msra.mxu0 0.0
    %5309 = vmatprep.subr.mxu0 0.0
    %5310 = vmatpush1.msra.mxu0 0.0
    %5311 = vmatprep.subr.mxu0 0.0
    %5312 = vmatpush1.msra.mxu0 0.0
    %5313 = vmatprep.subr.mxu0 0.0
    %5314 = vmatpush1.msra.mxu0 0.0
    %5315 = vmatprep.subr.mxu0 0.0
    %5316 = vmatpush1.msra.mxu0 0.0
    %5317 = vmatprep.subr.mxu0 0.0
    %5318 = vmatpush1.msra.mxu0 0.0
    %5319 = vmatprep.subr.mxu0 0.0
    %5320 = vmatpush1.msra.mxu0 0.0
    %5321 = vmatprep.subr.mxu0 0.0
    %5322 = vmatpush1.msra.mxu0 0.0
    %5323 = vmatprep.subr.mxu0 0.0
    %5324 = vmatpush1.msra.mxu0 0.0
    %5325 = vmatprep.subr.mxu0 0.0
    %5326 = vmatpush1.msra.mxu0 0.0
    %5327 = vmatprep.subr.mxu0 0.0
    %5328 = vmatpush1.msra.mxu0 0.0
    %5329 = vmatprep.subr.mxu0 0.0
    %5330 = vmatpush1.msra.mxu0 0.0
    %5331 = vmatprep.subr.mxu0 0.0
    %5332 = vmatpush1.msra.mxu0 0.0
    %5333 = vmatprep.subr.mxu0 0.0
    %5334 = vmatpush1.msra.mxu0 0.0
    %5335 = vmatprep.subr.mxu0 0.0
    %5336 = vmatpush1.msra.mxu0 0.0
    %5337 = vmatprep.subr.mxu0 0.0
    %5338 = vmatpush1.msra.mxu0 0.0
    %5339 = vmatprep.mubr.f32.mxu0 0.0
    %v5340 = vand.u32 %v4908, 4294901760
    %v5341 = vsub.f32 %v4908, %v5340
    %v5342 = vand.u32 %v5341, 4294901760
    %5343 = vmatmul.mubr.f32.gmra.mrb[0].mxu0 %v5342
    %v5344 = vpop.f32.mrb[0].mxu0
    %v5345 = vadd.f32 %v5255, %v5344
    %v5346 = vpop.f32.mrb[0].mxu0
    %v5347 = vadd.f32 %v5257, %v5346
    %5348 = vdwg.mxu0
    %v5349 = vand.u32 %v60, 4294901760
    %v5350 = vsub.f32 %v60, %v5349
    %v5351 = vand.u32 %v5350, 4294901760
    %5352 = vmatprep.subr.mxu0 %v5351
    %v5353 = vand.u32 %v59, 4294901760
    %v5354 = vsub.f32 %v59, %v5353
    %v5355 = vand.u32 %v5354, 4294901760
    %5356 = vmatpush1.msra.mxu0 %v5355
    %v5357 = vand.u32 %v62, 4294901760
    %v5358 = vsub.f32 %v62, %v5357
    %v5359 = vand.u32 %v5358, 4294901760
    %5360 = vmatprep.subr.mxu0 %v5359
    %v5361 = vand.u32 %v61, 4294901760
    %v5362 = vsub.f32 %v61, %v5361
    %v5363 = vand.u32 %v5362, 4294901760
    %5364 = vmatpush1.msra.mxu0 %v5363
    %v5365 = vand.u32 %v64, 4294901760
    %v5366 = vsub.f32 %v64, %v5365
    %v5367 = vand.u32 %v5366, 4294901760
    %5368 = vmatprep.subr.mxu0 %v5367
    %v5369 = vand.u32 %v63, 4294901760
    %v5370 = vsub.f32 %v63, %v5369
    %v5371 = vand.u32 %v5370, 4294901760
    %5372 = vmatpush1.msra.mxu0 %v5371
    %v5373 = vand.u32 %v66, 4294901760
    %v5374 = vsub.f32 %v66, %v5373
    %v5375 = vand.u32 %v5374, 4294901760
    %5376 = vmatprep.subr.mxu0 %v5375
    %v5377 = vand.u32 %v65, 4294901760
    %v5378 = vsub.f32 %v65, %v5377
    %v5379 = vand.u32 %v5378, 4294901760
    %5380 = vmatpush1.msra.mxu0 %v5379
    %v5381 = vand.u32 %v68, 4294901760
    %v5382 = vsub.f32 %v68, %v5381
    %v5383 = vand.u32 %v5382, 4294901760
    %5384 = vmatprep.subr.mxu0 %v5383
    %v5385 = vand.u32 %v67, 4294901760
    %v5386 = vsub.f32 %v67, %v5385
    %v5387 = vand.u32 %v5386, 4294901760
    %5388 = vmatpush1.msra.mxu0 %v5387
    %v5389 = vand.u32 %v70, 4294901760
    %v5390 = vsub.f32 %v70, %v5389
    %v5391 = vand.u32 %v5390, 4294901760
    %5392 = vmatprep.subr.mxu0 %v5391
    %v5393 = vand.u32 %v69, 4294901760
    %v5394 = vsub.f32 %v69, %v5393
    %v5395 = vand.u32 %v5394, 4294901760
    %5396 = vmatpush1.msra.mxu0 %v5395
    %v5397 = vand.u32 %v72, 4294901760
    %v5398 = vsub.f32 %v72, %v5397
    %v5399 = vand.u32 %v5398, 4294901760
    %5400 = vmatprep.subr.mxu0 %v5399
    %v5401 = vand.u32 %v71, 4294901760
    %v5402 = vsub.f32 %v71, %v5401
    %v5403 = vand.u32 %v5402, 4294901760
    %5404 = vmatpush1.msra.mxu0 %v5403
    %v5405 = vand.u32 %v74, 4294901760
    %v5406 = vsub.f32 %v74, %v5405
    %v5407 = vand.u32 %v5406, 4294901760
    %5408 = vmatprep.subr.mxu0 %v5407
    %v5409 = vand.u32 %v73, 4294901760
    %v5410 = vsub.f32 %v73, %v5409
    %v5411 = vand.u32 %v5410, 4294901760
    %5412 = vmatpush1.msra.mxu0 %v5411
    %5413 = vmatprep.subr.mxu0 0.0
    %5414 = vmatpush1.msra.mxu0 0.0
    %5415 = vmatprep.subr.mxu0 0.0
    %5416 = vmatpush1.msra.mxu0 0.0
    %5417 = vmatprep.subr.mxu0 0.0
    %5418 = vmatpush1.msra.mxu0 0.0
    %5419 = vmatprep.subr.mxu0 0.0
    %5420 = vmatpush1.msra.mxu0 0.0
    %5421 = vmatprep.subr.mxu0 0.0
    %5422 = vmatpush1.msra.mxu0 0.0
    %5423 = vmatprep.subr.mxu0 0.0
    %5424 = vmatpush1.msra.mxu0 0.0
    %5425 = vmatprep.subr.mxu0 0.0
    %5426 = vmatpush1.msra.mxu0 0.0
    %5427 = vmatprep.subr.mxu0 0.0
    %5428 = vmatpush1.msra.mxu0 0.0
    %5429 = vmatprep.subr.mxu0 0.0
    %5430 = vmatpush1.msra.mxu0 0.0
    %5431 = vmatprep.subr.mxu0 0.0
    %5432 = vmatpush1.msra.mxu0 0.0
    %5433 = vmatprep.subr.mxu0 0.0
    %5434 = vmatpush1.msra.mxu0 0.0
    %5435 = vmatprep.subr.mxu0 0.0
    %5436 = vmatpush1.msra.mxu0 0.0
    %5437 = vmatprep.subr.mxu0 0.0
    %5438 = vmatpush1.msra.mxu0 0.0
    %5439 = vmatprep.subr.mxu0 0.0
    %5440 = vmatpush1.msra.mxu0 0.0
    %5441 = vmatprep.subr.mxu0 0.0
    %5442 = vmatpush1.msra.mxu0 0.0
    %5443 = vmatprep.subr.mxu0 0.0
    %5444 = vmatpush1.msra.mxu0 0.0
    %5445 = vmatprep.subr.mxu0 0.0
    %5446 = vmatpush1.msra.mxu0 0.0
    %5447 = vmatprep.subr.mxu0 0.0
    %5448 = vmatpush1.msra.mxu0 0.0
    %5449 = vmatprep.subr.mxu0 0.0
    %5450 = vmatpush1.msra.mxu0 0.0
    %5451 = vmatprep.subr.mxu0 0.0
    %5452 = vmatpush1.msra.mxu0 0.0
    %5453 = vmatprep.subr.mxu0 0.0
    %5454 = vmatpush1.msra.mxu0 0.0
    %5455 = vmatprep.subr.mxu0 0.0
    %5456 = vmatpush1.msra.mxu0 0.0
    %5457 = vmatprep.subr.mxu0 0.0
    %5458 = vmatpush1.msra.mxu0 0.0
    %5459 = vmatprep.subr.mxu0 0.0
    %5460 = vmatpush1.msra.mxu0 0.0
    %5461 = vmatprep.mubr.f32.mxu0 0.0
    %v5462 = vand.u32 %v4908, 4294901760
    %5463 = vmatmul.mubr.f32.gmra.mrb[0].mxu0 %v5462
    %v5464 = vpop.f32.mrb[0].mxu0
    %v5465 = vadd.f32 %v5345, %v5464
    %v5466 = vpop.f32.mrb[0].mxu0
    %v5467 = vadd.f32 %v5347, %v5466
    %5468 = vdwg.mxu0
    %v5469 = vand.u32 %v60, 4294901760
    %5470 = vmatprep.subr.mxu0 %v5469
    %v5471 = vand.u32 %v59, 4294901760
    %5472 = vmatpush1.msra.mxu0 %v5471
    %v5473 = vand.u32 %v62, 4294901760
    %5474 = vmatprep.subr.mxu0 %v5473
    %v5475 = vand.u32 %v61, 4294901760
    %5476 = vmatpush1.msra.mxu0 %v5475
    %v5477 = vand.u32 %v64, 4294901760
    %5478 = vmatprep.subr.mxu0 %v5477
    %v5479 = vand.u32 %v63, 4294901760
    %5480 = vmatpush1.msra.mxu0 %v5479
    %v5481 = vand.u32 %v66, 4294901760
    %5482 = vmatprep.subr.mxu0 %v5481
    %v5483 = vand.u32 %v65, 4294901760
    %5484 = vmatpush1.msra.mxu0 %v5483
    %v5485 = vand.u32 %v68, 4294901760
    %5486 = vmatprep.subr.mxu0 %v5485
    %v5487 = vand.u32 %v67, 4294901760
    %5488 = vmatpush1.msra.mxu0 %v5487
    %v5489 = vand.u32 %v70, 4294901760
    %5490 = vmatprep.subr.mxu0 %v5489
    %v5491 = vand.u32 %v69, 4294901760
    %5492 = vmatpush1.msra.mxu0 %v5491
    %v5493 = vand.u32 %v72, 4294901760
    %5494 = vmatprep.subr.mxu0 %v5493
    %v5495 = vand.u32 %v71, 4294901760
    %5496 = vmatpush1.msra.mxu0 %v5495
    %v5497 = vand.u32 %v74, 4294901760
    %5498 = vmatprep.subr.mxu0 %v5497
    %v5499 = vand.u32 %v73, 4294901760
    %5500 = vmatpush1.msra.mxu0 %v5499
    %5501 = vmatprep.subr.mxu0 0.0
    %5502 = vmatpush1.msra.mxu0 0.0
    %5503 = vmatprep.subr.mxu0 0.0
    %5504 = vmatpush1.msra.mxu0 0.0
    %5505 = vmatprep.subr.mxu0 0.0
    %5506 = vmatpush1.msra.mxu0 0.0
    %5507 = vmatprep.subr.mxu0 0.0
    %5508 = vmatpush1.msra.mxu0 0.0
    %5509 = vmatprep.subr.mxu0 0.0
    %5510 = vmatpush1.msra.mxu0 0.0
    %5511 = vmatprep.subr.mxu0 0.0
    %5512 = vmatpush1.msra.mxu0 0.0
    %5513 = vmatprep.subr.mxu0 0.0
    %5514 = vmatpush1.msra.mxu0 0.0
    %5515 = vmatprep.subr.mxu0 0.0
    %5516 = vmatpush1.msra.mxu0 0.0
    %5517 = vmatprep.subr.mxu0 0.0
    %5518 = vmatpush1.msra.mxu0 0.0
    %5519 = vmatprep.subr.mxu0 0.0
    %5520 = vmatpush1.msra.mxu0 0.0
    %5521 = vmatprep.subr.mxu0 0.0
    %5522 = vmatpush1.msra.mxu0 0.0
    %5523 = vmatprep.subr.mxu0 0.0
    %5524 = vmatpush1.msra.mxu0 0.0
    %5525 = vmatprep.subr.mxu0 0.0
    %5526 = vmatpush1.msra.mxu0 0.0
    %5527 = vmatprep.subr.mxu0 0.0
    %5528 = vmatpush1.msra.mxu0 0.0
    %5529 = vmatprep.subr.mxu0 0.0
    %5530 = vmatpush1.msra.mxu0 0.0
    %5531 = vmatprep.subr.mxu0 0.0
    %5532 = vmatpush1.msra.mxu0 0.0
    %5533 = vmatprep.subr.mxu0 0.0
    %5534 = vmatpush1.msra.mxu0 0.0
    %5535 = vmatprep.subr.mxu0 0.0
    %5536 = vmatpush1.msra.mxu0 0.0
    %5537 = vmatprep.subr.mxu0 0.0
    %5538 = vmatpush1.msra.mxu0 0.0
    %5539 = vmatprep.subr.mxu0 0.0
    %5540 = vmatpush1.msra.mxu0 0.0
    %5541 = vmatprep.subr.mxu0 0.0
    %5542 = vmatpush1.msra.mxu0 0.0
    %5543 = vmatprep.subr.mxu0 0.0
    %5544 = vmatpush1.msra.mxu0 0.0
    %5545 = vmatprep.subr.mxu0 0.0
    %5546 = vmatpush1.msra.mxu0 0.0
    %5547 = vmatprep.subr.mxu0 0.0
    %5548 = vmatpush1.msra.mxu0 0.0
    %5549 = vmatprep.mubr.f32.mxu0 0.0
    %v5550 = vand.u32 %v4908, 4294901760
    %5551 = vmatmul.mubr.f32.gmra.mrb[0].mxu0 %v5550
    %v5552 = vpop.f32.mrb[0].mxu0
    %v5553 = vadd.f32 %v5465, %v5552
    %v5554 = vpop.f32.mrb[0].mxu0
    %v5555 = vadd.f32 %v5467, %v5554
    %5556 = vdwg.mxu0
    %v5559 = vrot.slane %v5553, 2
    %v5560 = vrot.slane %v5555, 2
    %v5563 = vadd.f32 %v77, %v5559
    %v5564 = vadd.f32 %v78, %v5560
    %v5565 = vxor.u32 %v5563, 2147483648
    %v5566 = vxor.u32 %v5564, 2147483648
    %v5567 = vmul.f32 %v5565, 1.442695
    %v5568 = vpow.pop %v5567
    %v5569 = vmul.f32 %v5566, 1.442695
    %v5570 = vpow.pop %v5569
    %v5571 = vadd.f32 %v5568, 1.0
    %v5572 = vadd.f32 %v5570, 1.0
    %v5573 = vrcp.pop %v5571
    %v5574 = vmul.f32 1.0, %v5573
    %v5575 = vrcp.pop %v5572
    %v5576 = vmul.f32 1.0, %v5575
    %v5577 = vtanh.pop %v5564
    %v5579 = vrot.slane %v4899, 6
    %v5581 = vmul.f32 %v5574, %v5579
    %5583 = vrot.lane.b32.xlu0 %v5577, 64
    %v5584 = vpop.permute.xlu0 %5583
    %v5586 = vmul.f32 %v5574, %v5584
    %5588 = vrot.lane.b32.xlu0 %v5586, 64
    %v5589 = vpop.permute.xlu0 %5588
    %v5591 = vadd.f32 %v5581, %v5589
    %v5592 = vtanh.pop %v5591
    %5594 = vrot.lane.b32.xlu0 %v5592, 64
    %v5595 = vpop.permute.xlu0 %5594
    %v5597 = vmul.f32 %v5576, %v5595
    %v5599 = vrot.slane %v5597, 6
    %vm5601 = vcmask 261120
    %v5602 = vsel %vm5601, %v761, %v5599
    %v5603 = vrot.slane %v4905, 2
    %v5605 = vsel %vm5601, %v1452, %v5603
    %v5606 = vrot.slane %v4213, 6
    %v5608 = vsel %vm5601, %v2144, %v5606
    %v5609 = vrot.slane %v3522, 2
    %v5611 = vsel %vm5601, %v2836, %v5609
    %v5613 = vsel %vm5601, %v3522, %v2838
    %v5614 = vrot.slane %v2144, 2
    %v5616 = vsel %vm5601, %v4213, %v5614
    %v5617 = vrot.slane %v1452, 6
    %v5619 = vsel %vm5601, %v4905, %v5617
    %v5620 = vrot.slane %v761, 2
    %v5622 = vsel %vm5601, %v5597, %v5620
    %v5623 = vmul.f32 %v5602, %v5599
    %vm5624 = vcmask 517120
    %v5625 = vsel %vm5624, %v5623, 0.0
    %5626 = vadd.xlane.f32.xlu0 %v5625
    %v5627 = vpop.xlane.xlu0 %5626
    %v5628 = vrot.slane %v5597, 4
    %v5630 = vmul.f32 %v5605, %v5628
    %vm5631 = vcmask 519170
    %v5632 = vsel %vm5631, %v5630, 0.0
    %5633 = vadd.xlane.f32.xlu0 %v5632
    %v5634 = vpop.xlane.xlu0 %5633
    %v5635 = vrot.slane %v5597, 2
    %v5637 = vmul.f32 %v5608, %v5635
    %vm5638 = vcmask 521220
    %v5639 = vsel %vm5638, %v5637, 0.0
    %5640 = vadd.xlane.f32.xlu0 %v5639
    %v5641 = vpop.xlane.xlu0 %5640
    %v5642 = vmul.f32 %v5611, %v5597
    %vm5643 = vcmask 523270
    %v5644 = vsel %vm5643, %v5642, 0.0
    %5645 = vadd.xlane.f32.xlu0 %v5644
    %v5646 = vpop.xlane.xlu0 %5645
    %v5647 = vmul.f32 %v5613, %v5599
    %v5648 = vsel %vm5624, %v5647, 0.0
    %5649 = vadd.xlane.f32.xlu0 %v5648
    %v5650 = vpop.xlane.xlu0 %5649
    %v5651 = vmul.f32 %v5616, %v5628
    %v5652 = vsel %vm5631, %v5651, 0.0
    %5653 = vadd.xlane.f32.xlu0 %v5652
    %v5654 = vpop.xlane.xlu0 %5653
    %v5655 = vmul.f32 %v5619, %v5635
    %v5656 = vsel %vm5638, %v5655, 0.0
    %5657 = vadd.xlane.f32.xlu0 %v5656
    %v5658 = vpop.xlane.xlu0 %5657
    %v5659 = vmul.f32 %v5622, %v5597
    %v5660 = vsel %vm5643, %v5659, 0.0
    %5661 = vadd.xlane.f32.xlu0 %v5660
    %v5662 = vpop.xlane.xlu0 %5661
    %v5664 = vrot.slane %v5634, 2
    %v5667 = vrot.slane %v5641, 4
    %v5670 = vrot.slane %v5646, 6
    %v5673 = vrot.slane %v5654, 2
    %v5676 = vrot.slane %v5658, 4
    %v5679 = vrot.slane %v5662, 6
    %vm5681 = vcmask 7168
    %v5682 = vsel %vm5681, %v5627, %v5664
    %vm5683 = vcmask 15360
    %v5684 = vsel %vm5683, %v5682, %v5667
    %vm5685 = vcmask 23552
    %v5686 = vsel %vm5685, %v5684, %v5670
    %vm5687 = vcmask 31744
    %v5688 = vsel %vm5687, %v5686, %v5650
    %vm5689 = vcmask 39936
    %v5690 = vsel %vm5689, %v5688, %v5673
    %vm5691 = vcmask 48128
    %v5692 = vsel %vm5691, %v5690, %v5676
    %vm5693 = vcmask 56320
    %v5694 = vsel %vm5693, %v5692, %v5679
    %vm5695 = vcmask 58368
    %v5696 = vsel %vm5695, %v5694, -inf
    %5697 = vmax.xlane.f32.xlu0 %v5696
    %v5698 = vpop.xlane.xlu0 %5697
    %v5699 = vsub.f32 %v5694, %v5698
    %v5700 = vmul.f32 %v5699, 1.442695
    %v5701 = vpow.pop %v5700
    %v5702 = vsel %vm5695, %v5701, 0.0
    %5703 = vadd.xlane.f32.xlu0 %v5702
    %v5704 = vpop.xlane.xlu0 %5703
    %v5705 = vrcp.pop %v5704
    %v5706 = vmul.f32 %v5701, %v5705
    %5708 = vset.pattern.permute.xlu0 0
    %5709 = vperm.xlu0 %5708, %v5706
    %v5710 = vpop.permute.xlu0 %5709
    %v5712 = vmul.f32 %v5602, %v5710
    %5713 = vset.pattern.permute.xlu0 1
    %5714 = vperm.xlu0 %5713, %v5706
    %v5715 = vpop.permute.xlu0 %5714
    %v5716 = vrot.slane %v5715, 6
    %v5718 = vmul.f32 %v5605, %v5716
    %v5720 = vrot.slane %v5718, 2
    %v5722 = vadd.f32 %v5712, %v5720
    %5723 = vset.pattern.permute.xlu0 2
    %5724 = vperm.xlu0 %5723, %v5706
    %v5725 = vpop.permute.xlu0 %5724
    %v5726 = vrot.slane %v5725, 4
    %v5728 = vmul.f32 %v5608, %v5726
    %v5730 = vrot.slane %v5728, 4
    %v5732 = vadd.f32 %v5722, %v5730
    %5733 = vset.pattern.permute.xlu0 3
    %5734 = vperm.xlu0 %5733, %v5706
    %v5735 = vpop.permute.xlu0 %5734
    %v5736 = vrot.slane %v5735, 2
    %v5738 = vmul.f32 %v5611, %v5736
    %v5740 = vrot.slane %v5738, 6
    %v5742 = vadd.f32 %v5732, %v5740
    %5743 = vset.pattern.permute.xlu0 4
    %5744 = vperm.xlu0 %5743, %v5706
    %v5745 = vpop.permute.xlu0 %5744
    %v5747 = vmul.f32 %v5613, %v5745
    %v5748 = vadd.f32 %v5742, %v5747
    %5749 = vset.pattern.permute.xlu0 5
    %5750 = vperm.xlu0 %5749, %v5706
    %v5751 = vpop.permute.xlu0 %5750
    %v5752 = vrot.slane %v5751, 6
    %v5754 = vmul.f32 %v5616, %v5752
    %v5756 = vrot.slane %v5754, 2
    %v5758 = vadd.f32 %v5748, %v5756
    %5759 = vset.pattern.permute.xlu0 6
    %5760 = vperm.xlu0 %5759, %v5706
    %v5761 = vpop.permute.xlu0 %5760
    %v5762 = vrot.slane %v5761, 4
    %v5764 = vmul.f32 %v5619, %v5762
    %v5766 = vrot.slane %v5764, 4
    %v5768 = vadd.f32 %v5758, %v5766
    %5769 = vset.pattern.permute.xlu0 7
    %5770 = vperm.xlu0 %5769, %v5706
    %v5771 = vpop.permute.xlu0 %5770
    %v5772 = vrot.slane %v5771, 2
    %v5774 = vmul.f32 %v5622, %v5772
    %v5776 = vrot.slane %v5774, 6
    %v5778 = vadd.f32 %v5768, %v5776
    %5779 = vrot.lane.b32.xlu0 %v5706, 64
    %v5780 = vpop.permute.xlu0 %5779
    %v5782 = vsel %vm79, %v5778, %v5780
    %v5783 = vld [vmem:[#allocation7] sm:$0xff]
    %v5784 = vld [vmem:[#allocation7 + $0x8] sm:$0xff]
    %v5785 = vld [vmem:[#allocation7 + $0x10] sm:$0xff]
    %v5786 = vld [vmem:[#allocation7 + $0x18] sm:$0xff]
    %v5787 = vld [vmem:[#allocation7 + $0x20] sm:$0xff]
    %v5788 = vld [vmem:[#allocation7 + $0x28] sm:$0xff]
    %v5789 = vld [vmem:[#allocation7 + $0x30] sm:$0xff]
    %v5790 = vld [vmem:[#allocation7 + $0x38] sm:$0xff]
    %v5791 = vld [vmem:[#allocation7 + $0x40] sm:$0xff]
    %v5792 = vld [vmem:[%s3] sm:$0x1]
    %v5794 = vlaneseq
    %v5795 = vshrl.u32 %v5794, 7
    %v5796 = vsub.s32 0, %v5795
    %v5797 = vrot.slane %v5792, %v5796
    %vm5799 = vcmask 588800
    %v5801 = vsel %vm5799, %v5782, 0
    %5803 = vmatprep.subr.mxu0 0.0
    %v5804 = vand.u32 %v5783, 4294901760
    %5805 = vmatpush1.msra.mxu0 %v5804
    %5806 = vmatprep.subr.mxu0 0.0
    %v5807 = vand.u32 %v5784, 4294901760
    %5808 = vmatpush1.msra.mxu0 %v5807
    %5809 = vmatprep.subr.mxu0 0.0
    %v5810 = vand.u32 %v5785, 4294901760
    %5811 = vmatpush1.msra.mxu0 %v5810
    %5812 = vmatprep.subr.mxu0 0.0
    %v5813 = vand.u32 %v5786, 4294901760
    %5814 = vmatpush1.msra.mxu0 %v5813
    %5815 = vmatprep.subr.mxu0 0.0
    %v5816 = vand.u32 %v5787, 4294901760
    %5817 = vmatpush1.msra.mxu0 %v5816
    %5818 = vmatprep.subr.mxu0 0.0
    %v5819 = vand.u32 %v5788, 4294901760
    %5820 = vmatpush1.msra.mxu0 %v5819
    %5821 = vmatprep.subr.mxu0 0.0
    %v5822 = vand.u32 %v5789, 4294901760
    %5823 = vmatpush1.msra.mxu0 %v5822
    %5824 = vmatprep.subr.mxu0 0.0
    %v5825 = vand.u32 %v5790, 4294901760
    %5826 = vmatpush1.msra.mxu0 %v5825
    %5827 = vmatprep.subr.mxu0 0.0
    %v5828 = vand.u32 %v5791, 4294901760
    %5829 = vmatpush1.msra.mxu0 %v5828
    %5830 = vmatprep.subr.mxu0 0.0
    %5831 = vmatpush1.msra.mxu0 0.0
    %5832 = vmatprep.subr.mxu0 0.0
    %5833 = vmatpush1.msra.mxu0 0.0
    %5834 = vmatprep.subr.mxu0 0.0
    %5835 = vmatpush1.msra.mxu0 0.0
    %5836 = vmatprep.subr.mxu0 0.0
    %5837 = vmatpush1.msra.mxu0 0.0
    %5838 = vmatprep.subr.mxu0 0.0
    %5839 = vmatpush1.msra.mxu0 0.0
    %5840 = vmatprep.subr.mxu0 0.0
    %5841 = vmatpush1.msra.mxu0 0.0
    %5842 = vmatprep.subr.mxu0 0.0
    %5843 = vmatpush1.msra.mxu0 0.0
    %5844 = vmatprep.subr.mxu0 0.0
    %5845 = vmatpush1.msra.mxu0 0.0
    %5846 = vmatprep.subr.mxu0 0.0
    %5847 = vmatpush1.msra.mxu0 0.0
    %5848 = vmatprep.subr.mxu0 0.0
    %5849 = vmatpush1.msra.mxu0 0.0
    %5850 = vmatprep.subr.mxu0 0.0
    %5851 = vmatpush1.msra.mxu0 0.0
    %5852 = vmatprep.subr.mxu0 0.0
    %5853 = vmatpush1.msra.mxu0 0.0
    %5854 = vmatprep.subr.mxu0 0.0
    %5855 = vmatpush1.msra.mxu0 0.0
    %5856 = vmatprep.subr.mxu0 0.0
    %5857 = vmatpush1.msra.mxu0 0.0
    %5858 = vmatprep.subr.mxu0 0.0
    %5859 = vmatpush1.msra.mxu0 0.0
    %5860 = vmatprep.subr.mxu0 0.0
    %5861 = vmatpush1.msra.mxu0 0.0
    %5862 = vmatprep.subr.mxu0 0.0
    %5863 = vmatpush1.msra.mxu0 0.0
    %5864 = vmatprep.subr.mxu0 0.0
    %5865 = vmatpush1.msra.mxu0 0.0
    %5866 = vmatprep.subr.mxu0 0.0
    %5867 = vmatpush1.msra.mxu0 0.0
    %5868 = vmatprep.subr.mxu0 0.0
    %5869 = vmatpush1.msra.mxu0 0.0
    %5870 = vmatprep.subr.mxu0 0.0
    %5871 = vmatpush1.msra.mxu0 0.0
    %5872 = vmatprep.subr.mxu0 0.0
    %5873 = vmatpush1.msra.mxu0 0.0
    %5874 = vmatprep.subr.mxu0 0.0
    %5875 = vmatpush1.msra.mxu0 0.0
    %5876 = vmatprep.mubr.f32.mxu0 0.0
    %v5877 = vand.u32 %v5801, 4294901760
    %v5878 = vsub.f32 %v5801, %v5877
    %v5879 = vand.u32 %v5878, 4294901760
    %v5880 = vsub.f32 %v5878, %v5879
    %v5881 = vand.u32 %v5880, 4294901760
    %5882 = vmatmul.mubr.f32.gmra.mrb[0].mxu0 %v5881
    %v5883 = vpop.f32.mrb[0].mxu0
    %v5884 = vadd.f32 %v5797, %v5883
    %v5885 = vpop.f32.mrb[0].mxu0
    %5886 = vdwg.mxu0
    %5887 = vmatprep.subr.mxu0 0.0
    %v5888 = vand.u32 %v5783, 4294901760
    %v5889 = vsub.f32 %v5783, %v5888
    %v5890 = vand.u32 %v5889, 4294901760
    %v5891 = vsub.f32 %v5889, %v5890
    %v5892 = vand.u32 %v5891, 4294901760
    %5893 = vmatpush1.msra.mxu0 %v5892
    %5894 = vmatprep.subr.mxu0 0.0
    %v5895 = vand.u32 %v5784, 4294901760
    %v5896 = vsub.f32 %v5784, %v5895
    %v5897 = vand.u32 %v5896, 4294901760
    %v5898 = vsub.f32 %v5896, %v5897
    %v5899 = vand.u32 %v5898, 4294901760
    %5900 = vmatpush1.msra.mxu0 %v5899
    %5901 = vmatprep.subr.mxu0 0.0
    %v5902 = vand.u32 %v5785, 4294901760
    %v5903 = vsub.f32 %v5785, %v5902
    %v5904 = vand.u32 %v5903, 4294901760
    %v5905 = vsub.f32 %v5903, %v5904
    %v5906 = vand.u32 %v5905, 4294901760
    %5907 = vmatpush1.msra.mxu0 %v5906
    %5908 = vmatprep.subr.mxu0 0.0
    %v5909 = vand.u32 %v5786, 4294901760
    %v5910 = vsub.f32 %v5786, %v5909
    %v5911 = vand.u32 %v5910, 4294901760
    %v5912 = vsub.f32 %v5910, %v5911
    %v5913 = vand.u32 %v5912, 4294901760
    %5914 = vmatpush1.msra.mxu0 %v5913
    %5915 = vmatprep.subr.mxu0 0.0
    %v5916 = vand.u32 %v5787, 4294901760
    %v5917 = vsub.f32 %v5787, %v5916
    %v5918 = vand.u32 %v5917, 4294901760
    %v5919 = vsub.f32 %v5917, %v5918
    %v5920 = vand.u32 %v5919, 4294901760
    %5921 = vmatpush1.msra.mxu0 %v5920
    %5922 = vmatprep.subr.mxu0 0.0
    %v5923 = vand.u32 %v5788, 4294901760
    %v5924 = vsub.f32 %v5788, %v5923
    %v5925 = vand.u32 %v5924, 4294901760
    %v5926 = vsub.f32 %v5924, %v5925
    %v5927 = vand.u32 %v5926, 4294901760
    %5928 = vmatpush1.msra.mxu0 %v5927
    %5929 = vmatprep.subr.mxu0 0.0
    %v5930 = vand.u32 %v5789, 4294901760
    %v5931 = vsub.f32 %v5789, %v5930
    %v5932 = vand.u32 %v5931, 4294901760
    %v5933 = vsub.f32 %v5931, %v5932
    %v5934 = vand.u32 %v5933, 4294901760
    %5935 = vmatpush1.msra.mxu0 %v5934
    %5936 = vmatprep.subr.mxu0 0.0
    %v5937 = vand.u32 %v5790, 4294901760
    %v5938 = vsub.f32 %v5790, %v5937
    %v5939 = vand.u32 %v5938, 4294901760
    %v5940 = vsub.f32 %v5938, %v5939
    %v5941 = vand.u32 %v5940, 4294901760
    %5942 = vmatpush1.msra.mxu0 %v5941
    %5943 = vmatprep.subr.mxu0 0.0
    %v5944 = vand.u32 %v5791, 4294901760
    %v5945 = vsub.f32 %v5791, %v5944
    %v5946 = vand.u32 %v5945, 4294901760
    %v5947 = vsub.f32 %v5945, %v5946
    %v5948 = vand.u32 %v5947, 4294901760
    %5949 = vmatpush1.msra.mxu0 %v5948
    %5950 = vmatprep.subr.mxu0 0.0
    %5951 = vmatpush1.msra.mxu0 0.0
    %5952 = vmatprep.subr.mxu0 0.0
    %5953 = vmatpush1.msra.mxu0 0.0
    %5954 = vmatprep.subr.mxu0 0.0
    %5955 = vmatpush1.msra.mxu0 0.0
    %5956 = vmatprep.subr.mxu0 0.0
    %5957 = vmatpush1.msra.mxu0 0.0
    %5958 = vmatprep.subr.mxu0 0.0
    %5959 = vmatpush1.msra.mxu0 0.0
    %5960 = vmatprep.subr.mxu0 0.0
    %5961 = vmatpush1.msra.mxu0 0.0
    %5962 = vmatprep.subr.mxu0 0.0
    %5963 = vmatpush1.msra.mxu0 0.0
    %5964 = vmatprep.subr.mxu0 0.0
    %5965 = vmatpush1.msra.mxu0 0.0
    %5966 = vmatprep.subr.mxu0 0.0
    %5967 = vmatpush1.msra.mxu0 0.0
    %5968 = vmatprep.subr.mxu0 0.0
    %5969 = vmatpush1.msra.mxu0 0.0
    %5970 = vmatprep.subr.mxu0 0.0
    %5971 = vmatpush1.msra.mxu0 0.0
    %5972 = vmatprep.subr.mxu0 0.0
    %5973 = vmatpush1.msra.mxu0 0.0
    %5974 = vmatprep.subr.mxu0 0.0
    %5975 = vmatpush1.msra.mxu0 0.0
    %5976 = vmatprep.subr.mxu0 0.0
    %5977 = vmatpush1.msra.mxu0 0.0
    %5978 = vmatprep.subr.mxu0 0.0
    %5979 = vmatpush1.msra.mxu0 0.0
    %5980 = vmatprep.subr.mxu0 0.0
    %5981 = vmatpush1.msra.mxu0 0.0
    %5982 = vmatprep.subr.mxu0 0.0
    %5983 = vmatpush1.msra.mxu0 0.0
    %5984 = vmatprep.subr.mxu0 0.0
    %5985 = vmatpush1.msra.mxu0 0.0
    %5986 = vmatprep.subr.mxu0 0.0
    %5987 = vmatpush1.msra.mxu0 0.0
    %5988 = vmatprep.subr.mxu0 0.0
    %5989 = vmatpush1.msra.mxu0 0.0
    %5990 = vmatprep.subr.mxu0 0.0
    %5991 = vmatpush1.msra.mxu0 0.0
    %5992 = vmatprep.subr.mxu0 0.0
    %5993 = vmatpush1.msra.mxu0 0.0
    %5994 = vmatprep.subr.mxu0 0.0
    %5995 = vmatpush1.msra.mxu0 0.0
    %5996 = vmatprep.mubr.f32.mxu0 0.0
    %v5997 = vand.u32 %v5801, 4294901760
    %5998 = vmatmul.mubr.f32.gmra.mrb[0].mxu0 %v5997
    %v5999 = vpop.f32.mrb[0].mxu0
    %v6000 = vadd.f32 %v5884, %v5999
    %v6001 = vpop.f32.mrb[0].mxu0
    %6002 = vdwg.mxu0
    %6003 = vmatprep.subr.mxu0 0.0
    %v6004 = vand.u32 %v5783, 4294901760
    %v6005 = vsub.f32 %v5783, %v6004
    %6006 = vmatpush1.msra.mxu0 %v6005
    %6007 = vmatprep.subr.mxu0 0.0
    %v6008 = vand.u32 %v5784, 4294901760
    %v6009 = vsub.f32 %v5784, %v6008
    %6010 = vmatpush1.msra.mxu0 %v6009
    %6011 = vmatprep.subr.mxu0 0.0
    %v6012 = vand.u32 %v5785, 4294901760
    %v6013 = vsub.f32 %v5785, %v6012
    %6014 = vmatpush1.msra.mxu0 %v6013
    %6015 = vmatprep.subr.mxu0 0.0
    %v6016 = vand.u32 %v5786, 4294901760
    %v6017 = vsub.f32 %v5786, %v6016
    %6018 = vmatpush1.msra.mxu0 %v6017
    %6019 = vmatprep.subr.mxu0 0.0
    %v6020 = vand.u32 %v5787, 4294901760
    %v6021 = vsub.f32 %v5787, %v6020
    %6022 = vmatpush1.msra.mxu0 %v6021
    %6023 = vmatprep.subr.mxu0 0.0
    %v6024 = vand.u32 %v5788, 4294901760
    %v6025 = vsub.f32 %v5788, %v6024
    %6026 = vmatpush1.msra.mxu0 %v6025
    %6027 = vmatprep.subr.mxu0 0.0
    %v6028 = vand.u32 %v5789, 4294901760
    %v6029 = vsub.f32 %v5789, %v6028
    %6030 = vmatpush1.msra.mxu0 %v6029
    %6031 = vmatprep.subr.mxu0 0.0
    %v6032 = vand.u32 %v5790, 4294901760
    %v6033 = vsub.f32 %v5790, %v6032
    %6034 = vmatpush1.msra.mxu0 %v6033
    %6035 = vmatprep.subr.mxu0 0.0
    %v6036 = vand.u32 %v5791, 4294901760
    %v6037 = vsub.f32 %v5791, %v6036
    %6038 = vmatpush1.msra.mxu0 %v6037
    %6039 = vmatprep.subr.mxu0 0.0
    %6040 = vmatpush1.msra.mxu0 0.0
    %6041 = vmatprep.subr.mxu0 0.0
    %6042 = vmatpush1.msra.mxu0 0.0
    %6043 = vmatprep.subr.mxu0 0.0
    %6044 = vmatpush1.msra.mxu0 0.0
    %6045 = vmatprep.subr.mxu0 0.0
    %6046 = vmatpush1.msra.mxu0 0.0
    %6047 = vmatprep.subr.mxu0 0.0
    %6048 = vmatpush1.msra.mxu0 0.0
    %6049 = vmatprep.subr.mxu0 0.0
    %6050 = vmatpush1.msra.mxu0 0.0
    %6051 = vmatprep.subr.mxu0 0.0
    %6052 = vmatpush1.msra.mxu0 0.0
    %6053 = vmatprep.subr.mxu0 0.0
    %6054 = vmatpush1.msra.mxu0 0.0
    %6055 = vmatprep.subr.mxu0 0.0
    %6056 = vmatpush1.msra.mxu0 0.0
    %6057 = vmatprep.subr.mxu0 0.0
    %6058 = vmatpush1.msra.mxu0 0.0
    %6059 = vmatprep.subr.mxu0 0.0
    %6060 = vmatpush1.msra.mxu0 0.0
    %6061 = vmatprep.subr.mxu0 0.0
    %6062 = vmatpush1.msra.mxu0 0.0
    %6063 = vmatprep.subr.mxu0 0.0
    %6064 = vmatpush1.msra.mxu0 0.0
    %6065 = vmatprep.subr.mxu0 0.0
    %6066 = vmatpush1.msra.mxu0 0.0
    %6067 = vmatprep.subr.mxu0 0.0
    %6068 = vmatpush1.msra.mxu0 0.0
    %6069 = vmatprep.subr.mxu0 0.0
    %6070 = vmatpush1.msra.mxu0 0.0
    %6071 = vmatprep.subr.mxu0 0.0
    %6072 = vmatpush1.msra.mxu0 0.0
    %6073 = vmatprep.subr.mxu0 0.0
    %6074 = vmatpush1.msra.mxu0 0.0
    %6075 = vmatprep.subr.mxu0 0.0
    %6076 = vmatpush1.msra.mxu0 0.0
    %6077 = vmatprep.subr.mxu0 0.0
    %6078 = vmatpush1.msra.mxu0 0.0
    %6079 = vmatprep.subr.mxu0 0.0
    %6080 = vmatpush1.msra.mxu0 0.0
    %6081 = vmatprep.subr.mxu0 0.0
    %6082 = vmatpush1.msra.mxu0 0.0
    %6083 = vmatprep.subr.mxu0 0.0
    %6084 = vmatpush1.msra.mxu0 0.0
    %6085 = vmatprep.mubr.f32.mxu0 0.0
    %v6086 = vand.u32 %v5801, 4294901760
    %v6087 = vsub.f32 %v5801, %v6086
    %6088 = vmatmul.mubr.f32.gmra.mrb[0].mxu0 %v6087
    %v6089 = vpop.f32.mrb[0].mxu0
    %v6090 = vadd.f32 %v6000, %v6089
    %v6091 = vpop.f32.mrb[0].mxu0
    %6092 = vdwg.mxu0
    %6093 = vmatprep.subr.mxu0 0.0
    %v6094 = vand.u32 %v5783, 4294901760
    %6095 = vmatpush1.msra.mxu0 %v6094
    %6096 = vmatprep.subr.mxu0 0.0
    %v6097 = vand.u32 %v5784, 4294901760
    %6098 = vmatpush1.msra.mxu0 %v6097
    %6099 = vmatprep.subr.mxu0 0.0
    %v6100 = vand.u32 %v5785, 4294901760
    %6101 = vmatpush1.msra.mxu0 %v6100
    %6102 = vmatprep.subr.mxu0 0.0
    %v6103 = vand.u32 %v5786, 4294901760
    %6104 = vmatpush1.msra.mxu0 %v6103
    %6105 = vmatprep.subr.mxu0 0.0
    %v6106 = vand.u32 %v5787, 4294901760
    %6107 = vmatpush1.msra.mxu0 %v6106
    %6108 = vmatprep.subr.mxu0 0.0
    %v6109 = vand.u32 %v5788, 4294901760
    %6110 = vmatpush1.msra.mxu0 %v6109
    %6111 = vmatprep.subr.mxu0 0.0
    %v6112 = vand.u32 %v5789, 4294901760
    %6113 = vmatpush1.msra.mxu0 %v6112
    %6114 = vmatprep.subr.mxu0 0.0
    %v6115 = vand.u32 %v5790, 4294901760
    %6116 = vmatpush1.msra.mxu0 %v6115
    %6117 = vmatprep.subr.mxu0 0.0
    %v6118 = vand.u32 %v5791, 4294901760
    %6119 = vmatpush1.msra.mxu0 %v6118
    %6120 = vmatprep.subr.mxu0 0.0
    %6121 = vmatpush1.msra.mxu0 0.0
    %6122 = vmatprep.subr.mxu0 0.0
    %6123 = vmatpush1.msra.mxu0 0.0
    %6124 = vmatprep.subr.mxu0 0.0
    %6125 = vmatpush1.msra.mxu0 0.0
    %6126 = vmatprep.subr.mxu0 0.0
    %6127 = vmatpush1.msra.mxu0 0.0
    %6128 = vmatprep.subr.mxu0 0.0
    %6129 = vmatpush1.msra.mxu0 0.0
    %6130 = vmatprep.subr.mxu0 0.0
    %6131 = vmatpush1.msra.mxu0 0.0
    %6132 = vmatprep.subr.mxu0 0.0
    %6133 = vmatpush1.msra.mxu0 0.0
    %6134 = vmatprep.subr.mxu0 0.0
    %6135 = vmatpush1.msra.mxu0 0.0
    %6136 = vmatprep.subr.mxu0 0.0
    %6137 = vmatpush1.msra.mxu0 0.0
    %6138 = vmatprep.subr.mxu0 0.0
    %6139 = vmatpush1.msra.mxu0 0.0
    %6140 = vmatprep.subr.mxu0 0.0
    %6141 = vmatpush1.msra.mxu0 0.0
    %6142 = vmatprep.subr.mxu0 0.0
    %6143 = vmatpush1.msra.mxu0 0.0
    %6144 = vmatprep.subr.mxu0 0.0
    %6145 = vmatpush1.msra.mxu0 0.0
    %6146 = vmatprep.subr.mxu0 0.0
    %6147 = vmatpush1.msra.mxu0 0.0
    %6148 = vmatprep.subr.mxu0 0.0
    %6149 = vmatpush1.msra.mxu0 0.0
    %6150 = vmatprep.subr.mxu0 0.0
    %6151 = vmatpush1.msra.mxu0 0.0
    %6152 = vmatprep.subr.mxu0 0.0
    %6153 = vmatpush1.msra.mxu0 0.0
    %6154 = vmatprep.subr.mxu0 0.0
    %6155 = vmatpush1.msra.mxu0 0.0
    %6156 = vmatprep.subr.mxu0 0.0
    %6157 = vmatpush1.msra.mxu0 0.0
    %6158 = vmatprep.subr.mxu0 0.0
    %6159 = vmatpush1.msra.mxu0 0.0
    %6160 = vmatprep.subr.mxu0 0.0
    %6161 = vmatpush1.msra.mxu0 0.0
    %6162 = vmatprep.subr.mxu0 0.0
    %6163 = vmatpush1.msra.mxu0 0.0
    %6164 = vmatprep.subr.mxu0 0.0
    %6165 = vmatpush1.msra.mxu0 0.0
    %6166 = vmatprep.mubr.f32.mxu0 0.0
    %v6167 = vand.u32 %v5801, 4294901760
    %v6168 = vsub.f32 %v5801, %v6167
    %v6169 = vand.u32 %v6168, 4294901760
    %6170 = vmatmul.mubr.f32.gmra.mrb[0].mxu0 %v6169
    %v6171 = vpop.f32.mrb[0].mxu0
    %v6172 = vadd.f32 %v6090, %v6171
    %v6173 = vpop.f32.mrb[0].mxu0
    %6174 = vdwg.mxu0
    %6175 = vmatprep.subr.mxu0 0.0
    %v6176 = vand.u32 %v5783, 4294901760
    %v6177 = vsub.f32 %v5783, %v6176
    %v6178 = vand.u32 %v6177, 4294901760
    %6179 = vmatpush1.msra.mxu0 %v6178
    %6180 = vmatprep.subr.mxu0 0.0
    %v6181 = vand.u32 %v5784, 4294901760
    %v6182 = vsub.f32 %v5784, %v6181
    %v6183 = vand.u32 %v6182, 4294901760
    %6184 = vmatpush1.msra.mxu0 %v6183
    %6185 = vmatprep.subr.mxu0 0.0
    %v6186 = vand.u32 %v5785, 4294901760
    %v6187 = vsub.f32 %v5785, %v6186
    %v6188 = vand.u32 %v6187, 4294901760
    %6189 = vmatpush1.msra.mxu0 %v6188
    %6190 = vmatprep.subr.mxu0 0.0
    %v6191 = vand.u32 %v5786, 4294901760
    %v6192 = vsub.f32 %v5786, %v6191
    %v6193 = vand.u32 %v6192, 4294901760
    %6194 = vmatpush1.msra.mxu0 %v6193
    %6195 = vmatprep.subr.mxu0 0.0
    %v6196 = vand.u32 %v5787, 4294901760
    %v6197 = vsub.f32 %v5787, %v6196
    %v6198 = vand.u32 %v6197, 4294901760
    %6199 = vmatpush1.msra.mxu0 %v6198
    %6200 = vmatprep.subr.mxu0 0.0
    %v6201 = vand.u32 %v5788, 4294901760
    %v6202 = vsub.f32 %v5788, %v6201
    %v6203 = vand.u32 %v6202, 4294901760
    %6204 = vmatpush1.msra.mxu0 %v6203
    %6205 = vmatprep.subr.mxu0 0.0
    %v6206 = vand.u32 %v5789, 4294901760
    %v6207 = vsub.f32 %v5789, %v6206
    %v6208 = vand.u32 %v6207, 4294901760
    %6209 = vmatpush1.msra.mxu0 %v6208
    %6210 = vmatprep.subr.mxu0 0.0
    %v6211 = vand.u32 %v5790, 4294901760
    %v6212 = vsub.f32 %v5790, %v6211
    %v6213 = vand.u32 %v6212, 4294901760
    %6214 = vmatpush1.msra.mxu0 %v6213
    %6215 = vmatprep.subr.mxu0 0.0
    %v6216 = vand.u32 %v5791, 4294901760
    %v6217 = vsub.f32 %v5791, %v6216
    %v6218 = vand.u32 %v6217, 4294901760
    %6219 = vmatpush1.msra.mxu0 %v6218
    %6220 = vmatprep.subr.mxu0 0.0
    %6221 = vmatpush1.msra.mxu0 0.0
    %6222 = vmatprep.subr.mxu0 0.0
    %6223 = vmatpush1.msra.mxu0 0.0
    %6224 = vmatprep.subr.mxu0 0.0
    %6225 = vmatpush1.msra.mxu0 0.0
    %6226 = vmatprep.subr.mxu0 0.0
    %6227 = vmatpush1.msra.mxu0 0.0
    %6228 = vmatprep.subr.mxu0 0.0
    %6229 = vmatpush1.msra.mxu0 0.0
    %6230 = vmatprep.subr.mxu0 0.0
    %6231 = vmatpush1.msra.mxu0 0.0
    %6232 = vmatprep.subr.mxu0 0.0
    %6233 = vmatpush1.msra.mxu0 0.0
    %6234 = vmatprep.subr.mxu0 0.0
    %6235 = vmatpush1.msra.mxu0 0.0
    %6236 = vmatprep.subr.mxu0 0.0
    %6237 = vmatpush1.msra.mxu0 0.0
    %6238 = vmatprep.subr.mxu0 0.0
    %6239 = vmatpush1.msra.mxu0 0.0
    %6240 = vmatprep.subr.mxu0 0.0
    %6241 = vmatpush1.msra.mxu0 0.0
    %6242 = vmatprep.subr.mxu0 0.0
    %6243 = vmatpush1.msra.mxu0 0.0
    %6244 = vmatprep.subr.mxu0 0.0
    %6245 = vmatpush1.msra.mxu0 0.0
    %6246 = vmatprep.subr.mxu0 0.0
    %6247 = vmatpush1.msra.mxu0 0.0
    %6248 = vmatprep.subr.mxu0 0.0
    %6249 = vmatpush1.msra.mxu0 0.0
    %6250 = vmatprep.subr.mxu0 0.0
    %6251 = vmatpush1.msra.mxu0 0.0
    %6252 = vmatprep.subr.mxu0 0.0
    %6253 = vmatpush1.msra.mxu0 0.0
    %6254 = vmatprep.subr.mxu0 0.0
    %6255 = vmatpush1.msra.mxu0 0.0
    %6256 = vmatprep.subr.mxu0 0.0
    %6257 = vmatpush1.msra.mxu0 0.0
    %6258 = vmatprep.subr.mxu0 0.0
    %6259 = vmatpush1.msra.mxu0 0.0
    %6260 = vmatprep.subr.mxu0 0.0
    %6261 = vmatpush1.msra.mxu0 0.0
    %6262 = vmatprep.subr.mxu0 0.0
    %6263 = vmatpush1.msra.mxu0 0.0
    %6264 = vmatprep.subr.mxu0 0.0
    %6265 = vmatpush1.msra.mxu0 0.0
    %6266 = vmatprep.mubr.f32.mxu0 0.0
    %v6267 = vand.u32 %v5801, 4294901760
    %6268 = vmatmul.mubr.f32.gmra.mrb[0].mxu0 %v6267
    %v6269 = vpop.f32.mrb[0].mxu0
    %v6270 = vadd.f32 %v6172, %v6269
    %v6271 = vpop.f32.mrb[0].mxu0
    %6272 = vdwg.mxu0
    %6273 = vmatprep.subr.mxu0 0.0
    %v6274 = vand.u32 %v5783, 4294901760
    %6275 = vmatpush1.msra.mxu0 %v6274
    %6276 = vmatprep.subr.mxu0 0.0
    %v6277 = vand.u32 %v5784, 4294901760
    %6278 = vmatpush1.msra.mxu0 %v6277
    %6279 = vmatprep.subr.mxu0 0.0
    %v6280 = vand.u32 %v5785, 4294901760
    %6281 = vmatpush1.msra.mxu0 %v6280
    %6282 = vmatprep.subr.mxu0 0.0
    %v6283 = vand.u32 %v5786, 4294901760
    %6284 = vmatpush1.msra.mxu0 %v6283
    %6285 = vmatprep.subr.mxu0 0.0
    %v6286 = vand.u32 %v5787, 4294901760
    %6287 = vmatpush1.msra.mxu0 %v6286
    %6288 = vmatprep.subr.mxu0 0.0
    %v6289 = vand.u32 %v5788, 4294901760
    %6290 = vmatpush1.msra.mxu0 %v6289
    %6291 = vmatprep.subr.mxu0 0.0
    %v6292 = vand.u32 %v5789, 4294901760
    %6293 = vmatpush1.msra.mxu0 %v6292
    %6294 = vmatprep.subr.mxu0 0.0
    %v6295 = vand.u32 %v5790, 4294901760
    %6296 = vmatpush1.msra.mxu0 %v6295
    %6297 = vmatprep.subr.mxu0 0.0
    %v6298 = vand.u32 %v5791, 4294901760
    %6299 = vmatpush1.msra.mxu0 %v6298
    %6300 = vmatprep.subr.mxu0 0.0
    %6301 = vmatpush1.msra.mxu0 0.0
    %6302 = vmatprep.subr.mxu0 0.0
    %6303 = vmatpush1.msra.mxu0 0.0
    %6304 = vmatprep.subr.mxu0 0.0
    %6305 = vmatpush1.msra.mxu0 0.0
    %6306 = vmatprep.subr.mxu0 0.0
    %6307 = vmatpush1.msra.mxu0 0.0
    %6308 = vmatprep.subr.mxu0 0.0
    %6309 = vmatpush1.msra.mxu0 0.0
    %6310 = vmatprep.subr.mxu0 0.0
    %6311 = vmatpush1.msra.mxu0 0.0
    %6312 = vmatprep.subr.mxu0 0.0
    %6313 = vmatpush1.msra.mxu0 0.0
    %6314 = vmatprep.subr.mxu0 0.0
    %6315 = vmatpush1.msra.mxu0 0.0
    %6316 = vmatprep.subr.mxu0 0.0
    %6317 = vmatpush1.msra.mxu0 0.0
    %6318 = vmatprep.subr.mxu0 0.0
    %6319 = vmatpush1.msra.mxu0 0.0
    %6320 = vmatprep.subr.mxu0 0.0
    %6321 = vmatpush1.msra.mxu0 0.0
    %6322 = vmatprep.subr.mxu0 0.0
    %6323 = vmatpush1.msra.mxu0 0.0
    %6324 = vmatprep.subr.mxu0 0.0
    %6325 = vmatpush1.msra.mxu0 0.0
    %6326 = vmatprep.subr.mxu0 0.0
    %6327 = vmatpush1.msra.mxu0 0.0
    %6328 = vmatprep.subr.mxu0 0.0
    %6329 = vmatpush1.msra.mxu0 0.0
    %6330 = vmatprep.subr.mxu0 0.0
    %6331 = vmatpush1.msra.mxu0 0.0
    %6332 = vmatprep.subr.mxu0 0.0
    %6333 = vmatpush1.msra.mxu0 0.0
    %6334 = vmatprep.subr.mxu0 0.0
    %6335 = vmatpush1.msra.mxu0 0.0
    %6336 = vmatprep.subr.mxu0 0.0
    %6337 = vmatpush1.msra.mxu0 0.0
    %6338 = vmatprep.subr.mxu0 0.0
    %6339 = vmatpush1.msra.mxu0 0.0
    %6340 = vmatprep.subr.mxu0 0.0
    %6341 = vmatpush1.msra.mxu0 0.0
    %6342 = vmatprep.subr.mxu0 0.0
    %6343 = vmatpush1.msra.mxu0 0.0
    %6344 = vmatprep.subr.mxu0 0.0
    %6345 = vmatpush1.msra.mxu0 0.0
    %6346 = vmatprep.mubr.f32.mxu0 0.0
    %v6347 = vand.u32 %v5801, 4294901760
    %6348 = vmatmul.mubr.f32.gmra.mrb[0].mxu0 %v6347
    %v6349 = vpop.f32.mrb[0].mxu0
    %v6350 = vadd.f32 %v6270, %v6349
    %v6351 = vpop.f32.mrb[0].mxu0
    %6352 = vdwg.mxu0
    %6353 = vst [vmem:[#allocation8] sm:$0x3] %v6350
    // Predicated region
    $region30: #{tpu_custom_call.1} parent=1 // pred_check
      _
    $region31: #{tpu_custom_call.1} parent=1 // pred_check_branch
      %6355 = sbr.rel (0) target = $region33
    $region32: #{tpu_custom_call.1} parent=1 // pred_region
      %s6357 = ssub.s32 32, 32
      %6358 = vsyncadd [#allocation4], %s6357
      %s6360 = sshll.u32 [#allocation8], 4
      %s6361 = int_to_ptr.vmem [resolvable:$true] %s6360
      %6363 = dma.vmem_to_hbm [thread:$0]  %s6361, 32, %s4, [#allocation4]
    $region33: #{tpu_custom_call.1} parent=1 // pred_fallthru
      _
    // Predicated region
    $region34: #{tpu_custom_call.1} parent=1 // pred_check
      _
    $region35: #{tpu_custom_call.1} parent=1 // pred_check_branch
      %6365 = sbr.rel (0) target = $region37
    $region36: #{tpu_custom_call.1} parent=1 // pred_region
      %6366 = dma.done [#allocation4], 32
    $region37: #{tpu_custom_call.1} parent=1 // pred_fallthru
      _
    %6367 = vsyncpa [#allocation3], 1
    %6368 = vsyncpa [#allocation6], 1
    %6369 = vsyncpa [#allocation4], 1

</llo_original>
